<compile_context>
chip_gen: v5e
topology: v5e:2x2
jax: 0.10.0
libtpu: 0.0.40
codegen_flags: <defaults>
</compile_context>

<pallas_src>
import jax
import jax.numpy as jnp
from jax import lax
from jax.experimental import pallas as pl
from jax.experimental.pallas import tpu as pltpu


NS_ITERS = 16        # Newton-Schulz iterations for the PSD matrix square root
EPS_REG = 1e-7       # mirrors torch.clamp(eigenvalues, min=1e-7)


def _round_up(x, m):
    return (x + m - 1) // m * m


def _eye(d, dtype=jnp.float32):
    r = lax.broadcasted_iota(jnp.int32, (d, d), 0)
    c = lax.broadcasted_iota(jnp.int32, (d, d), 1)
    return (r == c).astype(dtype)


def _ns_sqrtm(a, eye):
    """Newton-Schulz approximation of the symmetric-PSD matrix sqrt.

    Replaces torch.linalg.eigh + sqrt(clamp(e, 1e-7)); purely DxD MXU
    matmuls so it stays inside the Pallas kernel.
    """
    norm = jnp.maximum(jnp.sqrt(jnp.sum(a * a)), 1e-12)   # Frobenius norm
    y = a / norm
    z = eye

    def body(_, carry):
        y, z = carry
        t = 0.5 * (3.0 * eye - jnp.dot(z, y, preferred_element_type=jnp.float32))
        y = jnp.dot(y, t, preferred_element_type=jnp.float32)
        z = jnp.dot(t, z, preferred_element_type=jnp.float32)
        return y, z

    y, _ = lax.fori_loop(0, NS_ITERS, body, (y, z), unroll=True)
    return y * jnp.sqrt(norm)


# ---------------------------------------------------------------------------
# Fused:  x @ W_enc + b_enc  ->  L2 normalize  ->  x @ W_proj + b_proj
# ---------------------------------------------------------------------------

def _enc_norm_proj_kernel(x_ref, we_ref, be_ref, wp_ref, bp_ref,
                          feat_ref, z_ref, acc_ref):
    k = pl.program_id(1)

    @pl.when(k == 0)
    def _():
        acc_ref[...] = jnp.zeros_like(acc_ref)

    # bf16 operands, f32 accumulation (native MXU path).
    acc_ref[...] += jnp.dot(x_ref[...], we_ref[...],
                            preferred_element_type=jnp.float32)

    @pl.when(k == pl.num_programs(1) - 1)
    def _():
        f = acc_ref[...] + be_ref[...]
        inv = lax.rsqrt(jnp.sum(f * f, axis=-1, keepdims=True) + 1e-12)
        fn = f * inv                                   # L2-normalised features
        feat_ref[...] = fn
        # LiearProjector (the module's own parameter) kept in f32.
        z_ref[...] = (jnp.dot(fn, wp_ref[...], preferred_element_type=jnp.float32)
                      + bp_ref[...])


def fused_encode_project(x, w_enc, b_enc, w_proj, b_proj,
                         *, tm_max=128, tk_max=512):
    m, k = x.shape
    d = w_enc.shape[1]

    tm = min(tm_max, _round_up(m, 8))
    mp = _round_up(m, tm)
    kp128 = _round_up(k, 128)
    tk = kp128 if kp128 <= 2 * tk_max else tk_max      # single K step if small
    kp = _round_up(k, tk)

    x_p = jnp.pad(x, ((0, mp - m), (0, kp - k))).astype(jnp.bfloat16)
    w_enc_p = jnp.pad(w_enc, ((0, kp - k), (0, 0))).astype(jnp.bfloat16)
    b_enc_2d = b_enc.reshape(1, d).astype(jnp.float32)
    b_proj_2d = b_proj.reshape(1, d).astype(jnp.float32)

    feat, z = pl.pallas_call(
        _enc_norm_proj_kernel,
        grid_spec=pltpu.PrefetchScalarGridSpec(
            num_scalar_prefetch=0,
            grid=(mp // tm, kp // tk),
            in_specs=[
                pl.BlockSpec((tm, tk), lambda i, kk: (i, kk)),
                pl.BlockSpec((tk, d), lambda i, kk: (kk, 0)),
                pl.BlockSpec((1, d), lambda i, kk: (0, 0)),
                pl.BlockSpec((d, d), lambda i, kk: (0, 0)),
                pl.BlockSpec((1, d), lambda i, kk: (0, 0)),
            ],
            out_specs=[
                pl.BlockSpec((tm, d), lambda i, kk: (i, 0)),
                pl.BlockSpec((tm, d), lambda i, kk: (i, 0)),
            ],
            scratch_shapes=[pltpu.VMEM((tm, d), jnp.float32)],
        ),
        out_shape=(
            jax.ShapeDtypeStruct((mp, d), jnp.float32),
            jax.ShapeDtypeStruct((mp, d), jnp.float32),
        ),
        compiler_params=pltpu.CompilerParams(
            dimension_semantics=("parallel", "arbitrary")),
    )(x_p, w_enc_p, b_enc_2d, w_proj.astype(jnp.float32), b_proj_2d)
    return feat[:m], z[:m]


# ---------------------------------------------------------------------------
# Per-class text statistics: mean, diag(C2), C2^{1/2}   (computed once/class)
# ---------------------------------------------------------------------------

def _text_stats_kernel(t_ref, m2_ref, c2diag_ref, c2half_ref):
    t = t_ref[0]                                   # (desc_per_batch, D)
    p, d = t.shape
    inv_sqrt_denom = float(max(p - 1, 1)) ** -0.5  # guard desc_per_batch == 1
    m2 = jnp.mean(t, axis=0, keepdims=True)
    tcn = (t - m2) * inv_sqrt_denom                # centered / sqrt(n-1)
    c2 = lax.dot_general(tcn, tcn, (((0,), (0,)), ((), ())),
                         preferred_element_type=jnp.float32)
    eye = _eye(d)
    m2_ref[0] = m2
    c2diag_ref[0] = jnp.sum(tcn * tcn, axis=0, keepdims=True)   # == diag(C2)
    c2half_ref[0] = _ns_sqrtm(c2 + EPS_REG * eye, eye)


def pallas_text_stats(txt_z3):
    n_cls, p, d = txt_z3.shape
    return pl.pallas_call(
        _text_stats_kernel,
        grid_spec=pltpu.PrefetchScalarGridSpec(
            num_scalar_prefetch=0,
            grid=(n_cls,),
            in_specs=[pl.BlockSpec((1, p, d), lambda c: (c, 0, 0))],
            out_specs=[
                pl.BlockSpec((1, 1, d), lambda c: (c, 0, 0)),
                pl.BlockSpec((1, 1, d), lambda c: (c, 0, 0)),
                pl.BlockSpec((1, d, d), lambda c: (c, 0, 0)),
            ],
        ),
        out_shape=(
            jax.ShapeDtypeStruct((n_cls, 1, d), jnp.float32),
            jax.ShapeDtypeStruct((n_cls, 1, d), jnp.float32),
            jax.ShapeDtypeStruct((n_cls, d, d), jnp.float32),
        ),
        compiler_params=pltpu.CompilerParams(dimension_semantics=("parallel",)),
    )(txt_z3)


# ---------------------------------------------------------------------------
# Per-image Gaussian-W2 partials.  Never forms C1: with B = (xc/sqrt(n-1))@C2h
# we have  C2h C1 C2h = B^T B  (exactly symmetric PSD).  The lane-dense (1,D)
# partial row sums to  ||m1-m2||^2 + tr(C1) + tr(C2) - 2*tr(sqrtm(B^T B)).
# ---------------------------------------------------------------------------

def _image_wass_kernel(label_ref, x_ref, m2_ref, c2diag_ref, c2h_ref, part_ref):
    del label_ref  # only used by the index_maps
    x = x_ref[0]                                   # (aug_time, D)
    a, d = x.shape
    inv_sqrt_denom = float(max(a - 1, 1)) ** -0.5  # guard aug_time == 1
    eye = _eye(d)

    m1 = jnp.mean(x, axis=0, keepdims=True)
    xcn = (x - m1) * inv_sqrt_denom                # centered / sqrt(n-1)
    c1diag = jnp.sum(xcn * xcn, axis=0, keepdims=True)          # == diag(C1)

    c2h = c2h_ref[0]                               # C2^{1/2} of this class
    b = jnp.dot(xcn, c2h, preferred_element_type=jnp.float32)   # (a, D)
    temp = lax.dot_general(b, b, (((0,), (0,)), ((), ())),
                           preferred_element_type=jnp.float32)  # C2h C1 C2h
    s = _ns_sqrtm(temp + EPS_REG * eye, eye)       # sqrtm(C2^1/2 C1 C2^1/2)
    sdiag = jnp.sum(s * eye, axis=0, keepdims=True)

    diff = m1 - m2_ref[0]
    part_ref[0] = diff * diff + c1diag + c2diag_ref[0] - 2.0 * sdiag


def pallas_image_wass(img_z3, m2, c2diag, c2half, label):
    bs, a, d = img_z3.shape
    return pl.pallas_call(
        _image_wass_kernel,
        grid_spec=pltpu.PrefetchScalarGridSpec(
            num_scalar_prefetch=1,
            grid=(bs,),
            in_specs=[
                pl.BlockSpec((1, a, d), lambda i, lbl: (i, 0, 0)),
                pl.BlockSpec((1, 1, d), lambda i, lbl: (lbl[i], 0, 0)),
                pl.BlockSpec((1, 1, d), lambda i, lbl: (lbl[i], 0, 0)),
                pl.BlockSpec((1, d, d), lambda i, lbl: (lbl[i], 0, 0)),
            ],
            out_specs=pl.BlockSpec((1, 1, d), lambda i, lbl: (i, 0, 0)),
        ),
        out_shape=jax.ShapeDtypeStruct((bs, 1, d), jnp.float32),
        compiler_params=pltpu.CompilerParams(dimension_semantics=("parallel",)),
    )(label.astype(jnp.int32), img_z3, m2, c2diag, c2half)


# ---------------------------------------------------------------- JAX glue --

def custom_clip_forward(params, image, texts, label, desc_per_batch, sample_key):
    bs, aug_time = image.shape[0], image.shape[1]
    d = params['lin_vis_w'].shape[0]
    n_cls, tot_desc, tok = texts.shape

    # --- clip_model.encode_image -> normalize -> linear_projector_visual ---
    # TODO(synk): real CLIP ViT image encoder is an injected external module;
    # replaced by a deterministic linear stub, fused with L2-norm + projector.
    img_flat = image.reshape(bs * aug_time, -1).astype(jnp.float32)
    image_features, img_z = fused_encode_project(
        img_flat, params['img_enc_w'], params['img_enc_b'],
        params['lin_vis_w'], params['lin_vis_b'])

    # --- description sampling (torch.randperm equivalent, deterministic) ---
    sample_idx = jax.random.permutation(sample_key, tot_desc - 1)[: desc_per_batch - 1]
    sub_texts = jnp.concatenate(
        [texts[:, :1], texts[:, 1:][:, sample_idx]], axis=1).reshape(-1, tok)

    # --- clip_model.encode_text -> normalize -> linear_projector_text ------
    # TODO(synk): real CLIP text transformer replaced by a linear stub on the
    # float-cast token ids, fused with L2-norm + projector.
    text_features, txt_z = fused_encode_project(
        sub_texts.astype(jnp.float32), params['txt_enc_w'], params['txt_enc_b'],
        params['lin_txt_w'], params['lin_txt_b'])

    img_z3 = img_z.reshape(bs, aug_time, d)
    txt_z3 = txt_z.reshape(n_cls, desc_per_batch, d)

    # --- wasserstein2 -------------------------------------------------------
    m2, c2diag, c2half = pallas_text_stats(txt_z3)                 # per class
    part = pallas_image_wass(img_z3, m2, c2diag, c2half, label)    # per image

    per_image = jnp.sum(part, axis=(1, 2))                         # (bs,)
    # The torch code sums scalar distances over the batch, then .mean() of
    # that scalar == the sum, so jnp.sum matches the original semantics.
    wass_loss = jnp.sum(per_image)

    image_features_z = img_z3.reshape(bs * aug_time, -1)
    text_features_z = txt_z3.reshape(n_cls * desc_per_batch, -1)
    return image_features, text_features, image_features_z, text_features_z, wass_loss


# ------------------------------------------------------------------- main ---

if __name__ == "__main__":
    key = jax.random.PRNGKey(0)
    D = 128                       # ndim (clip_model.ln_final.weight.shape[0])
    BS, AUG = 2, 2                # batch, augmentations per image
    N_CLS = 4
    NUM_DESC = 4                  # cfg.LLM.Num_desc -> tot_desc = 5
    DESC_PER_BATCH = 3            # cfg.LLM.Desc_Per_Batch
    H = W = 16                    # small stand-in for 224x224

    ks = jax.random.split(key, 8)
    bound = float(jnp.sqrt(6.0 / D))
    params = {
        # synthetic CLIP-encoder stubs
        'img_enc_w': 0.02 * jax.random.normal(ks[0], (3 * H * W, D), jnp.float32),
        'img_enc_b': jnp.zeros((D,), jnp.float32),
        'txt_enc_w': 0.02 * jax.random.normal(ks[1], (77, D), jnp.float32),
        'txt_enc_b': jnp.zeros((D,), jnp.float32),
        # LiearProjector: kaiming-uniform weight, zero bias (stored (in, out))
        'lin_vis_w': jax.random.uniform(ks[2], (D, D), jnp.float32, -bound, bound),
        'lin_vis_b': jnp.zeros((D,), jnp.float32),
        'lin_txt_w': jax.random.uniform(ks[3], (D, D), jnp.float32, -bound, bound),
        'lin_txt_b': jnp.zeros((D,), jnp.float32),
    }

    image = jax.random.normal(ks[4], (BS, AUG, 3, H, W), jnp.float32)
    texts = jax.random.randint(ks[5], (N_CLS, NUM_DESC + 1, 77), 0, 49408, jnp.int32)
    label = jax.random.randint(ks[6], (BS,), 0, N_CLS, jnp.int32)

    forward = jax.jit(custom_clip_forward, static_argnums=(4,))
    outs = forward(params, image, texts, label, DESC_PER_BATCH, ks[7])
    outs = jax.block_until_ready(outs)
    img_f, txt_f, img_fz, txt_fz, wl = outs

    assert img_f.shape == (BS * AUG, D)
    assert txt_f.shape == (N_CLS * DESC_PER_BATCH, D)
    assert img_fz.shape == (BS * AUG, D)
    assert txt_fz.shape == (N_CLS * DESC_PER_BATCH, D)
    assert wl.shape == ()
    assert bool(jnp.isfinite(wl))
    print("KERNEL_OK")
</pallas_src>

<mosaic_0001>
module attributes {stable_mosaic.version = 11 : i64} {
  func.func @_enc_norm_proj_kernel(%arg0: i32, %arg1: i32, %arg2: memref<8x768xbf16, #tpu.memory_space<vmem>>, %arg3: memref<768x128xbf16, #tpu.memory_space<vmem>>, %arg4: memref<1x128xf32, #tpu.memory_space<vmem>>, %arg5: memref<128x128xf32, #tpu.memory_space<vmem>>, %arg6: memref<1x128xf32, #tpu.memory_space<vmem>>, %arg7: memref<8x128xf32, #tpu.memory_space<vmem>>, %arg8: memref<8x128xf32, #tpu.memory_space<vmem>>, %arg9: memref<8x128xf32, #tpu.memory_space<vmem>>) attributes {dimension_semantics = [#tpu.dimension_semantics<parallel>, #tpu.dimension_semantics<arbitrary>], iteration_bounds = array<i64: 1, 1>, scalar_prefetch = 0 : i64, scratch_operands = 1 : i64, tpu.core_type = #tpu.core_type<tc>, window_params = [{transform_indices = @transform_0, window_bounds = array<i64: 8, 768>}, {transform_indices = @transform_1, window_bounds = array<i64: 768, 128>}, {pipeline_mode = #tpu.pipeline_mode<synchronous>, transform_indices = @transform_2, window_bounds = array<i64: 1, 128>}, {pipeline_mode = #tpu.pipeline_mode<synchronous>, transform_indices = @transform_3, window_bounds = array<i64: 128, 128>}, {pipeline_mode = #tpu.pipeline_mode<synchronous>, transform_indices = @transform_4, window_bounds = array<i64: 1, 128>}, {transform_indices = @transform_5, window_bounds = array<i64: 8, 128>}, {transform_indices = @transform_6, window_bounds = array<i64: 8, 128>}]} {
    %c0_i32 = arith.constant 0 : i32
    %0 = arith.cmpi eq, %arg1, %c0_i32 : i32
    %1 = arith.extui %0 : i1 to i32
    %c0_i32_0 = arith.constant 0 : i32
    %2 = arith.cmpi ne, %1, %c0_i32_0 : i32
    scf.if %2 {
      %cst_10 = arith.constant 0.000000e+00 : f32
      %12 = vector.broadcast %cst_10 : f32 to vector<8x128xf32>
      %c0_11 = arith.constant 0 : index
      %c0_12 = arith.constant 0 : index
      %13 = vector.load %arg9[%c0_11, %c0_12] : memref<8x128xf32, #tpu.memory_space<vmem>>, vector<8x128xf32>
      tpu.vector_store %arg9[%c0_11, %c0_12], %12 {strides = array<i32>} : memref<8x128xf32, #tpu.memory_space<vmem>>, vector<8x128xf32>,
    } else {
    }
    %c0 = arith.constant 0 : index
    %c0_1 = arith.constant 0 : index
    %3 = vector.load %arg9[%c0, %c0_1] : memref<8x128xf32, #tpu.memory_space<vmem>>, vector<8x128xf32>
    %c0_2 = arith.constant 0 : index
    %c0_3 = arith.constant 0 : index
    %4 = vector.load %arg2[%c0_2, %c0_3] : memref<8x768xbf16, #tpu.memory_space<vmem>>, vector<8x768xbf16>
    %c0_4 = arith.constant 0 : index
    %c0_5 = arith.constant 0 : index
    %5 = vector.load %arg3[%c0_4, %c0_5] : memref<768x128xbf16, #tpu.memory_space<vmem>>, vector<768x128xbf16>
    %cst = arith.constant dense<0.000000e+00> : vector<8x128xf32>
    %6 = tpu.matmul %4, %5, %cst {dimension_numbers = #tpu.dot_dimension_numbers<[1], [0], [0], [1], [0, 0, 1, 1], [], []>} : vector<8x768xbf16>, vector<768x128xbf16>, vector<8x128xf32> -> vector<8x128xf32>
    %7 = arith.addf %3, %6 : vector<8x128xf32>
    %c0_6 = arith.constant 0 : index
    %c0_7 = arith.constant 0 : index
    %8 = vector.load %arg9[%c0_6, %c0_7] : memref<8x128xf32, #tpu.memory_space<vmem>>, vector<8x128xf32>
    tpu.vector_store %arg9[%c0_6, %c0_7], %7 {strides = array<i32>} : memref<8x128xf32, #tpu.memory_space<vmem>>, vector<8x128xf32>,
    %c0_i32_8 = arith.constant 0 : i32
    %9 = arith.cmpi eq, %arg1, %c0_i32_8 : i32
    %10 = arith.extui %9 : i1 to i32
    %c0_i32_9 = arith.constant 0 : i32
    %11 = arith.cmpi ne, %10, %c0_i32_9 : i32
    scf.if %11 {
      %c0_10 = arith.constant 0 : index
      %c0_11 = arith.constant 0 : index
      %12 = vector.load %arg9[%c0_10, %c0_11] : memref<8x128xf32, #tpu.memory_space<vmem>>, vector<8x128xf32>
      %c0_12 = arith.constant 0 : index
      %c0_13 = arith.constant 0 : index
      %13 = vector.load %arg4[%c0_12, %c0_13] : memref<1x128xf32, #tpu.memory_space<vmem>>, vector<1x128xf32>
      %14 = vector.broadcast %13 : vector<1x128xf32> to vector<8x128xf32>
      %15 = arith.addf %12, %14 : vector<8x128xf32>
      %16 = arith.mulf %15, %15 : vector<8x128xf32>
      %cst_14 = arith.constant dense<0.000000e+00> : vector<8xf32>
      %17 = vector.multi_reduction <add>, %16, %cst_14 [1] : vector<8x128xf32> to vector<8xf32>
      %18 = vector.shape_cast %17 : vector<8xf32> to vector<8x1xf32>
      %cst_15 = arith.constant 9.99999996E-13 : f32
      %19 = vector.broadcast %cst_15 : f32 to vector<8x1xf32>
      %20 = arith.addf %18, %19 : vector<8x1xf32>
      %21 = math.rsqrt %20 : vector<8x1xf32>
      %22 = vector.broadcast %21 : vector<8x1xf32> to vector<8x128xf32>
      %23 = arith.mulf %15, %22 : vector<8x128xf32>
      %c0_16 = arith.constant 0 : index
      %c0_17 = arith.constant 0 : index
      %24 = vector.load %arg7[%c0_16, %c0_17] : memref<8x128xf32, #tpu.memory_space<vmem>>, vector<8x128xf32>
      tpu.vector_store %arg7[%c0_16, %c0_17], %23 {strides = array<i32>} : memref<8x128xf32, #tpu.memory_space<vmem>>, vector<8x128xf32>,
      %c0_18 = arith.constant 0 : index
      %c0_19 = arith.constant 0 : index
      %25 = vector.load %arg5[%c0_18, %c0_19] : memref<128x128xf32, #tpu.memory_space<vmem>>, vector<128x128xf32>
      %cst_20 = arith.constant dense<0.000000e+00> : vector<8x128xf32>
      %26 = tpu.matmul %23, %25, %cst_20 {dimension_numbers = #tpu.dot_dimension_numbers<[1], [0], [0], [1], [0, 0, 1, 1], [], []>} : vector<8x128xf32>, vector<128x128xf32>, vector<8x128xf32> -> vector<8x128xf32>
      %c0_21 = arith.constant 0 : index
      %c0_22 = arith.constant 0 : index
      %27 = vector.load %arg6[%c0_21, %c0_22] : memref<1x128xf32, #tpu.memory_space<vmem>>, vector<1x128xf32>
      %28 = vector.broadcast %27 : vector<1x128xf32> to vector<8x128xf32>
      %29 = arith.addf %26, %28 : vector<8x128xf32>
      %c0_23 = arith.constant 0 : index
      %c0_24 = arith.constant 0 : index
      %30 = vector.load %arg8[%c0_23, %c0_24] : memref<8x128xf32, #tpu.memory_space<vmem>>, vector<8x128xf32>
      tpu.vector_store %arg8[%c0_23, %c0_24], %29 {strides = array<i32>} : memref<8x128xf32, #tpu.memory_space<vmem>>, vector<8x128xf32>,
    } else {
    }
    return
  }
  func.func @transform_0(%arg0: i32, %arg1: i32) -> (i32, i32) {
    %c0_i32 = arith.constant 0 : i32
    return %arg0, %arg1 : i32, i32
  }
  func.func @transform_1(%arg0: i32, %arg1: i32) -> (i32, i32) {
    %c0_i32 = arith.constant 0 : i32
    %c0_i32_0 = arith.constant 0 : i32
    return %arg1, %c0_i32 : i32, i32
  }
  func.func @transform_2(%arg0: i32, %arg1: i32) -> (i32, i32) {
    %c0_i32 = arith.constant 0 : i32
    %c0_i32_0 = arith.constant 0 : i32
    %c0_i32_1 = arith.constant 0 : i32
    return %c0_i32, %c0_i32_0 : i32, i32
  }
  func.func @transform_3(%arg0: i32, %arg1: i32) -> (i32, i32) {
    %c0_i32 = arith.constant 0 : i32
    %c0_i32_0 = arith.constant 0 : i32
    %c0_i32_1 = arith.constant 0 : i32
    return %c0_i32, %c0_i32_0 : i32, i32
  }
  func.func @transform_4(%arg0: i32, %arg1: i32) -> (i32, i32) {
    %c0_i32 = arith.constant 0 : i32
    %c0_i32_0 = arith.constant 0 : i32
    %c0_i32_1 = arith.constant 0 : i32
    return %c0_i32, %c0_i32_0 : i32, i32
  }
  func.func @transform_5(%arg0: i32, %arg1: i32) -> (i32, i32) {
    %c0_i32 = arith.constant 0 : i32
    %c0_i32_0 = arith.constant 0 : i32
    return %arg0, %c0_i32 : i32, i32
  }
  func.func @transform_6(%arg0: i32, %arg1: i32) -> (i32, i32) {
    %c0_i32 = arith.constant 0 : i32
    %c0_i32_0 = arith.constant 0 : i32
    return %arg0, %c0_i32 : i32, i32
  }
}

module attributes {stable_mosaic.version = 11 : i64} {
  func.func @_enc_norm_proj_kernel(%arg0: i32, %arg1: i32, %arg2: memref<16x128xbf16, #tpu.memory_space<vmem>>, %arg3: memref<128x128xbf16, #tpu.memory_space<vmem>>, %arg4: memref<1x128xf32, #tpu.memory_space<vmem>>, %arg5: memref<128x128xf32, #tpu.memory_space<vmem>>, %arg6: memref<1x128xf32, #tpu.memory_space<vmem>>, %arg7: memref<16x128xf32, #tpu.memory_space<vmem>>, %arg8: memref<16x128xf32, #tpu.memory_space<vmem>>, %arg9: memref<16x128xf32, #tpu.memory_space<vmem>>) attributes {dimension_semantics = [#tpu.dimension_semantics<parallel>, #tpu.dimension_semantics<arbitrary>], iteration_bounds = array<i64: 1, 1>, scalar_prefetch = 0 : i64, scratch_operands = 1 : i64, tpu.core_type = #tpu.core_type<tc>, window_params = [{transform_indices = @transform_0, window_bounds = array<i64: 16, 128>}, {transform_indices = @transform_1, window_bounds = array<i64: 128, 128>}, {pipeline_mode = #tpu.pipeline_mode<synchronous>, transform_indices = @transform_2, window_bounds = array<i64: 1, 128>}, {pipeline_mode = #tpu.pipeline_mode<synchronous>, transform_indices = @transform_3, window_bounds = array<i64: 128, 128>}, {pipeline_mode = #tpu.pipeline_mode<synchronous>, transform_indices = @transform_4, window_bounds = array<i64: 1, 128>}, {transform_indices = @transform_5, window_bounds = array<i64: 16, 128>}, {transform_indices = @transform_6, window_bounds = array<i64: 16, 128>}]} {
    %c0_i32 = arith.constant 0 : i32
    %0 = arith.cmpi eq, %arg1, %c0_i32 : i32
    %1 = arith.extui %0 : i1 to i32
    %c0_i32_0 = arith.constant 0 : i32
    %2 = arith.cmpi ne, %1, %c0_i32_0 : i32
    scf.if %2 {
      %cst_10 = arith.constant 0.000000e+00 : f32
      %12 = vector.broadcast %cst_10 : f32 to vector<16x128xf32>
      %c0_11 = arith.constant 0 : index
      %c0_12 = arith.constant 0 : index
      %13 = vector.load %arg9[%c0_11, %c0_12] : memref<16x128xf32, #tpu.memory_space<vmem>>, vector<16x128xf32>
      tpu.vector_store %arg9[%c0_11, %c0_12], %12 {strides = array<i32>} : memref<16x128xf32, #tpu.memory_space<vmem>>, vector<16x128xf32>,
    } else {
    }
    %c0 = arith.constant 0 : index
    %c0_1 = arith.constant 0 : index
    %3 = vector.load %arg9[%c0, %c0_1] : memref<16x128xf32, #tpu.memory_space<vmem>>, vector<16x128xf32>
    %c0_2 = arith.constant 0 : index
    %c0_3 = arith.constant 0 : index
    %4 = vector.load %arg2[%c0_2, %c0_3] : memref<16x128xbf16, #tpu.memory_space<vmem>>, vector<16x128xbf16>
    %c0_4 = arith.constant 0 : index
    %c0_5 = arith.constant 0 : index
    %5 = vector.load %arg3[%c0_4, %c0_5] : memref<128x128xbf16, #tpu.memory_space<vmem>>, vector<128x128xbf16>
    %cst = arith.constant dense<0.000000e+00> : vector<16x128xf32>
    %6 = tpu.matmul %4, %5, %cst {dimension_numbers = #tpu.dot_dimension_numbers<[1], [0], [0], [1], [0, 0, 1, 1], [], []>} : vector<16x128xbf16>, vector<128x128xbf16>, vector<16x128xf32> -> vector<16x128xf32>
    %7 = arith.addf %3, %6 : vector<16x128xf32>
    %c0_6 = arith.constant 0 : index
    %c0_7 = arith.constant 0 : index
    %8 = vector.load %arg9[%c0_6, %c0_7] : memref<16x128xf32, #tpu.memory_space<vmem>>, vector<16x128xf32>
    tpu.vector_store %arg9[%c0_6, %c0_7], %7 {strides = array<i32>} : memref<16x128xf32, #tpu.memory_space<vmem>>, vector<16x128xf32>,
    %c0_i32_8 = arith.constant 0 : i32
    %9 = arith.cmpi eq, %arg1, %c0_i32_8 : i32
    %10 = arith.extui %9 : i1 to i32
    %c0_i32_9 = arith.constant 0 : i32
    %11 = arith.cmpi ne, %10, %c0_i32_9 : i32
    scf.if %11 {
      %c0_10 = arith.constant 0 : index
      %c0_11 = arith.constant 0 : index
      %12 = vector.load %arg9[%c0_10, %c0_11] : memref<16x128xf32, #tpu.memory_space<vmem>>, vector<16x128xf32>
      %c0_12 = arith.constant 0 : index
      %c0_13 = arith.constant 0 : index
      %13 = vector.load %arg4[%c0_12, %c0_13] : memref<1x128xf32, #tpu.memory_space<vmem>>, vector<1x128xf32>
      %14 = vector.broadcast %13 : vector<1x128xf32> to vector<16x128xf32>
      %15 = arith.addf %12, %14 : vector<16x128xf32>
      %16 = arith.mulf %15, %15 : vector<16x128xf32>
      %cst_14 = arith.constant dense<0.000000e+00> : vector<16xf32>
      %17 = vector.multi_reduction <add>, %16, %cst_14 [1] : vector<16x128xf32> to vector<16xf32>
      %18 = vector.shape_cast %17 : vector<16xf32> to vector<16x1xf32>
      %cst_15 = arith.constant 9.99999996E-13 : f32
      %19 = vector.broadcast %cst_15 : f32 to vector<16x1xf32>
      %20 = arith.addf %18, %19 : vector<16x1xf32>
      %21 = math.rsqrt %20 : vector<16x1xf32>
      %22 = vector.broadcast %21 : vector<16x1xf32> to vector<16x128xf32>
      %23 = arith.mulf %15, %22 : vector<16x128xf32>
      %c0_16 = arith.constant 0 : index
      %c0_17 = arith.constant 0 : index
      %24 = vector.load %arg7[%c0_16, %c0_17] : memref<16x128xf32, #tpu.memory_space<vmem>>, vector<16x128xf32>
      tpu.vector_store %arg7[%c0_16, %c0_17], %23 {strides = array<i32>} : memref<16x128xf32, #tpu.memory_space<vmem>>, vector<16x128xf32>,
      %c0_18 = arith.constant 0 : index
      %c0_19 = arith.constant 0 : index
      %25 = vector.load %arg5[%c0_18, %c0_19] : memref<128x128xf32, #tpu.memory_space<vmem>>, vector<128x128xf32>
      %cst_20 = arith.constant dense<0.000000e+00> : vector<16x128xf32>
      %26 = tpu.matmul %23, %25, %cst_20 {dimension_numbers = #tpu.dot_dimension_numbers<[1], [0], [0], [1], [0, 0, 1, 1], [], []>} : vector<16x128xf32>, vector<128x128xf32>, vector<16x128xf32> -> vector<16x128xf32>
      %c0_21 = arith.constant 0 : index
      %c0_22 = arith.constant 0 : index
      %27 = vector.load %arg6[%c0_21, %c0_22] : memref<1x128xf32, #tpu.memory_space<vmem>>, vector<1x128xf32>
      %28 = vector.broadcast %27 : vector<1x128xf32> to vector<16x128xf32>
      %29 = arith.addf %26, %28 : vector<16x128xf32>
      %c0_23 = arith.constant 0 : index
      %c0_24 = arith.constant 0 : index
      %30 = vector.load %arg8[%c0_23, %c0_24] : memref<16x128xf32, #tpu.memory_space<vmem>>, vector<16x128xf32>
      tpu.vector_store %arg8[%c0_23, %c0_24], %29 {strides = array<i32>} : memref<16x128xf32, #tpu.memory_space<vmem>>, vector<16x128xf32>,
    } else {
    }
    return
  }
  func.func @transform_0(%arg0: i32, %arg1: i32) -> (i32, i32) {
    %c0_i32 = arith.constant 0 : i32
    return %arg0, %arg1 : i32, i32
  }
  func.func @transform_1(%arg0: i32, %arg1: i32) -> (i32, i32) {
    %c0_i32 = arith.constant 0 : i32
    %c0_i32_0 = arith.constant 0 : i32
    return %arg1, %c0_i32 : i32, i32
  }
  func.func @transform_2(%arg0: i32, %arg1: i32) -> (i32, i32) {
    %c0_i32 = arith.constant 0 : i32
    %c0_i32_0 = arith.constant 0 : i32
    %c0_i32_1 = arith.constant 0 : i32
    return %c0_i32, %c0_i32_0 : i32, i32
  }
  func.func @transform_3(%arg0: i32, %arg1: i32) -> (i32, i32) {
    %c0_i32 = arith.constant 0 : i32
    %c0_i32_0 = arith.constant 0 : i32
    %c0_i32_1 = arith.constant 0 : i32
    return %c0_i32, %c0_i32_0 : i32, i32
  }
  func.func @transform_4(%arg0: i32, %arg1: i32) -> (i32, i32) {
    %c0_i32 = arith.constant 0 : i32
    %c0_i32_0 = arith.constant 0 : i32
    %c0_i32_1 = arith.constant 0 : i32
    return %c0_i32, %c0_i32_0 : i32, i32
  }
  func.func @transform_5(%arg0: i32, %arg1: i32) -> (i32, i32) {
    %c0_i32 = arith.constant 0 : i32
    %c0_i32_0 = arith.constant 0 : i32
    return %arg0, %c0_i32 : i32, i32
  }
  func.func @transform_6(%arg0: i32, %arg1: i32) -> (i32, i32) {
    %c0_i32 = arith.constant 0 : i32
    %c0_i32_0 = arith.constant 0 : i32
    return %arg0, %c0_i32 : i32, i32
  }
}

module attributes {stable_mosaic.version = 11 : i64} {
  func.func @_text_stats_kernel(%arg0: i32, %arg1: memref<1x3x128xf32, #tpu.memory_space<vmem>>, %arg2: memref<1x1x128xf32, #tpu.memory_space<vmem>>, %arg3: memref<1x1x128xf32, #tpu.memory_space<vmem>>, %arg4: memref<1x128x128xf32, #tpu.memory_space<vmem>>) attributes {dimension_semantics = [#tpu.dimension_semantics<parallel>], iteration_bounds = array<i64: 4>, scalar_prefetch = 0 : i64, scratch_operands = 0 : i64, tpu.core_type = #tpu.core_type<tc>, window_params = [{transform_indices = @transform_0, window_bounds = array<i64: 1, 3, 128>}, {transform_indices = @transform_1, window_bounds = array<i64: 1, 1, 128>}, {transform_indices = @transform_2, window_bounds = array<i64: 1, 1, 128>}, {transform_indices = @transform_3, window_bounds = array<i64: 1, 128, 128>}]} {
    %c0 = arith.constant 0 : index
    %c0_0 = arith.constant 0 : index
    %c0_1 = arith.constant 0 : index
    %0 = vector.load %arg1[%c0, %c0_0, %c0_1] : memref<1x3x128xf32, #tpu.memory_space<vmem>>, vector<1x3x128xf32>
    %1 = vector.shape_cast %0 : vector<1x3x128xf32> to vector<3x128xf32>
    %cst = arith.constant dense<0.000000e+00> : vector<128xf32>
    %2 = vector.multi_reduction <add>, %1, %cst [0] : vector<3x128xf32> to vector<128xf32>
    %3 = vector.shape_cast %2 : vector<128xf32> to vector<1x128xf32>
    %cst_2 = arith.constant 3.000000e+00 : f32
    %4 = vector.broadcast %cst_2 : f32 to vector<1x128xf32>
    %5 = arith.divf %3, %4 : vector<1x128xf32>
    %6 = vector.broadcast %5 : vector<1x128xf32> to vector<3x128xf32>
    %7 = arith.subf %1, %6 : vector<3x128xf32>
    %cst_3 = arith.constant 0.707106769 : f32
    %8 = vector.broadcast %cst_3 : f32 to vector<3x128xf32>
    %9 = arith.mulf %7, %8 : vector<3x128xf32>
    %cst_4 = arith.constant dense<0.000000e+00> : vector<128x128xf32>
    %10 = tpu.matmul %9, %9, %cst_4 {dimension_numbers = #tpu.dot_dimension_numbers<[0], [0], [1], [1], [0, 1, 1, 1], [], []>} : vector<3x128xf32>, vector<3x128xf32>, vector<128x128xf32> -> vector<128x128xf32>
    %11 = tpu.iota {dimensions = array<i32: 0>} : vector<128x128xi32>
    %12 = tpu.iota {dimensions = array<i32: 1>} : vector<128x128xi32>
    %13 = arith.cmpi eq, %11, %12 : vector<128x128xi32>
    %14 = arith.extui %13 : vector<128x128xi1> to vector<128x128xi32>
    %15 = arith.sitofp %14 : vector<128x128xi32> to vector<128x128xf32>
    %c0_5 = arith.constant 0 : index
    %c0_6 = arith.constant 0 : index
    %c0_7 = arith.constant 0 : index
    %16 = vector.load %arg2[%c0_5, %c0_6, %c0_7] : memref<1x1x128xf32, #tpu.memory_space<vmem>>, vector<1x1x128xf32>
    %17 = vector.shape_cast %16 : vector<1x1x128xf32> to vector<1x128xf32>
    %18 = vector.shape_cast %5 : vector<1x128xf32> to vector<1x1x128xf32>
    tpu.vector_store %arg2[%c0_5, %c0_6, %c0_7], %18 {strides = array<i32>} : memref<1x1x128xf32, #tpu.memory_space<vmem>>, vector<1x1x128xf32>,
    %19 = arith.mulf %9, %9 : vector<3x128xf32>
    %cst_8 = arith.constant dense<0.000000e+00> : vector<128xf32>
    %20 = vector.multi_reduction <add>, %19, %cst_8 [0] : vector<3x128xf32> to vector<128xf32>
    %21 = vector.shape_cast %20 : vector<128xf32> to vector<1x128xf32>
    %c0_9 = arith.constant 0 : index
    %c0_10 = arith.constant 0 : index
    %c0_11 = arith.constant 0 : index
    %22 = vector.load %arg3[%c0_9, %c0_10, %c0_11] : memref<1x1x128xf32, #tpu.memory_space<vmem>>, vector<1x1x128xf32>
    %23 = vector.shape_cast %22 : vector<1x1x128xf32> to vector<1x128xf32>
    %24 = vector.shape_cast %21 : vector<1x128xf32> to vector<1x1x128xf32>
    tpu.vector_store %arg3[%c0_9, %c0_10, %c0_11], %24 {strides = array<i32>} : memref<1x1x128xf32, #tpu.memory_space<vmem>>, vector<1x1x128xf32>,
    %cst_12 = arith.constant 1.000000e-07 : f32
    %25 = vector.broadcast %cst_12 : f32 to vector<128x128xf32>
    %26 = arith.mulf %25, %15 : vector<128x128xf32>
    %27 = arith.addf %10, %26 : vector<128x128xf32>
    %28 = arith.mulf %27, %27 : vector<128x128xf32>
    %29 = vector.shape_cast %28 : vector<128x128xf32> to vector<1x128x128xf32>
    %cst_13 = arith.constant dense<0.000000e+00> : vector<1xf32>
    %30 = vector.multi_reduction <add>, %29, %cst_13 [1, 2] : vector<1x128x128xf32> to vector<1xf32>
    %31 = vector.shape_cast %30 : vector<1xf32> to vector<1x1x1xf32>
    %32 = vector.extract %31[0, 0, 0] : f32 from vector<1x1x1xf32>
    %33 = math.sqrt %32 : f32
    %cst_14 = arith.constant 9.99999996E-13 : f32
    %34 = arith.maximumf %33, %cst_14 : f32
    %35 = vector.broadcast %34 : f32 to vector<128x128xf32>
    %36 = arith.divf %27, %35 : vector<128x128xf32>
    %c0_i32 = arith.constant 0 : i32
    %cst_15 = arith.constant 3.000000e+00 : f32
    %37 = vector.broadcast %cst_15 : f32 to vector<128x128xf32>
    %38 = arith.mulf %37, %15 : vector<128x128xf32>
    %cst_16 = arith.constant dense<0.000000e+00> : vector<128x128xf32>
    %39 = tpu.matmul %15, %36, %cst_16 {dimension_numbers = #tpu.dot_dimension_numbers<[1], [0], [0], [1], [0, 0, 1, 1], [], []>} : vector<128x128xf32>, vector<128x128xf32>, vector<128x128xf32> -> vector<128x128xf32>
    %40 = arith.subf %38, %39 : vector<128x128xf32>
    %cst_17 = arith.constant 5.000000e-01 : f32
    %41 = vector.broadcast %cst_17 : f32 to vector<128x128xf32>
    %42 = arith.mulf %41, %40 : vector<128x128xf32>
    %cst_18 = arith.constant dense<0.000000e+00> : vector<128x128xf32>
    %43 = tpu.matmul %36, %42, %cst_18 {dimension_numbers = #tpu.dot_dimension_numbers<[1], [0], [0], [1], [0, 0, 1, 1], [], []>} : vector<128x128xf32>, vector<128x128xf32>, vector<128x128xf32> -> vector<128x128xf32>
    %cst_19 = arith.constant dense<0.000000e+00> : vector<128x128xf32>
    %44 = tpu.matmul %42, %15, %cst_19 {dimension_numbers = #tpu.dot_dimension_numbers<[1], [0], [0], [1], [0, 0, 1, 1], [], []>} : vector<128x128xf32>, vector<128x128xf32>, vector<128x128xf32> -> vector<128x128xf32>
    %c1_i32 = arith.constant 1 : i32
    %cst_20 = arith.constant 3.000000e+00 : f32
    %45 = vector.broadcast %cst_20 : f32 to vector<128x128xf32>
    %46 = arith.mulf %45, %15 : vector<128x128xf32>
    %cst_21 = arith.constant dense<0.000000e+00> : vector<128x128xf32>
    %47 = tpu.matmul %44, %43, %cst_21 {dimension_numbers = #tpu.dot_dimension_numbers<[1], [0], [0], [1], [0, 0, 1, 1], [], []>} : vector<128x128xf32>, vector<128x128xf32>, vector<128x128xf32> -> vector<128x128xf32>
    %48 = arith.subf %46, %47 : vector<128x128xf32>
    %cst_22 = arith.constant 5.000000e-01 : f32
    %49 = vector.broadcast %cst_22 : f32 to vector<128x128xf32>
    %50 = arith.mulf %49, %48 : vector<128x128xf32>
    %cst_23 = arith.constant dense<0.000000e+00> : vector<128x128xf32>
    %51 = tpu.matmul %43, %50, %cst_23 {dimension_numbers = #tpu.dot_dimension_numbers<[1], [0], [0], [1], [0, 0, 1, 1], [], []>} : vector<128x128xf32>, vector<128x128xf32>, vector<128x128xf32> -> vector<128x128xf32>
    %cst_24 = arith.constant dense<0.000000e+00> : vector<128x128xf32>
    %52 = tpu.matmul %50, %44, %cst_24 {dimension_numbers = #tpu.dot_dimension_numbers<[1], [0], [0], [1], [0, 0, 1, 1], [], []>} : vector<128x128xf32>, vector<128x128xf32>, vector<128x128xf32> -> vector<128x128xf32>
    %c2_i32 = arith.constant 2 : i32
    %cst_25 = arith.constant 3.000000e+00 : f32
    %53 = vector.broadcast %cst_25 : f32 to vector<128x128xf32>
    %54 = arith.mulf %53, %15 : vector<128x128xf32>
    %cst_26 = arith.constant dense<0.000000e+00> : vector<128x128xf32>
    %55 = tpu.matmul %52, %51, %cst_26 {dimension_numbers = #tpu.dot_dimension_numbers<[1], [0], [0], [1], [0, 0, 1, 1], [], []>} : vector<128x128xf32>, vector<128x128xf32>, vector<128x128xf32> -> vector<128x128xf32>
    %56 = arith.subf %54, %55 : vector<128x128xf32>
    %cst_27 = arith.constant 5.000000e-01 : f32
    %57 = vector.broadcast %cst_27 : f32 to vector<128x128xf32>
    %58 = arith.mulf %57, %56 : vector<128x128xf32>
    %cst_28 = arith.constant dense<0.000000e+00> : vector<128x128xf32>
    %59 = tpu.matmul %51, %58, %cst_28 {dimension_numbers = #tpu.dot_dimension_numbers<[1], [0], [0], [1], [0, 0, 1, 1], [], []>} : vector<128x128xf32>, vector<128x128xf32>, vector<128x128xf32> -> vector<128x128xf32>
    %cst_29 = arith.constant dense<0.000000e+00> : vector<128x128xf32>
    %60 = tpu.matmul %58, %52, %cst_29 {dimension_numbers = #tpu.dot_dimension_numbers<[1], [0], [0], [1], [0, 0, 1, 1], [], []>} : vector<128x128xf32>, vector<128x128xf32>, vector<128x128xf32> -> vector<128x128xf32>
    %c3_i32 = arith.constant 3 : i32
    %cst_30 = arith.constant 3.000000e+00 : f32
    %61 = vector.broadcast %cst_30 : f32 to vector<128x128xf32>
    %62 = arith.mulf %61, %15 : vector<128x128xf32>
    %cst_31 = arith.constant dense<0.000000e+00> : vector<128x128xf32>
    %63 = tpu.matmul %60, %59, %cst_31 {dimension_numbers = #tpu.dot_dimension_numbers<[1], [0], [0], [1], [0, 0, 1, 1], [], []>} : vector<128x128xf32>, vector<128x128xf32>, vector<128x128xf32> -> vector<128x128xf32>
    %64 = arith.subf %62, %63 : vector<128x128xf32>
    %cst_32 = arith.constant 5.000000e-01 : f32
    %65 = vector.broadcast %cst_32 : f32 to vector<128x128xf32>
    %66 = arith.mulf %65, %64 : vector<128x128xf32>
    %cst_33 = arith.constant dense<0.000000e+00> : vector<128x128xf32>
    %67 = tpu.matmul %59, %66, %cst_33 {dimension_numbers = #tpu.dot_dimension_numbers<[1], [0], [0], [1], [0, 0, 1, 1], [], []>} : vector<128x128xf32>, vector<128x128xf32>, vector<128x128xf32> -> vector<128x128xf32>
    %cst_34 = arith.constant dense<0.000000e+00> : vector<128x128xf32>
    %68 = tpu.matmul %66, %60, %cst_34 {dimension_numbers = #tpu.dot_dimension_numbers<[1], [0], [0], [1], [0, 0, 1, 1], [], []>} : vector<128x128xf32>, vector<128x128xf32>, vector<128x128xf32> -> vector<128x128xf32>
    %c4_i32 = arith.constant 4 : i32
    %cst_35 = arith.constant 3.000000e+00 : f32
    %69 = vector.broadcast %cst_35 : f32 to vector<128x128xf32>
    %70 = arith.mulf %69, %15 : vector<128x128xf32>
    %cst_36 = arith.constant dense<0.000000e+00> : vector<128x128xf32>
    %71 = tpu.matmul %68, %67, %cst_36 {dimension_numbers = #tpu.dot_dimension_numbers<[1], [0], [0], [1], [0, 0, 1, 1], [], []>} : vector<128x128xf32>, vector<128x128xf32>, vector<128x128xf32> -> vector<128x128xf32>
    %72 = arith.subf %70, %71 : vector<128x128xf32>
    %cst_37 = arith.constant 5.000000e-01 : f32
    %73 = vector.broadcast %cst_37 : f32 to vector<128x128xf32>
    %74 = arith.mulf %73, %72 : vector<128x128xf32>
    %cst_38 = arith.constant dense<0.000000e+00> : vector<128x128xf32>
    %75 = tpu.matmul %67, %74, %cst_38 {dimension_numbers = #tpu.dot_dimension_numbers<[1], [0], [0], [1], [0, 0, 1, 1], [], []>} : vector<128x128xf32>, vector<128x128xf32>, vector<128x128xf32> -> vector<128x128xf32>
    %cst_39 = arith.constant dense<0.000000e+00> : vector<128x128xf32>
    %76 = tpu.matmul %74, %68, %cst_39 {dimension_numbers = #tpu.dot_dimension_numbers<[1], [0], [0], [1], [0, 0, 1, 1], [], []>} : vector<128x128xf32>, vector<128x128xf32>, vector<128x128xf32> -> vector<128x128xf32>
    %c5_i32 = arith.constant 5 : i32
    %cst_40 = arith.constant 3.000000e+00 : f32
    %77 = vector.broadcast %cst_40 : f32 to vector<128x128xf32>
    %78 = arith.mulf %77, %15 : vector<128x128xf32>
    %cst_41 = arith.constant dense<0.000000e+00> : vector<128x128xf32>
    %79 = tpu.matmul %76, %75, %cst_41 {dimension_numbers = #tpu.dot_dimension_numbers<[1], [0], [0], [1], [0, 0, 1, 1], [], []>} : vector<128x128xf32>, vector<128x128xf32>, vector<128x128xf32> -> vector<128x128xf32>
    %80 = arith.subf %78, %79 : vector<128x128xf32>
    %cst_42 = arith.constant 5.000000e-01 : f32
    %81 = vector.broadcast %cst_42 : f32 to vector<128x128xf32>
    %82 = arith.mulf %81, %80 : vector<128x128xf32>
    %cst_43 = arith.constant dense<0.000000e+00> : vector<128x128xf32>
    %83 = tpu.matmul %75, %82, %cst_43 {dimension_numbers = #tpu.dot_dimension_numbers<[1], [0], [0], [1], [0, 0, 1, 1], [], []>} : vector<128x128xf32>, vector<128x128xf32>, vector<128x128xf32> -> vector<128x128xf32>
    %cst_44 = arith.constant dense<0.000000e+00> : vector<128x128xf32>
    %84 = tpu.matmul %82, %76, %cst_44 {dimension_numbers = #tpu.dot_dimension_numbers<[1], [0], [0], [1], [0, 0, 1, 1], [], []>} : vector<128x128xf32>, vector<128x128xf32>, vector<128x128xf32> -> vector<128x128xf32>
    %c6_i32 = arith.constant 6 : i32
    %cst_45 = arith.constant 3.000000e+00 : f32
    %85 = vector.broadcast %cst_45 : f32 to vector<128x128xf32>
    %86 = arith.mulf %85, %15 : vector<128x128xf32>
    %cst_46 = arith.constant dense<0.000000e+00> : vector<128x128xf32>
    %87 = tpu.matmul %84, %83, %cst_46 {dimension_numbers = #tpu.dot_dimension_numbers<[1], [0], [0], [1], [0, 0, 1, 1], [], []>} : vector<128x128xf32>, vector<128x128xf32>, vector<128x128xf32> -> vector<128x128xf32>
    %88 = arith.subf %86, %87 : vector<128x128xf32>
    %cst_47 = arith.constant 5.000000e-01 : f32
    %89 = vector.broadcast %cst_47 : f32 to vector<128x128xf32>
    %90 = arith.mulf %89, %88 : vector<128x128xf32>
    %cst_48 = arith.constant dense<0.000000e+00> : vector<128x128xf32>
    %91 = tpu.matmul %83, %90, %cst_48 {dimension_numbers = #tpu.dot_dimension_numbers<[1], [0], [0], [1], [0, 0, 1, 1], [], []>} : vector<128x128xf32>, vector<128x128xf32>, vector<128x128xf32> -> vector<128x128xf32>
    %cst_49 = arith.constant dense<0.000000e+00> : vector<128x128xf32>
    %92 = tpu.matmul %90, %84, %cst_49 {dimension_numbers = #tpu.dot_dimension_numbers<[1], [0], [0], [1], [0, 0, 1, 1], [], []>} : vector<128x128xf32>, vector<128x128xf32>, vector<128x128xf32> -> vector<128x128xf32>
    %c7_i32 = arith.constant 7 : i32
    %cst_50 = arith.constant 3.000000e+00 : f32
    %93 = vector.broadcast %cst_50 : f32 to vector<128x128xf32>
    %94 = arith.mulf %93, %15 : vector<128x128xf32>
    %cst_51 = arith.constant dense<0.000000e+00> : vector<128x128xf32>
    %95 = tpu.matmul %92, %91, %cst_51 {dimension_numbers = #tpu.dot_dimension_numbers<[1], [0], [0], [1], [0, 0, 1, 1], [], []>} : vector<128x128xf32>, vector<128x128xf32>, vector<128x128xf32> -> vector<128x128xf32>
    %96 = arith.subf %94, %95 : vector<128x128xf32>
    %cst_52 = arith.constant 5.000000e-01 : f32
    %97 = vector.broadcast %cst_52 : f32 to vector<128x128xf32>
    %98 = arith.mulf %97, %96 : vector<128x128xf32>
    %cst_53 = arith.constant dense<0.000000e+00> : vector<128x128xf32>
    %99 = tpu.matmul %91, %98, %cst_53 {dimension_numbers = #tpu.dot_dimension_numbers<[1], [0], [0], [1], [0, 0, 1, 1], [], []>} : vector<128x128xf32>, vector<128x128xf32>, vector<128x128xf32> -> vector<128x128xf32>
    %cst_54 = arith.constant dense<0.000000e+00> : vector<128x128xf32>
    %100 = tpu.matmul %98, %92, %cst_54 {dimension_numbers = #tpu.dot_dimension_numbers<[1], [0], [0], [1], [0, 0, 1, 1], [], []>} : vector<128x128xf32>, vector<128x128xf32>, vector<128x128xf32> -> vector<128x128xf32>
    %c8_i32 = arith.constant 8 : i32
    %cst_55 = arith.constant 3.000000e+00 : f32
    %101 = vector.broadcast %cst_55 : f32 to vector<128x128xf32>
    %102 = arith.mulf %101, %15 : vector<128x128xf32>
    %cst_56 = arith.constant dense<0.000000e+00> : vector<128x128xf32>
    %103 = tpu.matmul %100, %99, %cst_56 {dimension_numbers = #tpu.dot_dimension_numbers<[1], [0], [0], [1], [0, 0, 1, 1], [], []>} : vector<128x128xf32>, vector<128x128xf32>, vector<128x128xf32> -> vector<128x128xf32>
    %104 = arith.subf %102, %103 : vector<128x128xf32>
    %cst_57 = arith.constant 5.000000e-01 : f32
    %105 = vector.broadcast %cst_57 : f32 to vector<128x128xf32>
    %106 = arith.mulf %105, %104 : vector<128x128xf32>
    %cst_58 = arith.constant dense<0.000000e+00> : vector<128x128xf32>
    %107 = tpu.matmul %99, %106, %cst_58 {dimension_numbers = #tpu.dot_dimension_numbers<[1], [0], [0], [1], [0, 0, 1, 1], [], []>} : vector<128x128xf32>, vector<128x128xf32>, vector<128x128xf32> -> vector<128x128xf32>
    %cst_59 = arith.constant dense<0.000000e+00> : vector<128x128xf32>
    %108 = tpu.matmul %106, %100, %cst_59 {dimension_numbers = #tpu.dot_dimension_numbers<[1], [0], [0], [1], [0, 0, 1, 1], [], []>} : vector<128x128xf32>, vector<128x128xf32>, vector<128x128xf32> -> vector<128x128xf32>
    %c9_i32 = arith.constant 9 : i32
    %cst_60 = arith.constant 3.000000e+00 : f32
    %109 = vector.broadcast %cst_60 : f32 to vector<128x128xf32>
    %110 = arith.mulf %109, %15 : vector<128x128xf32>
    %cst_61 = arith.constant dense<0.000000e+00> : vector<128x128xf32>
    %111 = tpu.matmul %108, %107, %cst_61 {dimension_numbers = #tpu.dot_dimension_numbers<[1], [0], [0], [1], [0, 0, 1, 1], [], []>} : vector<128x128xf32>, vector<128x128xf32>, vector<128x128xf32> -> vector<128x128xf32>
    %112 = arith.subf %110, %111 : vector<128x128xf32>
    %cst_62 = arith.constant 5.000000e-01 : f32
    %113 = vector.broadcast %cst_62 : f32 to vector<128x128xf32>
    %114 = arith.mulf %113, %112 : vector<128x128xf32>
    %cst_63 = arith.constant dense<0.000000e+00> : vector<128x128xf32>
    %115 = tpu.matmul %107, %114, %cst_63 {dimension_numbers = #tpu.dot_dimension_numbers<[1], [0], [0], [1], [0, 0, 1, 1], [], []>} : vector<128x128xf32>, vector<128x128xf32>, vector<128x128xf32> -> vector<128x128xf32>
    %cst_64 = arith.constant dense<0.000000e+00> : vector<128x128xf32>
    %116 = tpu.matmul %114, %108, %cst_64 {dimension_numbers = #tpu.dot_dimension_numbers<[1], [0], [0], [1], [0, 0, 1, 1], [], []>} : vector<128x128xf32>, vector<128x128xf32>, vector<128x128xf32> -> vector<128x128xf32>
    %c10_i32 = arith.constant 10 : i32
    %cst_65 = arith.constant 3.000000e+00 : f32
    %117 = vector.broadcast %cst_65 : f32 to vector<128x128xf32>
    %118 = arith.mulf %117, %15 : vector<128x128xf32>
    %cst_66 = arith.constant dense<0.000000e+00> : vector<128x128xf32>
    %119 = tpu.matmul %116, %115, %cst_66 {dimension_numbers = #tpu.dot_dimension_numbers<[1], [0], [0], [1], [0, 0, 1, 1], [], []>} : vector<128x128xf32>, vector<128x128xf32>, vector<128x128xf32> -> vector<128x128xf32>
    %120 = arith.subf %118, %119 : vector<128x128xf32>
    %cst_67 = arith.constant 5.000000e-01 : f32
    %121 = vector.broadcast %cst_67 : f32 to vector<128x128xf32>
    %122 = arith.mulf %121, %120 : vector<128x128xf32>
    %cst_68 = arith.constant dense<0.000000e+00> : vector<128x128xf32>
    %123 = tpu.matmul %115, %122, %cst_68 {dimension_numbers = #tpu.dot_dimension_numbers<[1], [0], [0], [1], [0, 0, 1, 1], [], []>} : vector<128x128xf32>, vector<128x128xf32>, vector<128x128xf32> -> vector<128x128xf32>
    %cst_69 = arith.constant dense<0.000000e+00> : vector<128x128xf32>
    %124 = tpu.matmul %122, %116, %cst_69 {dimension_numbers = #tpu.dot_dimension_numbers<[1], [0], [0], [1], [0, 0, 1, 1], [], []>} : vector<128x128xf32>, vector<128x128xf32>, vector<128x128xf32> -> vector<128x128xf32>
    %c11_i32 = arith.constant 11 : i32
    %cst_70 = arith.constant 3.000000e+00 : f32
    %125 = vector.broadcast %cst_70 : f32 to vector<128x128xf32>
    %126 = arith.mulf %125, %15 : vector<128x128xf32>
    %cst_71 = arith.constant dense<0.000000e+00> : vector<128x128xf32>
    %127 = tpu.matmul %124, %123, %cst_71 {dimension_numbers = #tpu.dot_dimension_numbers<[1], [0], [0], [1], [0, 0, 1, 1], [], []>} : vector<128x128xf32>, vector<128x128xf32>, vector<128x128xf32> -> vector<128x128xf32>
    %128 = arith.subf %126, %127 : vector<128x128xf32>
    %cst_72 = arith.constant 5.000000e-01 : f32
    %129 = vector.broadcast %cst_72 : f32 to vector<128x128xf32>
    %130 = arith.mulf %129, %128 : vector<128x128xf32>
    %cst_73 = arith.constant dense<0.000000e+00> : vector<128x128xf32>
    %131 = tpu.matmul %123, %130, %cst_73 {dimension_numbers = #tpu.dot_dimension_numbers<[1], [0], [0], [1], [0, 0, 1, 1], [], []>} : vector<128x128xf32>, vector<128x128xf32>, vector<128x128xf32> -> vector<128x128xf32>
    %cst_74 = arith.constant dense<0.000000e+00> : vector<128x128xf32>
    %132 = tpu.matmul %130, %124, %cst_74 {dimension_numbers = #tpu.dot_dimension_numbers<[1], [0], [0], [1], [0, 0, 1, 1], [], []>} : vector<128x128xf32>, vector<128x128xf32>, vector<128x128xf32> -> vector<128x128xf32>
    %c12_i32 = arith.constant 12 : i32
    %cst_75 = arith.constant 3.000000e+00 : f32
    %133 = vector.broadcast %cst_75 : f32 to vector<128x128xf32>
    %134 = arith.mulf %133, %15 : vector<128x128xf32>
    %cst_76 = arith.constant dense<0.000000e+00> : vector<128x128xf32>
    %135 = tpu.matmul %132, %131, %cst_76 {dimension_numbers = #tpu.dot_dimension_numbers<[1], [0], [0], [1], [0, 0, 1, 1], [], []>} : vector<128x128xf32>, vector<128x128xf32>, vector<128x128xf32> -> vector<128x128xf32>
    %136 = arith.subf %134, %135 : vector<128x128xf32>
    %cst_77 = arith.constant 5.000000e-01 : f32
    %137 = vector.broadcast %cst_77 : f32 to vector<128x128xf32>
    %138 = arith.mulf %137, %136 : vector<128x128xf32>
    %cst_78 = arith.constant dense<0.000000e+00> : vector<128x128xf32>
    %139 = tpu.matmul %131, %138, %cst_78 {dimension_numbers = #tpu.dot_dimension_numbers<[1], [0], [0], [1], [0, 0, 1, 1], [], []>} : vector<128x128xf32>, vector<128x128xf32>, vector<128x128xf32> -> vector<128x128xf32>
    %cst_79 = arith.constant dense<0.000000e+00> : vector<128x128xf32>
    %140 = tpu.matmul %138, %132, %cst_79 {dimension_numbers = #tpu.dot_dimension_numbers<[1], [0], [0], [1], [0, 0, 1, 1], [], []>} : vector<128x128xf32>, vector<128x128xf32>, vector<128x128xf32> -> vector<128x128xf32>
    %c13_i32 = arith.constant 13 : i32
    %cst_80 = arith.constant 3.000000e+00 : f32
    %141 = vector.broadcast %cst_80 : f32 to vector<128x128xf32>
    %142 = arith.mulf %141, %15 : vector<128x128xf32>
    %cst_81 = arith.constant dense<0.000000e+00> : vector<128x128xf32>
    %143 = tpu.matmul %140, %139, %cst_81 {dimension_numbers = #tpu.dot_dimension_numbers<[1], [0], [0], [1], [0, 0, 1, 1], [], []>} : vector<128x128xf32>, vector<128x128xf32>, vector<128x128xf32> -> vector<128x128xf32>
    %144 = arith.subf %142, %143 : vector<128x128xf32>
    %cst_82 = arith.constant 5.000000e-01 : f32
    %145 = vector.broadcast %cst_82 : f32 to vector<128x128xf32>
    %146 = arith.mulf %145, %144 : vector<128x128xf32>
    %cst_83 = arith.constant dense<0.000000e+00> : vector<128x128xf32>
    %147 = tpu.matmul %139, %146, %cst_83 {dimension_numbers = #tpu.dot_dimension_numbers<[1], [0], [0], [1], [0, 0, 1, 1], [], []>} : vector<128x128xf32>, vector<128x128xf32>, vector<128x128xf32> -> vector<128x128xf32>
    %cst_84 = arith.constant dense<0.000000e+00> : vector<128x128xf32>
    %148 = tpu.matmul %146, %140, %cst_84 {dimension_numbers = #tpu.dot_dimension_numbers<[1], [0], [0], [1], [0, 0, 1, 1], [], []>} : vector<128x128xf32>, vector<128x128xf32>, vector<128x128xf32> -> vector<128x128xf32>
    %c14_i32 = arith.constant 14 : i32
    %cst_85 = arith.constant 3.000000e+00 : f32
    %149 = vector.broadcast %cst_85 : f32 to vector<128x128xf32>
    %150 = arith.mulf %149, %15 : vector<128x128xf32>
    %cst_86 = arith.constant dense<0.000000e+00> : vector<128x128xf32>
    %151 = tpu.matmul %148, %147, %cst_86 {dimension_numbers = #tpu.dot_dimension_numbers<[1], [0], [0], [1], [0, 0, 1, 1], [], []>} : vector<128x128xf32>, vector<128x128xf32>, vector<128x128xf32> -> vector<128x128xf32>
    %152 = arith.subf %150, %151 : vector<128x128xf32>
    %cst_87 = arith.constant 5.000000e-01 : f32
    %153 = vector.broadcast %cst_87 : f32 to vector<128x128xf32>
    %154 = arith.mulf %153, %152 : vector<128x128xf32>
    %cst_88 = arith.constant dense<0.000000e+00> : vector<128x128xf32>
    %155 = tpu.matmul %147, %154, %cst_88 {dimension_numbers = #tpu.dot_dimension_numbers<[1], [0], [0], [1], [0, 0, 1, 1], [], []>} : vector<128x128xf32>, vector<128x128xf32>, vector<128x128xf32> -> vector<128x128xf32>
    %cst_89 = arith.constant dense<0.000000e+00> : vector<128x128xf32>
    %156 = tpu.matmul %154, %148, %cst_89 {dimension_numbers = #tpu.dot_dimension_numbers<[1], [0], [0], [1], [0, 0, 1, 1], [], []>} : vector<128x128xf32>, vector<128x128xf32>, vector<128x128xf32> -> vector<128x128xf32>
    %c15_i32 = arith.constant 15 : i32
    %cst_90 = arith.constant 3.000000e+00 : f32
    %157 = vector.broadcast %cst_90 : f32 to vector<128x128xf32>
    %158 = arith.mulf %157, %15 : vector<128x128xf32>
    %cst_91 = arith.constant dense<0.000000e+00> : vector<128x128xf32>
    %159 = tpu.matmul %156, %155, %cst_91 {dimension_numbers = #tpu.dot_dimension_numbers<[1], [0], [0], [1], [0, 0, 1, 1], [], []>} : vector<128x128xf32>, vector<128x128xf32>, vector<128x128xf32> -> vector<128x128xf32>
    %160 = arith.subf %158, %159 : vector<128x128xf32>
    %cst_92 = arith.constant 5.000000e-01 : f32
    %161 = vector.broadcast %cst_92 : f32 to vector<128x128xf32>
    %162 = arith.mulf %161, %160 : vector<128x128xf32>
    %cst_93 = arith.constant dense<0.000000e+00> : vector<128x128xf32>
    %163 = tpu.matmul %155, %162, %cst_93 {dimension_numbers = #tpu.dot_dimension_numbers<[1], [0], [0], [1], [0, 0, 1, 1], [], []>} : vector<128x128xf32>, vector<128x128xf32>, vector<128x128xf32> -> vector<128x128xf32>
    %cst_94 = arith.constant dense<0.000000e+00> : vector<128x128xf32>
    %164 = tpu.matmul %162, %156, %cst_94 {dimension_numbers = #tpu.dot_dimension_numbers<[1], [0], [0], [1], [0, 0, 1, 1], [], []>} : vector<128x128xf32>, vector<128x128xf32>, vector<128x128xf32> -> vector<128x128xf32>
    %165 = math.sqrt %34 : f32
    %166 = vector.broadcast %165 : f32 to vector<128x128xf32>
    %167 = arith.mulf %163, %166 : vector<128x128xf32>
    %c0_95 = arith.constant 0 : index
    %c0_96 = arith.constant 0 : index
    %c0_97 = arith.constant 0 : index
    %168 = vector.load %arg4[%c0_95, %c0_96, %c0_97] : memref<1x128x128xf32, #tpu.memory_space<vmem>>, vector<1x128x128xf32>
    %169 = vector.shape_cast %168 : vector<1x128x128xf32> to vector<128x128xf32>
    %170 = vector.shape_cast %167 : vector<128x128xf32> to vector<1x128x128xf32>
    tpu.vector_store %arg4[%c0_95, %c0_96, %c0_97], %170 {strides = array<i32>} : memref<1x128x128xf32, #tpu.memory_space<vmem>>, vector<1x128x128xf32>,
    return
  }
  func.func @transform_0(%arg0: i32) -> (i32, i32, i32) {
    %c0_i32 = arith.constant 0 : i32
    %c0_i32_0 = arith.constant 0 : i32
    %c0_i32_1 = arith.constant 0 : i32
    return %arg0, %c0_i32, %c0_i32_0 : i32, i32, i32
  }
  func.func @transform_1(%arg0: i32) -> (i32, i32, i32) {
    %c0_i32 = arith.constant 0 : i32
    %c0_i32_0 = arith.constant 0 : i32
    %c0_i32_1 = arith.constant 0 : i32
    return %arg0, %c0_i32, %c0_i32_0 : i32, i32, i32
  }
  func.func @transform_2(%arg0: i32) -> (i32, i32, i32) {
    %c0_i32 = arith.constant 0 : i32
    %c0_i32_0 = arith.constant 0 : i32
    %c0_i32_1 = arith.constant 0 : i32
    return %arg0, %c0_i32, %c0_i32_0 : i32, i32, i32
  }
  func.func @transform_3(%arg0: i32) -> (i32, i32, i32) {
    %c0_i32 = arith.constant 0 : i32
    %c0_i32_0 = arith.constant 0 : i32
    %c0_i32_1 = arith.constant 0 : i32
    return %arg0, %c0_i32, %c0_i32_0 : i32, i32, i32
  }
}

module attributes {stable_mosaic.version = 11 : i64} {
  func.func @_image_wass_kernel(%arg0: i32, %arg1: memref<2xi32, #tpu.memory_space<smem>>, %arg2: memref<1x2x128xf32, #tpu.memory_space<vmem>>, %arg3: memref<1x1x128xf32, #tpu.memory_space<vmem>>, %arg4: memref<1x1x128xf32, #tpu.memory_space<vmem>>, %arg5: memref<1x128x128xf32, #tpu.memory_space<vmem>>, %arg6: memref<1x1x128xf32, #tpu.memory_space<vmem>>) attributes {dimension_semantics = [#tpu.dimension_semantics<parallel>], iteration_bounds = array<i64: 2>, scalar_prefetch = 1 : i64, scratch_operands = 0 : i64, tpu.core_type = #tpu.core_type<tc>, window_params = [{transform_indices = @transform_0, window_bounds = array<i64: 1, 2, 128>}, {transform_indices = @transform_1, window_bounds = array<i64: 1, 1, 128>}, {transform_indices = @transform_2, window_bounds = array<i64: 1, 1, 128>}, {transform_indices = @transform_3, window_bounds = array<i64: 1, 128, 128>}, {transform_indices = @transform_4, window_bounds = array<i64: 1, 1, 128>}]} {
    %c0 = arith.constant 0 : index
    %c0_0 = arith.constant 0 : index
    %c0_1 = arith.constant 0 : index
    %0 = vector.load %arg2[%c0, %c0_0, %c0_1] : memref<1x2x128xf32, #tpu.memory_space<vmem>>, vector<1x2x128xf32>
    %1 = vector.shape_cast %0 : vector<1x2x128xf32> to vector<2x128xf32>
    %2 = tpu.iota {dimensions = array<i32: 0>} : vector<128x128xi32>
    %3 = tpu.iota {dimensions = array<i32: 1>} : vector<128x128xi32>
    %4 = arith.cmpi eq, %2, %3 : vector<128x128xi32>
    %5 = arith.extui %4 : vector<128x128xi1> to vector<128x128xi32>
    %6 = arith.sitofp %5 : vector<128x128xi32> to vector<128x128xf32>
    %cst = arith.constant dense<0.000000e+00> : vector<128xf32>
    %7 = vector.multi_reduction <add>, %1, %cst [0] : vector<2x128xf32> to vector<128xf32>
    %8 = vector.shape_cast %7 : vector<128xf32> to vector<1x128xf32>
    %cst_2 = arith.constant 2.000000e+00 : f32
    %9 = vector.broadcast %cst_2 : f32 to vector<1x128xf32>
    %10 = arith.divf %8, %9 : vector<1x128xf32>
    %11 = vector.broadcast %10 : vector<1x128xf32> to vector<2x128xf32>
    %12 = arith.subf %1, %11 : vector<2x128xf32>
    %cst_3 = arith.constant 1.000000e+00 : f32
    %13 = vector.broadcast %cst_3 : f32 to vector<2x128xf32>
    %14 = arith.mulf %12, %13 : vector<2x128xf32>
    %15 = arith.mulf %14, %14 : vector<2x128xf32>
    %cst_4 = arith.constant dense<0.000000e+00> : vector<128xf32>
    %16 = vector.multi_reduction <add>, %15, %cst_4 [0] : vector<2x128xf32> to vector<128xf32>
    %17 = vector.shape_cast %16 : vector<128xf32> to vector<1x128xf32>
    %c0_5 = arith.constant 0 : index
    %c0_6 = arith.constant 0 : index
    %c0_7 = arith.constant 0 : index
    %18 = vector.load %arg5[%c0_5, %c0_6, %c0_7] : memref<1x128x128xf32, #tpu.memory_space<vmem>>, vector<1x128x128xf32>
    %19 = vector.shape_cast %18 : vector<1x128x128xf32> to vector<128x128xf32>
    %cst_8 = arith.constant dense<0.000000e+00> : vector<2x128xf32>
    %20 = tpu.matmul %14, %19, %cst_8 {dimension_numbers = #tpu.dot_dimension_numbers<[1], [0], [0], [1], [0, 0, 1, 1], [], []>} : vector<2x128xf32>, vector<128x128xf32>, vector<2x128xf32> -> vector<2x128xf32>
    %cst_9 = arith.constant dense<0.000000e+00> : vector<128x128xf32>
    %21 = tpu.matmul %20, %20, %cst_9 {dimension_numbers = #tpu.dot_dimension_numbers<[0], [0], [1], [1], [0, 1, 1, 1], [], []>} : vector<2x128xf32>, vector<2x128xf32>, vector<128x128xf32> -> vector<128x128xf32>
    %cst_10 = arith.constant 1.000000e-07 : f32
    %22 = vector.broadcast %cst_10 : f32 to vector<128x128xf32>
    %23 = arith.mulf %22, %6 : vector<128x128xf32>
    %24 = arith.addf %21, %23 : vector<128x128xf32>
    %25 = arith.mulf %24, %24 : vector<128x128xf32>
    %26 = vector.shape_cast %25 : vector<128x128xf32> to vector<1x128x128xf32>
    %cst_11 = arith.constant dense<0.000000e+00> : vector<1xf32>
    %27 = vector.multi_reduction <add>, %26, %cst_11 [1, 2] : vector<1x128x128xf32> to vector<1xf32>
    %28 = vector.shape_cast %27 : vector<1xf32> to vector<1x1x1xf32>
    %29 = vector.extract %28[0, 0, 0] : f32 from vector<1x1x1xf32>
    %30 = math.sqrt %29 : f32
    %cst_12 = arith.constant 9.99999996E-13 : f32
    %31 = arith.maximumf %30, %cst_12 : f32
    %32 = vector.broadcast %31 : f32 to vector<128x128xf32>
    %33 = arith.divf %24, %32 : vector<128x128xf32>
    %c0_i32 = arith.constant 0 : i32
    %cst_13 = arith.constant 3.000000e+00 : f32
    %34 = vector.broadcast %cst_13 : f32 to vector<128x128xf32>
    %35 = arith.mulf %34, %6 : vector<128x128xf32>
    %cst_14 = arith.constant dense<0.000000e+00> : vector<128x128xf32>
    %36 = tpu.matmul %6, %33, %cst_14 {dimension_numbers = #tpu.dot_dimension_numbers<[1], [0], [0], [1], [0, 0, 1, 1], [], []>} : vector<128x128xf32>, vector<128x128xf32>, vector<128x128xf32> -> vector<128x128xf32>
    %37 = arith.subf %35, %36 : vector<128x128xf32>
    %cst_15 = arith.constant 5.000000e-01 : f32
    %38 = vector.broadcast %cst_15 : f32 to vector<128x128xf32>
    %39 = arith.mulf %38, %37 : vector<128x128xf32>
    %cst_16 = arith.constant dense<0.000000e+00> : vector<128x128xf32>
    %40 = tpu.matmul %33, %39, %cst_16 {dimension_numbers = #tpu.dot_dimension_numbers<[1], [0], [0], [1], [0, 0, 1, 1], [], []>} : vector<128x128xf32>, vector<128x128xf32>, vector<128x128xf32> -> vector<128x128xf32>
    %cst_17 = arith.constant dense<0.000000e+00> : vector<128x128xf32>
    %41 = tpu.matmul %39, %6, %cst_17 {dimension_numbers = #tpu.dot_dimension_numbers<[1], [0], [0], [1], [0, 0, 1, 1], [], []>} : vector<128x128xf32>, vector<128x128xf32>, vector<128x128xf32> -> vector<128x128xf32>
    %c1_i32 = arith.constant 1 : i32
    %cst_18 = arith.constant 3.000000e+00 : f32
    %42 = vector.broadcast %cst_18 : f32 to vector<128x128xf32>
    %43 = arith.mulf %42, %6 : vector<128x128xf32>
    %cst_19 = arith.constant dense<0.000000e+00> : vector<128x128xf32>
    %44 = tpu.matmul %41, %40, %cst_19 {dimension_numbers = #tpu.dot_dimension_numbers<[1], [0], [0], [1], [0, 0, 1, 1], [], []>} : vector<128x128xf32>, vector<128x128xf32>, vector<128x128xf32> -> vector<128x128xf32>
    %45 = arith.subf %43, %44 : vector<128x128xf32>
    %cst_20 = arith.constant 5.000000e-01 : f32
    %46 = vector.broadcast %cst_20 : f32 to vector<128x128xf32>
    %47 = arith.mulf %46, %45 : vector<128x128xf32>
    %cst_21 = arith.constant dense<0.000000e+00> : vector<128x128xf32>
    %48 = tpu.matmul %40, %47, %cst_21 {dimension_numbers = #tpu.dot_dimension_numbers<[1], [0], [0], [1], [0, 0, 1, 1], [], []>} : vector<128x128xf32>, vector<128x128xf32>, vector<128x128xf32> -> vector<128x128xf32>
    %cst_22 = arith.constant dense<0.000000e+00> : vector<128x128xf32>
    %49 = tpu.matmul %47, %41, %cst_22 {dimension_numbers = #tpu.dot_dimension_numbers<[1], [0], [0], [1], [0, 0, 1, 1], [], []>} : vector<128x128xf32>, vector<128x128xf32>, vector<128x128xf32> -> vector<128x128xf32>
    %c2_i32 = arith.constant 2 : i32
    %cst_23 = arith.constant 3.000000e+00 : f32
    %50 = vector.broadcast %cst_23 : f32 to vector<128x128xf32>
    %51 = arith.mulf %50, %6 : vector<128x128xf32>
    %cst_24 = arith.constant dense<0.000000e+00> : vector<128x128xf32>
    %52 = tpu.matmul %49, %48, %cst_24 {dimension_numbers = #tpu.dot_dimension_numbers<[1], [0], [0], [1], [0, 0, 1, 1], [], []>} : vector<128x128xf32>, vector<128x128xf32>, vector<128x128xf32> -> vector<128x128xf32>
    %53 = arith.subf %51, %52 : vector<128x128xf32>
    %cst_25 = arith.constant 5.000000e-01 : f32
    %54 = vector.broadcast %cst_25 : f32 to vector<128x128xf32>
    %55 = arith.mulf %54, %53 : vector<128x128xf32>
    %cst_26 = arith.constant dense<0.000000e+00> : vector<128x128xf32>
    %56 = tpu.matmul %48, %55, %cst_26 {dimension_numbers = #tpu.dot_dimension_numbers<[1], [0], [0], [1], [0, 0, 1, 1], [], []>} : vector<128x128xf32>, vector<128x128xf32>, vector<128x128xf32> -> vector<128x128xf32>
    %cst_27 = arith.constant dense<0.000000e+00> : vector<128x128xf32>
    %57 = tpu.matmul %55, %49, %cst_27 {dimension_numbers = #tpu.dot_dimension_numbers<[1], [0], [0], [1], [0, 0, 1, 1], [], []>} : vector<128x128xf32>, vector<128x128xf32>, vector<128x128xf32> -> vector<128x128xf32>
    %c3_i32 = arith.constant 3 : i32
    %cst_28 = arith.constant 3.000000e+00 : f32
    %58 = vector.broadcast %cst_28 : f32 to vector<128x128xf32>
    %59 = arith.mulf %58, %6 : vector<128x128xf32>
    %cst_29 = arith.constant dense<0.000000e+00> : vector<128x128xf32>
    %60 = tpu.matmul %57, %56, %cst_29 {dimension_numbers = #tpu.dot_dimension_numbers<[1], [0], [0], [1], [0, 0, 1, 1], [], []>} : vector<128x128xf32>, vector<128x128xf32>, vector<128x128xf32> -> vector<128x128xf32>
    %61 = arith.subf %59, %60 : vector<128x128xf32>
    %cst_30 = arith.constant 5.000000e-01 : f32
    %62 = vector.broadcast %cst_30 : f32 to vector<128x128xf32>
    %63 = arith.mulf %62, %61 : vector<128x128xf32>
    %cst_31 = arith.constant dense<0.000000e+00> : vector<128x128xf32>
    %64 = tpu.matmul %56, %63, %cst_31 {dimension_numbers = #tpu.dot_dimension_numbers<[1], [0], [0], [1], [0, 0, 1, 1], [], []>} : vector<128x128xf32>, vector<128x128xf32>, vector<128x128xf32> -> vector<128x128xf32>
    %cst_32 = arith.constant dense<0.000000e+00> : vector<128x128xf32>
    %65 = tpu.matmul %63, %57, %cst_32 {dimension_numbers = #tpu.dot_dimension_numbers<[1], [0], [0], [1], [0, 0, 1, 1], [], []>} : vector<128x128xf32>, vector<128x128xf32>, vector<128x128xf32> -> vector<128x128xf32>
    %c4_i32 = arith.constant 4 : i32
    %cst_33 = arith.constant 3.000000e+00 : f32
    %66 = vector.broadcast %cst_33 : f32 to vector<128x128xf32>
    %67 = arith.mulf %66, %6 : vector<128x128xf32>
    %cst_34 = arith.constant dense<0.000000e+00> : vector<128x128xf32>
    %68 = tpu.matmul %65, %64, %cst_34 {dimension_numbers = #tpu.dot_dimension_numbers<[1], [0], [0], [1], [0, 0, 1, 1], [], []>} : vector<128x128xf32>, vector<128x128xf32>, vector<128x128xf32> -> vector<128x128xf32>
    %69 = arith.subf %67, %68 : vector<128x128xf32>
    %cst_35 = arith.constant 5.000000e-01 : f32
    %70 = vector.broadcast %cst_35 : f32 to vector<128x128xf32>
    %71 = arith.mulf %70, %69 : vector<128x128xf32>
    %cst_36 = arith.constant dense<0.000000e+00> : vector<128x128xf32>
    %72 = tpu.matmul %64, %71, %cst_36 {dimension_numbers = #tpu.dot_dimension_numbers<[1], [0], [0], [1], [0, 0, 1, 1], [], []>} : vector<128x128xf32>, vector<128x128xf32>, vector<128x128xf32> -> vector<128x128xf32>
    %cst_37 = arith.constant dense<0.000000e+00> : vector<128x128xf32>
    %73 = tpu.matmul %71, %65, %cst_37 {dimension_numbers = #tpu.dot_dimension_numbers<[1], [0], [0], [1], [0, 0, 1, 1], [], []>} : vector<128x128xf32>, vector<128x128xf32>, vector<128x128xf32> -> vector<128x128xf32>
    %c5_i32 = arith.constant 5 : i32
    %cst_38 = arith.constant 3.000000e+00 : f32
    %74 = vector.broadcast %cst_38 : f32 to vector<128x128xf32>
    %75 = arith.mulf %74, %6 : vector<128x128xf32>
    %cst_39 = arith.constant dense<0.000000e+00> : vector<128x128xf32>
    %76 = tpu.matmul %73, %72, %cst_39 {dimension_numbers = #tpu.dot_dimension_numbers<[1], [0], [0], [1], [0, 0, 1, 1], [], []>} : vector<128x128xf32>, vector<128x128xf32>, vector<128x128xf32> -> vector<128x128xf32>
    %77 = arith.subf %75, %76 : vector<128x128xf32>
    %cst_40 = arith.constant 5.000000e-01 : f32
    %78 = vector.broadcast %cst_40 : f32 to vector<128x128xf32>
    %79 = arith.mulf %78, %77 : vector<128x128xf32>
    %cst_41 = arith.constant dense<0.000000e+00> : vector<128x128xf32>
    %80 = tpu.matmul %72, %79, %cst_41 {dimension_numbers = #tpu.dot_dimension_numbers<[1], [0], [0], [1], [0, 0, 1, 1], [], []>} : vector<128x128xf32>, vector<128x128xf32>, vector<128x128xf32> -> vector<128x128xf32>
    %cst_42 = arith.constant dense<0.000000e+00> : vector<128x128xf32>
    %81 = tpu.matmul %79, %73, %cst_42 {dimension_numbers = #tpu.dot_dimension_numbers<[1], [0], [0], [1], [0, 0, 1, 1], [], []>} : vector<128x128xf32>, vector<128x128xf32>, vector<128x128xf32> -> vector<128x128xf32>
    %c6_i32 = arith.constant 6 : i32
    %cst_43 = arith.constant 3.000000e+00 : f32
    %82 = vector.broadcast %cst_43 : f32 to vector<128x128xf32>
    %83 = arith.mulf %82, %6 : vector<128x128xf32>
    %cst_44 = arith.constant dense<0.000000e+00> : vector<128x128xf32>
    %84 = tpu.matmul %81, %80, %cst_44 {dimension_numbers = #tpu.dot_dimension_numbers<[1], [0], [0], [1], [0, 0, 1, 1], [], []>} : vector<128x128xf32>, vector<128x128xf32>, vector<128x128xf32> -> vector<128x128xf32>
    %85 = arith.subf %83, %84 : vector<128x128xf32>
    %cst_45 = arith.constant 5.000000e-01 : f32
    %86 = vector.broadcast %cst_45 : f32 to vector<128x128xf32>
    %87 = arith.mulf %86, %85 : vector<128x128xf32>
    %cst_46 = arith.constant dense<0.000000e+00> : vector<128x128xf32>
    %88 = tpu.matmul %80, %87, %cst_46 {dimension_numbers = #tpu.dot_dimension_numbers<[1], [0], [0], [1], [0, 0, 1, 1], [], []>} : vector<128x128xf32>, vector<128x128xf32>, vector<128x128xf32> -> vector<128x128xf32>
    %cst_47 = arith.constant dense<0.000000e+00> : vector<128x128xf32>
    %89 = tpu.matmul %87, %81, %cst_47 {dimension_numbers = #tpu.dot_dimension_numbers<[1], [0], [0], [1], [0, 0, 1, 1], [], []>} : vector<128x128xf32>, vector<128x128xf32>, vector<128x128xf32> -> vector<128x128xf32>
    %c7_i32 = arith.constant 7 : i32
    %cst_48 = arith.constant 3.000000e+00 : f32
    %90 = vector.broadcast %cst_48 : f32 to vector<128x128xf32>
    %91 = arith.mulf %90, %6 : vector<128x128xf32>
    %cst_49 = arith.constant dense<0.000000e+00> : vector<128x128xf32>
    %92 = tpu.matmul %89, %88, %cst_49 {dimension_numbers = #tpu.dot_dimension_numbers<[1], [0], [0], [1], [0, 0, 1, 1], [], []>} : vector<128x128xf32>, vector<128x128xf32>, vector<128x128xf32> -> vector<128x128xf32>
    %93 = arith.subf %91, %92 : vector<128x128xf32>
    %cst_50 = arith.constant 5.000000e-01 : f32
    %94 = vector.broadcast %cst_50 : f32 to vector<128x128xf32>
    %95 = arith.mulf %94, %93 : vector<128x128xf32>
    %cst_51 = arith.constant dense<0.000000e+00> : vector<128x128xf32>
    %96 = tpu.matmul %88, %95, %cst_51 {dimension_numbers = #tpu.dot_dimension_numbers<[1], [0], [0], [1], [0, 0, 1, 1], [], []>} : vector<128x128xf32>, vector<128x128xf32>, vector<128x128xf32> -> vector<128x128xf32>
    %cst_52 = arith.constant dense<0.000000e+00> : vector<128x128xf32>
    %97 = tpu.matmul %95, %89, %cst_52 {dimension_numbers = #tpu.dot_dimension_numbers<[1], [0], [0], [1], [0, 0, 1, 1], [], []>} : vector<128x128xf32>, vector<128x128xf32>, vector<128x128xf32> -> vector<128x128xf32>
    %c8_i32 = arith.constant 8 : i32
    %cst_53 = arith.constant 3.000000e+00 : f32
    %98 = vector.broadcast %cst_53 : f32 to vector<128x128xf32>
    %99 = arith.mulf %98, %6 : vector<128x128xf32>
    %cst_54 = arith.constant dense<0.000000e+00> : vector<128x128xf32>
    %100 = tpu.matmul %97, %96, %cst_54 {dimension_numbers = #tpu.dot_dimension_numbers<[1], [0], [0], [1], [0, 0, 1, 1], [], []>} : vector<128x128xf32>, vector<128x128xf32>, vector<128x128xf32> -> vector<128x128xf32>
    %101 = arith.subf %99, %100 : vector<128x128xf32>
    %cst_55 = arith.constant 5.000000e-01 : f32
    %102 = vector.broadcast %cst_55 : f32 to vector<128x128xf32>
    %103 = arith.mulf %102, %101 : vector<128x128xf32>
    %cst_56 = arith.constant dense<0.000000e+00> : vector<128x128xf32>
    %104 = tpu.matmul %96, %103, %cst_56 {dimension_numbers = #tpu.dot_dimension_numbers<[1], [0], [0], [1], [0, 0, 1, 1], [], []>} : vector<128x128xf32>, vector<128x128xf32>, vector<128x128xf32> -> vector<128x128xf32>
    %cst_57 = arith.constant dense<0.000000e+00> : vector<128x128xf32>
    %105 = tpu.matmul %103, %97, %cst_57 {dimension_numbers = #tpu.dot_dimension_numbers<[1], [0], [0], [1], [0, 0, 1, 1], [], []>} : vector<128x128xf32>, vector<128x128xf32>, vector<128x128xf32> -> vector<128x128xf32>
    %c9_i32 = arith.constant 9 : i32
    %cst_58 = arith.constant 3.000000e+00 : f32
    %106 = vector.broadcast %cst_58 : f32 to vector<128x128xf32>
    %107 = arith.mulf %106, %6 : vector<128x128xf32>
    %cst_59 = arith.constant dense<0.000000e+00> : vector<128x128xf32>
    %108 = tpu.matmul %105, %104, %cst_59 {dimension_numbers = #tpu.dot_dimension_numbers<[1], [0], [0], [1], [0, 0, 1, 1], [], []>} : vector<128x128xf32>, vector<128x128xf32>, vector<128x128xf32> -> vector<128x128xf32>
    %109 = arith.subf %107, %108 : vector<128x128xf32>
    %cst_60 = arith.constant 5.000000e-01 : f32
    %110 = vector.broadcast %cst_60 : f32 to vector<128x128xf32>
    %111 = arith.mulf %110, %109 : vector<128x128xf32>
    %cst_61 = arith.constant dense<0.000000e+00> : vector<128x128xf32>
    %112 = tpu.matmul %104, %111, %cst_61 {dimension_numbers = #tpu.dot_dimension_numbers<[1], [0], [0], [1], [0, 0, 1, 1], [], []>} : vector<128x128xf32>, vector<128x128xf32>, vector<128x128xf32> -> vector<128x128xf32>
    %cst_62 = arith.constant dense<0.000000e+00> : vector<128x128xf32>
    %113 = tpu.matmul %111, %105, %cst_62 {dimension_numbers = #tpu.dot_dimension_numbers<[1], [0], [0], [1], [0, 0, 1, 1], [], []>} : vector<128x128xf32>, vector<128x128xf32>, vector<128x128xf32> -> vector<128x128xf32>
    %c10_i32 = arith.constant 10 : i32
    %cst_63 = arith.constant 3.000000e+00 : f32
    %114 = vector.broadcast %cst_63 : f32 to vector<128x128xf32>
    %115 = arith.mulf %114, %6 : vector<128x128xf32>
    %cst_64 = arith.constant dense<0.000000e+00> : vector<128x128xf32>
    %116 = tpu.matmul %113, %112, %cst_64 {dimension_numbers = #tpu.dot_dimension_numbers<[1], [0], [0], [1], [0, 0, 1, 1], [], []>} : vector<128x128xf32>, vector<128x128xf32>, vector<128x128xf32> -> vector<128x128xf32>
    %117 = arith.subf %115, %116 : vector<128x128xf32>
    %cst_65 = arith.constant 5.000000e-01 : f32
    %118 = vector.broadcast %cst_65 : f32 to vector<128x128xf32>
    %119 = arith.mulf %118, %117 : vector<128x128xf32>
    %cst_66 = arith.constant dense<0.000000e+00> : vector<128x128xf32>
    %120 = tpu.matmul %112, %119, %cst_66 {dimension_numbers = #tpu.dot_dimension_numbers<[1], [0], [0], [1], [0, 0, 1, 1], [], []>} : vector<128x128xf32>, vector<128x128xf32>, vector<128x128xf32> -> vector<128x128xf32>
    %cst_67 = arith.constant dense<0.000000e+00> : vector<128x128xf32>
    %121 = tpu.matmul %119, %113, %cst_67 {dimension_numbers = #tpu.dot_dimension_numbers<[1], [0], [0], [1], [0, 0, 1, 1], [], []>} : vector<128x128xf32>, vector<128x128xf32>, vector<128x128xf32> -> vector<128x128xf32>
    %c11_i32 = arith.constant 11 : i32
    %cst_68 = arith.constant 3.000000e+00 : f32
    %122 = vector.broadcast %cst_68 : f32 to vector<128x128xf32>
    %123 = arith.mulf %122, %6 : vector<128x128xf32>
    %cst_69 = arith.constant dense<0.000000e+00> : vector<128x128xf32>
    %124 = tpu.matmul %121, %120, %cst_69 {dimension_numbers = #tpu.dot_dimension_numbers<[1], [0], [0], [1], [0, 0, 1, 1], [], []>} : vector<128x128xf32>, vector<128x128xf32>, vector<128x128xf32> -> vector<128x128xf32>
    %125 = arith.subf %123, %124 : vector<128x128xf32>
    %cst_70 = arith.constant 5.000000e-01 : f32
    %126 = vector.broadcast %cst_70 : f32 to vector<128x128xf32>
    %127 = arith.mulf %126, %125 : vector<128x128xf32>
    %cst_71 = arith.constant dense<0.000000e+00> : vector<128x128xf32>
    %128 = tpu.matmul %120, %127, %cst_71 {dimension_numbers = #tpu.dot_dimension_numbers<[1], [0], [0], [1], [0, 0, 1, 1], [], []>} : vector<128x128xf32>, vector<128x128xf32>, vector<128x128xf32> -> vector<128x128xf32>
    %cst_72 = arith.constant dense<0.000000e+00> : vector<128x128xf32>
    %129 = tpu.matmul %127, %121, %cst_72 {dimension_numbers = #tpu.dot_dimension_numbers<[1], [0], [0], [1], [0, 0, 1, 1], [], []>} : vector<128x128xf32>, vector<128x128xf32>, vector<128x128xf32> -> vector<128x128xf32>
    %c12_i32 = arith.constant 12 : i32
    %cst_73 = arith.constant 3.000000e+00 : f32
    %130 = vector.broadcast %cst_73 : f32 to vector<128x128xf32>
    %131 = arith.mulf %130, %6 : vector<128x128xf32>
    %cst_74 = arith.constant dense<0.000000e+00> : vector<128x128xf32>
    %132 = tpu.matmul %129, %128, %cst_74 {dimension_numbers = #tpu.dot_dimension_numbers<[1], [0], [0], [1], [0, 0, 1, 1], [], []>} : vector<128x128xf32>, vector<128x128xf32>, vector<128x128xf32> -> vector<128x128xf32>
    %133 = arith.subf %131, %132 : vector<128x128xf32>
    %cst_75 = arith.constant 5.000000e-01 : f32
    %134 = vector.broadcast %cst_75 : f32 to vector<128x128xf32>
    %135 = arith.mulf %134, %133 : vector<128x128xf32>
    %cst_76 = arith.constant dense<0.000000e+00> : vector<128x128xf32>
    %136 = tpu.matmul %128, %135, %cst_76 {dimension_numbers = #tpu.dot_dimension_numbers<[1], [0], [0], [1], [0, 0, 1, 1], [], []>} : vector<128x128xf32>, vector<128x128xf32>, vector<128x128xf32> -> vector<128x128xf32>
    %cst_77 = arith.constant dense<0.000000e+00> : vector<128x128xf32>
    %137 = tpu.matmul %135, %129, %cst_77 {dimension_numbers = #tpu.dot_dimension_numbers<[1], [0], [0], [1], [0, 0, 1, 1], [], []>} : vector<128x128xf32>, vector<128x128xf32>, vector<128x128xf32> -> vector<128x128xf32>
    %c13_i32 = arith.constant 13 : i32
    %cst_78 = arith.constant 3.000000e+00 : f32
    %138 = vector.broadcast %cst_78 : f32 to vector<128x128xf32>
    %139 = arith.mulf %138, %6 : vector<128x128xf32>
    %cst_79 = arith.constant dense<0.000000e+00> : vector<128x128xf32>
    %140 = tpu.matmul %137, %136, %cst_79 {dimension_numbers = #tpu.dot_dimension_numbers<[1], [0], [0], [1], [0, 0, 1, 1], [], []>} : vector<128x128xf32>, vector<128x128xf32>, vector<128x128xf32> -> vector<128x128xf32>
    %141 = arith.subf %139, %140 : vector<128x128xf32>
    %cst_80 = arith.constant 5.000000e-01 : f32
    %142 = vector.broadcast %cst_80 : f32 to vector<128x128xf32>
    %143 = arith.mulf %142, %141 : vector<128x128xf32>
    %cst_81 = arith.constant dense<0.000000e+00> : vector<128x128xf32>
    %144 = tpu.matmul %136, %143, %cst_81 {dimension_numbers = #tpu.dot_dimension_numbers<[1], [0], [0], [1], [0, 0, 1, 1], [], []>} : vector<128x128xf32>, vector<128x128xf32>, vector<128x128xf32> -> vector<128x128xf32>
    %cst_82 = arith.constant dense<0.000000e+00> : vector<128x128xf32>
    %145 = tpu.matmul %143, %137, %cst_82 {dimension_numbers = #tpu.dot_dimension_numbers<[1], [0], [0], [1], [0, 0, 1, 1], [], []>} : vector<128x128xf32>, vector<128x128xf32>, vector<128x128xf32> -> vector<128x128xf32>
    %c14_i32 = arith.constant 14 : i32
    %cst_83 = arith.constant 3.000000e+00 : f32
    %146 = vector.broadcast %cst_83 : f32 to vector<128x128xf32>
    %147 = arith.mulf %146, %6 : vector<128x128xf32>
    %cst_84 = arith.constant dense<0.000000e+00> : vector<128x128xf32>
    %148 = tpu.matmul %145, %144, %cst_84 {dimension_numbers = #tpu.dot_dimension_numbers<[1], [0], [0], [1], [0, 0, 1, 1], [], []>} : vector<128x128xf32>, vector<128x128xf32>, vector<128x128xf32> -> vector<128x128xf32>
    %149 = arith.subf %147, %148 : vector<128x128xf32>
    %cst_85 = arith.constant 5.000000e-01 : f32
    %150 = vector.broadcast %cst_85 : f32 to vector<128x128xf32>
    %151 = arith.mulf %150, %149 : vector<128x128xf32>
    %cst_86 = arith.constant dense<0.000000e+00> : vector<128x128xf32>
    %152 = tpu.matmul %144, %151, %cst_86 {dimension_numbers = #tpu.dot_dimension_numbers<[1], [0], [0], [1], [0, 0, 1, 1], [], []>} : vector<128x128xf32>, vector<128x128xf32>, vector<128x128xf32> -> vector<128x128xf32>
    %cst_87 = arith.constant dense<0.000000e+00> : vector<128x128xf32>
    %153 = tpu.matmul %151, %145, %cst_87 {dimension_numbers = #tpu.dot_dimension_numbers<[1], [0], [0], [1], [0, 0, 1, 1], [], []>} : vector<128x128xf32>, vector<128x128xf32>, vector<128x128xf32> -> vector<128x128xf32>
    %c15_i32 = arith.constant 15 : i32
    %cst_88 = arith.constant 3.000000e+00 : f32
    %154 = vector.broadcast %cst_88 : f32 to vector<128x128xf32>
    %155 = arith.mulf %154, %6 : vector<128x128xf32>
    %cst_89 = arith.constant dense<0.000000e+00> : vector<128x128xf32>
    %156 = tpu.matmul %153, %152, %cst_89 {dimension_numbers = #tpu.dot_dimension_numbers<[1], [0], [0], [1], [0, 0, 1, 1], [], []>} : vector<128x128xf32>, vector<128x128xf32>, vector<128x128xf32> -> vector<128x128xf32>
    %157 = arith.subf %155, %156 : vector<128x128xf32>
    %cst_90 = arith.constant 5.000000e-01 : f32
    %158 = vector.broadcast %cst_90 : f32 to vector<128x128xf32>
    %159 = arith.mulf %158, %157 : vector<128x128xf32>
    %cst_91 = arith.constant dense<0.000000e+00> : vector<128x128xf32>
    %160 = tpu.matmul %152, %159, %cst_91 {dimension_numbers = #tpu.dot_dimension_numbers<[1], [0], [0], [1], [0, 0, 1, 1], [], []>} : vector<128x128xf32>, vector<128x128xf32>, vector<128x128xf32> -> vector<128x128xf32>
    %cst_92 = arith.constant dense<0.000000e+00> : vector<128x128xf32>
    %161 = tpu.matmul %159, %153, %cst_92 {dimension_numbers = #tpu.dot_dimension_numbers<[1], [0], [0], [1], [0, 0, 1, 1], [], []>} : vector<128x128xf32>, vector<128x128xf32>, vector<128x128xf32> -> vector<128x128xf32>
    %162 = math.sqrt %31 : f32
    %163 = vector.broadcast %162 : f32 to vector<128x128xf32>
    %164 = arith.mulf %160, %163 : vector<128x128xf32>
    %165 = arith.mulf %164, %6 : vector<128x128xf32>
    %cst_93 = arith.constant dense<0.000000e+00> : vector<128xf32>
    %166 = vector.multi_reduction <add>, %165, %cst_93 [0] : vector<128x128xf32> to vector<128xf32>
    %167 = vector.shape_cast %166 : vector<128xf32> to vector<1x128xf32>
    %c0_94 = arith.constant 0 : index
    %c0_95 = arith.constant 0 : index
    %c0_96 = arith.constant 0 : index
    %168 = vector.load %arg3[%c0_94, %c0_95, %c0_96] : memref<1x1x128xf32, #tpu.memory_space<vmem>>, vector<1x1x128xf32>
    %169 = vector.shape_cast %168 : vector<1x1x128xf32> to vector<1x128xf32>
    %170 = arith.subf %10, %169 : vector<1x128xf32>
    %171 = arith.mulf %170, %170 : vector<1x128xf32>
    %172 = arith.addf %171, %17 : vector<1x128xf32>
    %c0_97 = arith.constant 0 : index
    %c0_98 = arith.constant 0 : index
    %c0_99 = arith.constant 0 : index
    %173 = vector.load %arg4[%c0_97, %c0_98, %c0_99] : memref<1x1x128xf32, #tpu.memory_space<vmem>>, vector<1x1x128xf32>
    %174 = vector.shape_cast %173 : vector<1x1x128xf32> to vector<1x128xf32>
    %175 = arith.addf %172, %174 : vector<1x128xf32>
    %cst_100 = arith.constant 2.000000e+00 : f32
    %176 = vector.broadcast %cst_100 : f32 to vector<1x128xf32>
    %177 = arith.mulf %176, %167 : vector<1x128xf32>
    %178 = arith.subf %175, %177 : vector<1x128xf32>
    %c0_101 = arith.constant 0 : index
    %c0_102 = arith.constant 0 : index
    %c0_103 = arith.constant 0 : index
    %179 = vector.load %arg6[%c0_101, %c0_102, %c0_103] : memref<1x1x128xf32, #tpu.memory_space<vmem>>, vector<1x1x128xf32>
    %180 = vector.shape_cast %179 : vector<1x1x128xf32> to vector<1x128xf32>
    %181 = vector.shape_cast %178 : vector<1x128xf32> to vector<1x1x128xf32>
    tpu.vector_store %arg6[%c0_101, %c0_102, %c0_103], %181 {strides = array<i32>} : memref<1x1x128xf32, #tpu.memory_space<vmem>>, vector<1x1x128xf32>,
    return
  }
  func.func @transform_0(%arg0: i32, %arg1: memref<2xi32, #tpu.memory_space<smem>>) -> (i32, i32, i32) {
    %c0_i32 = arith.constant 0 : i32
    %c0_i32_0 = arith.constant 0 : i32
    %c0_i32_1 = arith.constant 0 : i32
    return %arg0, %c0_i32, %c0_i32_0 : i32, i32, i32
  }
  func.func @transform_1(%arg0: i32, %arg1: memref<2xi32, #tpu.memory_space<smem>>) -> (i32, i32, i32) {
    %0 = arith.index_cast %arg0 : i32 to index
    %1 = memref.load %arg1[%0] : memref<2xi32, #tpu.memory_space<smem>>
    %c0_i32 = arith.constant 0 : i32
    %c0_i32_0 = arith.constant 0 : i32
    %c0_i32_1 = arith.constant 0 : i32
    return %1, %c0_i32, %c0_i32_0 : i32, i32, i32
  }
  func.func @transform_2(%arg0: i32, %arg1: memref<2xi32, #tpu.memory_space<smem>>) -> (i32, i32, i32) {
    %0 = arith.index_cast %arg0 : i32 to index
    %1 = memref.load %arg1[%0] : memref<2xi32, #tpu.memory_space<smem>>
    %c0_i32 = arith.constant 0 : i32
    %c0_i32_0 = arith.constant 0 : i32
    %c0_i32_1 = arith.constant 0 : i32
    return %1, %c0_i32, %c0_i32_0 : i32, i32, i32
  }
  func.func @transform_3(%arg0: i32, %arg1: memref<2xi32, #tpu.memory_space<smem>>) -> (i32, i32, i32) {
    %0 = arith.index_cast %arg0 : i32 to index
    %1 = memref.load %arg1[%0] : memref<2xi32, #tpu.memory_space<smem>>
    %c0_i32 = arith.constant 0 : i32
    %c0_i32_0 = arith.constant 0 : i32
    %c0_i32_1 = arith.constant 0 : i32
    return %1, %c0_i32, %c0_i32_0 : i32, i32, i32
  }
  func.func @transform_4(%arg0: i32, %arg1: memref<2xi32, #tpu.memory_space<smem>>) -> (i32, i32, i32) {
    %c0_i32 = arith.constant 0 : i32
    %c0_i32_0 = arith.constant 0 : i32
    %c0_i32_1 = arith.constant 0 : i32
    return %arg0, %c0_i32, %c0_i32_0 : i32, i32, i32
  }
}

</mosaic_0001>

<llo_original>
// kernel: custom_clip_forward.5
$region0: #{custom_clip_forward.5}
  #allocation0 [shape = 'u32[]', space=smem, size = 0x4, offset = 0x4, fixed_abs, tag = 'smem constant byte address 0x4 - core index']
  #allocation1 [shape = 'u32[72,128]{1,0:T(1,128)}', space=vmem, size = 0x9000, scoped, tag = 'internal scratch']
  #allocation2 [shape = 'f32[16,128]{1,0:T(8,128)}', space=vmem, size = 0x2000, scoped, tag = 'scratch operand']
  %s0 = inlined_call_operand.vmem [shape: bf16[16,128], index: 0, kind: input, shape index: {}]
  %s1 = inlined_call_operand.vmem [shape: bf16[128,128], index: 1, kind: input, shape index: {}]
  %s2 = inlined_call_operand.vmem [shape: f32[1,128], index: 2, kind: input, shape index: {}]
  %s3 = inlined_call_operand.hbm [shape: f32[128,128], index: 3, kind: input, shape index: {}]
  %s4 = inlined_call_operand.vmem [shape: f32[1,128], index: 4, kind: input, shape index: {}]
  %s5 = inlined_call_operand.hbm [shape: f32[16,128], index: 5, kind: output, shape index: {0}]
  %s6 = inlined_call_operand.vmem [shape: f32[16,128], index: 6, kind: output, shape index: {1}]
  %7 = xla_tuple %s5, %s6
  %s8 = sld [smem:[#allocation0]]
  $region50: #{custom_clip_forward.5} parent=0
    _
  %s10 = ssub.s32 1, %s8
  %s11 = scalar_select 0, %s10, %s8
  $region1: #{custom_clip_forward.5} parent=0
    #allocation3 [shape = 'u8[65536]{0}', space=vmem, size = 0x10000, scoped, tag = 'input window, operand 3, single buffered']
    #allocation4 [shape = 's32[1]{0}', space=sflag, size = 0x4, scoped, tag = 'scoped memory for custom_clip_forward.5']
    #allocation5 [shape = 's32[1]{0}', space=sflag, size = 0x4, scoped, tag = 'scoped memory for custom_clip_forward.5']
    #allocation6 [shape = 'u8[8192]{0}', space=vmem, size = 0x2000, scoped, tag = 'output window, operand 0, single buffered']
    %12 = vsyncpa [#allocation4], 0
    %13 = vsyncpa [#allocation5], 0
    // Predicated region
    $region2: #{custom_clip_forward.5} parent=1 // pred_check
      _
    $region3: #{custom_clip_forward.5} parent=1 // pred_check_branch
      %15 = sbr.rel (0) target = $region5
    $region4: #{custom_clip_forward.5} parent=1 // pred_region
      _
    $region5: #{custom_clip_forward.5} parent=1 // pred_fallthru
      _
    // Predicated region
    $region6: #{custom_clip_forward.5} parent=1 // pred_check
      _
    $region7: #{custom_clip_forward.5} parent=1 // pred_check_branch
      %17 = sbr.rel (0) target = $region9
    $region8: #{custom_clip_forward.5} parent=1 // pred_region
      _
    $region9: #{custom_clip_forward.5} parent=1 // pred_fallthru
      _
    // Predicated region
    $region10: #{custom_clip_forward.5} parent=1 // pred_check
      _
    $region11: #{custom_clip_forward.5} parent=1 // pred_check_branch
      %19 = sbr.rel (0) target = $region13
    $region12: #{custom_clip_forward.5} parent=1 // pred_region
      _
    $region13: #{custom_clip_forward.5} parent=1 // pred_fallthru
      _
    // Predicated region
    $region14: #{custom_clip_forward.5} parent=1 // pred_check
      _
    $region15: #{custom_clip_forward.5} parent=1 // pred_check_branch
      %21 = sbr.rel (0) target = $region17
    $region16: #{custom_clip_forward.5} parent=1 // pred_region
      %23 = vsyncadd [#allocation4], 0
      %s24 = sshll.u32 %s3, 4
      %s25 = int_to_ptr.hbm [resolvable:$true] %s24
      %s26 = sshll.u32 [#allocation3], 4
      %s27 = int_to_ptr.vmem [resolvable:$true] %s26
      %32 = dma.hbm_to_vmem [thread:$0]  %s25, 2048, %s27, [#allocation4], 128, 128, 8
    $region17: #{custom_clip_forward.5} parent=1 // pred_fallthru
      _
    // Predicated region
    $region18: #{custom_clip_forward.5} parent=1 // pred_check
      _
    $region19: #{custom_clip_forward.5} parent=1 // pred_check_branch
      %34 = sbr.rel (0) target = $region21
    $region20: #{custom_clip_forward.5} parent=1 // pred_region
      _
    $region21: #{custom_clip_forward.5} parent=1 // pred_fallthru
      _
    // Predicated region
    $region22: #{custom_clip_forward.5} parent=1 // pred_check
      _
    $region23: #{custom_clip_forward.5} parent=1 // pred_check_branch
      %36 = sbr.rel (0) target = $region25
    $region24: #{custom_clip_forward.5} parent=1 // pred_region
      %38 = dma.done [#allocation4], 2048
    $region25: #{custom_clip_forward.5} parent=1 // pred_fallthru
      _
    %p39 = scmp.eq.s32.totalorder 0, 0
    // Predicated region
    $region26: #{custom_clip_forward.5} parent=1 // pred_check
      %p40 = pneg %p39
    $region27: #{custom_clip_forward.5} parent=1 // pred_check_branch
      %42 = sbr.rel (%p40) target = $region29
    $region28: #{custom_clip_forward.5} parent=1 // pred_region
      %43 = vst [vmem:[#allocation2] sm:$0xff] 0.0
      %44 = vst [vmem:[#allocation2 + $0x8] sm:$0xff] 0.0
    $region29: #{custom_clip_forward.5} parent=1 // pred_fallthru
      _
    %v45 = vld [vmem:[#allocation2] sm:$0xff]
    %v46 = vld [vmem:[#allocation2 + $0x8] sm:$0xff]
    %v47 = vld [vmem:[%s0] sm:$0xf]
    %v48 = vld [vmem:[%s0 + $0x4] sm:$0xf]
    %v49 = vld [vmem:[%s1] sm:$0xf]
    %v50 = vld [vmem:[%s1 + $0x4] sm:$0xf]
    %v51 = vld [vmem:[%s1 + $0x8] sm:$0xf]
    %v52 = vld [vmem:[%s1 + $0xc] sm:$0xf]
    %v53 = vld [vmem:[%s1 + $0x10] sm:$0xf]
    %v54 = vld [vmem:[%s1 + $0x14] sm:$0xf]
    %v55 = vld [vmem:[%s1 + $0x18] sm:$0xf]
    %v56 = vld [vmem:[%s1 + $0x1c] sm:$0xf]
    %v57 = vld [vmem:[%s1 + $0x20] sm:$0xf]
    %v58 = vld [vmem:[%s1 + $0x24] sm:$0xf]
    %v59 = vld [vmem:[%s1 + $0x28] sm:$0xf]
    %v60 = vld [vmem:[%s1 + $0x2c] sm:$0xf]
    %v61 = vld [vmem:[%s1 + $0x30] sm:$0xf]
    %v62 = vld [vmem:[%s1 + $0x34] sm:$0xf]
    %v63 = vld [vmem:[%s1 + $0x38] sm:$0xf]
    %v64 = vld [vmem:[%s1 + $0x3c] sm:$0xf]
    %v67 = vunpack.c.l.b16 %v47
    %v68 = vunpack.c.l.b16 %v48
    %v69 = vpack.c.b16 %v68, %v67
    %v87 = vunpack.c.l.b16 %v49
    %v88 = vunpack.c.l.b16 %v50
    %v89 = vunpack.c.l.b16 %v51
    %v90 = vunpack.c.l.b16 %v52
    %v91 = vunpack.c.l.b16 %v53
    %v92 = vunpack.c.l.b16 %v54
    %v93 = vunpack.c.l.b16 %v55
    %v94 = vunpack.c.l.b16 %v56
    %v95 = vunpack.c.l.b16 %v57
    %v96 = vunpack.c.l.b16 %v58
    %v97 = vunpack.c.l.b16 %v59
    %v98 = vunpack.c.l.b16 %v60
    %v99 = vunpack.c.l.b16 %v61
    %v100 = vunpack.c.l.b16 %v62
    %v101 = vunpack.c.l.b16 %v63
    %v102 = vunpack.c.l.b16 %v64
    %v103 = vpack.c.b16 %v88, %v87
    %v104 = vpack.c.b16 %v90, %v89
    %v105 = vpack.c.b16 %v92, %v91
    %v106 = vpack.c.b16 %v94, %v93
    %v107 = vpack.c.b16 %v96, %v95
    %v108 = vpack.c.b16 %v98, %v97
    %v109 = vpack.c.b16 %v100, %v99
    %v110 = vpack.c.b16 %v102, %v101
    %119 = vmatpush.bf16.msra.mxu0 %v110
    %120 = vmatpush.bf16.msra.mxu0 %v109
    %121 = vmatpush.bf16.msra.mxu0 %v108
    %122 = vmatpush.bf16.msra.mxu0 %v107
    %123 = vmatpush.bf16.msra.mxu0 %v106
    %124 = vmatpush.bf16.msra.mxu0 %v105
    %125 = vmatpush.bf16.msra.mxu0 %v104
    %126 = vmatpush.bf16.msra.mxu0 %v103
    %127 = vmatmul.bf16.gmra.mxu0 %v69
    %v128 = vpop.f32.mrf.mxu0
    %v129 = vadd.f32 0.0, %v128
    %v130 = vpop.f32.mrf.mxu0
    %v131 = vadd.f32 0.0, %v130
    %132 = vdwg.mxu0
    %v133 = vadd.f32 %v45, %v129
    %v134 = vadd.f32 %v46, %v131
    %135 = vst [vmem:[#allocation2] sm:$0xff] %v133
    %136 = vst [vmem:[#allocation2 + $0x8] sm:$0xff] %v134
    // Predicated region
    $region30: #{custom_clip_forward.5} parent=1 // pred_check
      %p137 = pneg %p39
    $region31: #{custom_clip_forward.5} parent=1 // pred_check_branch
      %139 = sbr.rel (%p137) target = $region33
    $region32: #{custom_clip_forward.5} parent=1 // pred_region
      %v140 = vld [vmem:[#allocation2] sm:$0xff]
      %v141 = vld [vmem:[#allocation2 + $0x8] sm:$0xff]
      %v142 = vld [vmem:[%s2] sm:$0x1]
      %v144 = vperm.slane %v142, 0
      %v146 = vadd.f32 %v140, %v144
      %v147 = vadd.f32 %v141, %v144
      %v148 = vmul.f32 %v146, %v146
      %v149 = vmul.f32 %v147, %v147
      %150 = vadd.xlane.f32.xlu0 %v148
      %v151 = vpop.xlane.xlu0 %150
      %152 = vadd.xlane.f32.xlu0 %v149
      %v153 = vpop.xlane.xlu0 %152
      %v154 = vadd.f32 %v151, 1e-12
      %v155 = vadd.f32 %v153, 1e-12
      %v156 = vrsqrt.pop %v154
      %v157 = vmul.f32 %v156, %v154
      %v158 = vmul.f32 %v157, %v156
      %v159 = vmul.f32 0.5, %v158
      %v160 = vsub.f32 1.5, %v159
      %v161 = vmul.f32 %v156, %v160
      %vm162 = vweird.f32 %v154
      %vm163 = vweird.f32 %v156
      %vm164 = vmor %vm162, %vm163
      %v165 = vsel %vm164, %v156, %v161
      %v166 = vrsqrt.pop %v155
      %v167 = vmul.f32 %v166, %v155
      %v168 = vmul.f32 %v167, %v166
      %v169 = vmul.f32 0.5, %v168
      %v170 = vsub.f32 1.5, %v169
      %v171 = vmul.f32 %v166, %v170
      %vm172 = vweird.f32 %v155
      %vm173 = vweird.f32 %v166
      %vm174 = vmor %vm172, %vm173
      %v175 = vsel %vm174, %v166, %v171
      %v176 = vmul.f32 %v146, %v165
      %v177 = vmul.f32 %v147, %v175
      %178 = vst [vmem:[#allocation6] sm:$0xff] %v176
      %179 = vst [vmem:[#allocation6 + $0x8] sm:$0xff] %v177
      %v180 = vld [vmem:[#allocation3] sm:$0xff]
      %v181 = vld [vmem:[#allocation3 + $0x8] sm:$0xff]
      %v182 = vld [vmem:[#allocation3 + $0x10] sm:$0xff]
      %v183 = vld [vmem:[#allocation3 + $0x18] sm:$0xff]
      %v184 = vld [vmem:[#allocation3 + $0x20] sm:$0xff]
      %v185 = vld [vmem:[#allocation3 + $0x28] sm:$0xff]
      %v186 = vld [vmem:[#allocation3 + $0x30] sm:$0xff]
      %v187 = vld [vmem:[#allocation3 + $0x38] sm:$0xff]
      %v188 = vld [vmem:[#allocation3 + $0x40] sm:$0xff]
      %v189 = vld [vmem:[#allocation3 + $0x48] sm:$0xff]
      %v190 = vld [vmem:[#allocation3 + $0x50] sm:$0xff]
      %v191 = vld [vmem:[#allocation3 + $0x58] sm:$0xff]
      %v192 = vld [vmem:[#allocation3 + $0x60] sm:$0xff]
      %v193 = vld [vmem:[#allocation3 + $0x68] sm:$0xff]
      %v194 = vld [vmem:[#allocation3 + $0x70] sm:$0xff]
      %v195 = vld [vmem:[#allocation3 + $0x78] sm:$0xff]
      %v196 = vld [vmem:[%s4] sm:$0x1]
      %v198 = vperm.slane %v196, 0
      %200 = vmatpush.msra.mxu0 %v195
      %201 = vmatpush.msra.mxu0 %v194
      %202 = vmatpush.msra.mxu0 %v193
      %203 = vmatpush.msra.mxu0 %v192
      %204 = vmatpush.msra.mxu0 %v191
      %205 = vmatpush.msra.mxu0 %v190
      %206 = vmatpush.msra.mxu0 %v189
      %207 = vmatpush.msra.mxu0 %v188
      %208 = vmatpush.msra.mxu0 %v187
      %209 = vmatpush.msra.mxu0 %v186
      %210 = vmatpush.msra.mxu0 %v185
      %211 = vmatpush.msra.mxu0 %v184
      %212 = vmatpush.msra.mxu0 %v183
      %213 = vmatpush.msra.mxu0 %v182
      %214 = vmatpush.msra.mxu0 %v181
      %215 = vmatpush.msra.mxu0 %v180
      %216 = vmatmul.f32.gmra.mxu0 %v176
      %v217 = vpop.f32.mrf.mxu0
      %v218 = vadd.f32 %v198, %v217
      %219 = vmatmul.f32.gmra.mxu0 %v177
      %v220 = vpop.f32.mrf.mxu0
      %v221 = vadd.f32 %v198, %v220
      %222 = vdwg.mxu0
      %223 = vst [vmem:[%s6] sm:$0xff] %v218
      %224 = vst [vmem:[%s6 + $0x8] sm:$0xff] %v221
    $region33: #{custom_clip_forward.5} parent=1 // pred_fallthru
      _
    // Predicated region
    $region34: #{custom_clip_forward.5} parent=1 // pred_check
      _
    $region35: #{custom_clip_forward.5} parent=1 // pred_check_branch
      %226 = sbr.rel (0) target = $region37
    $region36: #{custom_clip_forward.5} parent=1 // pred_region
      %228 = vsyncadd [#allocation5], 0
      %s229 = sshll.u32 [#allocation6], 4
      %s230 = int_to_ptr.vmem [resolvable:$true] %s229
      %s231 = sshll.u32 %s5, 4
      %s232 = int_to_ptr.hbm [resolvable:$true] %s231
      %237 = dma.vmem_to_hbm [thread:$0]  %s230, 256, %s232, [#allocation5], 128, 128, 8
    $region37: #{custom_clip_forward.5} parent=1 // pred_fallthru
      _
    // Predicated region
    $region38: #{custom_clip_forward.5} parent=1 // pred_check
      _
    $region39: #{custom_clip_forward.5} parent=1 // pred_check_branch
      %239 = sbr.rel (0) target = $region41
    $region40: #{custom_clip_forward.5} parent=1 // pred_region
      _
    $region41: #{custom_clip_forward.5} parent=1 // pred_fallthru
      _
    // Predicated region
    $region42: #{custom_clip_forward.5} parent=1 // pred_check
      _
    $region43: #{custom_clip_forward.5} parent=1 // pred_check_branch
      %241 = sbr.rel (0) target = $region45
    $region44: #{custom_clip_forward.5} parent=1 // pred_region
      %243 = dma.done [#allocation5], 256
    $region45: #{custom_clip_forward.5} parent=1 // pred_fallthru
      _
    // Predicated region
    $region46: #{custom_clip_forward.5} parent=1 // pred_check
      _
    $region47: #{custom_clip_forward.5} parent=1 // pred_check_branch
      %245 = sbr.rel (0) target = $region49
    $region48: #{custom_clip_forward.5} parent=1 // pred_region
      _
    $region49: #{custom_clip_forward.5} parent=1 // pred_fallthru
      _
    %246 = vsyncpa [#allocation4], 1
    %247 = vsyncpa [#allocation5], 1

// kernel: custom_clip_forward.4
$region0: #{custom_clip_forward.4}
  #allocation0 [shape = 'u32[]', space=smem, size = 0x4, offset = 0x4, fixed_abs, tag = 'smem constant byte address 0x4 - core index']
  #allocation1 [shape = 'u32[72,128]{1,0:T(1,128)}', space=vmem, size = 0x9000, scoped, tag = 'internal scratch']
  #allocation2 [shape = 'f32[8,128]{1,0:T(8,128)}', space=vmem, size = 0x1000, scoped, tag = 'scratch operand']
  %s0 = inlined_call_operand.vmem [shape: bf16[8,768], index: 0, kind: input, shape index: {}]
  %s1 = inlined_call_operand.vmem [shape: bf16[768,128], index: 1, kind: input, shape index: {}]
  %s2 = inlined_call_operand.vmem [shape: f32[1,128], index: 2, kind: input, shape index: {}]
  %s3 = inlined_call_operand.vmem [shape: f32[128,128], index: 3, kind: input, shape index: {}]
  %s4 = inlined_call_operand.vmem [shape: f32[1,128], index: 4, kind: input, shape index: {}]
  %s5 = inlined_call_operand.vmem [shape: f32[8,128], index: 5, kind: output, shape index: {0}]
  %s6 = inlined_call_operand.vmem [shape: f32[8,128], index: 6, kind: output, shape index: {1}]
  %7 = xla_tuple %s5, %s6
  %s8 = sld [smem:[#allocation0]]
  $region46: #{custom_clip_forward.4} parent=0
    _
  %s10 = ssub.s32 1, %s8
  %s11 = scalar_select 0, %s10, %s8
  // Predicated region
  $region2: #{custom_clip_forward.4} parent=0 // pred_check
    _
  $region3: #{custom_clip_forward.4} parent=0 // pred_check_branch
    %13 = sbr.rel (0) target = $region5
  $region4: #{custom_clip_forward.4} parent=0 // pred_region
    _
  $region5: #{custom_clip_forward.4} parent=0 // pred_fallthru
    _
  // Predicated region
  $region6: #{custom_clip_forward.4} parent=0 // pred_check
    _
  $region7: #{custom_clip_forward.4} parent=0 // pred_check_branch
    %15 = sbr.rel (0) target = $region9
  $region8: #{custom_clip_forward.4} parent=0 // pred_region
    _
  $region9: #{custom_clip_forward.4} parent=0 // pred_fallthru
    _
  // Predicated region
  $region10: #{custom_clip_forward.4} parent=0 // pred_check
    _
  $region11: #{custom_clip_forward.4} parent=0 // pred_check_branch
    %17 = sbr.rel (0) target = $region13
  $region12: #{custom_clip_forward.4} parent=0 // pred_region
    _
  $region13: #{custom_clip_forward.4} parent=0 // pred_fallthru
    _
  // Predicated region
  $region14: #{custom_clip_forward.4} parent=0 // pred_check
    _
  $region15: #{custom_clip_forward.4} parent=0 // pred_check_branch
    %19 = sbr.rel (0) target = $region17
  $region16: #{custom_clip_forward.4} parent=0 // pred_region
    _
  $region17: #{custom_clip_forward.4} parent=0 // pred_fallthru
    _
  // Predicated region
  $region18: #{custom_clip_forward.4} parent=0 // pred_check
    _
  $region19: #{custom_clip_forward.4} parent=0 // pred_check_branch
    %21 = sbr.rel (0) target = $region21
  $region20: #{custom_clip_forward.4} parent=0 // pred_region
    _
  $region21: #{custom_clip_forward.4} parent=0 // pred_fallthru
    _
  %p22 = scmp.eq.s32.totalorder 0, 0
  // Predicated region
  $region22: #{custom_clip_forward.4} parent=0 // pred_check
    %p23 = pneg %p22
  $region23: #{custom_clip_forward.4} parent=0 // pred_check_branch
    %25 = sbr.rel (%p23) target = $region25
  $region24: #{custom_clip_forward.4} parent=0 // pred_region
    %26 = vst [vmem:[#allocation2] sm:$0xff] 0.0
  $region25: #{custom_clip_forward.4} parent=0 // pred_fallthru
    _
  %v27 = vld [vmem:[#allocation2] sm:$0xff]
  %v28 = vld [vmem:[%s0] sm:$0xff]
  %v29 = vld [vmem:[%s0 + $0x8] sm:$0xff]
  %v30 = vld [vmem:[%s0 + $0x10] sm:$0xff]
  %v31 = vld [vmem:[%s1] sm:$0xf]
  %v32 = vld [vmem:[%s1 + $0x4] sm:$0xf]
  %v33 = vld [vmem:[%s1 + $0x8] sm:$0xf]
  %v34 = vld [vmem:[%s1 + $0xc] sm:$0xf]
  %v35 = vld [vmem:[%s1 + $0x10] sm:$0xf]
  %v36 = vld [vmem:[%s1 + $0x14] sm:$0xf]
  %v37 = vld [vmem:[%s1 + $0x18] sm:$0xf]
  %v38 = vld [vmem:[%s1 + $0x1c] sm:$0xf]
  %v39 = vld [vmem:[%s1 + $0x20] sm:$0xf]
  %v40 = vld [vmem:[%s1 + $0x24] sm:$0xf]
  %v41 = vld [vmem:[%s1 + $0x28] sm:$0xf]
  %v42 = vld [vmem:[%s1 + $0x2c] sm:$0xf]
  %v43 = vld [vmem:[%s1 + $0x30] sm:$0xf]
  %v44 = vld [vmem:[%s1 + $0x34] sm:$0xf]
  %v45 = vld [vmem:[%s1 + $0x38] sm:$0xf]
  %v46 = vld [vmem:[%s1 + $0x3c] sm:$0xf]
  %v47 = vld [vmem:[%s1 + $0x40] sm:$0xf]
  %v48 = vld [vmem:[%s1 + $0x44] sm:$0xf]
  %v49 = vld [vmem:[%s1 + $0x48] sm:$0xf]
  %v50 = vld [vmem:[%s1 + $0x4c] sm:$0xf]
  %v51 = vld [vmem:[%s1 + $0x50] sm:$0xf]
  %v52 = vld [vmem:[%s1 + $0x54] sm:$0xf]
  %v53 = vld [vmem:[%s1 + $0x58] sm:$0xf]
  %v54 = vld [vmem:[%s1 + $0x5c] sm:$0xf]
  %v55 = vld [vmem:[%s1 + $0x60] sm:$0xf]
  %v56 = vld [vmem:[%s1 + $0x64] sm:$0xf]
  %v57 = vld [vmem:[%s1 + $0x68] sm:$0xf]
  %v58 = vld [vmem:[%s1 + $0x6c] sm:$0xf]
  %v59 = vld [vmem:[%s1 + $0x70] sm:$0xf]
  %v60 = vld [vmem:[%s1 + $0x74] sm:$0xf]
  %v61 = vld [vmem:[%s1 + $0x78] sm:$0xf]
  %v62 = vld [vmem:[%s1 + $0x7c] sm:$0xf]
  %v63 = vld [vmem:[%s1 + $0x80] sm:$0xf]
  %v64 = vld [vmem:[%s1 + $0x84] sm:$0xf]
  %v65 = vld [vmem:[%s1 + $0x88] sm:$0xf]
  %v66 = vld [vmem:[%s1 + $0x8c] sm:$0xf]
  %v67 = vld [vmem:[%s1 + $0x90] sm:$0xf]
  %v68 = vld [vmem:[%s1 + $0x94] sm:$0xf]
  %v69 = vld [vmem:[%s1 + $0x98] sm:$0xf]
  %v70 = vld [vmem:[%s1 + $0x9c] sm:$0xf]
  %v71 = vld [vmem:[%s1 + $0xa0] sm:$0xf]
  %v72 = vld [vmem:[%s1 + $0xa4] sm:$0xf]
  %v73 = vld [vmem:[%s1 + $0xa8] sm:$0xf]
  %v74 = vld [vmem:[%s1 + $0xac] sm:$0xf]
  %v75 = vld [vmem:[%s1 + $0xb0] sm:$0xf]
  %v76 = vld [vmem:[%s1 + $0xb4] sm:$0xf]
  %v77 = vld [vmem:[%s1 + $0xb8] sm:$0xf]
  %v78 = vld [vmem:[%s1 + $0xbc] sm:$0xf]
  %v79 = vld [vmem:[%s1 + $0xc0] sm:$0xf]
  %v80 = vld [vmem:[%s1 + $0xc4] sm:$0xf]
  %v81 = vld [vmem:[%s1 + $0xc8] sm:$0xf]
  %v82 = vld [vmem:[%s1 + $0xcc] sm:$0xf]
  %v83 = vld [vmem:[%s1 + $0xd0] sm:$0xf]
  %v84 = vld [vmem:[%s1 + $0xd4] sm:$0xf]
  %v85 = vld [vmem:[%s1 + $0xd8] sm:$0xf]
  %v86 = vld [vmem:[%s1 + $0xdc] sm:$0xf]
  %v87 = vld [vmem:[%s1 + $0xe0] sm:$0xf]
  %v88 = vld [vmem:[%s1 + $0xe4] sm:$0xf]
  %v89 = vld [vmem:[%s1 + $0xe8] sm:$0xf]
  %v90 = vld [vmem:[%s1 + $0xec] sm:$0xf]
  %v91 = vld [vmem:[%s1 + $0xf0] sm:$0xf]
  %v92 = vld [vmem:[%s1 + $0xf4] sm:$0xf]
  %v93 = vld [vmem:[%s1 + $0xf8] sm:$0xf]
  %v94 = vld [vmem:[%s1 + $0xfc] sm:$0xf]
  %v95 = vld [vmem:[%s1 + $0x100] sm:$0xf]
  %v96 = vld [vmem:[%s1 + $0x104] sm:$0xf]
  %v97 = vld [vmem:[%s1 + $0x108] sm:$0xf]
  %v98 = vld [vmem:[%s1 + $0x10c] sm:$0xf]
  %v99 = vld [vmem:[%s1 + $0x110] sm:$0xf]
  %v100 = vld [vmem:[%s1 + $0x114] sm:$0xf]
  %v101 = vld [vmem:[%s1 + $0x118] sm:$0xf]
  %v102 = vld [vmem:[%s1 + $0x11c] sm:$0xf]
  %v103 = vld [vmem:[%s1 + $0x120] sm:$0xf]
  %v104 = vld [vmem:[%s1 + $0x124] sm:$0xf]
  %v105 = vld [vmem:[%s1 + $0x128] sm:$0xf]
  %v106 = vld [vmem:[%s1 + $0x12c] sm:$0xf]
  %v107 = vld [vmem:[%s1 + $0x130] sm:$0xf]
  %v108 = vld [vmem:[%s1 + $0x134] sm:$0xf]
  %v109 = vld [vmem:[%s1 + $0x138] sm:$0xf]
  %v110 = vld [vmem:[%s1 + $0x13c] sm:$0xf]
  %v111 = vld [vmem:[%s1 + $0x140] sm:$0xf]
  %v112 = vld [vmem:[%s1 + $0x144] sm:$0xf]
  %v113 = vld [vmem:[%s1 + $0x148] sm:$0xf]
  %v114 = vld [vmem:[%s1 + $0x14c] sm:$0xf]
  %v115 = vld [vmem:[%s1 + $0x150] sm:$0xf]
  %v116 = vld [vmem:[%s1 + $0x154] sm:$0xf]
  %v117 = vld [vmem:[%s1 + $0x158] sm:$0xf]
  %v118 = vld [vmem:[%s1 + $0x15c] sm:$0xf]
  %v119 = vld [vmem:[%s1 + $0x160] sm:$0xf]
  %v120 = vld [vmem:[%s1 + $0x164] sm:$0xf]
  %v121 = vld [vmem:[%s1 + $0x168] sm:$0xf]
  %v122 = vld [vmem:[%s1 + $0x16c] sm:$0xf]
  %v123 = vld [vmem:[%s1 + $0x170] sm:$0xf]
  %v124 = vld [vmem:[%s1 + $0x174] sm:$0xf]
  %v125 = vld [vmem:[%s1 + $0x178] sm:$0xf]
  %v126 = vld [vmem:[%s1 + $0x17c] sm:$0xf]
  %v130 = vunpack.c.l.b16 %v28
  %v131 = vunpack.c.h.b16 %v28
  %v132 = vunpack.c.l.b16 %v29
  %v133 = vunpack.c.h.b16 %v29
  %v134 = vunpack.c.l.b16 %v30
  %v135 = vunpack.c.h.b16 %v30
  %v136 = vpack.c.b16 %v130, %v130
  %v137 = vpack.c.b16 %v131, %v131
  %v138 = vpack.c.b16 %v132, %v132
  %v139 = vpack.c.b16 %v133, %v133
  %v140 = vpack.c.b16 %v134, %v134
  %v141 = vpack.c.b16 %v135, %v135
  %v244 = vunpack.c.l.b16 %v31
  %v245 = vunpack.c.l.b16 %v32
  %v246 = vunpack.c.l.b16 %v33
  %v247 = vunpack.c.l.b16 %v34
  %v248 = vunpack.c.l.b16 %v35
  %v249 = vunpack.c.l.b16 %v36
  %v250 = vunpack.c.l.b16 %v37
  %v251 = vunpack.c.l.b16 %v38
  %v252 = vunpack.c.l.b16 %v39
  %v253 = vunpack.c.l.b16 %v40
  %v254 = vunpack.c.l.b16 %v41
  %v255 = vunpack.c.l.b16 %v42
  %v256 = vunpack.c.l.b16 %v43
  %v257 = vunpack.c.l.b16 %v44
  %v258 = vunpack.c.l.b16 %v45
  %v259 = vunpack.c.l.b16 %v46
  %v260 = vunpack.c.l.b16 %v47
  %v261 = vunpack.c.l.b16 %v48
  %v262 = vunpack.c.l.b16 %v49
  %v263 = vunpack.c.l.b16 %v50
  %v264 = vunpack.c.l.b16 %v51
  %v265 = vunpack.c.l.b16 %v52
  %v266 = vunpack.c.l.b16 %v53
  %v267 = vunpack.c.l.b16 %v54
  %v268 = vunpack.c.l.b16 %v55
  %v269 = vunpack.c.l.b16 %v56
  %v270 = vunpack.c.l.b16 %v57
  %v271 = vunpack.c.l.b16 %v58
  %v272 = vunpack.c.l.b16 %v59
  %v273 = vunpack.c.l.b16 %v60
  %v274 = vunpack.c.l.b16 %v61
  %v275 = vunpack.c.l.b16 %v62
  %v276 = vunpack.c.l.b16 %v63
  %v277 = vunpack.c.l.b16 %v64
  %v278 = vunpack.c.l.b16 %v65
  %v279 = vunpack.c.l.b16 %v66
  %v280 = vunpack.c.l.b16 %v67
  %v281 = vunpack.c.l.b16 %v68
  %v282 = vunpack.c.l.b16 %v69
  %v283 = vunpack.c.l.b16 %v70
  %v284 = vunpack.c.l.b16 %v71
  %v285 = vunpack.c.l.b16 %v72
  %v286 = vunpack.c.l.b16 %v73
  %v287 = vunpack.c.l.b16 %v74
  %v288 = vunpack.c.l.b16 %v75
  %v289 = vunpack.c.l.b16 %v76
  %v290 = vunpack.c.l.b16 %v77
  %v291 = vunpack.c.l.b16 %v78
  %v292 = vunpack.c.l.b16 %v79
  %v293 = vunpack.c.l.b16 %v80
  %v294 = vunpack.c.l.b16 %v81
  %v295 = vunpack.c.l.b16 %v82
  %v296 = vunpack.c.l.b16 %v83
  %v297 = vunpack.c.l.b16 %v84
  %v298 = vunpack.c.l.b16 %v85
  %v299 = vunpack.c.l.b16 %v86
  %v300 = vunpack.c.l.b16 %v87
  %v301 = vunpack.c.l.b16 %v88
  %v302 = vunpack.c.l.b16 %v89
  %v303 = vunpack.c.l.b16 %v90
  %v304 = vunpack.c.l.b16 %v91
  %v305 = vunpack.c.l.b16 %v92
  %v306 = vunpack.c.l.b16 %v93
  %v307 = vunpack.c.l.b16 %v94
  %v308 = vunpack.c.l.b16 %v95
  %v309 = vunpack.c.l.b16 %v96
  %v310 = vunpack.c.l.b16 %v97
  %v311 = vunpack.c.l.b16 %v98
  %v312 = vunpack.c.l.b16 %v99
  %v313 = vunpack.c.l.b16 %v100
  %v314 = vunpack.c.l.b16 %v101
  %v315 = vunpack.c.l.b16 %v102
  %v316 = vunpack.c.l.b16 %v103
  %v317 = vunpack.c.l.b16 %v104
  %v318 = vunpack.c.l.b16 %v105
  %v319 = vunpack.c.l.b16 %v106
  %v320 = vunpack.c.l.b16 %v107
  %v321 = vunpack.c.l.b16 %v108
  %v322 = vunpack.c.l.b16 %v109
  %v323 = vunpack.c.l.b16 %v110
  %v324 = vunpack.c.l.b16 %v111
  %v325 = vunpack.c.l.b16 %v112
  %v326 = vunpack.c.l.b16 %v113
  %v327 = vunpack.c.l.b16 %v114
  %v328 = vunpack.c.l.b16 %v115
  %v329 = vunpack.c.l.b16 %v116
  %v330 = vunpack.c.l.b16 %v117
  %v331 = vunpack.c.l.b16 %v118
  %v332 = vunpack.c.l.b16 %v119
  %v333 = vunpack.c.l.b16 %v120
  %v334 = vunpack.c.l.b16 %v121
  %v335 = vunpack.c.l.b16 %v122
  %v336 = vunpack.c.l.b16 %v123
  %v337 = vunpack.c.l.b16 %v124
  %v338 = vunpack.c.l.b16 %v125
  %v339 = vunpack.c.l.b16 %v126
  %v340 = vpack.c.b16 %v245, %v244
  %v341 = vpack.c.b16 %v247, %v246
  %v342 = vpack.c.b16 %v249, %v248
  %v343 = vpack.c.b16 %v251, %v250
  %v344 = vpack.c.b16 %v253, %v252
  %v345 = vpack.c.b16 %v255, %v254
  %v346 = vpack.c.b16 %v257, %v256
  %v347 = vpack.c.b16 %v259, %v258
  %v348 = vpack.c.b16 %v261, %v260
  %v349 = vpack.c.b16 %v263, %v262
  %v350 = vpack.c.b16 %v265, %v264
  %v351 = vpack.c.b16 %v267, %v266
  %v352 = vpack.c.b16 %v269, %v268
  %v353 = vpack.c.b16 %v271, %v270
  %v354 = vpack.c.b16 %v273, %v272
  %v355 = vpack.c.b16 %v275, %v274
  %v356 = vpack.c.b16 %v277, %v276
  %v357 = vpack.c.b16 %v279, %v278
  %v358 = vpack.c.b16 %v281, %v280
  %v359 = vpack.c.b16 %v283, %v282
  %v360 = vpack.c.b16 %v285, %v284
  %v361 = vpack.c.b16 %v287, %v286
  %v362 = vpack.c.b16 %v289, %v288
  %v363 = vpack.c.b16 %v291, %v290
  %v364 = vpack.c.b16 %v293, %v292
  %v365 = vpack.c.b16 %v295, %v294
  %v366 = vpack.c.b16 %v297, %v296
  %v367 = vpack.c.b16 %v299, %v298
  %v368 = vpack.c.b16 %v301, %v300
  %v369 = vpack.c.b16 %v303, %v302
  %v370 = vpack.c.b16 %v305, %v304
  %v371 = vpack.c.b16 %v307, %v306
  %v372 = vpack.c.b16 %v309, %v308
  %v373 = vpack.c.b16 %v311, %v310
  %v374 = vpack.c.b16 %v313, %v312
  %v375 = vpack.c.b16 %v315, %v314
  %v376 = vpack.c.b16 %v317, %v316
  %v377 = vpack.c.b16 %v319, %v318
  %v378 = vpack.c.b16 %v321, %v320
  %v379 = vpack.c.b16 %v323, %v322
  %v380 = vpack.c.b16 %v325, %v324
  %v381 = vpack.c.b16 %v327, %v326
  %v382 = vpack.c.b16 %v329, %v328
  %v383 = vpack.c.b16 %v331, %v330
  %v384 = vpack.c.b16 %v333, %v332
  %v385 = vpack.c.b16 %v335, %v334
  %v386 = vpack.c.b16 %v337, %v336
  %v387 = vpack.c.b16 %v339, %v338
  %436 = vmatpush.bf16.msra.mxu0 %v347
  %437 = vmatpush.bf16.msra.mxu0 %v346
  %438 = vmatpush.bf16.msra.mxu0 %v345
  %439 = vmatpush.bf16.msra.mxu0 %v344
  %440 = vmatpush.bf16.msra.mxu0 %v343
  %441 = vmatpush.bf16.msra.mxu0 %v342
  %442 = vmatpush.bf16.msra.mxu0 %v341
  %443 = vmatpush.bf16.msra.mxu0 %v340
  %444 = vmatmul.bf16.gmra.mxu0 %v136
  %v445 = vpop.f32.mrf.mxu0
  %v446 = vadd.f32 0.0, %v445
  %v447 = vpop.f32.mrf.mxu0
  %448 = vdwg.mxu0
  %449 = vmatpush.bf16.msra.mxu0 %v355
  %450 = vmatpush.bf16.msra.mxu0 %v354
  %451 = vmatpush.bf16.msra.mxu0 %v353
  %452 = vmatpush.bf16.msra.mxu0 %v352
  %453 = vmatpush.bf16.msra.mxu0 %v351
  %454 = vmatpush.bf16.msra.mxu0 %v350
  %455 = vmatpush.bf16.msra.mxu0 %v349
  %456 = vmatpush.bf16.msra.mxu0 %v348
  %457 = vmatmul.bf16.gmra.mxu0 %v137
  %v458 = vpop.f32.mrf.mxu0
  %v459 = vadd.f32 %v446, %v458
  %v460 = vpop.f32.mrf.mxu0
  %461 = vdwg.mxu0
  %462 = vmatpush.bf16.msra.mxu0 %v363
  %463 = vmatpush.bf16.msra.mxu0 %v362
  %464 = vmatpush.bf16.msra.mxu0 %v361
  %465 = vmatpush.bf16.msra.mxu0 %v360
  %466 = vmatpush.bf16.msra.mxu0 %v359
  %467 = vmatpush.bf16.msra.mxu0 %v358
  %468 = vmatpush.bf16.msra.mxu0 %v357
  %469 = vmatpush.bf16.msra.mxu0 %v356
  %470 = vmatmul.bf16.gmra.mxu0 %v138
  %v471 = vpop.f32.mrf.mxu0
  %v472 = vadd.f32 %v459, %v471
  %v473 = vpop.f32.mrf.mxu0
  %474 = vdwg.mxu0
  %475 = vmatpush.bf16.msra.mxu0 %v371
  %476 = vmatpush.bf16.msra.mxu0 %v370
  %477 = vmatpush.bf16.msra.mxu0 %v369
  %478 = vmatpush.bf16.msra.mxu0 %v368
  %479 = vmatpush.bf16.msra.mxu0 %v367
  %480 = vmatpush.bf16.msra.mxu0 %v366
  %481 = vmatpush.bf16.msra.mxu0 %v365
  %482 = vmatpush.bf16.msra.mxu0 %v364
  %483 = vmatmul.bf16.gmra.mxu0 %v139
  %v484 = vpop.f32.mrf.mxu0
  %v485 = vadd.f32 %v472, %v484
  %v486 = vpop.f32.mrf.mxu0
  %487 = vdwg.mxu0
  %488 = vmatpush.bf16.msra.mxu0 %v379
  %489 = vmatpush.bf16.msra.mxu0 %v378
  %490 = vmatpush.bf16.msra.mxu0 %v377
  %491 = vmatpush.bf16.msra.mxu0 %v376
  %492 = vmatpush.bf16.msra.mxu0 %v375
  %493 = vmatpush.bf16.msra.mxu0 %v374
  %494 = vmatpush.bf16.msra.mxu0 %v373
  %495 = vmatpush.bf16.msra.mxu0 %v372
  %496 = vmatmul.bf16.gmra.mxu0 %v140
  %v497 = vpop.f32.mrf.mxu0
  %v498 = vadd.f32 %v485, %v497
  %v499 = vpop.f32.mrf.mxu0
  %500 = vdwg.mxu0
  %501 = vmatpush.bf16.msra.mxu0 %v387
  %502 = vmatpush.bf16.msra.mxu0 %v386
  %503 = vmatpush.bf16.msra.mxu0 %v385
  %504 = vmatpush.bf16.msra.mxu0 %v384
  %505 = vmatpush.bf16.msra.mxu0 %v383
  %506 = vmatpush.bf16.msra.mxu0 %v382
  %507 = vmatpush.bf16.msra.mxu0 %v381
  %508 = vmatpush.bf16.msra.mxu0 %v380
  %509 = vmatmul.bf16.gmra.mxu0 %v141
  %v510 = vpop.f32.mrf.mxu0
  %v511 = vadd.f32 %v498, %v510
  %v512 = vpop.f32.mrf.mxu0
  %513 = vdwg.mxu0
  %v514 = vadd.f32 %v27, %v511
  %515 = vst [vmem:[#allocation2] sm:$0xff] %v514
  // Predicated region
  $region26: #{custom_clip_forward.4} parent=0 // pred_check
    %p516 = pneg %p22
  $region27: #{custom_clip_forward.4} parent=0 // pred_check_branch
    %518 = sbr.rel (%p516) target = $region29
  $region28: #{custom_clip_forward.4} parent=0 // pred_region
    %v519 = vld [vmem:[#allocation2] sm:$0xff]
    %v520 = vld [vmem:[%s2] sm:$0x1]
    %v522 = vperm.slane %v520, 0
    %v524 = vadd.f32 %v519, %v522
    %v525 = vmul.f32 %v524, %v524
    %526 = vadd.xlane.f32.xlu0 %v525
    %v527 = vpop.xlane.xlu0 %526
    %v528 = vadd.f32 %v527, 1e-12
    %v529 = vrsqrt.pop %v528
    %v530 = vmul.f32 %v529, %v528
    %v531 = vmul.f32 %v530, %v529
    %v532 = vmul.f32 0.5, %v531
    %v533 = vsub.f32 1.5, %v532
    %v534 = vmul.f32 %v529, %v533
    %vm535 = vweird.f32 %v528
    %vm536 = vweird.f32 %v529
    %vm537 = vmor %vm535, %vm536
    %v538 = vsel %vm537, %v529, %v534
    %v539 = vmul.f32 %v524, %v538
    %540 = vst [vmem:[%s5] sm:$0xff] %v539
    %v541 = vld [vmem:[%s3] sm:$0xff]
    %v542 = vld [vmem:[%s3 + $0x8] sm:$0xff]
    %v543 = vld [vmem:[%s3 + $0x10] sm:$0xff]
    %v544 = vld [vmem:[%s3 + $0x18] sm:$0xff]
    %v545 = vld [vmem:[%s3 + $0x20] sm:$0xff]
    %v546 = vld [vmem:[%s3 + $0x28] sm:$0xff]
    %v547 = vld [vmem:[%s3 + $0x30] sm:$0xff]
    %v548 = vld [vmem:[%s3 + $0x38] sm:$0xff]
    %v549 = vld [vmem:[%s3 + $0x40] sm:$0xff]
    %v550 = vld [vmem:[%s3 + $0x48] sm:$0xff]
    %v551 = vld [vmem:[%s3 + $0x50] sm:$0xff]
    %v552 = vld [vmem:[%s3 + $0x58] sm:$0xff]
    %v553 = vld [vmem:[%s3 + $0x60] sm:$0xff]
    %v554 = vld [vmem:[%s3 + $0x68] sm:$0xff]
    %v555 = vld [vmem:[%s3 + $0x70] sm:$0xff]
    %v556 = vld [vmem:[%s3 + $0x78] sm:$0xff]
    %v557 = vld [vmem:[%s4] sm:$0x1]
    %v559 = vperm.slane %v557, 0
    %561 = vmatpush.msra.mxu0 %v556
    %562 = vmatpush.msra.mxu0 %v555
    %563 = vmatpush.msra.mxu0 %v554
    %564 = vmatpush.msra.mxu0 %v553
    %565 = vmatpush.msra.mxu0 %v552
    %566 = vmatpush.msra.mxu0 %v551
    %567 = vmatpush.msra.mxu0 %v550
    %568 = vmatpush.msra.mxu0 %v549
    %569 = vmatpush.msra.mxu0 %v548
    %570 = vmatpush.msra.mxu0 %v547
    %571 = vmatpush.msra.mxu0 %v546
    %572 = vmatpush.msra.mxu0 %v545
    %573 = vmatpush.msra.mxu0 %v544
    %574 = vmatpush.msra.mxu0 %v543
    %575 = vmatpush.msra.mxu0 %v542
    %576 = vmatpush.msra.mxu0 %v541
    %577 = vmatmul.f32.gmra.mxu0 %v539
    %v578 = vpop.f32.mrf.mxu0
    %v579 = vadd.f32 %v559, %v578
    %580 = vdwg.mxu0
    %581 = vst [vmem:[%s6] sm:$0xff] %v579
  $region29: #{custom_clip_forward.4} parent=0 // pred_fallthru
    _
  // Predicated region
  $region30: #{custom_clip_forward.4} parent=0 // pred_check
    _
  $region31: #{custom_clip_forward.4} parent=0 // pred_check_branch
    %583 = sbr.rel (0) target = $region33
  $region32: #{custom_clip_forward.4} parent=0 // pred_region
    _
  $region33: #{custom_clip_forward.4} parent=0 // pred_fallthru
    _
  // Predicated region
  $region34: #{custom_clip_forward.4} parent=0 // pred_check
    _
  $region35: #{custom_clip_forward.4} parent=0 // pred_check_branch
    %585 = sbr.rel (0) target = $region37
  $region36: #{custom_clip_forward.4} parent=0 // pred_region
    _
  $region37: #{custom_clip_forward.4} parent=0 // pred_fallthru
    _
  // Predicated region
  $region38: #{custom_clip_forward.4} parent=0 // pred_check
    _
  $region39: #{custom_clip_forward.4} parent=0 // pred_check_branch
    %587 = sbr.rel (0) target = $region41
  $region40: #{custom_clip_forward.4} parent=0 // pred_region
    _
  $region41: #{custom_clip_forward.4} parent=0 // pred_fallthru
    _
  // Predicated region
  $region42: #{custom_clip_forward.4} parent=0 // pred_check
    _
  $region43: #{custom_clip_forward.4} parent=0 // pred_check_branch
    %589 = sbr.rel (0) target = $region45
  $region44: #{custom_clip_forward.4} parent=0 // pred_region
    _
  $region45: #{custom_clip_forward.4} parent=0 // pred_fallthru
    _

// kernel: custom_clip_forward.7
$region0: #{custom_clip_forward.7}
  #allocation0 [shape = 'u32[]', space=smem, size = 0x4, offset = 0x4, fixed_abs, tag = 'smem constant byte address 0x4 - core index']
  #allocation1 [shape = 'u32[72,128]{1,0:T(1,128)}', space=vmem, size = 0x9000, scoped, tag = 'internal scratch']
  #allocation2 [shape = 's32[1]{0}', space=sflag, size = 0x4, scoped, tag = 'scoped memory for custom_clip_forward.7']
  #allocation3 [shape = 'u8[512]{0}', space=smem, size = 0x200, scoped, tag = 'prefetched SMEM operand 0']
  %s0 = inlined_call_operand.vmem [shape: s32[2], index: 0, kind: input, shape index: {}]
  %s1 = inlined_call_operand.vmem [shape: f32[2,2,128], index: 1, kind: input, shape index: {}]
  %s2 = inlined_call_operand.vmem [shape: f32[4,1,128], index: 2, kind: input, shape index: {}]
  %s3 = inlined_call_operand.vmem [shape: f32[4,1,128], index: 3, kind: input, shape index: {}]
  %s4 = inlined_call_operand.vmem [shape: f32[4,128,128], index: 4, kind: input, shape index: {}]
  %s5 = inlined_call_operand.vmem [shape: f32[2,1,128], index: 5, kind: output, shape index: {}]
  %s6 = sld [smem:[#allocation0]]
  $region49: #{custom_clip_forward.7} parent=0
    _
  %s8 = ssub.s32 1, %s6
  %s9 = scalar_select 0, %s8, %s6
  %s11 = sshll.u32 %s0, 4
  %s12 = int_to_ptr.vmem [resolvable:$true] %s11
  %14 = dma.vmem_to_smem %s12, 16, [#allocation3], [#allocation2]
  %16 = dma.done [#allocation2], 16
  %17 = sfence
  loop: start=0, step=1, limit=4
  $region2: #{custom_clip_forward.7} parent=0 // loop_pre_header
    _
  $region3: #{custom_clip_forward.7} parent=0 // loop_header
    %s19 = sphi 0, %s23
    %p20 = scmp.ge.s32.totalorder %s19, 4
    %s29 = sphi 0, %s31
    %s32 = sphi 0, %s29
    %s33 = sphi 0, %s32
    %s49 = sphi 0, %s33
    %s57 = sphi 0, %s59
    %s60 = sphi 0, %s57
    %s61 = sphi 0, %s60
    %s77 = sphi 0, %s61
    %s85 = sphi 0, %s87
    %s88 = sphi 0, %s85
    %s89 = sphi 0, %s88
    %s105 = sphi 0, %s89
    %s113 = sphi 0, %s115
    %s116 = sphi 0, %s113
    %s117 = sphi 0, %s116
    %s133 = sphi 0, %s117
    %s139 = sphi 0, %s141
    %s142 = sphi 0, %s139
    %s143 = sphi 0, %s142
    %s159 = sphi 0, %s143
  $region4: #{custom_clip_forward.7} parent=0 // loop_header_branch
    %22 = sbr.rel (%p20) target = $region8
  $region5: #{custom_clip_forward.7} parent=0 // loop_body
    %s24 = ssub.s32 %s19, 1
    %s25 = ssub.s32 %s19, 2
    %s26 = sadd.s32 %s19, 1
    %s27 = ssub.s32 %s19, %s26
    %p28 = scmp.eq.s32.totalorder %s27, 0
    %s30 = sadd.s32 %s29, 1
    %s31 = scalar_select %p28, %s29, %s30
    %p34 = pneg %p28
    %p35 = scmp.eq.s32.totalorder %s19, 1
    %p36 = por %p34, %p35
    %p37 = scmp.ne.s32.totalorder %s29, %s32
    %p38 = scmp.eq.s32.totalorder %s19, 0
    %p39 = por %p37, %p38
    %p40 = scmp.ne.s32.totalorder %s29, %s32
    %p41 = scmp.eq.s32.totalorder %s24, 1
    %p42 = por %p40, %p41
    %p43 = scmp.ne.s32.totalorder %s32, %s33
    %p44 = scmp.eq.s32.totalorder %s24, 0
    %p45 = por %p43, %p44
    %p46 = scmp.ne.s32.totalorder %s32, %s33
    %p47 = scmp.eq.s32.totalorder %s25, 1
    %p48 = por %p46, %p47
    %p50 = scmp.ne.s32.totalorder %s33, %s49
    %p51 = scmp.eq.s32.totalorder %s25, 0
    %p52 = por %p50, %p51
    %s53 = sld [smem:[#allocation3 + %s19]]
    %s54 = sld [smem:[#allocation3 + %s26]]
    %s55 = ssub.s32 %s53, %s54
    %p56 = scmp.eq.s32.totalorder %s55, 0
    %s58 = sadd.s32 %s57, 1
    %s59 = scalar_select %p56, %s57, %s58
    %p62 = pneg %p56
    %p63 = scmp.eq.s32.totalorder %s19, 1
    %p64 = por %p62, %p63
    %p65 = scmp.ne.s32.totalorder %s57, %s60
    %p66 = scmp.eq.s32.totalorder %s19, 0
    %p67 = por %p65, %p66
    %p68 = scmp.ne.s32.totalorder %s57, %s60
    %p69 = scmp.eq.s32.totalorder %s24, 1
    %p70 = por %p68, %p69
    %p71 = scmp.ne.s32.totalorder %s60, %s61
    %p72 = scmp.eq.s32.totalorder %s24, 0
    %p73 = por %p71, %p72
    %p74 = scmp.ne.s32.totalorder %s60, %s61
    %p75 = scmp.eq.s32.totalorder %s25, 1
    %p76 = por %p74, %p75
    %p78 = scmp.ne.s32.totalorder %s61, %s77
    %p79 = scmp.eq.s32.totalorder %s25, 0
    %p80 = por %p78, %p79
    %s81 = sld [smem:[#allocation3 + %s19]]
    %s82 = sld [smem:[#allocation3 + %s26]]
    %s83 = ssub.s32 %s81, %s82
    %p84 = scmp.eq.s32.totalorder %s83, 0
    %s86 = sadd.s32 %s85, 1
    %s87 = scalar_select %p84, %s85, %s86
    %p90 = pneg %p84
    %p91 = scmp.eq.s32.totalorder %s19, 1
    %p92 = por %p90, %p91
    %p93 = scmp.ne.s32.totalorder %s85, %s88
    %p94 = scmp.eq.s32.totalorder %s19, 0
    %p95 = por %p93, %p94
    %p96 = scmp.ne.s32.totalorder %s85, %s88
    %p97 = scmp.eq.s32.totalorder %s24, 1
    %p98 = por %p96, %p97
    %p99 = scmp.ne.s32.totalorder %s88, %s89
    %p100 = scmp.eq.s32.totalorder %s24, 0
    %p101 = por %p99, %p100
    %p102 = scmp.ne.s32.totalorder %s88, %s89
    %p103 = scmp.eq.s32.totalorder %s25, 1
    %p104 = por %p102, %p103
    %p106 = scmp.ne.s32.totalorder %s89, %s105
    %p107 = scmp.eq.s32.totalorder %s25, 0
    %p108 = por %p106, %p107
    %s109 = sld [smem:[#allocation3 + %s19]]
    %s110 = sld [smem:[#allocation3 + %s26]]
    %s111 = ssub.s32 %s109, %s110
    %p112 = scmp.eq.s32.totalorder %s111, 0
    %s114 = sadd.s32 %s113, 1
    %s115 = scalar_select %p112, %s113, %s114
    %p118 = pneg %p112
    %p119 = scmp.eq.s32.totalorder %s19, 1
    %p120 = por %p118, %p119
    %p121 = scmp.ne.s32.totalorder %s113, %s116
    %p122 = scmp.eq.s32.totalorder %s19, 0
    %p123 = por %p121, %p122
    %p124 = scmp.ne.s32.totalorder %s113, %s116
    %p125 = scmp.eq.s32.totalorder %s24, 1
    %p126 = por %p124, %p125
    %p127 = scmp.ne.s32.totalorder %s116, %s117
    %p128 = scmp.eq.s32.totalorder %s24, 0
    %p129 = por %p127, %p128
    %p130 = scmp.ne.s32.totalorder %s116, %s117
    %p131 = scmp.eq.s32.totalorder %s25, 1
    %p132 = por %p130, %p131
    %p134 = scmp.ne.s32.totalorder %s117, %s133
    %p135 = scmp.eq.s32.totalorder %s25, 0
    %p136 = por %p134, %p135
    %s137 = ssub.s32 %s19, %s26
    %p138 = scmp.eq.s32.totalorder %s137, 0
    %s140 = sadd.s32 %s139, 1
    %s141 = scalar_select %p138, %s139, %s140
    %p144 = pneg %p138
    %p145 = scmp.eq.s32.totalorder %s19, 1
    %p146 = por %p144, %p145
    %p147 = scmp.ne.s32.totalorder %s139, %s142
    %p148 = scmp.eq.s32.totalorder %s19, 0
    %p149 = por %p147, %p148
    %p150 = scmp.ne.s32.totalorder %s139, %s142
    %p151 = scmp.eq.s32.totalorder %s24, 1
    %p152 = por %p150, %p151
    %p153 = scmp.ne.s32.totalorder %s142, %s143
    %p154 = scmp.eq.s32.totalorder %s24, 0
    %p155 = por %p153, %p154
    %p156 = scmp.ne.s32.totalorder %s142, %s143
    %p157 = scmp.eq.s32.totalorder %s25, 1
    %p158 = por %p156, %p157
    %p160 = scmp.ne.s32.totalorder %s143, %s159
    %p161 = scmp.eq.s32.totalorder %s25, 0
    %p162 = por %p160, %p161
    %p163 = scmp.le.s32.totalorder 1, %s19
    %p164 = scmp.lt.s32.totalorder %s19, 3
    %p165 = pnand %p163, %p164
    %p166 = pneg %p165
    // Predicated region
    $region9: #{custom_clip_forward.7} parent=5 // pred_check
      _
    $region10: #{custom_clip_forward.7} parent=5 // pred_check_branch
      %168 = sbr.rel (%p165) target = $region12
    $region11: #{custom_clip_forward.7} parent=5 // pred_region
      %s169 = ssub.s32 %s19, 1
    $region12: #{custom_clip_forward.7} parent=5 // pred_fallthru
      _
    %p170 = scmp.lt.s32.totalorder %s19, 2
    // Predicated region
    $region13: #{custom_clip_forward.7} parent=5 // pred_check
      %p171 = pneg %p170
    $region14: #{custom_clip_forward.7} parent=5 // pred_check_branch
      %173 = sbr.rel (%p171) target = $region16
    $region15: #{custom_clip_forward.7} parent=5 // pred_region
      // Predicated region
      $region17: #{custom_clip_forward.7} parent=15 // pred_check
        %p174 = pneg %p39
      $region18: #{custom_clip_forward.7} parent=15 // pred_check_branch
        %176 = sbr.rel (%p174) target = $region20
      $region19: #{custom_clip_forward.7} parent=15 // pred_region
        %p177 = scmp.lt.s32.totalorder %s19, 1
        %s178 = scalar_select %p177, %s19, 1
        %s179 = smul.addr %s178, 2
        %s180 = scalar_lea.vmem %s1, %s179
      $region20: #{custom_clip_forward.7} parent=15 // pred_fallthru
        _
      // Predicated region
      $region21: #{custom_clip_forward.7} parent=15 // pred_check
        %p181 = pneg %p67
      $region22: #{custom_clip_forward.7} parent=15 // pred_check_branch
        %183 = sbr.rel (%p181) target = $region24
      $region23: #{custom_clip_forward.7} parent=15 // pred_region
        %s184 = sld [smem:[#allocation3 + %s19]]
        %p185 = scmp.lt.s32.totalorder %s184, 3
        %s186 = scalar_select %p185, %s184, 3
        %s187 = scalar_lea.vmem %s2, %s186
        %s188 = sld [smem:[#allocation3 + %s19]]
      $region24: #{custom_clip_forward.7} parent=15 // pred_fallthru
        _
      // Predicated region
      $region25: #{custom_clip_forward.7} parent=15 // pred_check
        %p189 = pneg %p95
      $region26: #{custom_clip_forward.7} parent=15 // pred_check_branch
        %191 = sbr.rel (%p189) target = $region28
      $region27: #{custom_clip_forward.7} parent=15 // pred_region
        %s192 = sld [smem:[#allocation3 + %s19]]
        %p193 = scmp.lt.s32.totalorder %s192, 3
        %s194 = scalar_select %p193, %s192, 3
        %s195 = scalar_lea.vmem %s3, %s194
        %s196 = sld [smem:[#allocation3 + %s19]]
      $region28: #{custom_clip_forward.7} parent=15 // pred_fallthru
        _
      // Predicated region
      $region29: #{custom_clip_forward.7} parent=15 // pred_check
        %p197 = pneg %p123
      $region30: #{custom_clip_forward.7} parent=15 // pred_check_branch
        %199 = sbr.rel (%p197) target = $region32
      $region31: #{custom_clip_forward.7} parent=15 // pred_region
        %s200 = sld [smem:[#allocation3 + %s19]]
        %p201 = scmp.lt.s32.totalorder %s200, 3
        %s202 = scalar_select %p201, %s200, 3
        %s203 = smul.addr %s202, 16
        %s204 = smul.addr %s203, 8
        %s205 = scalar_lea.vmem %s4, %s204
        %s206 = sld [smem:[#allocation3 + %s19]]
      $region32: #{custom_clip_forward.7} parent=15 // pred_fallthru
        _
    $region16: #{custom_clip_forward.7} parent=5 // pred_fallthru
      _
    %p207 = scmp.le.s32.totalorder 1, %s19
    %p208 = scmp.lt.s32.totalorder %s19, 3
    %p209 = pnand %p207, %p208
    %p210 = pneg %p209
    // Predicated region
    $region33: #{custom_clip_forward.7} parent=5 // pred_check
      _
    $region34: #{custom_clip_forward.7} parent=5 // pred_check_branch
      %212 = sbr.rel (%p209) target = $region36
    $region35: #{custom_clip_forward.7} parent=5 // pred_region
      %s213 = ssub.s32 %s19, 1
      %p214 = scmp.lt.s32.totalorder %s24, 1
      %s215 = scalar_select %p214, %s24, 1
      %s216 = smul.addr %s215, 2
      %s217 = scalar_lea.vmem %s1, %s216
      %p218 = pneg %p45
      %p219 = pneg %p42
      %s220 = sld [smem:[#allocation3 + %s24]]
      %p221 = scmp.lt.s32.totalorder %s220, 3
      %s222 = scalar_select %p221, %s220, 3
      %s223 = scalar_lea.vmem %s2, %s222
      %p224 = pneg %p73
      %p225 = pneg %p70
      %s226 = sld [smem:[#allocation3 + %s24]]
      %p227 = scmp.lt.s32.totalorder %s226, 3
      %s228 = scalar_select %p227, %s226, 3
      %s229 = scalar_lea.vmem %s3, %s228
      %p230 = pneg %p101
      %p231 = pneg %p98
      %s232 = sld [smem:[#allocation3 + %s24]]
      %p233 = scmp.lt.s32.totalorder %s232, 3
      %s234 = scalar_select %p233, %s232, 3
      %s235 = smul.addr %s234, 16
      %s236 = smul.addr %s235, 8
      %s237 = scalar_lea.vmem %s4, %s236
      %p238 = pneg %p129
      %p239 = pneg %p126
      %p240 = pneg %p155
      %p241 = pneg %p152
      %p242 = scmp.lt.s32.totalorder %s24, 1
      %s243 = scalar_select %p242, %s24, 1
      %s244 = scalar_lea.vmem %s5, %s243
      %p245 = scmp.lt.s32.totalorder %s24, 1
      %s246 = scalar_select %p245, %s24, 1
      %s247 = smul.addr %s246, 2
      %s248 = scalar_lea.vmem %s1, %s247
      %s249 = sld [smem:[#allocation3 + %s24]]
      %p250 = scmp.lt.s32.totalorder %s249, 3
      %s251 = scalar_select %p250, %s249, 3
      %s252 = scalar_lea.vmem %s2, %s251
      %s253 = sld [smem:[#allocation3 + %s24]]
      %s254 = sld [smem:[#allocation3 + %s24]]
      %p255 = scmp.lt.s32.totalorder %s254, 3
      %s256 = scalar_select %p255, %s254, 3
      %s257 = scalar_lea.vmem %s3, %s256
      %s258 = sld [smem:[#allocation3 + %s24]]
      %s259 = sld [smem:[#allocation3 + %s24]]
      %p260 = scmp.lt.s32.totalorder %s259, 3
      %s261 = scalar_select %p260, %s259, 3
      %s262 = smul.addr %s261, 16
      %s263 = smul.addr %s262, 8
      %s264 = scalar_lea.vmem %s4, %s263
      %s265 = sld [smem:[#allocation3 + %s24]]
      %p266 = scmp.lt.s32.totalorder %s24, 1
      %s267 = scalar_select %p266, %s24, 1
      %s268 = scalar_lea.vmem %s5, %s267
      %v269 = vld [vmem:[%s248] sm:$0x3]
      %v270 = vlaneseq
      %v271 = vshrl.u32 %v270, 7
      %v272 = vadd.s32 %v271, 8
      %v273 = vadd.s32 %v271, 16
      %v274 = vadd.s32 %v271, 24
      %v275 = vadd.s32 %v271, 32
      %v276 = vadd.s32 %v271, 40
      %v277 = vadd.s32 %v271, 48
      %v278 = vadd.s32 %v271, 56
      %v279 = vadd.s32 %v271, 64
      %v280 = vadd.s32 %v271, 72
      %v281 = vadd.s32 %v271, 80
      %v282 = vadd.s32 %v271, 88
      %v283 = vadd.s32 %v271, 96
      %v284 = vadd.s32 %v271, 104
      %v285 = vadd.s32 %v271, 112
      %v286 = vadd.s32 %v271, 120
      %v287 = vlaneseq
      %v288 = vand.u32 %v287, 127
      %vm289 = vcmp.eq.s32.totalorder %v271, %v288
      %vm290 = vcmp.eq.s32.totalorder %v272, %v288
      %vm291 = vcmp.eq.s32.totalorder %v273, %v288
      %vm292 = vcmp.eq.s32.totalorder %v274, %v288
      %vm293 = vcmp.eq.s32.totalorder %v275, %v288
      %vm294 = vcmp.eq.s32.totalorder %v276, %v288
      %vm295 = vcmp.eq.s32.totalorder %v277, %v288
      %vm296 = vcmp.eq.s32.totalorder %v278, %v288
      %vm297 = vcmp.eq.s32.totalorder %v279, %v288
      %vm298 = vcmp.eq.s32.totalorder %v280, %v288
      %vm299 = vcmp.eq.s32.totalorder %v281, %v288
      %vm300 = vcmp.eq.s32.totalorder %v282, %v288
      %vm301 = vcmp.eq.s32.totalorder %v283, %v288
      %vm302 = vcmp.eq.s32.totalorder %v284, %v288
      %vm303 = vcmp.eq.s32.totalorder %v285, %v288
      %vm304 = vcmp.eq.s32.totalorder %v286, %v288
      %v305 = vsel %vm289, 1, 0
      %v306 = vsel %vm290, 1, 0
      %v307 = vsel %vm291, 1, 0
      %v308 = vsel %vm292, 1, 0
      %v309 = vsel %vm293, 1, 0
      %v310 = vsel %vm294, 1, 0
      %v311 = vsel %vm295, 1, 0
      %v312 = vsel %vm296, 1, 0
      %v313 = vsel %vm297, 1, 0
      %v314 = vsel %vm298, 1, 0
      %v315 = vsel %vm299, 1, 0
      %v316 = vsel %vm300, 1, 0
      %v317 = vsel %vm301, 1, 0
      %v318 = vsel %vm302, 1, 0
      %v319 = vsel %vm303, 1, 0
      %v320 = vsel %vm304, 1, 0
      %v321 = vcvt.s32.f32 %v305
      %v322 = vcvt.s32.f32 %v306
      %v323 = vcvt.s32.f32 %v307
      %v324 = vcvt.s32.f32 %v308
      %v325 = vcvt.s32.f32 %v309
      %v326 = vcvt.s32.f32 %v310
      %v327 = vcvt.s32.f32 %v311
      %v328 = vcvt.s32.f32 %v312
      %v329 = vcvt.s32.f32 %v313
      %v330 = vcvt.s32.f32 %v314
      %v331 = vcvt.s32.f32 %v315
      %v332 = vcvt.s32.f32 %v316
      %v333 = vcvt.s32.f32 %v317
      %v334 = vcvt.s32.f32 %v318
      %v335 = vcvt.s32.f32 %v319
      %v336 = vcvt.s32.f32 %v320
      %vm337 = vcmask 1041408
      %v338 = vsel %vm337, %v269, 0.0
      %v339 = vrot.slane %v338, 4
      %v340 = vadd.f32 %v338, %v339
      %v341 = vrot.slane %v340, 2
      %v342 = vadd.f32 %v340, %v341
      %v343 = vrot.slane %v342, 1
      %v344 = vadd.f32 %v342, %v343
      %v345 = vrcp.pop 2.0
      %v346 = vmul.f32 2.0, %v345
      %v347 = vsub.f32 1.0, %v346
      %v348 = vmul.f32 %v345, %v347
      %v349 = vadd.f32 %v345, %v348
      %vm350 = vweird.f32 %v345
      %v351 = vsel %vm350, %v345, %v349
      %v352 = vmul.f32 %v344, %v351
      %v353 = vsub.f32 %v269, %v352
      %v354 = vmul.f32 %v353, %v353
      %v355 = vsel %vm337, %v354, 0.0
      %v356 = vrot.slane %v355, 4
      %v357 = vadd.f32 %v355, %v356
      %v358 = vrot.slane %v357, 2
      %v359 = vadd.f32 %v357, %v358
      %v360 = vrot.slane %v359, 1
      %v361 = vadd.f32 %v359, %v360
      %v362 = vld [vmem:[%s264] sm:$0xff]
      %v363 = vld [vmem:[%s264 + $0x8] sm:$0xff]
      %v364 = vld [vmem:[%s264 + $0x10] sm:$0xff]
      %v365 = vld [vmem:[%s264 + $0x18] sm:$0xff]
      %v366 = vld [vmem:[%s264 + $0x20] sm:$0xff]
      %v367 = vld [vmem:[%s264 + $0x28] sm:$0xff]
      %v368 = vld [vmem:[%s264 + $0x30] sm:$0xff]
      %v369 = vld [vmem:[%s264 + $0x38] sm:$0xff]
      %v370 = vld [vmem:[%s264 + $0x40] sm:$0xff]
      %v371 = vld [vmem:[%s264 + $0x48] sm:$0xff]
      %v372 = vld [vmem:[%s264 + $0x50] sm:$0xff]
      %v373 = vld [vmem:[%s264 + $0x58] sm:$0xff]
      %v374 = vld [vmem:[%s264 + $0x60] sm:$0xff]
      %v375 = vld [vmem:[%s264 + $0x68] sm:$0xff]
      %v376 = vld [vmem:[%s264 + $0x70] sm:$0xff]
      %v377 = vld [vmem:[%s264 + $0x78] sm:$0xff]
      %378 = vmatpush.msra.mxu0 %v377
      %379 = vmatpush.msra.mxu0 %v376
      %380 = vmatpush.msra.mxu0 %v375
      %381 = vmatpush.msra.mxu0 %v374
      %382 = vmatpush.msra.mxu0 %v373
      %383 = vmatpush.msra.mxu0 %v372
      %384 = vmatpush.msra.mxu0 %v371
      %385 = vmatpush.msra.mxu0 %v370
      %386 = vmatpush.msra.mxu0 %v369
      %387 = vmatpush.msra.mxu0 %v368
      %388 = vmatpush.msra.mxu0 %v367
      %389 = vmatpush.msra.mxu0 %v366
      %390 = vmatpush.msra.mxu0 %v365
      %391 = vmatpush.msra.mxu0 %v364
      %392 = vmatpush.msra.mxu0 %v363
      %393 = vmatpush.msra.mxu0 %v362
      %394 = vmatmul.f32.gmra.mxu0 %v353
      %v395 = vpop.f32.mrf.mxu0
      %v396 = vadd.f32 0.0, %v395
      %397 = vdwg.mxu0
      %v398 = vmul.f32 %v321, 1e-07
      %v399 = vmul.f32 %v322, 1e-07
      %v400 = vmul.f32 %v323, 1e-07
      %v401 = vmul.f32 %v324, 1e-07
      %v402 = vmul.f32 %v325, 1e-07
      %v403 = vmul.f32 %v326, 1e-07
      %v404 = vmul.f32 %v327, 1e-07
      %v405 = vmul.f32 %v328, 1e-07
      %v406 = vmul.f32 %v329, 1e-07
      %v407 = vmul.f32 %v330, 1e-07
      %v408 = vmul.f32 %v331, 1e-07
      %v409 = vmul.f32 %v332, 1e-07
      %v410 = vmul.f32 %v333, 1e-07
      %v411 = vmul.f32 %v334, 1e-07
      %v412 = vmul.f32 %v335, 1e-07
      %v413 = vmul.f32 %v336, 1e-07
      %414 = vxpose.xlu0.b32.start [1/16] %v396, 128
      %415 = vxpose.xlu0.b32.cont [2/16] 0.0, 128
      %416 = vxpose.xlu0.b32.cont [3/16] 0.0, 128
      %417 = vxpose.xlu0.b32.cont [4/16] 0.0, 128
      %418 = vxpose.xlu0.b32.cont [5/16] 0.0, 128
      %419 = vxpose.xlu0.b32.cont [6/16] 0.0, 128
      %420 = vxpose.xlu0.b32.cont [7/16] 0.0, 128
      %421 = vxpose.xlu0.b32.cont [8/16] 0.0, 128
      %422 = vxpose.xlu0.b32.cont [9/16] 0.0, 128
      %423 = vxpose.xlu0.b32.cont [10/16] 0.0, 128
      %424 = vxpose.xlu0.b32.cont [11/16] 0.0, 128
      %425 = vxpose.xlu0.b32.cont [12/16] 0.0, 128
      %426 = vxpose.xlu0.b32.cont [13/16] 0.0, 128
      %427 = vxpose.xlu0.b32.cont [14/16] 0.0, 128
      %428 = vxpose.xlu0.b32.cont [15/16] 0.0, 128
      %429 = vxpose.xlu0.b32.end [16/16] 0.0, 128
      %v430 = vpop.trf.xlu0
      %v431 = vpop.trf.xlu0
      %v432 = vpop.trf.xlu0
      %v433 = vpop.trf.xlu0
      %v434 = vpop.trf.xlu0
      %v435 = vpop.trf.xlu0
      %v436 = vpop.trf.xlu0
      %v437 = vpop.trf.xlu0
      %v438 = vpop.trf.xlu0
      %v439 = vpop.trf.xlu0
      %v440 = vpop.trf.xlu0
      %v441 = vpop.trf.xlu0
      %v442 = vpop.trf.xlu0
      %v443 = vpop.trf.xlu0
      %v444 = vpop.trf.xlu0
      %v445 = vpop.trf.xlu0
      %vm446 = vcmask 15360
      %v448 = vsel %vm446, %v430, 0
      %v451 = vsel %vm446, %v431, 0
      %v454 = vsel %vm446, %v432, 0
      %v457 = vsel %vm446, %v433, 0
      %v460 = vsel %vm446, %v434, 0
      %v463 = vsel %vm446, %v435, 0
      %v466 = vsel %vm446, %v436, 0
      %v469 = vsel %vm446, %v437, 0
      %v472 = vsel %vm446, %v438, 0
      %v475 = vsel %vm446, %v439, 0
      %v478 = vsel %vm446, %v440, 0
      %v481 = vsel %vm446, %v441, 0
      %v484 = vsel %vm446, %v442, 0
      %v487 = vsel %vm446, %v443, 0
      %v490 = vsel %vm446, %v444, 0
      %v493 = vsel %vm446, %v445, 0
      %v496 = vsel %vm337, %v396, 0
      %498 = vmatpush.msra.mxu0 0.0
      %499 = vmatpush.msra.mxu0 0.0
      %500 = vmatpush.msra.mxu0 0.0
      %501 = vmatpush.msra.mxu0 0.0
      %502 = vmatpush.msra.mxu0 0.0
      %503 = vmatpush.msra.mxu0 0.0
      %504 = vmatpush.msra.mxu0 0.0
      %505 = vmatpush.msra.mxu0 0.0
      %506 = vmatpush.msra.mxu0 0.0
      %507 = vmatpush.msra.mxu0 0.0
      %508 = vmatpush.msra.mxu0 0.0
      %509 = vmatpush.msra.mxu0 0.0
      %510 = vmatpush.msra.mxu0 0.0
      %511 = vmatpush.msra.mxu0 0.0
      %512 = vmatpush.msra.mxu0 0.0
      %513 = vmatpush.msra.mxu0 %v496
      %514 = vmatmul.f32.gmra.mxu0 %v448
      %v515 = vpop.f32.mrf.mxu0
      %v516 = vadd.f32 %v398, %v515
      %517 = vmatmul.f32.gmra.mxu0 %v451
      %v518 = vpop.f32.mrf.mxu0
      %v519 = vadd.f32 %v399, %v518
      %520 = vmatmul.f32.gmra.mxu0 %v454
      %v521 = vpop.f32.mrf.mxu0
      %v522 = vadd.f32 %v400, %v521
      %523 = vmatmul.f32.gmra.mxu0 %v457
      %v524 = vpop.f32.mrf.mxu0
      %v525 = vadd.f32 %v401, %v524
      %526 = vmatmul.f32.gmra.mxu0 %v460
      %v527 = vpop.f32.mrf.mxu0
      %v528 = vadd.f32 %v402, %v527
      %529 = vmatmul.f32.gmra.mxu0 %v463
      %v530 = vpop.f32.mrf.mxu0
      %v531 = vadd.f32 %v403, %v530
      %532 = vmatmul.f32.gmra.mxu0 %v466
      %v533 = vpop.f32.mrf.mxu0
      %v534 = vadd.f32 %v404, %v533
      %535 = vmatmul.f32.gmra.mxu0 %v469
      %v536 = vpop.f32.mrf.mxu0
      %v537 = vadd.f32 %v405, %v536
      %538 = vmatmul.f32.gmra.mxu0 %v472
      %v539 = vpop.f32.mrf.mxu0
      %v540 = vadd.f32 %v406, %v539
      %541 = vmatmul.f32.gmra.mxu0 %v475
      %v542 = vpop.f32.mrf.mxu0
      %v543 = vadd.f32 %v407, %v542
      %544 = vmatmul.f32.gmra.mxu0 %v478
      %v545 = vpop.f32.mrf.mxu0
      %v546 = vadd.f32 %v408, %v545
      %547 = vmatmul.f32.gmra.mxu0 %v481
      %v548 = vpop.f32.mrf.mxu0
      %v549 = vadd.f32 %v409, %v548
      %550 = vmatmul.f32.gmra.mxu0 %v484
      %v551 = vpop.f32.mrf.mxu0
      %v552 = vadd.f32 %v410, %v551
      %553 = vmatmul.f32.gmra.mxu0 %v487
      %v554 = vpop.f32.mrf.mxu0
      %v555 = vadd.f32 %v411, %v554
      %556 = vmatmul.f32.gmra.mxu0 %v490
      %v557 = vpop.f32.mrf.mxu0
      %v558 = vadd.f32 %v412, %v557
      %559 = vmatmul.f32.gmra.mxu0 %v493
      %v560 = vpop.f32.mrf.mxu0
      %v561 = vadd.f32 %v413, %v560
      %562 = vdwg.mxu0
      %v563 = vmul.f32 %v516, %v516
      %v564 = vmul.f32 %v519, %v519
      %v565 = vmul.f32 %v522, %v522
      %v566 = vmul.f32 %v525, %v525
      %v567 = vmul.f32 %v528, %v528
      %v568 = vmul.f32 %v531, %v531
      %v569 = vmul.f32 %v534, %v534
      %v570 = vmul.f32 %v537, %v537
      %v571 = vmul.f32 %v540, %v540
      %v572 = vmul.f32 %v543, %v543
      %v573 = vmul.f32 %v546, %v546
      %v574 = vmul.f32 %v549, %v549
      %v575 = vmul.f32 %v552, %v552
      %v576 = vmul.f32 %v555, %v555
      %v577 = vmul.f32 %v558, %v558
      %v578 = vmul.f32 %v561, %v561
      %v579 = vadd.f32 %v563, %v564
      %v580 = vadd.f32 %v579, %v565
      %v581 = vadd.f32 %v580, %v566
      %v582 = vadd.f32 %v581, %v567
      %v583 = vadd.f32 %v582, %v568
      %v584 = vadd.f32 %v583, %v569
      %v585 = vadd.f32 %v584, %v570
      %v586 = vadd.f32 %v585, %v571
      %v587 = vadd.f32 %v586, %v572
      %v588 = vadd.f32 %v587, %v573
      %v589 = vadd.f32 %v588, %v574
      %v590 = vadd.f32 %v589, %v575
      %v591 = vadd.f32 %v590, %v576
      %v592 = vadd.f32 %v591, %v577
      %v593 = vadd.f32 %v592, %v578
      %594 = vadd.xlane.f32.xlu0 %v593
      %v595 = vpop.xlane.xlu0 %594
      %v596 = vrot.slane %v595, 4
      %v597 = vadd.f32 %v595, %v596
      %v598 = vrot.slane %v597, 2
      %v599 = vadd.f32 %v597, %v598
      %v600 = vrot.slane %v599, 1
      %v601 = vadd.f32 %v599, %v600
      %s602 = vtos %v601
      %v603 = vstv %s602
      %v604 = vrsqrt.pop %v603
      %v605 = vmul.f32 %v604, %v603
      %v606 = vmul.f32 %v605, %v604
      %v607 = vmul.f32 0.5, %v606
      %v608 = vsub.f32 1.5, %v607
      %v609 = vmul.f32 %v604, %v608
      %v610 = vmul.f32 %v603, %v609
      %vm611 = vcmp.eq.f32.partialorder %v603, inf
      %v612 = vsel %vm611, %v603, %v610
      %vm613 = vcmp.eq.f32.partialorder %v603, 0.0
      %v614 = vand.u32 %v603, 2147483648
      %v615 = vsel %vm613, %v614, %v612
      %s616 = vtos %v615
      %s617 = smax.f32 %s616, 1e-12
      %v618 = vstv %s617
      %v619 = vrcp.pop %v618
      %v620 = vmul.f32 %v618, %v619
      %v621 = vsub.f32 1.0, %v620
      %v622 = vmul.f32 %v619, %v621
      %v623 = vadd.f32 %v619, %v622
      %vm624 = vweird.f32 %v618
      %vm625 = vweird.f32 %v619
      %vm626 = vmor %vm624, %vm625
      %v627 = vsel %vm626, %v619, %v623
      %v628 = vand.u32 2147483647, %v618
      %vm629 = vcmp.eq.f32.partialorder %v628, 8.507059e+37
      %v630 = vand.u32 %v618, 2147483648
      %v631 = vor.u32 1.1754944e-38, %v630
      %v632 = vsel %vm629, %v631, %v627
      %v633 = vmul.f32 %v516, %v632
      %v634 = vmul.f32 %v519, %v632
      %v635 = vmul.f32 %v522, %v632
      %v636 = vmul.f32 %v525, %v632
      %v637 = vmul.f32 %v528, %v632
      %v638 = vmul.f32 %v531, %v632
      %v639 = vmul.f32 %v534, %v632
      %v640 = vmul.f32 %v537, %v632
      %v641 = vmul.f32 %v540, %v632
      %v642 = vmul.f32 %v543, %v632
      %v643 = vmul.f32 %v546, %v632
      %v644 = vmul.f32 %v549, %v632
      %v645 = vmul.f32 %v552, %v632
      %v646 = vmul.f32 %v555, %v632
      %v647 = vmul.f32 %v558, %v632
      %v648 = vmul.f32 %v561, %v632
      %v649 = vmul.f32 %v321, 3.0
      %v650 = vmul.f32 %v322, 3.0
      %v651 = vmul.f32 %v323, 3.0
      %v652 = vmul.f32 %v324, 3.0
      %v653 = vmul.f32 %v325, 3.0
      %v654 = vmul.f32 %v326, 3.0
      %v655 = vmul.f32 %v327, 3.0
      %v656 = vmul.f32 %v328, 3.0
      %v657 = vmul.f32 %v329, 3.0
      %v658 = vmul.f32 %v330, 3.0
      %v659 = vmul.f32 %v331, 3.0
      %v660 = vmul.f32 %v332, 3.0
      %v661 = vmul.f32 %v333, 3.0
      %v662 = vmul.f32 %v334, 3.0
      %v663 = vmul.f32 %v335, 3.0
      %v664 = vmul.f32 %v336, 3.0
      %665 = vmatpush.msra.mxu0 %v648
      %666 = vmatpush.msra.mxu0 %v647
      %667 = vmatpush.msra.mxu0 %v646
      %668 = vmatpush.msra.mxu0 %v645
      %669 = vmatpush.msra.mxu0 %v644
      %670 = vmatpush.msra.mxu0 %v643
      %671 = vmatpush.msra.mxu0 %v642
      %672 = vmatpush.msra.mxu0 %v641
      %673 = vmatpush.msra.mxu0 %v640
      %674 = vmatpush.msra.mxu0 %v639
      %675 = vmatpush.msra.mxu0 %v638
      %676 = vmatpush.msra.mxu0 %v637
      %677 = vmatpush.msra.mxu0 %v636
      %678 = vmatpush.msra.mxu0 %v635
      %679 = vmatpush.msra.mxu0 %v634
      %680 = vmatpush.msra.mxu0 %v633
      %681 = vmatmul.f32.gmra.mxu0 %v321
      %v682 = vpop.f32.mrf.mxu0
      %v683 = vadd.f32 0.0, %v682
      %684 = vmatmul.f32.gmra.mxu0 %v322
      %v685 = vpop.f32.mrf.mxu0
      %v686 = vadd.f32 0.0, %v685
      %687 = vmatmul.f32.gmra.mxu0 %v323
      %v688 = vpop.f32.mrf.mxu0
      %v689 = vadd.f32 0.0, %v688
      %690 = vmatmul.f32.gmra.mxu0 %v324
      %v691 = vpop.f32.mrf.mxu0
      %v692 = vadd.f32 0.0, %v691
      %693 = vmatmul.f32.gmra.mxu0 %v325
      %v694 = vpop.f32.mrf.mxu0
      %v695 = vadd.f32 0.0, %v694
      %696 = vmatmul.f32.gmra.mxu0 %v326
      %v697 = vpop.f32.mrf.mxu0
      %v698 = vadd.f32 0.0, %v697
      %699 = vmatmul.f32.gmra.mxu0 %v327
      %v700 = vpop.f32.mrf.mxu0
      %v701 = vadd.f32 0.0, %v700
      %702 = vmatmul.f32.gmra.mxu0 %v328
      %v703 = vpop.f32.mrf.mxu0
      %v704 = vadd.f32 0.0, %v703
      %705 = vmatmul.f32.gmra.mxu0 %v329
      %v706 = vpop.f32.mrf.mxu0
      %v707 = vadd.f32 0.0, %v706
      %708 = vmatmul.f32.gmra.mxu0 %v330
      %v709 = vpop.f32.mrf.mxu0
      %v710 = vadd.f32 0.0, %v709
      %711 = vmatmul.f32.gmra.mxu0 %v331
      %v712 = vpop.f32.mrf.mxu0
      %v713 = vadd.f32 0.0, %v712
      %714 = vmatmul.f32.gmra.mxu0 %v332
      %v715 = vpop.f32.mrf.mxu0
      %v716 = vadd.f32 0.0, %v715
      %717 = vmatmul.f32.gmra.mxu0 %v333
      %v718 = vpop.f32.mrf.mxu0
      %v719 = vadd.f32 0.0, %v718
      %720 = vmatmul.f32.gmra.mxu0 %v334
      %v721 = vpop.f32.mrf.mxu0
      %v722 = vadd.f32 0.0, %v721
      %723 = vmatmul.f32.gmra.mxu0 %v335
      %v724 = vpop.f32.mrf.mxu0
      %v725 = vadd.f32 0.0, %v724
      %726 = vmatmul.f32.gmra.mxu0 %v336
      %v727 = vpop.f32.mrf.mxu0
      %v728 = vadd.f32 0.0, %v727
      %729 = vdwg.mxu0
      %v730 = vsub.f32 %v649, %v683
      %v731 = vsub.f32 %v650, %v686
      %v732 = vsub.f32 %v651, %v689
      %v733 = vsub.f32 %v652, %v692
      %v734 = vsub.f32 %v653, %v695
      %v735 = vsub.f32 %v654, %v698
      %v736 = vsub.f32 %v655, %v701
      %v737 = vsub.f32 %v656, %v704
      %v738 = vsub.f32 %v657, %v707
      %v739 = vsub.f32 %v658, %v710
      %v740 = vsub.f32 %v659, %v713
      %v741 = vsub.f32 %v660, %v716
      %v742 = vsub.f32 %v661, %v719
      %v743 = vsub.f32 %v662, %v722
      %v744 = vsub.f32 %v663, %v725
      %v745 = vsub.f32 %v664, %v728
      %v746 = vmul.f32 %v730, 0.5
      %v747 = vmul.f32 %v731, 0.5
      %v748 = vmul.f32 %v732, 0.5
      %v749 = vmul.f32 %v733, 0.5
      %v750 = vmul.f32 %v734, 0.5
      %v751 = vmul.f32 %v735, 0.5
      %v752 = vmul.f32 %v736, 0.5
      %v753 = vmul.f32 %v737, 0.5
      %v754 = vmul.f32 %v738, 0.5
      %v755 = vmul.f32 %v739, 0.5
      %v756 = vmul.f32 %v740, 0.5
      %v757 = vmul.f32 %v741, 0.5
      %v758 = vmul.f32 %v742, 0.5
      %v759 = vmul.f32 %v743, 0.5
      %v760 = vmul.f32 %v744, 0.5
      %v761 = vmul.f32 %v745, 0.5
      %762 = vmatpush.msra.mxu0 %v761
      %763 = vmatpush.msra.mxu0 %v760
      %764 = vmatpush.msra.mxu0 %v759
      %765 = vmatpush.msra.mxu0 %v758
      %766 = vmatpush.msra.mxu0 %v757
      %767 = vmatpush.msra.mxu0 %v756
      %768 = vmatpush.msra.mxu0 %v755
      %769 = vmatpush.msra.mxu0 %v754
      %770 = vmatpush.msra.mxu0 %v753
      %771 = vmatpush.msra.mxu0 %v752
      %772 = vmatpush.msra.mxu0 %v751
      %773 = vmatpush.msra.mxu0 %v750
      %774 = vmatpush.msra.mxu0 %v749
      %775 = vmatpush.msra.mxu0 %v748
      %776 = vmatpush.msra.mxu0 %v747
      %777 = vmatpush.msra.mxu0 %v746
      %778 = vmatmul.f32.gmra.mxu0 %v633
      %v779 = vpop.f32.mrf.mxu0
      %v780 = vadd.f32 0.0, %v779
      %781 = vmatmul.f32.gmra.mxu0 %v634
      %v782 = vpop.f32.mrf.mxu0
      %v783 = vadd.f32 0.0, %v782
      %784 = vmatmul.f32.gmra.mxu0 %v635
      %v785 = vpop.f32.mrf.mxu0
      %v786 = vadd.f32 0.0, %v785
      %787 = vmatmul.f32.gmra.mxu0 %v636
      %v788 = vpop.f32.mrf.mxu0
      %v789 = vadd.f32 0.0, %v788
      %790 = vmatmul.f32.gmra.mxu0 %v637
      %v791 = vpop.f32.mrf.mxu0
      %v792 = vadd.f32 0.0, %v791
      %793 = vmatmul.f32.gmra.mxu0 %v638
      %v794 = vpop.f32.mrf.mxu0
      %v795 = vadd.f32 0.0, %v794
      %796 = vmatmul.f32.gmra.mxu0 %v639
      %v797 = vpop.f32.mrf.mxu0
      %v798 = vadd.f32 0.0, %v797
      %799 = vmatmul.f32.gmra.mxu0 %v640
      %v800 = vpop.f32.mrf.mxu0
      %v801 = vadd.f32 0.0, %v800
      %802 = vmatmul.f32.gmra.mxu0 %v641
      %v803 = vpop.f32.mrf.mxu0
      %v804 = vadd.f32 0.0, %v803
      %805 = vmatmul.f32.gmra.mxu0 %v642
      %v806 = vpop.f32.mrf.mxu0
      %v807 = vadd.f32 0.0, %v806
      %808 = vmatmul.f32.gmra.mxu0 %v643
      %v809 = vpop.f32.mrf.mxu0
      %v810 = vadd.f32 0.0, %v809
      %811 = vmatmul.f32.gmra.mxu0 %v644
      %v812 = vpop.f32.mrf.mxu0
      %v813 = vadd.f32 0.0, %v812
      %814 = vmatmul.f32.gmra.mxu0 %v645
      %v815 = vpop.f32.mrf.mxu0
      %v816 = vadd.f32 0.0, %v815
      %817 = vmatmul.f32.gmra.mxu0 %v646
      %v818 = vpop.f32.mrf.mxu0
      %v819 = vadd.f32 0.0, %v818
      %820 = vmatmul.f32.gmra.mxu0 %v647
      %v821 = vpop.f32.mrf.mxu0
      %v822 = vadd.f32 0.0, %v821
      %823 = vmatmul.f32.gmra.mxu0 %v648
      %v824 = vpop.f32.mrf.mxu0
      %v825 = vadd.f32 0.0, %v824
      %826 = vdwg.mxu0
      %827 = vmatpush.msra.mxu0 %v336
      %828 = vmatpush.msra.mxu0 %v335
      %829 = vmatpush.msra.mxu0 %v334
      %830 = vmatpush.msra.mxu0 %v333
      %831 = vmatpush.msra.mxu0 %v332
      %832 = vmatpush.msra.mxu0 %v331
      %833 = vmatpush.msra.mxu0 %v330
      %834 = vmatpush.msra.mxu0 %v329
      %835 = vmatpush.msra.mxu0 %v328
      %836 = vmatpush.msra.mxu0 %v327
      %837 = vmatpush.msra.mxu0 %v326
      %838 = vmatpush.msra.mxu0 %v325
      %839 = vmatpush.msra.mxu0 %v324
      %840 = vmatpush.msra.mxu0 %v323
      %841 = vmatpush.msra.mxu0 %v322
      %842 = vmatpush.msra.mxu0 %v321
      %843 = vmatmul.f32.gmra.mxu0 %v746
      %v844 = vpop.f32.mrf.mxu0
      %v845 = vadd.f32 0.0, %v844
      %846 = vmatmul.f32.gmra.mxu0 %v747
      %v847 = vpop.f32.mrf.mxu0
      %v848 = vadd.f32 0.0, %v847
      %849 = vmatmul.f32.gmra.mxu0 %v748
      %v850 = vpop.f32.mrf.mxu0
      %v851 = vadd.f32 0.0, %v850
      %852 = vmatmul.f32.gmra.mxu0 %v749
      %v853 = vpop.f32.mrf.mxu0
      %v854 = vadd.f32 0.0, %v853
      %855 = vmatmul.f32.gmra.mxu0 %v750
      %v856 = vpop.f32.mrf.mxu0
      %v857 = vadd.f32 0.0, %v856
      %858 = vmatmul.f32.gmra.mxu0 %v751
      %v859 = vpop.f32.mrf.mxu0
      %v860 = vadd.f32 0.0, %v859
      %861 = vmatmul.f32.gmra.mxu0 %v752
      %v862 = vpop.f32.mrf.mxu0
      %v863 = vadd.f32 0.0, %v862
      %864 = vmatmul.f32.gmra.mxu0 %v753
      %v865 = vpop.f32.mrf.mxu0
      %v866 = vadd.f32 0.0, %v865
      %867 = vmatmul.f32.gmra.mxu0 %v754
      %v868 = vpop.f32.mrf.mxu0
      %v869 = vadd.f32 0.0, %v868
      %870 = vmatmul.f32.gmra.mxu0 %v755
      %v871 = vpop.f32.mrf.mxu0
      %v872 = vadd.f32 0.0, %v871
      %873 = vmatmul.f32.gmra.mxu0 %v756
      %v874 = vpop.f32.mrf.mxu0
      %v875 = vadd.f32 0.0, %v874
      %876 = vmatmul.f32.gmra.mxu0 %v757
      %v877 = vpop.f32.mrf.mxu0
      %v878 = vadd.f32 0.0, %v877
      %879 = vmatmul.f32.gmra.mxu0 %v758
      %v880 = vpop.f32.mrf.mxu0
      %v881 = vadd.f32 0.0, %v880
      %882 = vmatmul.f32.gmra.mxu0 %v759
      %v883 = vpop.f32.mrf.mxu0
      %v884 = vadd.f32 0.0, %v883
      %885 = vmatmul.f32.gmra.mxu0 %v760
      %v886 = vpop.f32.mrf.mxu0
      %v887 = vadd.f32 0.0, %v886
      %888 = vmatmul.f32.gmra.mxu0 %v761
      %v889 = vpop.f32.mrf.mxu0
      %v890 = vadd.f32 0.0, %v889
      %891 = vdwg.mxu0
      %892 = vmatpush.msra.mxu0 %v825
      %893 = vmatpush.msra.mxu0 %v822
      %894 = vmatpush.msra.mxu0 %v819
      %895 = vmatpush.msra.mxu0 %v816
      %896 = vmatpush.msra.mxu0 %v813
      %897 = vmatpush.msra.mxu0 %v810
      %898 = vmatpush.msra.mxu0 %v807
      %899 = vmatpush.msra.mxu0 %v804
      %900 = vmatpush.msra.mxu0 %v801
      %901 = vmatpush.msra.mxu0 %v798
      %902 = vmatpush.msra.mxu0 %v795
      %903 = vmatpush.msra.mxu0 %v792
      %904 = vmatpush.msra.mxu0 %v789
      %905 = vmatpush.msra.mxu0 %v786
      %906 = vmatpush.msra.mxu0 %v783
      %907 = vmatpush.msra.mxu0 %v780
      %908 = vmatmul.f32.gmra.mxu0 %v845
      %v909 = vpop.f32.mrf.mxu0
      %v910 = vadd.f32 0.0, %v909
      %911 = vmatmul.f32.gmra.mxu0 %v848
      %v912 = vpop.f32.mrf.mxu0
      %v913 = vadd.f32 0.0, %v912
      %914 = vmatmul.f32.gmra.mxu0 %v851
      %v915 = vpop.f32.mrf.mxu0
      %v916 = vadd.f32 0.0, %v915
      %917 = vmatmul.f32.gmra.mxu0 %v854
      %v918 = vpop.f32.mrf.mxu0
      %v919 = vadd.f32 0.0, %v918
      %920 = vmatmul.f32.gmra.mxu0 %v857
      %v921 = vpop.f32.mrf.mxu0
      %v922 = vadd.f32 0.0, %v921
      %923 = vmatmul.f32.gmra.mxu0 %v860
      %v924 = vpop.f32.mrf.mxu0
      %v925 = vadd.f32 0.0, %v924
      %926 = vmatmul.f32.gmra.mxu0 %v863
      %v927 = vpop.f32.mrf.mxu0
      %v928 = vadd.f32 0.0, %v927
      %929 = vmatmul.f32.gmra.mxu0 %v866
      %v930 = vpop.f32.mrf.mxu0
      %v931 = vadd.f32 0.0, %v930
      %932 = vmatmul.f32.gmra.mxu0 %v869
      %v933 = vpop.f32.mrf.mxu0
      %v934 = vadd.f32 0.0, %v933
      %935 = vmatmul.f32.gmra.mxu0 %v872
      %v936 = vpop.f32.mrf.mxu0
      %v937 = vadd.f32 0.0, %v936
      %938 = vmatmul.f32.gmra.mxu0 %v875
      %v939 = vpop.f32.mrf.mxu0
      %v940 = vadd.f32 0.0, %v939
      %941 = vmatmul.f32.gmra.mxu0 %v878
      %v942 = vpop.f32.mrf.mxu0
      %v943 = vadd.f32 0.0, %v942
      %944 = vmatmul.f32.gmra.mxu0 %v881
      %v945 = vpop.f32.mrf.mxu0
      %v946 = vadd.f32 0.0, %v945
      %947 = vmatmul.f32.gmra.mxu0 %v884
      %v948 = vpop.f32.mrf.mxu0
      %v949 = vadd.f32 0.0, %v948
      %950 = vmatmul.f32.gmra.mxu0 %v887
      %v951 = vpop.f32.mrf.mxu0
      %v952 = vadd.f32 0.0, %v951
      %953 = vmatmul.f32.gmra.mxu0 %v890
      %v954 = vpop.f32.mrf.mxu0
      %v955 = vadd.f32 0.0, %v954
      %956 = vdwg.mxu0
      %v957 = vsub.f32 %v649, %v910
      %v958 = vsub.f32 %v650, %v913
      %v959 = vsub.f32 %v651, %v916
      %v960 = vsub.f32 %v652, %v919
      %v961 = vsub.f32 %v653, %v922
      %v962 = vsub.f32 %v654, %v925
      %v963 = vsub.f32 %v655, %v928
      %v964 = vsub.f32 %v656, %v931
      %v965 = vsub.f32 %v657, %v934
      %v966 = vsub.f32 %v658, %v937
      %v967 = vsub.f32 %v659, %v940
      %v968 = vsub.f32 %v660, %v943
      %v969 = vsub.f32 %v661, %v946
      %v970 = vsub.f32 %v662, %v949
      %v971 = vsub.f32 %v663, %v952
      %v972 = vsub.f32 %v664, %v955
      %v973 = vmul.f32 %v957, 0.5
      %v974 = vmul.f32 %v958, 0.5
      %v975 = vmul.f32 %v959, 0.5
      %v976 = vmul.f32 %v960, 0.5
      %v977 = vmul.f32 %v961, 0.5
      %v978 = vmul.f32 %v962, 0.5
      %v979 = vmul.f32 %v963, 0.5
      %v980 = vmul.f32 %v964, 0.5
      %v981 = vmul.f32 %v965, 0.5
      %v982 = vmul.f32 %v966, 0.5
      %v983 = vmul.f32 %v967, 0.5
      %v984 = vmul.f32 %v968, 0.5
      %v985 = vmul.f32 %v969, 0.5
      %v986 = vmul.f32 %v970, 0.5
      %v987 = vmul.f32 %v971, 0.5
      %v988 = vmul.f32 %v972, 0.5
      %989 = vmatpush.msra.mxu0 %v988
      %990 = vmatpush.msra.mxu0 %v987
      %991 = vmatpush.msra.mxu0 %v986
      %992 = vmatpush.msra.mxu0 %v985
      %993 = vmatpush.msra.mxu0 %v984
      %994 = vmatpush.msra.mxu0 %v983
      %995 = vmatpush.msra.mxu0 %v982
      %996 = vmatpush.msra.mxu0 %v981
      %997 = vmatpush.msra.mxu0 %v980
      %998 = vmatpush.msra.mxu0 %v979
      %999 = vmatpush.msra.mxu0 %v978
      %1000 = vmatpush.msra.mxu0 %v977
      %1001 = vmatpush.msra.mxu0 %v976
      %1002 = vmatpush.msra.mxu0 %v975
      %1003 = vmatpush.msra.mxu0 %v974
      %1004 = vmatpush.msra.mxu0 %v973
      %1005 = vmatmul.f32.gmra.mxu0 %v780
      %v1006 = vpop.f32.mrf.mxu0
      %v1007 = vadd.f32 0.0, %v1006
      %1008 = vmatmul.f32.gmra.mxu0 %v783
      %v1009 = vpop.f32.mrf.mxu0
      %v1010 = vadd.f32 0.0, %v1009
      %1011 = vmatmul.f32.gmra.mxu0 %v786
      %v1012 = vpop.f32.mrf.mxu0
      %v1013 = vadd.f32 0.0, %v1012
      %1014 = vmatmul.f32.gmra.mxu0 %v789
      %v1015 = vpop.f32.mrf.mxu0
      %v1016 = vadd.f32 0.0, %v1015
      %1017 = vmatmul.f32.gmra.mxu0 %v792
      %v1018 = vpop.f32.mrf.mxu0
      %v1019 = vadd.f32 0.0, %v1018
      %1020 = vmatmul.f32.gmra.mxu0 %v795
      %v1021 = vpop.f32.mrf.mxu0
      %v1022 = vadd.f32 0.0, %v1021
      %1023 = vmatmul.f32.gmra.mxu0 %v798
      %v1024 = vpop.f32.mrf.mxu0
      %v1025 = vadd.f32 0.0, %v1024
      %1026 = vmatmul.f32.gmra.mxu0 %v801
      %v1027 = vpop.f32.mrf.mxu0
      %v1028 = vadd.f32 0.0, %v1027
      %1029 = vmatmul.f32.gmra.mxu0 %v804
      %v1030 = vpop.f32.mrf.mxu0
      %v1031 = vadd.f32 0.0, %v1030
      %1032 = vmatmul.f32.gmra.mxu0 %v807
      %v1033 = vpop.f32.mrf.mxu0
      %v1034 = vadd.f32 0.0, %v1033
      %1035 = vmatmul.f32.gmra.mxu0 %v810
      %v1036 = vpop.f32.mrf.mxu0
      %v1037 = vadd.f32 0.0, %v1036
      %1038 = vmatmul.f32.gmra.mxu0 %v813
      %v1039 = vpop.f32.mrf.mxu0
      %v1040 = vadd.f32 0.0, %v1039
      %1041 = vmatmul.f32.gmra.mxu0 %v816
      %v1042 = vpop.f32.mrf.mxu0
      %v1043 = vadd.f32 0.0, %v1042
      %1044 = vmatmul.f32.gmra.mxu0 %v819
      %v1045 = vpop.f32.mrf.mxu0
      %v1046 = vadd.f32 0.0, %v1045
      %1047 = vmatmul.f32.gmra.mxu0 %v822
      %v1048 = vpop.f32.mrf.mxu0
      %v1049 = vadd.f32 0.0, %v1048
      %1050 = vmatmul.f32.gmra.mxu0 %v825
      %v1051 = vpop.f32.mrf.mxu0
      %v1052 = vadd.f32 0.0, %v1051
      %1053 = vdwg.mxu0
      %1054 = vmatpush.msra.mxu0 %v890
      %1055 = vmatpush.msra.mxu0 %v887
      %1056 = vmatpush.msra.mxu0 %v884
      %1057 = vmatpush.msra.mxu0 %v881
      %1058 = vmatpush.msra.mxu0 %v878
      %1059 = vmatpush.msra.mxu0 %v875
      %1060 = vmatpush.msra.mxu0 %v872
      %1061 = vmatpush.msra.mxu0 %v869
      %1062 = vmatpush.msra.mxu0 %v866
      %1063 = vmatpush.msra.mxu0 %v863
      %1064 = vmatpush.msra.mxu0 %v860
      %1065 = vmatpush.msra.mxu0 %v857
      %1066 = vmatpush.msra.mxu0 %v854
      %1067 = vmatpush.msra.mxu0 %v851
      %1068 = vmatpush.msra.mxu0 %v848
      %1069 = vmatpush.msra.mxu0 %v845
      %1070 = vmatmul.f32.gmra.mxu0 %v973
      %v1071 = vpop.f32.mrf.mxu0
      %v1072 = vadd.f32 0.0, %v1071
      %1073 = vmatmul.f32.gmra.mxu0 %v974
      %v1074 = vpop.f32.mrf.mxu0
      %v1075 = vadd.f32 0.0, %v1074
      %1076 = vmatmul.f32.gmra.mxu0 %v975
      %v1077 = vpop.f32.mrf.mxu0
      %v1078 = vadd.f32 0.0, %v1077
      %1079 = vmatmul.f32.gmra.mxu0 %v976
      %v1080 = vpop.f32.mrf.mxu0
      %v1081 = vadd.f32 0.0, %v1080
      %1082 = vmatmul.f32.gmra.mxu0 %v977
      %v1083 = vpop.f32.mrf.mxu0
      %v1084 = vadd.f32 0.0, %v1083
      %1085 = vmatmul.f32.gmra.mxu0 %v978
      %v1086 = vpop.f32.mrf.mxu0
      %v1087 = vadd.f32 0.0, %v1086
      %1088 = vmatmul.f32.gmra.mxu0 %v979
      %v1089 = vpop.f32.mrf.mxu0
      %v1090 = vadd.f32 0.0, %v1089
      %1091 = vmatmul.f32.gmra.mxu0 %v980
      %v1092 = vpop.f32.mrf.mxu0
      %v1093 = vadd.f32 0.0, %v1092
      %1094 = vmatmul.f32.gmra.mxu0 %v981
      %v1095 = vpop.f32.mrf.mxu0
      %v1096 = vadd.f32 0.0, %v1095
      %1097 = vmatmul.f32.gmra.mxu0 %v982
      %v1098 = vpop.f32.mrf.mxu0
      %v1099 = vadd.f32 0.0, %v1098
      %1100 = vmatmul.f32.gmra.mxu0 %v983
      %v1101 = vpop.f32.mrf.mxu0
      %v1102 = vadd.f32 0.0, %v1101
      %1103 = vmatmul.f32.gmra.mxu0 %v984
      %v1104 = vpop.f32.mrf.mxu0
      %v1105 = vadd.f32 0.0, %v1104
      %1106 = vmatmul.f32.gmra.mxu0 %v985
      %v1107 = vpop.f32.mrf.mxu0
      %v1108 = vadd.f32 0.0, %v1107
      %1109 = vmatmul.f32.gmra.mxu0 %v986
      %v1110 = vpop.f32.mrf.mxu0
      %v1111 = vadd.f32 0.0, %v1110
      %1112 = vmatmul.f32.gmra.mxu0 %v987
      %v1113 = vpop.f32.mrf.mxu0
      %v1114 = vadd.f32 0.0, %v1113
      %1115 = vmatmul.f32.gmra.mxu0 %v988
      %v1116 = vpop.f32.mrf.mxu0
      %v1117 = vadd.f32 0.0, %v1116
      %1118 = vdwg.mxu0
      %1119 = vmatpush.msra.mxu0 %v1052
      %1120 = vmatpush.msra.mxu0 %v1049
      %1121 = vmatpush.msra.mxu0 %v1046
      %1122 = vmatpush.msra.mxu0 %v1043
      %1123 = vmatpush.msra.mxu0 %v1040
      %1124 = vmatpush.msra.mxu0 %v1037
      %1125 = vmatpush.msra.mxu0 %v1034
      %1126 = vmatpush.msra.mxu0 %v1031
      %1127 = vmatpush.msra.mxu0 %v1028
      %1128 = vmatpush.msra.mxu0 %v1025
      %1129 = vmatpush.msra.mxu0 %v1022
      %1130 = vmatpush.msra.mxu0 %v1019
      %1131 = vmatpush.msra.mxu0 %v1016
      %1132 = vmatpush.msra.mxu0 %v1013
      %1133 = vmatpush.msra.mxu0 %v1010
      %1134 = vmatpush.msra.mxu0 %v1007
      %1135 = vmatmul.f32.gmra.mxu0 %v1072
      %v1136 = vpop.f32.mrf.mxu0
      %v1137 = vadd.f32 0.0, %v1136
      %1138 = vmatmul.f32.gmra.mxu0 %v1075
      %v1139 = vpop.f32.mrf.mxu0
      %v1140 = vadd.f32 0.0, %v1139
      %1141 = vmatmul.f32.gmra.mxu0 %v1078
      %v1142 = vpop.f32.mrf.mxu0
      %v1143 = vadd.f32 0.0, %v1142
      %1144 = vmatmul.f32.gmra.mxu0 %v1081
      %v1145 = vpop.f32.mrf.mxu0
      %v1146 = vadd.f32 0.0, %v1145
      %1147 = vmatmul.f32.gmra.mxu0 %v1084
      %v1148 = vpop.f32.mrf.mxu0
      %v1149 = vadd.f32 0.0, %v1148
      %1150 = vmatmul.f32.gmra.mxu0 %v1087
      %v1151 = vpop.f32.mrf.mxu0
      %v1152 = vadd.f32 0.0, %v1151
      %1153 = vmatmul.f32.gmra.mxu0 %v1090
      %v1154 = vpop.f32.mrf.mxu0
      %v1155 = vadd.f32 0.0, %v1154
      %1156 = vmatmul.f32.gmra.mxu0 %v1093
      %v1157 = vpop.f32.mrf.mxu0
      %v1158 = vadd.f32 0.0, %v1157
      %1159 = vmatmul.f32.gmra.mxu0 %v1096
      %v1160 = vpop.f32.mrf.mxu0
      %v1161 = vadd.f32 0.0, %v1160
      %1162 = vmatmul.f32.gmra.mxu0 %v1099
      %v1163 = vpop.f32.mrf.mxu0
      %v1164 = vadd.f32 0.0, %v1163
      %1165 = vmatmul.f32.gmra.mxu0 %v1102
      %v1166 = vpop.f32.mrf.mxu0
      %v1167 = vadd.f32 0.0, %v1166
      %1168 = vmatmul.f32.gmra.mxu0 %v1105
      %v1169 = vpop.f32.mrf.mxu0
      %v1170 = vadd.f32 0.0, %v1169
      %1171 = vmatmul.f32.gmra.mxu0 %v1108
      %v1172 = vpop.f32.mrf.mxu0
      %v1173 = vadd.f32 0.0, %v1172
      %1174 = vmatmul.f32.gmra.mxu0 %v1111
      %v1175 = vpop.f32.mrf.mxu0
      %v1176 = vadd.f32 0.0, %v1175
      %1177 = vmatmul.f32.gmra.mxu0 %v1114
      %v1178 = vpop.f32.mrf.mxu0
      %v1179 = vadd.f32 0.0, %v1178
      %1180 = vmatmul.f32.gmra.mxu0 %v1117
      %v1181 = vpop.f32.mrf.mxu0
      %v1182 = vadd.f32 0.0, %v1181
      %1183 = vdwg.mxu0
      %v1184 = vsub.f32 %v649, %v1137
      %v1185 = vsub.f32 %v650, %v1140
      %v1186 = vsub.f32 %v651, %v1143
      %v1187 = vsub.f32 %v652, %v1146
      %v1188 = vsub.f32 %v653, %v1149
      %v1189 = vsub.f32 %v654, %v1152
      %v1190 = vsub.f32 %v655, %v1155
      %v1191 = vsub.f32 %v656, %v1158
      %v1192 = vsub.f32 %v657, %v1161
      %v1193 = vsub.f32 %v658, %v1164
      %v1194 = vsub.f32 %v659, %v1167
      %v1195 = vsub.f32 %v660, %v1170
      %v1196 = vsub.f32 %v661, %v1173
      %v1197 = vsub.f32 %v662, %v1176
      %v1198 = vsub.f32 %v663, %v1179
      %v1199 = vsub.f32 %v664, %v1182
      %v1200 = vmul.f32 %v1184, 0.5
      %v1201 = vmul.f32 %v1185, 0.5
      %v1202 = vmul.f32 %v1186, 0.5
      %v1203 = vmul.f32 %v1187, 0.5
      %v1204 = vmul.f32 %v1188, 0.5
      %v1205 = vmul.f32 %v1189, 0.5
      %v1206 = vmul.f32 %v1190, 0.5
      %v1207 = vmul.f32 %v1191, 0.5
      %v1208 = vmul.f32 %v1192, 0.5
      %v1209 = vmul.f32 %v1193, 0.5
      %v1210 = vmul.f32 %v1194, 0.5
      %v1211 = vmul.f32 %v1195, 0.5
      %v1212 = vmul.f32 %v1196, 0.5
      %v1213 = vmul.f32 %v1197, 0.5
      %v1214 = vmul.f32 %v1198, 0.5
      %v1215 = vmul.f32 %v1199, 0.5
      %1216 = vmatpush.msra.mxu0 %v1215
      %1217 = vmatpush.msra.mxu0 %v1214
      %1218 = vmatpush.msra.mxu0 %v1213
      %1219 = vmatpush.msra.mxu0 %v1212
      %1220 = vmatpush.msra.mxu0 %v1211
      %1221 = vmatpush.msra.mxu0 %v1210
      %1222 = vmatpush.msra.mxu0 %v1209
      %1223 = vmatpush.msra.mxu0 %v1208
      %1224 = vmatpush.msra.mxu0 %v1207
      %1225 = vmatpush.msra.mxu0 %v1206
      %1226 = vmatpush.msra.mxu0 %v1205
      %1227 = vmatpush.msra.mxu0 %v1204
      %1228 = vmatpush.msra.mxu0 %v1203
      %1229 = vmatpush.msra.mxu0 %v1202
      %1230 = vmatpush.msra.mxu0 %v1201
      %1231 = vmatpush.msra.mxu0 %v1200
      %1232 = vmatmul.f32.gmra.mxu0 %v1007
      %v1233 = vpop.f32.mrf.mxu0
      %v1234 = vadd.f32 0.0, %v1233
      %1235 = vmatmul.f32.gmra.mxu0 %v1010
      %v1236 = vpop.f32.mrf.mxu0
      %v1237 = vadd.f32 0.0, %v1236
      %1238 = vmatmul.f32.gmra.mxu0 %v1013
      %v1239 = vpop.f32.mrf.mxu0
      %v1240 = vadd.f32 0.0, %v1239
      %1241 = vmatmul.f32.gmra.mxu0 %v1016
      %v1242 = vpop.f32.mrf.mxu0
      %v1243 = vadd.f32 0.0, %v1242
      %1244 = vmatmul.f32.gmra.mxu0 %v1019
      %v1245 = vpop.f32.mrf.mxu0
      %v1246 = vadd.f32 0.0, %v1245
      %1247 = vmatmul.f32.gmra.mxu0 %v1022
      %v1248 = vpop.f32.mrf.mxu0
      %v1249 = vadd.f32 0.0, %v1248
      %1250 = vmatmul.f32.gmra.mxu0 %v1025
      %v1251 = vpop.f32.mrf.mxu0
      %v1252 = vadd.f32 0.0, %v1251
      %1253 = vmatmul.f32.gmra.mxu0 %v1028
      %v1254 = vpop.f32.mrf.mxu0
      %v1255 = vadd.f32 0.0, %v1254
      %1256 = vmatmul.f32.gmra.mxu0 %v1031
      %v1257 = vpop.f32.mrf.mxu0
      %v1258 = vadd.f32 0.0, %v1257
      %1259 = vmatmul.f32.gmra.mxu0 %v1034
      %v1260 = vpop.f32.mrf.mxu0
      %v1261 = vadd.f32 0.0, %v1260
      %1262 = vmatmul.f32.gmra.mxu0 %v1037
      %v1263 = vpop.f32.mrf.mxu0
      %v1264 = vadd.f32 0.0, %v1263
      %1265 = vmatmul.f32.gmra.mxu0 %v1040
      %v1266 = vpop.f32.mrf.mxu0
      %v1267 = vadd.f32 0.0, %v1266
      %1268 = vmatmul.f32.gmra.mxu0 %v1043
      %v1269 = vpop.f32.mrf.mxu0
      %v1270 = vadd.f32 0.0, %v1269
      %1271 = vmatmul.f32.gmra.mxu0 %v1046
      %v1272 = vpop.f32.mrf.mxu0
      %v1273 = vadd.f32 0.0, %v1272
      %1274 = vmatmul.f32.gmra.mxu0 %v1049
      %v1275 = vpop.f32.mrf.mxu0
      %v1276 = vadd.f32 0.0, %v1275
      %1277 = vmatmul.f32.gmra.mxu0 %v1052
      %v1278 = vpop.f32.mrf.mxu0
      %v1279 = vadd.f32 0.0, %v1278
      %1280 = vdwg.mxu0
      %1281 = vmatpush.msra.mxu0 %v1117
      %1282 = vmatpush.msra.mxu0 %v1114
      %1283 = vmatpush.msra.mxu0 %v1111
      %1284 = vmatpush.msra.mxu0 %v1108
      %1285 = vmatpush.msra.mxu0 %v1105
      %1286 = vmatpush.msra.mxu0 %v1102
      %1287 = vmatpush.msra.mxu0 %v1099
      %1288 = vmatpush.msra.mxu0 %v1096
      %1289 = vmatpush.msra.mxu0 %v1093
      %1290 = vmatpush.msra.mxu0 %v1090
      %1291 = vmatpush.msra.mxu0 %v1087
      %1292 = vmatpush.msra.mxu0 %v1084
      %1293 = vmatpush.msra.mxu0 %v1081
      %1294 = vmatpush.msra.mxu0 %v1078
      %1295 = vmatpush.msra.mxu0 %v1075
      %1296 = vmatpush.msra.mxu0 %v1072
      %1297 = vmatmul.f32.gmra.mxu0 %v1200
      %v1298 = vpop.f32.mrf.mxu0
      %v1299 = vadd.f32 0.0, %v1298
      %1300 = vmatmul.f32.gmra.mxu0 %v1201
      %v1301 = vpop.f32.mrf.mxu0
      %v1302 = vadd.f32 0.0, %v1301
      %1303 = vmatmul.f32.gmra.mxu0 %v1202
      %v1304 = vpop.f32.mrf.mxu0
      %v1305 = vadd.f32 0.0, %v1304
      %1306 = vmatmul.f32.gmra.mxu0 %v1203
      %v1307 = vpop.f32.mrf.mxu0
      %v1308 = vadd.f32 0.0, %v1307
      %1309 = vmatmul.f32.gmra.mxu0 %v1204
      %v1310 = vpop.f32.mrf.mxu0
      %v1311 = vadd.f32 0.0, %v1310
      %1312 = vmatmul.f32.gmra.mxu0 %v1205
      %v1313 = vpop.f32.mrf.mxu0
      %v1314 = vadd.f32 0.0, %v1313
      %1315 = vmatmul.f32.gmra.mxu0 %v1206
      %v1316 = vpop.f32.mrf.mxu0
      %v1317 = vadd.f32 0.0, %v1316
      %1318 = vmatmul.f32.gmra.mxu0 %v1207
      %v1319 = vpop.f32.mrf.mxu0
      %v1320 = vadd.f32 0.0, %v1319
      %1321 = vmatmul.f32.gmra.mxu0 %v1208
      %v1322 = vpop.f32.mrf.mxu0
      %v1323 = vadd.f32 0.0, %v1322
      %1324 = vmatmul.f32.gmra.mxu0 %v1209
      %v1325 = vpop.f32.mrf.mxu0
      %v1326 = vadd.f32 0.0, %v1325
      %1327 = vmatmul.f32.gmra.mxu0 %v1210
      %v1328 = vpop.f32.mrf.mxu0
      %v1329 = vadd.f32 0.0, %v1328
      %1330 = vmatmul.f32.gmra.mxu0 %v1211
      %v1331 = vpop.f32.mrf.mxu0
      %v1332 = vadd.f32 0.0, %v1331
      %1333 = vmatmul.f32.gmra.mxu0 %v1212
      %v1334 = vpop.f32.mrf.mxu0
      %v1335 = vadd.f32 0.0, %v1334
      %1336 = vmatmul.f32.gmra.mxu0 %v1213
      %v1337 = vpop.f32.mrf.mxu0
      %v1338 = vadd.f32 0.0, %v1337
      %1339 = vmatmul.f32.gmra.mxu0 %v1214
      %v1340 = vpop.f32.mrf.mxu0
      %v1341 = vadd.f32 0.0, %v1340
      %1342 = vmatmul.f32.gmra.mxu0 %v1215
      %v1343 = vpop.f32.mrf.mxu0
      %v1344 = vadd.f32 0.0, %v1343
      %1345 = vdwg.mxu0
      %1346 = vmatpush.msra.mxu0 %v1279
      %1347 = vmatpush.msra.mxu0 %v1276
      %1348 = vmatpush.msra.mxu0 %v1273
      %1349 = vmatpush.msra.mxu0 %v1270
      %1350 = vmatpush.msra.mxu0 %v1267
      %1351 = vmatpush.msra.mxu0 %v1264
      %1352 = vmatpush.msra.mxu0 %v1261
      %1353 = vmatpush.msra.mxu0 %v1258
      %1354 = vmatpush.msra.mxu0 %v1255
      %1355 = vmatpush.msra.mxu0 %v1252
      %1356 = vmatpush.msra.mxu0 %v1249
      %1357 = vmatpush.msra.mxu0 %v1246
      %1358 = vmatpush.msra.mxu0 %v1243
      %1359 = vmatpush.msra.mxu0 %v1240
      %1360 = vmatpush.msra.mxu0 %v1237
      %1361 = vmatpush.msra.mxu0 %v1234
      %1362 = vmatmul.f32.gmra.mxu0 %v1299
      %v1363 = vpop.f32.mrf.mxu0
      %v1364 = vadd.f32 0.0, %v1363
      %1365 = vmatmul.f32.gmra.mxu0 %v1302
      %v1366 = vpop.f32.mrf.mxu0
      %v1367 = vadd.f32 0.0, %v1366
      %1368 = vmatmul.f32.gmra.mxu0 %v1305
      %v1369 = vpop.f32.mrf.mxu0
      %v1370 = vadd.f32 0.0, %v1369
      %1371 = vmatmul.f32.gmra.mxu0 %v1308
      %v1372 = vpop.f32.mrf.mxu0
      %v1373 = vadd.f32 0.0, %v1372
      %1374 = vmatmul.f32.gmra.mxu0 %v1311
      %v1375 = vpop.f32.mrf.mxu0
      %v1376 = vadd.f32 0.0, %v1375
      %1377 = vmatmul.f32.gmra.mxu0 %v1314
      %v1378 = vpop.f32.mrf.mxu0
      %v1379 = vadd.f32 0.0, %v1378
      %1380 = vmatmul.f32.gmra.mxu0 %v1317
      %v1381 = vpop.f32.mrf.mxu0
      %v1382 = vadd.f32 0.0, %v1381
      %1383 = vmatmul.f32.gmra.mxu0 %v1320
      %v1384 = vpop.f32.mrf.mxu0
      %v1385 = vadd.f32 0.0, %v1384
      %1386 = vmatmul.f32.gmra.mxu0 %v1323
      %v1387 = vpop.f32.mrf.mxu0
      %v1388 = vadd.f32 0.0, %v1387
      %1389 = vmatmul.f32.gmra.mxu0 %v1326
      %v1390 = vpop.f32.mrf.mxu0
      %v1391 = vadd.f32 0.0, %v1390
      %1392 = vmatmul.f32.gmra.mxu0 %v1329
      %v1393 = vpop.f32.mrf.mxu0
      %v1394 = vadd.f32 0.0, %v1393
      %1395 = vmatmul.f32.gmra.mxu0 %v1332
      %v1396 = vpop.f32.mrf.mxu0
      %v1397 = vadd.f32 0.0, %v1396
      %1398 = vmatmul.f32.gmra.mxu0 %v1335
      %v1399 = vpop.f32.mrf.mxu0
      %v1400 = vadd.f32 0.0, %v1399
      %1401 = vmatmul.f32.gmra.mxu0 %v1338
      %v1402 = vpop.f32.mrf.mxu0
      %v1403 = vadd.f32 0.0, %v1402
      %1404 = vmatmul.f32.gmra.mxu0 %v1341
      %v1405 = vpop.f32.mrf.mxu0
      %v1406 = vadd.f32 0.0, %v1405
      %1407 = vmatmul.f32.gmra.mxu0 %v1344
      %v1408 = vpop.f32.mrf.mxu0
      %v1409 = vadd.f32 0.0, %v1408
      %1410 = vdwg.mxu0
      %v1411 = vsub.f32 %v649, %v1364
      %v1412 = vsub.f32 %v650, %v1367
      %v1413 = vsub.f32 %v651, %v1370
      %v1414 = vsub.f32 %v652, %v1373
      %v1415 = vsub.f32 %v653, %v1376
      %v1416 = vsub.f32 %v654, %v1379
      %v1417 = vsub.f32 %v655, %v1382
      %v1418 = vsub.f32 %v656, %v1385
      %v1419 = vsub.f32 %v657, %v1388
      %v1420 = vsub.f32 %v658, %v1391
      %v1421 = vsub.f32 %v659, %v1394
      %v1422 = vsub.f32 %v660, %v1397
      %v1423 = vsub.f32 %v661, %v1400
      %v1424 = vsub.f32 %v662, %v1403
      %v1425 = vsub.f32 %v663, %v1406
      %v1426 = vsub.f32 %v664, %v1409
      %v1427 = vmul.f32 %v1411, 0.5
      %v1428 = vmul.f32 %v1412, 0.5
      %v1429 = vmul.f32 %v1413, 0.5
      %v1430 = vmul.f32 %v1414, 0.5
      %v1431 = vmul.f32 %v1415, 0.5
      %v1432 = vmul.f32 %v1416, 0.5
      %v1433 = vmul.f32 %v1417, 0.5
      %v1434 = vmul.f32 %v1418, 0.5
      %v1435 = vmul.f32 %v1419, 0.5
      %v1436 = vmul.f32 %v1420, 0.5
      %v1437 = vmul.f32 %v1421, 0.5
      %v1438 = vmul.f32 %v1422, 0.5
      %v1439 = vmul.f32 %v1423, 0.5
      %v1440 = vmul.f32 %v1424, 0.5
      %v1441 = vmul.f32 %v1425, 0.5
      %v1442 = vmul.f32 %v1426, 0.5
      %1443 = vmatpush.msra.mxu0 %v1442
      %1444 = vmatpush.msra.mxu0 %v1441
      %1445 = vmatpush.msra.mxu0 %v1440
      %1446 = vmatpush.msra.mxu0 %v1439
      %1447 = vmatpush.msra.mxu0 %v1438
      %1448 = vmatpush.msra.mxu0 %v1437
      %1449 = vmatpush.msra.mxu0 %v1436
      %1450 = vmatpush.msra.mxu0 %v1435
      %1451 = vmatpush.msra.mxu0 %v1434
      %1452 = vmatpush.msra.mxu0 %v1433
      %1453 = vmatpush.msra.mxu0 %v1432
      %1454 = vmatpush.msra.mxu0 %v1431
      %1455 = vmatpush.msra.mxu0 %v1430
      %1456 = vmatpush.msra.mxu0 %v1429
      %1457 = vmatpush.msra.mxu0 %v1428
      %1458 = vmatpush.msra.mxu0 %v1427
      %1459 = vmatmul.f32.gmra.mxu0 %v1234
      %v1460 = vpop.f32.mrf.mxu0
      %v1461 = vadd.f32 0.0, %v1460
      %1462 = vmatmul.f32.gmra.mxu0 %v1237
      %v1463 = vpop.f32.mrf.mxu0
      %v1464 = vadd.f32 0.0, %v1463
      %1465 = vmatmul.f32.gmra.mxu0 %v1240
      %v1466 = vpop.f32.mrf.mxu0
      %v1467 = vadd.f32 0.0, %v1466
      %1468 = vmatmul.f32.gmra.mxu0 %v1243
      %v1469 = vpop.f32.mrf.mxu0
      %v1470 = vadd.f32 0.0, %v1469
      %1471 = vmatmul.f32.gmra.mxu0 %v1246
      %v1472 = vpop.f32.mrf.mxu0
      %v1473 = vadd.f32 0.0, %v1472
      %1474 = vmatmul.f32.gmra.mxu0 %v1249
      %v1475 = vpop.f32.mrf.mxu0
      %v1476 = vadd.f32 0.0, %v1475
      %1477 = vmatmul.f32.gmra.mxu0 %v1252
      %v1478 = vpop.f32.mrf.mxu0
      %v1479 = vadd.f32 0.0, %v1478
      %1480 = vmatmul.f32.gmra.mxu0 %v1255
      %v1481 = vpop.f32.mrf.mxu0
      %v1482 = vadd.f32 0.0, %v1481
      %1483 = vmatmul.f32.gmra.mxu0 %v1258
      %v1484 = vpop.f32.mrf.mxu0
      %v1485 = vadd.f32 0.0, %v1484
      %1486 = vmatmul.f32.gmra.mxu0 %v1261
      %v1487 = vpop.f32.mrf.mxu0
      %v1488 = vadd.f32 0.0, %v1487
      %1489 = vmatmul.f32.gmra.mxu0 %v1264
      %v1490 = vpop.f32.mrf.mxu0
      %v1491 = vadd.f32 0.0, %v1490
      %1492 = vmatmul.f32.gmra.mxu0 %v1267
      %v1493 = vpop.f32.mrf.mxu0
      %v1494 = vadd.f32 0.0, %v1493
      %1495 = vmatmul.f32.gmra.mxu0 %v1270
      %v1496 = vpop.f32.mrf.mxu0
      %v1497 = vadd.f32 0.0, %v1496
      %1498 = vmatmul.f32.gmra.mxu0 %v1273
      %v1499 = vpop.f32.mrf.mxu0
      %v1500 = vadd.f32 0.0, %v1499
      %1501 = vmatmul.f32.gmra.mxu0 %v1276
      %v1502 = vpop.f32.mrf.mxu0
      %v1503 = vadd.f32 0.0, %v1502
      %1504 = vmatmul.f32.gmra.mxu0 %v1279
      %v1505 = vpop.f32.mrf.mxu0
      %v1506 = vadd.f32 0.0, %v1505
      %1507 = vdwg.mxu0
      %1508 = vmatpush.msra.mxu0 %v1344
      %1509 = vmatpush.msra.mxu0 %v1341
      %1510 = vmatpush.msra.mxu0 %v1338
      %1511 = vmatpush.msra.mxu0 %v1335
      %1512 = vmatpush.msra.mxu0 %v1332
      %1513 = vmatpush.msra.mxu0 %v1329
      %1514 = vmatpush.msra.mxu0 %v1326
      %1515 = vmatpush.msra.mxu0 %v1323
      %1516 = vmatpush.msra.mxu0 %v1320
      %1517 = vmatpush.msra.mxu0 %v1317
      %1518 = vmatpush.msra.mxu0 %v1314
      %1519 = vmatpush.msra.mxu0 %v1311
      %1520 = vmatpush.msra.mxu0 %v1308
      %1521 = vmatpush.msra.mxu0 %v1305
      %1522 = vmatpush.msra.mxu0 %v1302
      %1523 = vmatpush.msra.mxu0 %v1299
      %1524 = vmatmul.f32.gmra.mxu0 %v1427
      %v1525 = vpop.f32.mrf.mxu0
      %v1526 = vadd.f32 0.0, %v1525
      %1527 = vmatmul.f32.gmra.mxu0 %v1428
      %v1528 = vpop.f32.mrf.mxu0
      %v1529 = vadd.f32 0.0, %v1528
      %1530 = vmatmul.f32.gmra.mxu0 %v1429
      %v1531 = vpop.f32.mrf.mxu0
      %v1532 = vadd.f32 0.0, %v1531
      %1533 = vmatmul.f32.gmra.mxu0 %v1430
      %v1534 = vpop.f32.mrf.mxu0
      %v1535 = vadd.f32 0.0, %v1534
      %1536 = vmatmul.f32.gmra.mxu0 %v1431
      %v1537 = vpop.f32.mrf.mxu0
      %v1538 = vadd.f32 0.0, %v1537
      %1539 = vmatmul.f32.gmra.mxu0 %v1432
      %v1540 = vpop.f32.mrf.mxu0
      %v1541 = vadd.f32 0.0, %v1540
      %1542 = vmatmul.f32.gmra.mxu0 %v1433
      %v1543 = vpop.f32.mrf.mxu0
      %v1544 = vadd.f32 0.0, %v1543
      %1545 = vmatmul.f32.gmra.mxu0 %v1434
      %v1546 = vpop.f32.mrf.mxu0
      %v1547 = vadd.f32 0.0, %v1546
      %1548 = vmatmul.f32.gmra.mxu0 %v1435
      %v1549 = vpop.f32.mrf.mxu0
      %v1550 = vadd.f32 0.0, %v1549
      %1551 = vmatmul.f32.gmra.mxu0 %v1436
      %v1552 = vpop.f32.mrf.mxu0
      %v1553 = vadd.f32 0.0, %v1552
      %1554 = vmatmul.f32.gmra.mxu0 %v1437
      %v1555 = vpop.f32.mrf.mxu0
      %v1556 = vadd.f32 0.0, %v1555
      %1557 = vmatmul.f32.gmra.mxu0 %v1438
      %v1558 = vpop.f32.mrf.mxu0
      %v1559 = vadd.f32 0.0, %v1558
      %1560 = vmatmul.f32.gmra.mxu0 %v1439
      %v1561 = vpop.f32.mrf.mxu0
      %v1562 = vadd.f32 0.0, %v1561
      %1563 = vmatmul.f32.gmra.mxu0 %v1440
      %v1564 = vpop.f32.mrf.mxu0
      %v1565 = vadd.f32 0.0, %v1564
      %1566 = vmatmul.f32.gmra.mxu0 %v1441
      %v1567 = vpop.f32.mrf.mxu0
      %v1568 = vadd.f32 0.0, %v1567
      %1569 = vmatmul.f32.gmra.mxu0 %v1442
      %v1570 = vpop.f32.mrf.mxu0
      %v1571 = vadd.f32 0.0, %v1570
      %1572 = vdwg.mxu0
      %1573 = vmatpush.msra.mxu0 %v1506
      %1574 = vmatpush.msra.mxu0 %v1503
      %1575 = vmatpush.msra.mxu0 %v1500
      %1576 = vmatpush.msra.mxu0 %v1497
      %1577 = vmatpush.msra.mxu0 %v1494
      %1578 = vmatpush.msra.mxu0 %v1491
      %1579 = vmatpush.msra.mxu0 %v1488
      %1580 = vmatpush.msra.mxu0 %v1485
      %1581 = vmatpush.msra.mxu0 %v1482
      %1582 = vmatpush.msra.mxu0 %v1479
      %1583 = vmatpush.msra.mxu0 %v1476
      %1584 = vmatpush.msra.mxu0 %v1473
      %1585 = vmatpush.msra.mxu0 %v1470
      %1586 = vmatpush.msra.mxu0 %v1467
      %1587 = vmatpush.msra.mxu0 %v1464
      %1588 = vmatpush.msra.mxu0 %v1461
      %1589 = vmatmul.f32.gmra.mxu0 %v1526
      %v1590 = vpop.f32.mrf.mxu0
      %v1591 = vadd.f32 0.0, %v1590
      %1592 = vmatmul.f32.gmra.mxu0 %v1529
      %v1593 = vpop.f32.mrf.mxu0
      %v1594 = vadd.f32 0.0, %v1593
      %1595 = vmatmul.f32.gmra.mxu0 %v1532
      %v1596 = vpop.f32.mrf.mxu0
      %v1597 = vadd.f32 0.0, %v1596
      %1598 = vmatmul.f32.gmra.mxu0 %v1535
      %v1599 = vpop.f32.mrf.mxu0
      %v1600 = vadd.f32 0.0, %v1599
      %1601 = vmatmul.f32.gmra.mxu0 %v1538
      %v1602 = vpop.f32.mrf.mxu0
      %v1603 = vadd.f32 0.0, %v1602
      %1604 = vmatmul.f32.gmra.mxu0 %v1541
      %v1605 = vpop.f32.mrf.mxu0
      %v1606 = vadd.f32 0.0, %v1605
      %1607 = vmatmul.f32.gmra.mxu0 %v1544
      %v1608 = vpop.f32.mrf.mxu0
      %v1609 = vadd.f32 0.0, %v1608
      %1610 = vmatmul.f32.gmra.mxu0 %v1547
      %v1611 = vpop.f32.mrf.mxu0
      %v1612 = vadd.f32 0.0, %v1611
      %1613 = vmatmul.f32.gmra.mxu0 %v1550
      %v1614 = vpop.f32.mrf.mxu0
      %v1615 = vadd.f32 0.0, %v1614
      %1616 = vmatmul.f32.gmra.mxu0 %v1553
      %v1617 = vpop.f32.mrf.mxu0
      %v1618 = vadd.f32 0.0, %v1617
      %1619 = vmatmul.f32.gmra.mxu0 %v1556
      %v1620 = vpop.f32.mrf.mxu0
      %v1621 = vadd.f32 0.0, %v1620
      %1622 = vmatmul.f32.gmra.mxu0 %v1559
      %v1623 = vpop.f32.mrf.mxu0
      %v1624 = vadd.f32 0.0, %v1623
      %1625 = vmatmul.f32.gmra.mxu0 %v1562
      %v1626 = vpop.f32.mrf.mxu0
      %v1627 = vadd.f32 0.0, %v1626
      %1628 = vmatmul.f32.gmra.mxu0 %v1565
      %v1629 = vpop.f32.mrf.mxu0
      %v1630 = vadd.f32 0.0, %v1629
      %1631 = vmatmul.f32.gmra.mxu0 %v1568
      %v1632 = vpop.f32.mrf.mxu0
      %v1633 = vadd.f32 0.0, %v1632
      %1634 = vmatmul.f32.gmra.mxu0 %v1571
      %v1635 = vpop.f32.mrf.mxu0
      %v1636 = vadd.f32 0.0, %v1635
      %1637 = vdwg.mxu0
      %v1638 = vsub.f32 %v649, %v1591
      %v1639 = vsub.f32 %v650, %v1594
      %v1640 = vsub.f32 %v651, %v1597
      %v1641 = vsub.f32 %v652, %v1600
      %v1642 = vsub.f32 %v653, %v1603
      %v1643 = vsub.f32 %v654, %v1606
      %v1644 = vsub.f32 %v655, %v1609
      %v1645 = vsub.f32 %v656, %v1612
      %v1646 = vsub.f32 %v657, %v1615
      %v1647 = vsub.f32 %v658, %v1618
      %v1648 = vsub.f32 %v659, %v1621
      %v1649 = vsub.f32 %v660, %v1624
      %v1650 = vsub.f32 %v661, %v1627
      %v1651 = vsub.f32 %v662, %v1630
      %v1652 = vsub.f32 %v663, %v1633
      %v1653 = vsub.f32 %v664, %v1636
      %v1654 = vmul.f32 %v1638, 0.5
      %v1655 = vmul.f32 %v1639, 0.5
      %v1656 = vmul.f32 %v1640, 0.5
      %v1657 = vmul.f32 %v1641, 0.5
      %v1658 = vmul.f32 %v1642, 0.5
      %v1659 = vmul.f32 %v1643, 0.5
      %v1660 = vmul.f32 %v1644, 0.5
      %v1661 = vmul.f32 %v1645, 0.5
      %v1662 = vmul.f32 %v1646, 0.5
      %v1663 = vmul.f32 %v1647, 0.5
      %v1664 = vmul.f32 %v1648, 0.5
      %v1665 = vmul.f32 %v1649, 0.5
      %v1666 = vmul.f32 %v1650, 0.5
      %v1667 = vmul.f32 %v1651, 0.5
      %v1668 = vmul.f32 %v1652, 0.5
      %v1669 = vmul.f32 %v1653, 0.5
      %1670 = vmatpush.msra.mxu0 %v1669
      %1671 = vmatpush.msra.mxu0 %v1668
      %1672 = vmatpush.msra.mxu0 %v1667
      %1673 = vmatpush.msra.mxu0 %v1666
      %1674 = vmatpush.msra.mxu0 %v1665
      %1675 = vmatpush.msra.mxu0 %v1664
      %1676 = vmatpush.msra.mxu0 %v1663
      %1677 = vmatpush.msra.mxu0 %v1662
      %1678 = vmatpush.msra.mxu0 %v1661
      %1679 = vmatpush.msra.mxu0 %v1660
      %1680 = vmatpush.msra.mxu0 %v1659
      %1681 = vmatpush.msra.mxu0 %v1658
      %1682 = vmatpush.msra.mxu0 %v1657
      %1683 = vmatpush.msra.mxu0 %v1656
      %1684 = vmatpush.msra.mxu0 %v1655
      %1685 = vmatpush.msra.mxu0 %v1654
      %1686 = vmatmul.f32.gmra.mxu0 %v1461
      %v1687 = vpop.f32.mrf.mxu0
      %v1688 = vadd.f32 0.0, %v1687
      %1689 = vmatmul.f32.gmra.mxu0 %v1464
      %v1690 = vpop.f32.mrf.mxu0
      %v1691 = vadd.f32 0.0, %v1690
      %1692 = vmatmul.f32.gmra.mxu0 %v1467
      %v1693 = vpop.f32.mrf.mxu0
      %v1694 = vadd.f32 0.0, %v1693
      %1695 = vmatmul.f32.gmra.mxu0 %v1470
      %v1696 = vpop.f32.mrf.mxu0
      %v1697 = vadd.f32 0.0, %v1696
      %1698 = vmatmul.f32.gmra.mxu0 %v1473
      %v1699 = vpop.f32.mrf.mxu0
      %v1700 = vadd.f32 0.0, %v1699
      %1701 = vmatmul.f32.gmra.mxu0 %v1476
      %v1702 = vpop.f32.mrf.mxu0
      %v1703 = vadd.f32 0.0, %v1702
      %1704 = vmatmul.f32.gmra.mxu0 %v1479
      %v1705 = vpop.f32.mrf.mxu0
      %v1706 = vadd.f32 0.0, %v1705
      %1707 = vmatmul.f32.gmra.mxu0 %v1482
      %v1708 = vpop.f32.mrf.mxu0
      %v1709 = vadd.f32 0.0, %v1708
      %1710 = vmatmul.f32.gmra.mxu0 %v1485
      %v1711 = vpop.f32.mrf.mxu0
      %v1712 = vadd.f32 0.0, %v1711
      %1713 = vmatmul.f32.gmra.mxu0 %v1488
      %v1714 = vpop.f32.mrf.mxu0
      %v1715 = vadd.f32 0.0, %v1714
      %1716 = vmatmul.f32.gmra.mxu0 %v1491
      %v1717 = vpop.f32.mrf.mxu0
      %v1718 = vadd.f32 0.0, %v1717
      %1719 = vmatmul.f32.gmra.mxu0 %v1494
      %v1720 = vpop.f32.mrf.mxu0
      %v1721 = vadd.f32 0.0, %v1720
      %1722 = vmatmul.f32.gmra.mxu0 %v1497
      %v1723 = vpop.f32.mrf.mxu0
      %v1724 = vadd.f32 0.0, %v1723
      %1725 = vmatmul.f32.gmra.mxu0 %v1500
      %v1726 = vpop.f32.mrf.mxu0
      %v1727 = vadd.f32 0.0, %v1726
      %1728 = vmatmul.f32.gmra.mxu0 %v1503
      %v1729 = vpop.f32.mrf.mxu0
      %v1730 = vadd.f32 0.0, %v1729
      %1731 = vmatmul.f32.gmra.mxu0 %v1506
      %v1732 = vpop.f32.mrf.mxu0
      %v1733 = vadd.f32 0.0, %v1732
      %1734 = vdwg.mxu0
      %1735 = vmatpush.msra.mxu0 %v1571
      %1736 = vmatpush.msra.mxu0 %v1568
      %1737 = vmatpush.msra.mxu0 %v1565
      %1738 = vmatpush.msra.mxu0 %v1562
      %1739 = vmatpush.msra.mxu0 %v1559
      %1740 = vmatpush.msra.mxu0 %v1556
      %1741 = vmatpush.msra.mxu0 %v1553
      %1742 = vmatpush.msra.mxu0 %v1550
      %1743 = vmatpush.msra.mxu0 %v1547
      %1744 = vmatpush.msra.mxu0 %v1544
      %1745 = vmatpush.msra.mxu0 %v1541
      %1746 = vmatpush.msra.mxu0 %v1538
      %1747 = vmatpush.msra.mxu0 %v1535
      %1748 = vmatpush.msra.mxu0 %v1532
      %1749 = vmatpush.msra.mxu0 %v1529
      %1750 = vmatpush.msra.mxu0 %v1526
      %1751 = vmatmul.f32.gmra.mxu0 %v1654
      %v1752 = vpop.f32.mrf.mxu0
      %v1753 = vadd.f32 0.0, %v1752
      %1754 = vmatmul.f32.gmra.mxu0 %v1655
      %v1755 = vpop.f32.mrf.mxu0
      %v1756 = vadd.f32 0.0, %v1755
      %1757 = vmatmul.f32.gmra.mxu0 %v1656
      %v1758 = vpop.f32.mrf.mxu0
      %v1759 = vadd.f32 0.0, %v1758
      %1760 = vmatmul.f32.gmra.mxu0 %v1657
      %v1761 = vpop.f32.mrf.mxu0
      %v1762 = vadd.f32 0.0, %v1761
      %1763 = vmatmul.f32.gmra.mxu0 %v1658
      %v1764 = vpop.f32.mrf.mxu0
      %v1765 = vadd.f32 0.0, %v1764
      %1766 = vmatmul.f32.gmra.mxu0 %v1659
      %v1767 = vpop.f32.mrf.mxu0
      %v1768 = vadd.f32 0.0, %v1767
      %1769 = vmatmul.f32.gmra.mxu0 %v1660
      %v1770 = vpop.f32.mrf.mxu0
      %v1771 = vadd.f32 0.0, %v1770
      %1772 = vmatmul.f32.gmra.mxu0 %v1661
      %v1773 = vpop.f32.mrf.mxu0
      %v1774 = vadd.f32 0.0, %v1773
      %1775 = vmatmul.f32.gmra.mxu0 %v1662
      %v1776 = vpop.f32.mrf.mxu0
      %v1777 = vadd.f32 0.0, %v1776
      %1778 = vmatmul.f32.gmra.mxu0 %v1663
      %v1779 = vpop.f32.mrf.mxu0
      %v1780 = vadd.f32 0.0, %v1779
      %1781 = vmatmul.f32.gmra.mxu0 %v1664
      %v1782 = vpop.f32.mrf.mxu0
      %v1783 = vadd.f32 0.0, %v1782
      %1784 = vmatmul.f32.gmra.mxu0 %v1665
      %v1785 = vpop.f32.mrf.mxu0
      %v1786 = vadd.f32 0.0, %v1785
      %1787 = vmatmul.f32.gmra.mxu0 %v1666
      %v1788 = vpop.f32.mrf.mxu0
      %v1789 = vadd.f32 0.0, %v1788
      %1790 = vmatmul.f32.gmra.mxu0 %v1667
      %v1791 = vpop.f32.mrf.mxu0
      %v1792 = vadd.f32 0.0, %v1791
      %1793 = vmatmul.f32.gmra.mxu0 %v1668
      %v1794 = vpop.f32.mrf.mxu0
      %v1795 = vadd.f32 0.0, %v1794
      %1796 = vmatmul.f32.gmra.mxu0 %v1669
      %v1797 = vpop.f32.mrf.mxu0
      %v1798 = vadd.f32 0.0, %v1797
      %1799 = vdwg.mxu0
      %1800 = vmatpush.msra.mxu0 %v1733
      %1801 = vmatpush.msra.mxu0 %v1730
      %1802 = vmatpush.msra.mxu0 %v1727
      %1803 = vmatpush.msra.mxu0 %v1724
      %1804 = vmatpush.msra.mxu0 %v1721
      %1805 = vmatpush.msra.mxu0 %v1718
      %1806 = vmatpush.msra.mxu0 %v1715
      %1807 = vmatpush.msra.mxu0 %v1712
      %1808 = vmatpush.msra.mxu0 %v1709
      %1809 = vmatpush.msra.mxu0 %v1706
      %1810 = vmatpush.msra.mxu0 %v1703
      %1811 = vmatpush.msra.mxu0 %v1700
      %1812 = vmatpush.msra.mxu0 %v1697
      %1813 = vmatpush.msra.mxu0 %v1694
      %1814 = vmatpush.msra.mxu0 %v1691
      %1815 = vmatpush.msra.mxu0 %v1688
      %1816 = vmatmul.f32.gmra.mxu0 %v1753
      %v1817 = vpop.f32.mrf.mxu0
      %v1818 = vadd.f32 0.0, %v1817
      %1819 = vmatmul.f32.gmra.mxu0 %v1756
      %v1820 = vpop.f32.mrf.mxu0
      %v1821 = vadd.f32 0.0, %v1820
      %1822 = vmatmul.f32.gmra.mxu0 %v1759
      %v1823 = vpop.f32.mrf.mxu0
      %v1824 = vadd.f32 0.0, %v1823
      %1825 = vmatmul.f32.gmra.mxu0 %v1762
      %v1826 = vpop.f32.mrf.mxu0
      %v1827 = vadd.f32 0.0, %v1826
      %1828 = vmatmul.f32.gmra.mxu0 %v1765
      %v1829 = vpop.f32.mrf.mxu0
      %v1830 = vadd.f32 0.0, %v1829
      %1831 = vmatmul.f32.gmra.mxu0 %v1768
      %v1832 = vpop.f32.mrf.mxu0
      %v1833 = vadd.f32 0.0, %v1832
      %1834 = vmatmul.f32.gmra.mxu0 %v1771
      %v1835 = vpop.f32.mrf.mxu0
      %v1836 = vadd.f32 0.0, %v1835
      %1837 = vmatmul.f32.gmra.mxu0 %v1774
      %v1838 = vpop.f32.mrf.mxu0
      %v1839 = vadd.f32 0.0, %v1838
      %1840 = vmatmul.f32.gmra.mxu0 %v1777
      %v1841 = vpop.f32.mrf.mxu0
      %v1842 = vadd.f32 0.0, %v1841
      %1843 = vmatmul.f32.gmra.mxu0 %v1780
      %v1844 = vpop.f32.mrf.mxu0
      %v1845 = vadd.f32 0.0, %v1844
      %1846 = vmatmul.f32.gmra.mxu0 %v1783
      %v1847 = vpop.f32.mrf.mxu0
      %v1848 = vadd.f32 0.0, %v1847
      %1849 = vmatmul.f32.gmra.mxu0 %v1786
      %v1850 = vpop.f32.mrf.mxu0
      %v1851 = vadd.f32 0.0, %v1850
      %1852 = vmatmul.f32.gmra.mxu0 %v1789
      %v1853 = vpop.f32.mrf.mxu0
      %v1854 = vadd.f32 0.0, %v1853
      %1855 = vmatmul.f32.gmra.mxu0 %v1792
      %v1856 = vpop.f32.mrf.mxu0
      %v1857 = vadd.f32 0.0, %v1856
      %1858 = vmatmul.f32.gmra.mxu0 %v1795
      %v1859 = vpop.f32.mrf.mxu0
      %v1860 = vadd.f32 0.0, %v1859
      %1861 = vmatmul.f32.gmra.mxu0 %v1798
      %v1862 = vpop.f32.mrf.mxu0
      %v1863 = vadd.f32 0.0, %v1862
      %1864 = vdwg.mxu0
      %v1865 = vsub.f32 %v649, %v1818
      %v1866 = vsub.f32 %v650, %v1821
      %v1867 = vsub.f32 %v651, %v1824
      %v1868 = vsub.f32 %v652, %v1827
      %v1869 = vsub.f32 %v653, %v1830
      %v1870 = vsub.f32 %v654, %v1833
      %v1871 = vsub.f32 %v655, %v1836
      %v1872 = vsub.f32 %v656, %v1839
      %v1873 = vsub.f32 %v657, %v1842
      %v1874 = vsub.f32 %v658, %v1845
      %v1875 = vsub.f32 %v659, %v1848
      %v1876 = vsub.f32 %v660, %v1851
      %v1877 = vsub.f32 %v661, %v1854
      %v1878 = vsub.f32 %v662, %v1857
      %v1879 = vsub.f32 %v663, %v1860
      %v1880 = vsub.f32 %v664, %v1863
      %v1881 = vmul.f32 %v1865, 0.5
      %v1882 = vmul.f32 %v1866, 0.5
      %v1883 = vmul.f32 %v1867, 0.5
      %v1884 = vmul.f32 %v1868, 0.5
      %v1885 = vmul.f32 %v1869, 0.5
      %v1886 = vmul.f32 %v1870, 0.5
      %v1887 = vmul.f32 %v1871, 0.5
      %v1888 = vmul.f32 %v1872, 0.5
      %v1889 = vmul.f32 %v1873, 0.5
      %v1890 = vmul.f32 %v1874, 0.5
      %v1891 = vmul.f32 %v1875, 0.5
      %v1892 = vmul.f32 %v1876, 0.5
      %v1893 = vmul.f32 %v1877, 0.5
      %v1894 = vmul.f32 %v1878, 0.5
      %v1895 = vmul.f32 %v1879, 0.5
      %v1896 = vmul.f32 %v1880, 0.5
      %1897 = vmatpush.msra.mxu0 %v1896
      %1898 = vmatpush.msra.mxu0 %v1895
      %1899 = vmatpush.msra.mxu0 %v1894
      %1900 = vmatpush.msra.mxu0 %v1893
      %1901 = vmatpush.msra.mxu0 %v1892
      %1902 = vmatpush.msra.mxu0 %v1891
      %1903 = vmatpush.msra.mxu0 %v1890
      %1904 = vmatpush.msra.mxu0 %v1889
      %1905 = vmatpush.msra.mxu0 %v1888
      %1906 = vmatpush.msra.mxu0 %v1887
      %1907 = vmatpush.msra.mxu0 %v1886
      %1908 = vmatpush.msra.mxu0 %v1885
      %1909 = vmatpush.msra.mxu0 %v1884
      %1910 = vmatpush.msra.mxu0 %v1883
      %1911 = vmatpush.msra.mxu0 %v1882
      %1912 = vmatpush.msra.mxu0 %v1881
      %1913 = vmatmul.f32.gmra.mxu0 %v1688
      %v1914 = vpop.f32.mrf.mxu0
      %v1915 = vadd.f32 0.0, %v1914
      %1916 = vmatmul.f32.gmra.mxu0 %v1691
      %v1917 = vpop.f32.mrf.mxu0
      %v1918 = vadd.f32 0.0, %v1917
      %1919 = vmatmul.f32.gmra.mxu0 %v1694
      %v1920 = vpop.f32.mrf.mxu0
      %v1921 = vadd.f32 0.0, %v1920
      %1922 = vmatmul.f32.gmra.mxu0 %v1697
      %v1923 = vpop.f32.mrf.mxu0
      %v1924 = vadd.f32 0.0, %v1923
      %1925 = vmatmul.f32.gmra.mxu0 %v1700
      %v1926 = vpop.f32.mrf.mxu0
      %v1927 = vadd.f32 0.0, %v1926
      %1928 = vmatmul.f32.gmra.mxu0 %v1703
      %v1929 = vpop.f32.mrf.mxu0
      %v1930 = vadd.f32 0.0, %v1929
      %1931 = vmatmul.f32.gmra.mxu0 %v1706
      %v1932 = vpop.f32.mrf.mxu0
      %v1933 = vadd.f32 0.0, %v1932
      %1934 = vmatmul.f32.gmra.mxu0 %v1709
      %v1935 = vpop.f32.mrf.mxu0
      %v1936 = vadd.f32 0.0, %v1935
      %1937 = vmatmul.f32.gmra.mxu0 %v1712
      %v1938 = vpop.f32.mrf.mxu0
      %v1939 = vadd.f32 0.0, %v1938
      %1940 = vmatmul.f32.gmra.mxu0 %v1715
      %v1941 = vpop.f32.mrf.mxu0
      %v1942 = vadd.f32 0.0, %v1941
      %1943 = vmatmul.f32.gmra.mxu0 %v1718
      %v1944 = vpop.f32.mrf.mxu0
      %v1945 = vadd.f32 0.0, %v1944
      %1946 = vmatmul.f32.gmra.mxu0 %v1721
      %v1947 = vpop.f32.mrf.mxu0
      %v1948 = vadd.f32 0.0, %v1947
      %1949 = vmatmul.f32.gmra.mxu0 %v1724
      %v1950 = vpop.f32.mrf.mxu0
      %v1951 = vadd.f32 0.0, %v1950
      %1952 = vmatmul.f32.gmra.mxu0 %v1727
      %v1953 = vpop.f32.mrf.mxu0
      %v1954 = vadd.f32 0.0, %v1953
      %1955 = vmatmul.f32.gmra.mxu0 %v1730
      %v1956 = vpop.f32.mrf.mxu0
      %v1957 = vadd.f32 0.0, %v1956
      %1958 = vmatmul.f32.gmra.mxu0 %v1733
      %v1959 = vpop.f32.mrf.mxu0
      %v1960 = vadd.f32 0.0, %v1959
      %1961 = vdwg.mxu0
      %1962 = vmatpush.msra.mxu0 %v1798
      %1963 = vmatpush.msra.mxu0 %v1795
      %1964 = vmatpush.msra.mxu0 %v1792
      %1965 = vmatpush.msra.mxu0 %v1789
      %1966 = vmatpush.msra.mxu0 %v1786
      %1967 = vmatpush.msra.mxu0 %v1783
      %1968 = vmatpush.msra.mxu0 %v1780
      %1969 = vmatpush.msra.mxu0 %v1777
      %1970 = vmatpush.msra.mxu0 %v1774
      %1971 = vmatpush.msra.mxu0 %v1771
      %1972 = vmatpush.msra.mxu0 %v1768
      %1973 = vmatpush.msra.mxu0 %v1765
      %1974 = vmatpush.msra.mxu0 %v1762
      %1975 = vmatpush.msra.mxu0 %v1759
      %1976 = vmatpush.msra.mxu0 %v1756
      %1977 = vmatpush.msra.mxu0 %v1753
      %1978 = vmatmul.f32.gmra.mxu0 %v1881
      %v1979 = vpop.f32.mrf.mxu0
      %v1980 = vadd.f32 0.0, %v1979
      %1981 = vmatmul.f32.gmra.mxu0 %v1882
      %v1982 = vpop.f32.mrf.mxu0
      %v1983 = vadd.f32 0.0, %v1982
      %1984 = vmatmul.f32.gmra.mxu0 %v1883
      %v1985 = vpop.f32.mrf.mxu0
      %v1986 = vadd.f32 0.0, %v1985
      %1987 = vmatmul.f32.gmra.mxu0 %v1884
      %v1988 = vpop.f32.mrf.mxu0
      %v1989 = vadd.f32 0.0, %v1988
      %1990 = vmatmul.f32.gmra.mxu0 %v1885
      %v1991 = vpop.f32.mrf.mxu0
      %v1992 = vadd.f32 0.0, %v1991
      %1993 = vmatmul.f32.gmra.mxu0 %v1886
      %v1994 = vpop.f32.mrf.mxu0
      %v1995 = vadd.f32 0.0, %v1994
      %1996 = vmatmul.f32.gmra.mxu0 %v1887
      %v1997 = vpop.f32.mrf.mxu0
      %v1998 = vadd.f32 0.0, %v1997
      %1999 = vmatmul.f32.gmra.mxu0 %v1888
      %v2000 = vpop.f32.mrf.mxu0
      %v2001 = vadd.f32 0.0, %v2000
      %2002 = vmatmul.f32.gmra.mxu0 %v1889
      %v2003 = vpop.f32.mrf.mxu0
      %v2004 = vadd.f32 0.0, %v2003
      %2005 = vmatmul.f32.gmra.mxu0 %v1890
      %v2006 = vpop.f32.mrf.mxu0
      %v2007 = vadd.f32 0.0, %v2006
      %2008 = vmatmul.f32.gmra.mxu0 %v1891
      %v2009 = vpop.f32.mrf.mxu0
      %v2010 = vadd.f32 0.0, %v2009
      %2011 = vmatmul.f32.gmra.mxu0 %v1892
      %v2012 = vpop.f32.mrf.mxu0
      %v2013 = vadd.f32 0.0, %v2012
      %2014 = vmatmul.f32.gmra.mxu0 %v1893
      %v2015 = vpop.f32.mrf.mxu0
      %v2016 = vadd.f32 0.0, %v2015
      %2017 = vmatmul.f32.gmra.mxu0 %v1894
      %v2018 = vpop.f32.mrf.mxu0
      %v2019 = vadd.f32 0.0, %v2018
      %2020 = vmatmul.f32.gmra.mxu0 %v1895
      %v2021 = vpop.f32.mrf.mxu0
      %v2022 = vadd.f32 0.0, %v2021
      %2023 = vmatmul.f32.gmra.mxu0 %v1896
      %v2024 = vpop.f32.mrf.mxu0
      %v2025 = vadd.f32 0.0, %v2024
      %2026 = vdwg.mxu0
      %2027 = vmatpush.msra.mxu0 %v1960
      %2028 = vmatpush.msra.mxu0 %v1957
      %2029 = vmatpush.msra.mxu0 %v1954
      %2030 = vmatpush.msra.mxu0 %v1951
      %2031 = vmatpush.msra.mxu0 %v1948
      %2032 = vmatpush.msra.mxu0 %v1945
      %2033 = vmatpush.msra.mxu0 %v1942
      %2034 = vmatpush.msra.mxu0 %v1939
      %2035 = vmatpush.msra.mxu0 %v1936
      %2036 = vmatpush.msra.mxu0 %v1933
      %2037 = vmatpush.msra.mxu0 %v1930
      %2038 = vmatpush.msra.mxu0 %v1927
      %2039 = vmatpush.msra.mxu0 %v1924
      %2040 = vmatpush.msra.mxu0 %v1921
      %2041 = vmatpush.msra.mxu0 %v1918
      %2042 = vmatpush.msra.mxu0 %v1915
      %2043 = vmatmul.f32.gmra.mxu0 %v1980
      %v2044 = vpop.f32.mrf.mxu0
      %v2045 = vadd.f32 0.0, %v2044
      %2046 = vmatmul.f32.gmra.mxu0 %v1983
      %v2047 = vpop.f32.mrf.mxu0
      %v2048 = vadd.f32 0.0, %v2047
      %2049 = vmatmul.f32.gmra.mxu0 %v1986
      %v2050 = vpop.f32.mrf.mxu0
      %v2051 = vadd.f32 0.0, %v2050
      %2052 = vmatmul.f32.gmra.mxu0 %v1989
      %v2053 = vpop.f32.mrf.mxu0
      %v2054 = vadd.f32 0.0, %v2053
      %2055 = vmatmul.f32.gmra.mxu0 %v1992
      %v2056 = vpop.f32.mrf.mxu0
      %v2057 = vadd.f32 0.0, %v2056
      %2058 = vmatmul.f32.gmra.mxu0 %v1995
      %v2059 = vpop.f32.mrf.mxu0
      %v2060 = vadd.f32 0.0, %v2059
      %2061 = vmatmul.f32.gmra.mxu0 %v1998
      %v2062 = vpop.f32.mrf.mxu0
      %v2063 = vadd.f32 0.0, %v2062
      %2064 = vmatmul.f32.gmra.mxu0 %v2001
      %v2065 = vpop.f32.mrf.mxu0
      %v2066 = vadd.f32 0.0, %v2065
      %2067 = vmatmul.f32.gmra.mxu0 %v2004
      %v2068 = vpop.f32.mrf.mxu0
      %v2069 = vadd.f32 0.0, %v2068
      %2070 = vmatmul.f32.gmra.mxu0 %v2007
      %v2071 = vpop.f32.mrf.mxu0
      %v2072 = vadd.f32 0.0, %v2071
      %2073 = vmatmul.f32.gmra.mxu0 %v2010
      %v2074 = vpop.f32.mrf.mxu0
      %v2075 = vadd.f32 0.0, %v2074
      %2076 = vmatmul.f32.gmra.mxu0 %v2013
      %v2077 = vpop.f32.mrf.mxu0
      %v2078 = vadd.f32 0.0, %v2077
      %2079 = vmatmul.f32.gmra.mxu0 %v2016
      %v2080 = vpop.f32.mrf.mxu0
      %v2081 = vadd.f32 0.0, %v2080
      %2082 = vmatmul.f32.gmra.mxu0 %v2019
      %v2083 = vpop.f32.mrf.mxu0
      %v2084 = vadd.f32 0.0, %v2083
      %2085 = vmatmul.f32.gmra.mxu0 %v2022
      %v2086 = vpop.f32.mrf.mxu0
      %v2087 = vadd.f32 0.0, %v2086
      %2088 = vmatmul.f32.gmra.mxu0 %v2025
      %v2089 = vpop.f32.mrf.mxu0
      %v2090 = vadd.f32 0.0, %v2089
      %2091 = vdwg.mxu0
      %v2092 = vsub.f32 %v649, %v2045
      %v2093 = vsub.f32 %v650, %v2048
      %v2094 = vsub.f32 %v651, %v2051
      %v2095 = vsub.f32 %v652, %v2054
      %v2096 = vsub.f32 %v653, %v2057
      %v2097 = vsub.f32 %v654, %v2060
      %v2098 = vsub.f32 %v655, %v2063
      %v2099 = vsub.f32 %v656, %v2066
      %v2100 = vsub.f32 %v657, %v2069
      %v2101 = vsub.f32 %v658, %v2072
      %v2102 = vsub.f32 %v659, %v2075
      %v2103 = vsub.f32 %v660, %v2078
      %v2104 = vsub.f32 %v661, %v2081
      %v2105 = vsub.f32 %v662, %v2084
      %v2106 = vsub.f32 %v663, %v2087
      %v2107 = vsub.f32 %v664, %v2090
      %v2108 = vmul.f32 %v2092, 0.5
      %v2109 = vmul.f32 %v2093, 0.5
      %v2110 = vmul.f32 %v2094, 0.5
      %v2111 = vmul.f32 %v2095, 0.5
      %v2112 = vmul.f32 %v2096, 0.5
      %v2113 = vmul.f32 %v2097, 0.5
      %v2114 = vmul.f32 %v2098, 0.5
      %v2115 = vmul.f32 %v2099, 0.5
      %v2116 = vmul.f32 %v2100, 0.5
      %v2117 = vmul.f32 %v2101, 0.5
      %v2118 = vmul.f32 %v2102, 0.5
      %v2119 = vmul.f32 %v2103, 0.5
      %v2120 = vmul.f32 %v2104, 0.5
      %v2121 = vmul.f32 %v2105, 0.5
      %v2122 = vmul.f32 %v2106, 0.5
      %v2123 = vmul.f32 %v2107, 0.5
      %2124 = vmatpush.msra.mxu0 %v2123
      %2125 = vmatpush.msra.mxu0 %v2122
      %2126 = vmatpush.msra.mxu0 %v2121
      %2127 = vmatpush.msra.mxu0 %v2120
      %2128 = vmatpush.msra.mxu0 %v2119
      %2129 = vmatpush.msra.mxu0 %v2118
      %2130 = vmatpush.msra.mxu0 %v2117
      %2131 = vmatpush.msra.mxu0 %v2116
      %2132 = vmatpush.msra.mxu0 %v2115
      %2133 = vmatpush.msra.mxu0 %v2114
      %2134 = vmatpush.msra.mxu0 %v2113
      %2135 = vmatpush.msra.mxu0 %v2112
      %2136 = vmatpush.msra.mxu0 %v2111
      %2137 = vmatpush.msra.mxu0 %v2110
      %2138 = vmatpush.msra.mxu0 %v2109
      %2139 = vmatpush.msra.mxu0 %v2108
      %2140 = vmatmul.f32.gmra.mxu0 %v1915
      %v2141 = vpop.f32.mrf.mxu0
      %v2142 = vadd.f32 0.0, %v2141
      %2143 = vmatmul.f32.gmra.mxu0 %v1918
      %v2144 = vpop.f32.mrf.mxu0
      %v2145 = vadd.f32 0.0, %v2144
      %2146 = vmatmul.f32.gmra.mxu0 %v1921
      %v2147 = vpop.f32.mrf.mxu0
      %v2148 = vadd.f32 0.0, %v2147
      %2149 = vmatmul.f32.gmra.mxu0 %v1924
      %v2150 = vpop.f32.mrf.mxu0
      %v2151 = vadd.f32 0.0, %v2150
      %2152 = vmatmul.f32.gmra.mxu0 %v1927
      %v2153 = vpop.f32.mrf.mxu0
      %v2154 = vadd.f32 0.0, %v2153
      %2155 = vmatmul.f32.gmra.mxu0 %v1930
      %v2156 = vpop.f32.mrf.mxu0
      %v2157 = vadd.f32 0.0, %v2156
      %2158 = vmatmul.f32.gmra.mxu0 %v1933
      %v2159 = vpop.f32.mrf.mxu0
      %v2160 = vadd.f32 0.0, %v2159
      %2161 = vmatmul.f32.gmra.mxu0 %v1936
      %v2162 = vpop.f32.mrf.mxu0
      %v2163 = vadd.f32 0.0, %v2162
      %2164 = vmatmul.f32.gmra.mxu0 %v1939
      %v2165 = vpop.f32.mrf.mxu0
      %v2166 = vadd.f32 0.0, %v2165
      %2167 = vmatmul.f32.gmra.mxu0 %v1942
      %v2168 = vpop.f32.mrf.mxu0
      %v2169 = vadd.f32 0.0, %v2168
      %2170 = vmatmul.f32.gmra.mxu0 %v1945
      %v2171 = vpop.f32.mrf.mxu0
      %v2172 = vadd.f32 0.0, %v2171
      %2173 = vmatmul.f32.gmra.mxu0 %v1948
      %v2174 = vpop.f32.mrf.mxu0
      %v2175 = vadd.f32 0.0, %v2174
      %2176 = vmatmul.f32.gmra.mxu0 %v1951
      %v2177 = vpop.f32.mrf.mxu0
      %v2178 = vadd.f32 0.0, %v2177
      %2179 = vmatmul.f32.gmra.mxu0 %v1954
      %v2180 = vpop.f32.mrf.mxu0
      %v2181 = vadd.f32 0.0, %v2180
      %2182 = vmatmul.f32.gmra.mxu0 %v1957
      %v2183 = vpop.f32.mrf.mxu0
      %v2184 = vadd.f32 0.0, %v2183
      %2185 = vmatmul.f32.gmra.mxu0 %v1960
      %v2186 = vpop.f32.mrf.mxu0
      %v2187 = vadd.f32 0.0, %v2186
      %2188 = vdwg.mxu0
      %2189 = vmatpush.msra.mxu0 %v2025
      %2190 = vmatpush.msra.mxu0 %v2022
      %2191 = vmatpush.msra.mxu0 %v2019
      %2192 = vmatpush.msra.mxu0 %v2016
      %2193 = vmatpush.msra.mxu0 %v2013
      %2194 = vmatpush.msra.mxu0 %v2010
      %2195 = vmatpush.msra.mxu0 %v2007
      %2196 = vmatpush.msra.mxu0 %v2004
      %2197 = vmatpush.msra.mxu0 %v2001
      %2198 = vmatpush.msra.mxu0 %v1998
      %2199 = vmatpush.msra.mxu0 %v1995
      %2200 = vmatpush.msra.mxu0 %v1992
      %2201 = vmatpush.msra.mxu0 %v1989
      %2202 = vmatpush.msra.mxu0 %v1986
      %2203 = vmatpush.msra.mxu0 %v1983
      %2204 = vmatpush.msra.mxu0 %v1980
      %2205 = vmatmul.f32.gmra.mxu0 %v2108
      %v2206 = vpop.f32.mrf.mxu0
      %v2207 = vadd.f32 0.0, %v2206
      %2208 = vmatmul.f32.gmra.mxu0 %v2109
      %v2209 = vpop.f32.mrf.mxu0
      %v2210 = vadd.f32 0.0, %v2209
      %2211 = vmatmul.f32.gmra.mxu0 %v2110
      %v2212 = vpop.f32.mrf.mxu0
      %v2213 = vadd.f32 0.0, %v2212
      %2214 = vmatmul.f32.gmra.mxu0 %v2111
      %v2215 = vpop.f32.mrf.mxu0
      %v2216 = vadd.f32 0.0, %v2215
      %2217 = vmatmul.f32.gmra.mxu0 %v2112
      %v2218 = vpop.f32.mrf.mxu0
      %v2219 = vadd.f32 0.0, %v2218
      %2220 = vmatmul.f32.gmra.mxu0 %v2113
      %v2221 = vpop.f32.mrf.mxu0
      %v2222 = vadd.f32 0.0, %v2221
      %2223 = vmatmul.f32.gmra.mxu0 %v2114
      %v2224 = vpop.f32.mrf.mxu0
      %v2225 = vadd.f32 0.0, %v2224
      %2226 = vmatmul.f32.gmra.mxu0 %v2115
      %v2227 = vpop.f32.mrf.mxu0
      %v2228 = vadd.f32 0.0, %v2227
      %2229 = vmatmul.f32.gmra.mxu0 %v2116
      %v2230 = vpop.f32.mrf.mxu0
      %v2231 = vadd.f32 0.0, %v2230
      %2232 = vmatmul.f32.gmra.mxu0 %v2117
      %v2233 = vpop.f32.mrf.mxu0
      %v2234 = vadd.f32 0.0, %v2233
      %2235 = vmatmul.f32.gmra.mxu0 %v2118
      %v2236 = vpop.f32.mrf.mxu0
      %v2237 = vadd.f32 0.0, %v2236
      %2238 = vmatmul.f32.gmra.mxu0 %v2119
      %v2239 = vpop.f32.mrf.mxu0
      %v2240 = vadd.f32 0.0, %v2239
      %2241 = vmatmul.f32.gmra.mxu0 %v2120
      %v2242 = vpop.f32.mrf.mxu0
      %v2243 = vadd.f32 0.0, %v2242
      %2244 = vmatmul.f32.gmra.mxu0 %v2121
      %v2245 = vpop.f32.mrf.mxu0
      %v2246 = vadd.f32 0.0, %v2245
      %2247 = vmatmul.f32.gmra.mxu0 %v2122
      %v2248 = vpop.f32.mrf.mxu0
      %v2249 = vadd.f32 0.0, %v2248
      %2250 = vmatmul.f32.gmra.mxu0 %v2123
      %v2251 = vpop.f32.mrf.mxu0
      %v2252 = vadd.f32 0.0, %v2251
      %2253 = vdwg.mxu0
      %2254 = vmatpush.msra.mxu0 %v2187
      %2255 = vmatpush.msra.mxu0 %v2184
      %2256 = vmatpush.msra.mxu0 %v2181
      %2257 = vmatpush.msra.mxu0 %v2178
      %2258 = vmatpush.msra.mxu0 %v2175
      %2259 = vmatpush.msra.mxu0 %v2172
      %2260 = vmatpush.msra.mxu0 %v2169
      %2261 = vmatpush.msra.mxu0 %v2166
      %2262 = vmatpush.msra.mxu0 %v2163
      %2263 = vmatpush.msra.mxu0 %v2160
      %2264 = vmatpush.msra.mxu0 %v2157
      %2265 = vmatpush.msra.mxu0 %v2154
      %2266 = vmatpush.msra.mxu0 %v2151
      %2267 = vmatpush.msra.mxu0 %v2148
      %2268 = vmatpush.msra.mxu0 %v2145
      %2269 = vmatpush.msra.mxu0 %v2142
      %2270 = vmatmul.f32.gmra.mxu0 %v2207
      %v2271 = vpop.f32.mrf.mxu0
      %v2272 = vadd.f32 0.0, %v2271
      %2273 = vmatmul.f32.gmra.mxu0 %v2210
      %v2274 = vpop.f32.mrf.mxu0
      %v2275 = vadd.f32 0.0, %v2274
      %2276 = vmatmul.f32.gmra.mxu0 %v2213
      %v2277 = vpop.f32.mrf.mxu0
      %v2278 = vadd.f32 0.0, %v2277
      %2279 = vmatmul.f32.gmra.mxu0 %v2216
      %v2280 = vpop.f32.mrf.mxu0
      %v2281 = vadd.f32 0.0, %v2280
      %2282 = vmatmul.f32.gmra.mxu0 %v2219
      %v2283 = vpop.f32.mrf.mxu0
      %v2284 = vadd.f32 0.0, %v2283
      %2285 = vmatmul.f32.gmra.mxu0 %v2222
      %v2286 = vpop.f32.mrf.mxu0
      %v2287 = vadd.f32 0.0, %v2286
      %2288 = vmatmul.f32.gmra.mxu0 %v2225
      %v2289 = vpop.f32.mrf.mxu0
      %v2290 = vadd.f32 0.0, %v2289
      %2291 = vmatmul.f32.gmra.mxu0 %v2228
      %v2292 = vpop.f32.mrf.mxu0
      %v2293 = vadd.f32 0.0, %v2292
      %2294 = vmatmul.f32.gmra.mxu0 %v2231
      %v2295 = vpop.f32.mrf.mxu0
      %v2296 = vadd.f32 0.0, %v2295
      %2297 = vmatmul.f32.gmra.mxu0 %v2234
      %v2298 = vpop.f32.mrf.mxu0
      %v2299 = vadd.f32 0.0, %v2298
      %2300 = vmatmul.f32.gmra.mxu0 %v2237
      %v2301 = vpop.f32.mrf.mxu0
      %v2302 = vadd.f32 0.0, %v2301
      %2303 = vmatmul.f32.gmra.mxu0 %v2240
      %v2304 = vpop.f32.mrf.mxu0
      %v2305 = vadd.f32 0.0, %v2304
      %2306 = vmatmul.f32.gmra.mxu0 %v2243
      %v2307 = vpop.f32.mrf.mxu0
      %v2308 = vadd.f32 0.0, %v2307
      %2309 = vmatmul.f32.gmra.mxu0 %v2246
      %v2310 = vpop.f32.mrf.mxu0
      %v2311 = vadd.f32 0.0, %v2310
      %2312 = vmatmul.f32.gmra.mxu0 %v2249
      %v2313 = vpop.f32.mrf.mxu0
      %v2314 = vadd.f32 0.0, %v2313
      %2315 = vmatmul.f32.gmra.mxu0 %v2252
      %v2316 = vpop.f32.mrf.mxu0
      %v2317 = vadd.f32 0.0, %v2316
      %2318 = vdwg.mxu0
      %v2319 = vsub.f32 %v649, %v2272
      %v2320 = vsub.f32 %v650, %v2275
      %v2321 = vsub.f32 %v651, %v2278
      %v2322 = vsub.f32 %v652, %v2281
      %v2323 = vsub.f32 %v653, %v2284
      %v2324 = vsub.f32 %v654, %v2287
      %v2325 = vsub.f32 %v655, %v2290
      %v2326 = vsub.f32 %v656, %v2293
      %v2327 = vsub.f32 %v657, %v2296
      %v2328 = vsub.f32 %v658, %v2299
      %v2329 = vsub.f32 %v659, %v2302
      %v2330 = vsub.f32 %v660, %v2305
      %v2331 = vsub.f32 %v661, %v2308
      %v2332 = vsub.f32 %v662, %v2311
      %v2333 = vsub.f32 %v663, %v2314
      %v2334 = vsub.f32 %v664, %v2317
      %v2335 = vmul.f32 %v2319, 0.5
      %v2336 = vmul.f32 %v2320, 0.5
      %v2337 = vmul.f32 %v2321, 0.5
      %v2338 = vmul.f32 %v2322, 0.5
      %v2339 = vmul.f32 %v2323, 0.5
      %v2340 = vmul.f32 %v2324, 0.5
      %v2341 = vmul.f32 %v2325, 0.5
      %v2342 = vmul.f32 %v2326, 0.5
      %v2343 = vmul.f32 %v2327, 0.5
      %v2344 = vmul.f32 %v2328, 0.5
      %v2345 = vmul.f32 %v2329, 0.5
      %v2346 = vmul.f32 %v2330, 0.5
      %v2347 = vmul.f32 %v2331, 0.5
      %v2348 = vmul.f32 %v2332, 0.5
      %v2349 = vmul.f32 %v2333, 0.5
      %v2350 = vmul.f32 %v2334, 0.5
      %2351 = vmatpush.msra.mxu0 %v2350
      %2352 = vmatpush.msra.mxu0 %v2349
      %2353 = vmatpush.msra.mxu0 %v2348
      %2354 = vmatpush.msra.mxu0 %v2347
      %2355 = vmatpush.msra.mxu0 %v2346
      %2356 = vmatpush.msra.mxu0 %v2345
      %2357 = vmatpush.msra.mxu0 %v2344
      %2358 = vmatpush.msra.mxu0 %v2343
      %2359 = vmatpush.msra.mxu0 %v2342
      %2360 = vmatpush.msra.mxu0 %v2341
      %2361 = vmatpush.msra.mxu0 %v2340
      %2362 = vmatpush.msra.mxu0 %v2339
      %2363 = vmatpush.msra.mxu0 %v2338
      %2364 = vmatpush.msra.mxu0 %v2337
      %2365 = vmatpush.msra.mxu0 %v2336
      %2366 = vmatpush.msra.mxu0 %v2335
      %2367 = vmatmul.f32.gmra.mxu0 %v2142
      %v2368 = vpop.f32.mrf.mxu0
      %v2369 = vadd.f32 0.0, %v2368
      %2370 = vmatmul.f32.gmra.mxu0 %v2145
      %v2371 = vpop.f32.mrf.mxu0
      %v2372 = vadd.f32 0.0, %v2371
      %2373 = vmatmul.f32.gmra.mxu0 %v2148
      %v2374 = vpop.f32.mrf.mxu0
      %v2375 = vadd.f32 0.0, %v2374
      %2376 = vmatmul.f32.gmra.mxu0 %v2151
      %v2377 = vpop.f32.mrf.mxu0
      %v2378 = vadd.f32 0.0, %v2377
      %2379 = vmatmul.f32.gmra.mxu0 %v2154
      %v2380 = vpop.f32.mrf.mxu0
      %v2381 = vadd.f32 0.0, %v2380
      %2382 = vmatmul.f32.gmra.mxu0 %v2157
      %v2383 = vpop.f32.mrf.mxu0
      %v2384 = vadd.f32 0.0, %v2383
      %2385 = vmatmul.f32.gmra.mxu0 %v2160
      %v2386 = vpop.f32.mrf.mxu0
      %v2387 = vadd.f32 0.0, %v2386
      %2388 = vmatmul.f32.gmra.mxu0 %v2163
      %v2389 = vpop.f32.mrf.mxu0
      %v2390 = vadd.f32 0.0, %v2389
      %2391 = vmatmul.f32.gmra.mxu0 %v2166
      %v2392 = vpop.f32.mrf.mxu0
      %v2393 = vadd.f32 0.0, %v2392
      %2394 = vmatmul.f32.gmra.mxu0 %v2169
      %v2395 = vpop.f32.mrf.mxu0
      %v2396 = vadd.f32 0.0, %v2395
      %2397 = vmatmul.f32.gmra.mxu0 %v2172
      %v2398 = vpop.f32.mrf.mxu0
      %v2399 = vadd.f32 0.0, %v2398
      %2400 = vmatmul.f32.gmra.mxu0 %v2175
      %v2401 = vpop.f32.mrf.mxu0
      %v2402 = vadd.f32 0.0, %v2401
      %2403 = vmatmul.f32.gmra.mxu0 %v2178
      %v2404 = vpop.f32.mrf.mxu0
      %v2405 = vadd.f32 0.0, %v2404
      %2406 = vmatmul.f32.gmra.mxu0 %v2181
      %v2407 = vpop.f32.mrf.mxu0
      %v2408 = vadd.f32 0.0, %v2407
      %2409 = vmatmul.f32.gmra.mxu0 %v2184
      %v2410 = vpop.f32.mrf.mxu0
      %v2411 = vadd.f32 0.0, %v2410
      %2412 = vmatmul.f32.gmra.mxu0 %v2187
      %v2413 = vpop.f32.mrf.mxu0
      %v2414 = vadd.f32 0.0, %v2413
      %2415 = vdwg.mxu0
      %2416 = vmatpush.msra.mxu0 %v2252
      %2417 = vmatpush.msra.mxu0 %v2249
      %2418 = vmatpush.msra.mxu0 %v2246
      %2419 = vmatpush.msra.mxu0 %v2243
      %2420 = vmatpush.msra.mxu0 %v2240
      %2421 = vmatpush.msra.mxu0 %v2237
      %2422 = vmatpush.msra.mxu0 %v2234
      %2423 = vmatpush.msra.mxu0 %v2231
      %2424 = vmatpush.msra.mxu0 %v2228
      %2425 = vmatpush.msra.mxu0 %v2225
      %2426 = vmatpush.msra.mxu0 %v2222
      %2427 = vmatpush.msra.mxu0 %v2219
      %2428 = vmatpush.msra.mxu0 %v2216
      %2429 = vmatpush.msra.mxu0 %v2213
      %2430 = vmatpush.msra.mxu0 %v2210
      %2431 = vmatpush.msra.mxu0 %v2207
      %2432 = vmatmul.f32.gmra.mxu0 %v2335
      %v2433 = vpop.f32.mrf.mxu0
      %v2434 = vadd.f32 0.0, %v2433
      %2435 = vmatmul.f32.gmra.mxu0 %v2336
      %v2436 = vpop.f32.mrf.mxu0
      %v2437 = vadd.f32 0.0, %v2436
      %2438 = vmatmul.f32.gmra.mxu0 %v2337
      %v2439 = vpop.f32.mrf.mxu0
      %v2440 = vadd.f32 0.0, %v2439
      %2441 = vmatmul.f32.gmra.mxu0 %v2338
      %v2442 = vpop.f32.mrf.mxu0
      %v2443 = vadd.f32 0.0, %v2442
      %2444 = vmatmul.f32.gmra.mxu0 %v2339
      %v2445 = vpop.f32.mrf.mxu0
      %v2446 = vadd.f32 0.0, %v2445
      %2447 = vmatmul.f32.gmra.mxu0 %v2340
      %v2448 = vpop.f32.mrf.mxu0
      %v2449 = vadd.f32 0.0, %v2448
      %2450 = vmatmul.f32.gmra.mxu0 %v2341
      %v2451 = vpop.f32.mrf.mxu0
      %v2452 = vadd.f32 0.0, %v2451
      %2453 = vmatmul.f32.gmra.mxu0 %v2342
      %v2454 = vpop.f32.mrf.mxu0
      %v2455 = vadd.f32 0.0, %v2454
      %2456 = vmatmul.f32.gmra.mxu0 %v2343
      %v2457 = vpop.f32.mrf.mxu0
      %v2458 = vadd.f32 0.0, %v2457
      %2459 = vmatmul.f32.gmra.mxu0 %v2344
      %v2460 = vpop.f32.mrf.mxu0
      %v2461 = vadd.f32 0.0, %v2460
      %2462 = vmatmul.f32.gmra.mxu0 %v2345
      %v2463 = vpop.f32.mrf.mxu0
      %v2464 = vadd.f32 0.0, %v2463
      %2465 = vmatmul.f32.gmra.mxu0 %v2346
      %v2466 = vpop.f32.mrf.mxu0
      %v2467 = vadd.f32 0.0, %v2466
      %2468 = vmatmul.f32.gmra.mxu0 %v2347
      %v2469 = vpop.f32.mrf.mxu0
      %v2470 = vadd.f32 0.0, %v2469
      %2471 = vmatmul.f32.gmra.mxu0 %v2348
      %v2472 = vpop.f32.mrf.mxu0
      %v2473 = vadd.f32 0.0, %v2472
      %2474 = vmatmul.f32.gmra.mxu0 %v2349
      %v2475 = vpop.f32.mrf.mxu0
      %v2476 = vadd.f32 0.0, %v2475
      %2477 = vmatmul.f32.gmra.mxu0 %v2350
      %v2478 = vpop.f32.mrf.mxu0
      %v2479 = vadd.f32 0.0, %v2478
      %2480 = vdwg.mxu0
      %2481 = vmatpush.msra.mxu0 %v2414
      %2482 = vmatpush.msra.mxu0 %v2411
      %2483 = vmatpush.msra.mxu0 %v2408
      %2484 = vmatpush.msra.mxu0 %v2405
      %2485 = vmatpush.msra.mxu0 %v2402
      %2486 = vmatpush.msra.mxu0 %v2399
      %2487 = vmatpush.msra.mxu0 %v2396
      %2488 = vmatpush.msra.mxu0 %v2393
      %2489 = vmatpush.msra.mxu0 %v2390
      %2490 = vmatpush.msra.mxu0 %v2387
      %2491 = vmatpush.msra.mxu0 %v2384
      %2492 = vmatpush.msra.mxu0 %v2381
      %2493 = vmatpush.msra.mxu0 %v2378
      %2494 = vmatpush.msra.mxu0 %v2375
      %2495 = vmatpush.msra.mxu0 %v2372
      %2496 = vmatpush.msra.mxu0 %v2369
      %2497 = vmatmul.f32.gmra.mxu0 %v2434
      %v2498 = vpop.f32.mrf.mxu0
      %v2499 = vadd.f32 0.0, %v2498
      %2500 = vmatmul.f32.gmra.mxu0 %v2437
      %v2501 = vpop.f32.mrf.mxu0
      %v2502 = vadd.f32 0.0, %v2501
      %2503 = vmatmul.f32.gmra.mxu0 %v2440
      %v2504 = vpop.f32.mrf.mxu0
      %v2505 = vadd.f32 0.0, %v2504
      %2506 = vmatmul.f32.gmra.mxu0 %v2443
      %v2507 = vpop.f32.mrf.mxu0
      %v2508 = vadd.f32 0.0, %v2507
      %2509 = vmatmul.f32.gmra.mxu0 %v2446
      %v2510 = vpop.f32.mrf.mxu0
      %v2511 = vadd.f32 0.0, %v2510
      %2512 = vmatmul.f32.gmra.mxu0 %v2449
      %v2513 = vpop.f32.mrf.mxu0
      %v2514 = vadd.f32 0.0, %v2513
      %2515 = vmatmul.f32.gmra.mxu0 %v2452
      %v2516 = vpop.f32.mrf.mxu0
      %v2517 = vadd.f32 0.0, %v2516
      %2518 = vmatmul.f32.gmra.mxu0 %v2455
      %v2519 = vpop.f32.mrf.mxu0
      %v2520 = vadd.f32 0.0, %v2519
      %2521 = vmatmul.f32.gmra.mxu0 %v2458
      %v2522 = vpop.f32.mrf.mxu0
      %v2523 = vadd.f32 0.0, %v2522
      %2524 = vmatmul.f32.gmra.mxu0 %v2461
      %v2525 = vpop.f32.mrf.mxu0
      %v2526 = vadd.f32 0.0, %v2525
      %2527 = vmatmul.f32.gmra.mxu0 %v2464
      %v2528 = vpop.f32.mrf.mxu0
      %v2529 = vadd.f32 0.0, %v2528
      %2530 = vmatmul.f32.gmra.mxu0 %v2467
      %v2531 = vpop.f32.mrf.mxu0
      %v2532 = vadd.f32 0.0, %v2531
      %2533 = vmatmul.f32.gmra.mxu0 %v2470
      %v2534 = vpop.f32.mrf.mxu0
      %v2535 = vadd.f32 0.0, %v2534
      %2536 = vmatmul.f32.gmra.mxu0 %v2473
      %v2537 = vpop.f32.mrf.mxu0
      %v2538 = vadd.f32 0.0, %v2537
      %2539 = vmatmul.f32.gmra.mxu0 %v2476
      %v2540 = vpop.f32.mrf.mxu0
      %v2541 = vadd.f32 0.0, %v2540
      %2542 = vmatmul.f32.gmra.mxu0 %v2479
      %v2543 = vpop.f32.mrf.mxu0
      %v2544 = vadd.f32 0.0, %v2543
      %2545 = vdwg.mxu0
      %v2546 = vsub.f32 %v649, %v2499
      %v2547 = vsub.f32 %v650, %v2502
      %v2548 = vsub.f32 %v651, %v2505
      %v2549 = vsub.f32 %v652, %v2508
      %v2550 = vsub.f32 %v653, %v2511
      %v2551 = vsub.f32 %v654, %v2514
      %v2552 = vsub.f32 %v655, %v2517
      %v2553 = vsub.f32 %v656, %v2520
      %v2554 = vsub.f32 %v657, %v2523
      %v2555 = vsub.f32 %v658, %v2526
      %v2556 = vsub.f32 %v659, %v2529
      %v2557 = vsub.f32 %v660, %v2532
      %v2558 = vsub.f32 %v661, %v2535
      %v2559 = vsub.f32 %v662, %v2538
      %v2560 = vsub.f32 %v663, %v2541
      %v2561 = vsub.f32 %v664, %v2544
      %v2562 = vmul.f32 %v2546, 0.5
      %v2563 = vmul.f32 %v2547, 0.5
      %v2564 = vmul.f32 %v2548, 0.5
      %v2565 = vmul.f32 %v2549, 0.5
      %v2566 = vmul.f32 %v2550, 0.5
      %v2567 = vmul.f32 %v2551, 0.5
      %v2568 = vmul.f32 %v2552, 0.5
      %v2569 = vmul.f32 %v2553, 0.5
      %v2570 = vmul.f32 %v2554, 0.5
      %v2571 = vmul.f32 %v2555, 0.5
      %v2572 = vmul.f32 %v2556, 0.5
      %v2573 = vmul.f32 %v2557, 0.5
      %v2574 = vmul.f32 %v2558, 0.5
      %v2575 = vmul.f32 %v2559, 0.5
      %v2576 = vmul.f32 %v2560, 0.5
      %v2577 = vmul.f32 %v2561, 0.5
      %2578 = vmatpush.msra.mxu0 %v2577
      %2579 = vmatpush.msra.mxu0 %v2576
      %2580 = vmatpush.msra.mxu0 %v2575
      %2581 = vmatpush.msra.mxu0 %v2574
      %2582 = vmatpush.msra.mxu0 %v2573
      %2583 = vmatpush.msra.mxu0 %v2572
      %2584 = vmatpush.msra.mxu0 %v2571
      %2585 = vmatpush.msra.mxu0 %v2570
      %2586 = vmatpush.msra.mxu0 %v2569
      %2587 = vmatpush.msra.mxu0 %v2568
      %2588 = vmatpush.msra.mxu0 %v2567
      %2589 = vmatpush.msra.mxu0 %v2566
      %2590 = vmatpush.msra.mxu0 %v2565
      %2591 = vmatpush.msra.mxu0 %v2564
      %2592 = vmatpush.msra.mxu0 %v2563
      %2593 = vmatpush.msra.mxu0 %v2562
      %2594 = vmatmul.f32.gmra.mxu0 %v2369
      %v2595 = vpop.f32.mrf.mxu0
      %v2596 = vadd.f32 0.0, %v2595
      %2597 = vmatmul.f32.gmra.mxu0 %v2372
      %v2598 = vpop.f32.mrf.mxu0
      %v2599 = vadd.f32 0.0, %v2598
      %2600 = vmatmul.f32.gmra.mxu0 %v2375
      %v2601 = vpop.f32.mrf.mxu0
      %v2602 = vadd.f32 0.0, %v2601
      %2603 = vmatmul.f32.gmra.mxu0 %v2378
      %v2604 = vpop.f32.mrf.mxu0
      %v2605 = vadd.f32 0.0, %v2604
      %2606 = vmatmul.f32.gmra.mxu0 %v2381
      %v2607 = vpop.f32.mrf.mxu0
      %v2608 = vadd.f32 0.0, %v2607
      %2609 = vmatmul.f32.gmra.mxu0 %v2384
      %v2610 = vpop.f32.mrf.mxu0
      %v2611 = vadd.f32 0.0, %v2610
      %2612 = vmatmul.f32.gmra.mxu0 %v2387
      %v2613 = vpop.f32.mrf.mxu0
      %v2614 = vadd.f32 0.0, %v2613
      %2615 = vmatmul.f32.gmra.mxu0 %v2390
      %v2616 = vpop.f32.mrf.mxu0
      %v2617 = vadd.f32 0.0, %v2616
      %2618 = vmatmul.f32.gmra.mxu0 %v2393
      %v2619 = vpop.f32.mrf.mxu0
      %v2620 = vadd.f32 0.0, %v2619
      %2621 = vmatmul.f32.gmra.mxu0 %v2396
      %v2622 = vpop.f32.mrf.mxu0
      %v2623 = vadd.f32 0.0, %v2622
      %2624 = vmatmul.f32.gmra.mxu0 %v2399
      %v2625 = vpop.f32.mrf.mxu0
      %v2626 = vadd.f32 0.0, %v2625
      %2627 = vmatmul.f32.gmra.mxu0 %v2402
      %v2628 = vpop.f32.mrf.mxu0
      %v2629 = vadd.f32 0.0, %v2628
      %2630 = vmatmul.f32.gmra.mxu0 %v2405
      %v2631 = vpop.f32.mrf.mxu0
      %v2632 = vadd.f32 0.0, %v2631
      %2633 = vmatmul.f32.gmra.mxu0 %v2408
      %v2634 = vpop.f32.mrf.mxu0
      %v2635 = vadd.f32 0.0, %v2634
      %2636 = vmatmul.f32.gmra.mxu0 %v2411
      %v2637 = vpop.f32.mrf.mxu0
      %v2638 = vadd.f32 0.0, %v2637
      %2639 = vmatmul.f32.gmra.mxu0 %v2414
      %v2640 = vpop.f32.mrf.mxu0
      %v2641 = vadd.f32 0.0, %v2640
      %2642 = vdwg.mxu0
      %2643 = vmatpush.msra.mxu0 %v2479
      %2644 = vmatpush.msra.mxu0 %v2476
      %2645 = vmatpush.msra.mxu0 %v2473
      %2646 = vmatpush.msra.mxu0 %v2470
      %2647 = vmatpush.msra.mxu0 %v2467
      %2648 = vmatpush.msra.mxu0 %v2464
      %2649 = vmatpush.msra.mxu0 %v2461
      %2650 = vmatpush.msra.mxu0 %v2458
      %2651 = vmatpush.msra.mxu0 %v2455
      %2652 = vmatpush.msra.mxu0 %v2452
      %2653 = vmatpush.msra.mxu0 %v2449
      %2654 = vmatpush.msra.mxu0 %v2446
      %2655 = vmatpush.msra.mxu0 %v2443
      %2656 = vmatpush.msra.mxu0 %v2440
      %2657 = vmatpush.msra.mxu0 %v2437
      %2658 = vmatpush.msra.mxu0 %v2434
      %2659 = vmatmul.f32.gmra.mxu0 %v2562
      %v2660 = vpop.f32.mrf.mxu0
      %v2661 = vadd.f32 0.0, %v2660
      %2662 = vmatmul.f32.gmra.mxu0 %v2563
      %v2663 = vpop.f32.mrf.mxu0
      %v2664 = vadd.f32 0.0, %v2663
      %2665 = vmatmul.f32.gmra.mxu0 %v2564
      %v2666 = vpop.f32.mrf.mxu0
      %v2667 = vadd.f32 0.0, %v2666
      %2668 = vmatmul.f32.gmra.mxu0 %v2565
      %v2669 = vpop.f32.mrf.mxu0
      %v2670 = vadd.f32 0.0, %v2669
      %2671 = vmatmul.f32.gmra.mxu0 %v2566
      %v2672 = vpop.f32.mrf.mxu0
      %v2673 = vadd.f32 0.0, %v2672
      %2674 = vmatmul.f32.gmra.mxu0 %v2567
      %v2675 = vpop.f32.mrf.mxu0
      %v2676 = vadd.f32 0.0, %v2675
      %2677 = vmatmul.f32.gmra.mxu0 %v2568
      %v2678 = vpop.f32.mrf.mxu0
      %v2679 = vadd.f32 0.0, %v2678
      %2680 = vmatmul.f32.gmra.mxu0 %v2569
      %v2681 = vpop.f32.mrf.mxu0
      %v2682 = vadd.f32 0.0, %v2681
      %2683 = vmatmul.f32.gmra.mxu0 %v2570
      %v2684 = vpop.f32.mrf.mxu0
      %v2685 = vadd.f32 0.0, %v2684
      %2686 = vmatmul.f32.gmra.mxu0 %v2571
      %v2687 = vpop.f32.mrf.mxu0
      %v2688 = vadd.f32 0.0, %v2687
      %2689 = vmatmul.f32.gmra.mxu0 %v2572
      %v2690 = vpop.f32.mrf.mxu0
      %v2691 = vadd.f32 0.0, %v2690
      %2692 = vmatmul.f32.gmra.mxu0 %v2573
      %v2693 = vpop.f32.mrf.mxu0
      %v2694 = vadd.f32 0.0, %v2693
      %2695 = vmatmul.f32.gmra.mxu0 %v2574
      %v2696 = vpop.f32.mrf.mxu0
      %v2697 = vadd.f32 0.0, %v2696
      %2698 = vmatmul.f32.gmra.mxu0 %v2575
      %v2699 = vpop.f32.mrf.mxu0
      %v2700 = vadd.f32 0.0, %v2699
      %2701 = vmatmul.f32.gmra.mxu0 %v2576
      %v2702 = vpop.f32.mrf.mxu0
      %v2703 = vadd.f32 0.0, %v2702
      %2704 = vmatmul.f32.gmra.mxu0 %v2577
      %v2705 = vpop.f32.mrf.mxu0
      %v2706 = vadd.f32 0.0, %v2705
      %2707 = vdwg.mxu0
      %2708 = vmatpush.msra.mxu0 %v2641
      %2709 = vmatpush.msra.mxu0 %v2638
      %2710 = vmatpush.msra.mxu0 %v2635
      %2711 = vmatpush.msra.mxu0 %v2632
      %2712 = vmatpush.msra.mxu0 %v2629
      %2713 = vmatpush.msra.mxu0 %v2626
      %2714 = vmatpush.msra.mxu0 %v2623
      %2715 = vmatpush.msra.mxu0 %v2620
      %2716 = vmatpush.msra.mxu0 %v2617
      %2717 = vmatpush.msra.mxu0 %v2614
      %2718 = vmatpush.msra.mxu0 %v2611
      %2719 = vmatpush.msra.mxu0 %v2608
      %2720 = vmatpush.msra.mxu0 %v2605
      %2721 = vmatpush.msra.mxu0 %v2602
      %2722 = vmatpush.msra.mxu0 %v2599
      %2723 = vmatpush.msra.mxu0 %v2596
      %2724 = vmatmul.f32.gmra.mxu0 %v2661
      %v2725 = vpop.f32.mrf.mxu0
      %v2726 = vadd.f32 0.0, %v2725
      %2727 = vmatmul.f32.gmra.mxu0 %v2664
      %v2728 = vpop.f32.mrf.mxu0
      %v2729 = vadd.f32 0.0, %v2728
      %2730 = vmatmul.f32.gmra.mxu0 %v2667
      %v2731 = vpop.f32.mrf.mxu0
      %v2732 = vadd.f32 0.0, %v2731
      %2733 = vmatmul.f32.gmra.mxu0 %v2670
      %v2734 = vpop.f32.mrf.mxu0
      %v2735 = vadd.f32 0.0, %v2734
      %2736 = vmatmul.f32.gmra.mxu0 %v2673
      %v2737 = vpop.f32.mrf.mxu0
      %v2738 = vadd.f32 0.0, %v2737
      %2739 = vmatmul.f32.gmra.mxu0 %v2676
      %v2740 = vpop.f32.mrf.mxu0
      %v2741 = vadd.f32 0.0, %v2740
      %2742 = vmatmul.f32.gmra.mxu0 %v2679
      %v2743 = vpop.f32.mrf.mxu0
      %v2744 = vadd.f32 0.0, %v2743
      %2745 = vmatmul.f32.gmra.mxu0 %v2682
      %v2746 = vpop.f32.mrf.mxu0
      %v2747 = vadd.f32 0.0, %v2746
      %2748 = vmatmul.f32.gmra.mxu0 %v2685
      %v2749 = vpop.f32.mrf.mxu0
      %v2750 = vadd.f32 0.0, %v2749
      %2751 = vmatmul.f32.gmra.mxu0 %v2688
      %v2752 = vpop.f32.mrf.mxu0
      %v2753 = vadd.f32 0.0, %v2752
      %2754 = vmatmul.f32.gmra.mxu0 %v2691
      %v2755 = vpop.f32.mrf.mxu0
      %v2756 = vadd.f32 0.0, %v2755
      %2757 = vmatmul.f32.gmra.mxu0 %v2694
      %v2758 = vpop.f32.mrf.mxu0
      %v2759 = vadd.f32 0.0, %v2758
      %2760 = vmatmul.f32.gmra.mxu0 %v2697
      %v2761 = vpop.f32.mrf.mxu0
      %v2762 = vadd.f32 0.0, %v2761
      %2763 = vmatmul.f32.gmra.mxu0 %v2700
      %v2764 = vpop.f32.mrf.mxu0
      %v2765 = vadd.f32 0.0, %v2764
      %2766 = vmatmul.f32.gmra.mxu0 %v2703
      %v2767 = vpop.f32.mrf.mxu0
      %v2768 = vadd.f32 0.0, %v2767
      %2769 = vmatmul.f32.gmra.mxu0 %v2706
      %v2770 = vpop.f32.mrf.mxu0
      %v2771 = vadd.f32 0.0, %v2770
      %2772 = vdwg.mxu0
      %v2773 = vsub.f32 %v649, %v2726
      %v2774 = vsub.f32 %v650, %v2729
      %v2775 = vsub.f32 %v651, %v2732
      %v2776 = vsub.f32 %v652, %v2735
      %v2777 = vsub.f32 %v653, %v2738
      %v2778 = vsub.f32 %v654, %v2741
      %v2779 = vsub.f32 %v655, %v2744
      %v2780 = vsub.f32 %v656, %v2747
      %v2781 = vsub.f32 %v657, %v2750
      %v2782 = vsub.f32 %v658, %v2753
      %v2783 = vsub.f32 %v659, %v2756
      %v2784 = vsub.f32 %v660, %v2759
      %v2785 = vsub.f32 %v661, %v2762
      %v2786 = vsub.f32 %v662, %v2765
      %v2787 = vsub.f32 %v663, %v2768
      %v2788 = vsub.f32 %v664, %v2771
      %v2789 = vmul.f32 %v2773, 0.5
      %v2790 = vmul.f32 %v2774, 0.5
      %v2791 = vmul.f32 %v2775, 0.5
      %v2792 = vmul.f32 %v2776, 0.5
      %v2793 = vmul.f32 %v2777, 0.5
      %v2794 = vmul.f32 %v2778, 0.5
      %v2795 = vmul.f32 %v2779, 0.5
      %v2796 = vmul.f32 %v2780, 0.5
      %v2797 = vmul.f32 %v2781, 0.5
      %v2798 = vmul.f32 %v2782, 0.5
      %v2799 = vmul.f32 %v2783, 0.5
      %v2800 = vmul.f32 %v2784, 0.5
      %v2801 = vmul.f32 %v2785, 0.5
      %v2802 = vmul.f32 %v2786, 0.5
      %v2803 = vmul.f32 %v2787, 0.5
      %v2804 = vmul.f32 %v2788, 0.5
      %2805 = vmatpush.msra.mxu0 %v2804
      %2806 = vmatpush.msra.mxu0 %v2803
      %2807 = vmatpush.msra.mxu0 %v2802
      %2808 = vmatpush.msra.mxu0 %v2801
      %2809 = vmatpush.msra.mxu0 %v2800
      %2810 = vmatpush.msra.mxu0 %v2799
      %2811 = vmatpush.msra.mxu0 %v2798
      %2812 = vmatpush.msra.mxu0 %v2797
      %2813 = vmatpush.msra.mxu0 %v2796
      %2814 = vmatpush.msra.mxu0 %v2795
      %2815 = vmatpush.msra.mxu0 %v2794
      %2816 = vmatpush.msra.mxu0 %v2793
      %2817 = vmatpush.msra.mxu0 %v2792
      %2818 = vmatpush.msra.mxu0 %v2791
      %2819 = vmatpush.msra.mxu0 %v2790
      %2820 = vmatpush.msra.mxu0 %v2789
      %2821 = vmatmul.f32.gmra.mxu0 %v2596
      %v2822 = vpop.f32.mrf.mxu0
      %v2823 = vadd.f32 0.0, %v2822
      %2824 = vmatmul.f32.gmra.mxu0 %v2599
      %v2825 = vpop.f32.mrf.mxu0
      %v2826 = vadd.f32 0.0, %v2825
      %2827 = vmatmul.f32.gmra.mxu0 %v2602
      %v2828 = vpop.f32.mrf.mxu0
      %v2829 = vadd.f32 0.0, %v2828
      %2830 = vmatmul.f32.gmra.mxu0 %v2605
      %v2831 = vpop.f32.mrf.mxu0
      %v2832 = vadd.f32 0.0, %v2831
      %2833 = vmatmul.f32.gmra.mxu0 %v2608
      %v2834 = vpop.f32.mrf.mxu0
      %v2835 = vadd.f32 0.0, %v2834
      %2836 = vmatmul.f32.gmra.mxu0 %v2611
      %v2837 = vpop.f32.mrf.mxu0
      %v2838 = vadd.f32 0.0, %v2837
      %2839 = vmatmul.f32.gmra.mxu0 %v2614
      %v2840 = vpop.f32.mrf.mxu0
      %v2841 = vadd.f32 0.0, %v2840
      %2842 = vmatmul.f32.gmra.mxu0 %v2617
      %v2843 = vpop.f32.mrf.mxu0
      %v2844 = vadd.f32 0.0, %v2843
      %2845 = vmatmul.f32.gmra.mxu0 %v2620
      %v2846 = vpop.f32.mrf.mxu0
      %v2847 = vadd.f32 0.0, %v2846
      %2848 = vmatmul.f32.gmra.mxu0 %v2623
      %v2849 = vpop.f32.mrf.mxu0
      %v2850 = vadd.f32 0.0, %v2849
      %2851 = vmatmul.f32.gmra.mxu0 %v2626
      %v2852 = vpop.f32.mrf.mxu0
      %v2853 = vadd.f32 0.0, %v2852
      %2854 = vmatmul.f32.gmra.mxu0 %v2629
      %v2855 = vpop.f32.mrf.mxu0
      %v2856 = vadd.f32 0.0, %v2855
      %2857 = vmatmul.f32.gmra.mxu0 %v2632
      %v2858 = vpop.f32.mrf.mxu0
      %v2859 = vadd.f32 0.0, %v2858
      %2860 = vmatmul.f32.gmra.mxu0 %v2635
      %v2861 = vpop.f32.mrf.mxu0
      %v2862 = vadd.f32 0.0, %v2861
      %2863 = vmatmul.f32.gmra.mxu0 %v2638
      %v2864 = vpop.f32.mrf.mxu0
      %v2865 = vadd.f32 0.0, %v2864
      %2866 = vmatmul.f32.gmra.mxu0 %v2641
      %v2867 = vpop.f32.mrf.mxu0
      %v2868 = vadd.f32 0.0, %v2867
      %2869 = vdwg.mxu0
      %2870 = vmatpush.msra.mxu0 %v2706
      %2871 = vmatpush.msra.mxu0 %v2703
      %2872 = vmatpush.msra.mxu0 %v2700
      %2873 = vmatpush.msra.mxu0 %v2697
      %2874 = vmatpush.msra.mxu0 %v2694
      %2875 = vmatpush.msra.mxu0 %v2691
      %2876 = vmatpush.msra.mxu0 %v2688
      %2877 = vmatpush.msra.mxu0 %v2685
      %2878 = vmatpush.msra.mxu0 %v2682
      %2879 = vmatpush.msra.mxu0 %v2679
      %2880 = vmatpush.msra.mxu0 %v2676
      %2881 = vmatpush.msra.mxu0 %v2673
      %2882 = vmatpush.msra.mxu0 %v2670
      %2883 = vmatpush.msra.mxu0 %v2667
      %2884 = vmatpush.msra.mxu0 %v2664
      %2885 = vmatpush.msra.mxu0 %v2661
      %2886 = vmatmul.f32.gmra.mxu0 %v2789
      %v2887 = vpop.f32.mrf.mxu0
      %v2888 = vadd.f32 0.0, %v2887
      %2889 = vmatmul.f32.gmra.mxu0 %v2790
      %v2890 = vpop.f32.mrf.mxu0
      %v2891 = vadd.f32 0.0, %v2890
      %2892 = vmatmul.f32.gmra.mxu0 %v2791
      %v2893 = vpop.f32.mrf.mxu0
      %v2894 = vadd.f32 0.0, %v2893
      %2895 = vmatmul.f32.gmra.mxu0 %v2792
      %v2896 = vpop.f32.mrf.mxu0
      %v2897 = vadd.f32 0.0, %v2896
      %2898 = vmatmul.f32.gmra.mxu0 %v2793
      %v2899 = vpop.f32.mrf.mxu0
      %v2900 = vadd.f32 0.0, %v2899
      %2901 = vmatmul.f32.gmra.mxu0 %v2794
      %v2902 = vpop.f32.mrf.mxu0
      %v2903 = vadd.f32 0.0, %v2902
      %2904 = vmatmul.f32.gmra.mxu0 %v2795
      %v2905 = vpop.f32.mrf.mxu0
      %v2906 = vadd.f32 0.0, %v2905
      %2907 = vmatmul.f32.gmra.mxu0 %v2796
      %v2908 = vpop.f32.mrf.mxu0
      %v2909 = vadd.f32 0.0, %v2908
      %2910 = vmatmul.f32.gmra.mxu0 %v2797
      %v2911 = vpop.f32.mrf.mxu0
      %v2912 = vadd.f32 0.0, %v2911
      %2913 = vmatmul.f32.gmra.mxu0 %v2798
      %v2914 = vpop.f32.mrf.mxu0
      %v2915 = vadd.f32 0.0, %v2914
      %2916 = vmatmul.f32.gmra.mxu0 %v2799
      %v2917 = vpop.f32.mrf.mxu0
      %v2918 = vadd.f32 0.0, %v2917
      %2919 = vmatmul.f32.gmra.mxu0 %v2800
      %v2920 = vpop.f32.mrf.mxu0
      %v2921 = vadd.f32 0.0, %v2920
      %2922 = vmatmul.f32.gmra.mxu0 %v2801
      %v2923 = vpop.f32.mrf.mxu0
      %v2924 = vadd.f32 0.0, %v2923
      %2925 = vmatmul.f32.gmra.mxu0 %v2802
      %v2926 = vpop.f32.mrf.mxu0
      %v2927 = vadd.f32 0.0, %v2926
      %2928 = vmatmul.f32.gmra.mxu0 %v2803
      %v2929 = vpop.f32.mrf.mxu0
      %v2930 = vadd.f32 0.0, %v2929
      %2931 = vmatmul.f32.gmra.mxu0 %v2804
      %v2932 = vpop.f32.mrf.mxu0
      %v2933 = vadd.f32 0.0, %v2932
      %2934 = vdwg.mxu0
      %2935 = vmatpush.msra.mxu0 %v2868
      %2936 = vmatpush.msra.mxu0 %v2865
      %2937 = vmatpush.msra.mxu0 %v2862
      %2938 = vmatpush.msra.mxu0 %v2859
      %2939 = vmatpush.msra.mxu0 %v2856
      %2940 = vmatpush.msra.mxu0 %v2853
      %2941 = vmatpush.msra.mxu0 %v2850
      %2942 = vmatpush.msra.mxu0 %v2847
      %2943 = vmatpush.msra.mxu0 %v2844
      %2944 = vmatpush.msra.mxu0 %v2841
      %2945 = vmatpush.msra.mxu0 %v2838
      %2946 = vmatpush.msra.mxu0 %v2835
      %2947 = vmatpush.msra.mxu0 %v2832
      %2948 = vmatpush.msra.mxu0 %v2829
      %2949 = vmatpush.msra.mxu0 %v2826
      %2950 = vmatpush.msra.mxu0 %v2823
      %2951 = vmatmul.f32.gmra.mxu0 %v2888
      %v2952 = vpop.f32.mrf.mxu0
      %v2953 = vadd.f32 0.0, %v2952
      %2954 = vmatmul.f32.gmra.mxu0 %v2891
      %v2955 = vpop.f32.mrf.mxu0
      %v2956 = vadd.f32 0.0, %v2955
      %2957 = vmatmul.f32.gmra.mxu0 %v2894
      %v2958 = vpop.f32.mrf.mxu0
      %v2959 = vadd.f32 0.0, %v2958
      %2960 = vmatmul.f32.gmra.mxu0 %v2897
      %v2961 = vpop.f32.mrf.mxu0
      %v2962 = vadd.f32 0.0, %v2961
      %2963 = vmatmul.f32.gmra.mxu0 %v2900
      %v2964 = vpop.f32.mrf.mxu0
      %v2965 = vadd.f32 0.0, %v2964
      %2966 = vmatmul.f32.gmra.mxu0 %v2903
      %v2967 = vpop.f32.mrf.mxu0
      %v2968 = vadd.f32 0.0, %v2967
      %2969 = vmatmul.f32.gmra.mxu0 %v2906
      %v2970 = vpop.f32.mrf.mxu0
      %v2971 = vadd.f32 0.0, %v2970
      %2972 = vmatmul.f32.gmra.mxu0 %v2909
      %v2973 = vpop.f32.mrf.mxu0
      %v2974 = vadd.f32 0.0, %v2973
      %2975 = vmatmul.f32.gmra.mxu0 %v2912
      %v2976 = vpop.f32.mrf.mxu0
      %v2977 = vadd.f32 0.0, %v2976
      %2978 = vmatmul.f32.gmra.mxu0 %v2915
      %v2979 = vpop.f32.mrf.mxu0
      %v2980 = vadd.f32 0.0, %v2979
      %2981 = vmatmul.f32.gmra.mxu0 %v2918
      %v2982 = vpop.f32.mrf.mxu0
      %v2983 = vadd.f32 0.0, %v2982
      %2984 = vmatmul.f32.gmra.mxu0 %v2921
      %v2985 = vpop.f32.mrf.mxu0
      %v2986 = vadd.f32 0.0, %v2985
      %2987 = vmatmul.f32.gmra.mxu0 %v2924
      %v2988 = vpop.f32.mrf.mxu0
      %v2989 = vadd.f32 0.0, %v2988
      %2990 = vmatmul.f32.gmra.mxu0 %v2927
      %v2991 = vpop.f32.mrf.mxu0
      %v2992 = vadd.f32 0.0, %v2991
      %2993 = vmatmul.f32.gmra.mxu0 %v2930
      %v2994 = vpop.f32.mrf.mxu0
      %v2995 = vadd.f32 0.0, %v2994
      %2996 = vmatmul.f32.gmra.mxu0 %v2933
      %v2997 = vpop.f32.mrf.mxu0
      %v2998 = vadd.f32 0.0, %v2997
      %2999 = vdwg.mxu0
      %v3000 = vsub.f32 %v649, %v2953
      %v3001 = vsub.f32 %v650, %v2956
      %v3002 = vsub.f32 %v651, %v2959
      %v3003 = vsub.f32 %v652, %v2962
      %v3004 = vsub.f32 %v653, %v2965
      %v3005 = vsub.f32 %v654, %v2968
      %v3006 = vsub.f32 %v655, %v2971
      %v3007 = vsub.f32 %v656, %v2974
      %v3008 = vsub.f32 %v657, %v2977
      %v3009 = vsub.f32 %v658, %v2980
      %v3010 = vsub.f32 %v659, %v2983
      %v3011 = vsub.f32 %v660, %v2986
      %v3012 = vsub.f32 %v661, %v2989
      %v3013 = vsub.f32 %v662, %v2992
      %v3014 = vsub.f32 %v663, %v2995
      %v3015 = vsub.f32 %v664, %v2998
      %v3016 = vmul.f32 %v3000, 0.5
      %v3017 = vmul.f32 %v3001, 0.5
      %v3018 = vmul.f32 %v3002, 0.5
      %v3019 = vmul.f32 %v3003, 0.5
      %v3020 = vmul.f32 %v3004, 0.5
      %v3021 = vmul.f32 %v3005, 0.5
      %v3022 = vmul.f32 %v3006, 0.5
      %v3023 = vmul.f32 %v3007, 0.5
      %v3024 = vmul.f32 %v3008, 0.5
      %v3025 = vmul.f32 %v3009, 0.5
      %v3026 = vmul.f32 %v3010, 0.5
      %v3027 = vmul.f32 %v3011, 0.5
      %v3028 = vmul.f32 %v3012, 0.5
      %v3029 = vmul.f32 %v3013, 0.5
      %v3030 = vmul.f32 %v3014, 0.5
      %v3031 = vmul.f32 %v3015, 0.5
      %3032 = vmatpush.msra.mxu0 %v3031
      %3033 = vmatpush.msra.mxu0 %v3030
      %3034 = vmatpush.msra.mxu0 %v3029
      %3035 = vmatpush.msra.mxu0 %v3028
      %3036 = vmatpush.msra.mxu0 %v3027
      %3037 = vmatpush.msra.mxu0 %v3026
      %3038 = vmatpush.msra.mxu0 %v3025
      %3039 = vmatpush.msra.mxu0 %v3024
      %3040 = vmatpush.msra.mxu0 %v3023
      %3041 = vmatpush.msra.mxu0 %v3022
      %3042 = vmatpush.msra.mxu0 %v3021
      %3043 = vmatpush.msra.mxu0 %v3020
      %3044 = vmatpush.msra.mxu0 %v3019
      %3045 = vmatpush.msra.mxu0 %v3018
      %3046 = vmatpush.msra.mxu0 %v3017
      %3047 = vmatpush.msra.mxu0 %v3016
      %3048 = vmatmul.f32.gmra.mxu0 %v2823
      %v3049 = vpop.f32.mrf.mxu0
      %v3050 = vadd.f32 0.0, %v3049
      %3051 = vmatmul.f32.gmra.mxu0 %v2826
      %v3052 = vpop.f32.mrf.mxu0
      %v3053 = vadd.f32 0.0, %v3052
      %3054 = vmatmul.f32.gmra.mxu0 %v2829
      %v3055 = vpop.f32.mrf.mxu0
      %v3056 = vadd.f32 0.0, %v3055
      %3057 = vmatmul.f32.gmra.mxu0 %v2832
      %v3058 = vpop.f32.mrf.mxu0
      %v3059 = vadd.f32 0.0, %v3058
      %3060 = vmatmul.f32.gmra.mxu0 %v2835
      %v3061 = vpop.f32.mrf.mxu0
      %v3062 = vadd.f32 0.0, %v3061
      %3063 = vmatmul.f32.gmra.mxu0 %v2838
      %v3064 = vpop.f32.mrf.mxu0
      %v3065 = vadd.f32 0.0, %v3064
      %3066 = vmatmul.f32.gmra.mxu0 %v2841
      %v3067 = vpop.f32.mrf.mxu0
      %v3068 = vadd.f32 0.0, %v3067
      %3069 = vmatmul.f32.gmra.mxu0 %v2844
      %v3070 = vpop.f32.mrf.mxu0
      %v3071 = vadd.f32 0.0, %v3070
      %3072 = vmatmul.f32.gmra.mxu0 %v2847
      %v3073 = vpop.f32.mrf.mxu0
      %v3074 = vadd.f32 0.0, %v3073
      %3075 = vmatmul.f32.gmra.mxu0 %v2850
      %v3076 = vpop.f32.mrf.mxu0
      %v3077 = vadd.f32 0.0, %v3076
      %3078 = vmatmul.f32.gmra.mxu0 %v2853
      %v3079 = vpop.f32.mrf.mxu0
      %v3080 = vadd.f32 0.0, %v3079
      %3081 = vmatmul.f32.gmra.mxu0 %v2856
      %v3082 = vpop.f32.mrf.mxu0
      %v3083 = vadd.f32 0.0, %v3082
      %3084 = vmatmul.f32.gmra.mxu0 %v2859
      %v3085 = vpop.f32.mrf.mxu0
      %v3086 = vadd.f32 0.0, %v3085
      %3087 = vmatmul.f32.gmra.mxu0 %v2862
      %v3088 = vpop.f32.mrf.mxu0
      %v3089 = vadd.f32 0.0, %v3088
      %3090 = vmatmul.f32.gmra.mxu0 %v2865
      %v3091 = vpop.f32.mrf.mxu0
      %v3092 = vadd.f32 0.0, %v3091
      %3093 = vmatmul.f32.gmra.mxu0 %v2868
      %v3094 = vpop.f32.mrf.mxu0
      %v3095 = vadd.f32 0.0, %v3094
      %3096 = vdwg.mxu0
      %3097 = vmatpush.msra.mxu0 %v2933
      %3098 = vmatpush.msra.mxu0 %v2930
      %3099 = vmatpush.msra.mxu0 %v2927
      %3100 = vmatpush.msra.mxu0 %v2924
      %3101 = vmatpush.msra.mxu0 %v2921
      %3102 = vmatpush.msra.mxu0 %v2918
      %3103 = vmatpush.msra.mxu0 %v2915
      %3104 = vmatpush.msra.mxu0 %v2912
      %3105 = vmatpush.msra.mxu0 %v2909
      %3106 = vmatpush.msra.mxu0 %v2906
      %3107 = vmatpush.msra.mxu0 %v2903
      %3108 = vmatpush.msra.mxu0 %v2900
      %3109 = vmatpush.msra.mxu0 %v2897
      %3110 = vmatpush.msra.mxu0 %v2894
      %3111 = vmatpush.msra.mxu0 %v2891
      %3112 = vmatpush.msra.mxu0 %v2888
      %3113 = vmatmul.f32.gmra.mxu0 %v3016
      %v3114 = vpop.f32.mrf.mxu0
      %v3115 = vadd.f32 0.0, %v3114
      %3116 = vmatmul.f32.gmra.mxu0 %v3017
      %v3117 = vpop.f32.mrf.mxu0
      %v3118 = vadd.f32 0.0, %v3117
      %3119 = vmatmul.f32.gmra.mxu0 %v3018
      %v3120 = vpop.f32.mrf.mxu0
      %v3121 = vadd.f32 0.0, %v3120
      %3122 = vmatmul.f32.gmra.mxu0 %v3019
      %v3123 = vpop.f32.mrf.mxu0
      %v3124 = vadd.f32 0.0, %v3123
      %3125 = vmatmul.f32.gmra.mxu0 %v3020
      %v3126 = vpop.f32.mrf.mxu0
      %v3127 = vadd.f32 0.0, %v3126
      %3128 = vmatmul.f32.gmra.mxu0 %v3021
      %v3129 = vpop.f32.mrf.mxu0
      %v3130 = vadd.f32 0.0, %v3129
      %3131 = vmatmul.f32.gmra.mxu0 %v3022
      %v3132 = vpop.f32.mrf.mxu0
      %v3133 = vadd.f32 0.0, %v3132
      %3134 = vmatmul.f32.gmra.mxu0 %v3023
      %v3135 = vpop.f32.mrf.mxu0
      %v3136 = vadd.f32 0.0, %v3135
      %3137 = vmatmul.f32.gmra.mxu0 %v3024
      %v3138 = vpop.f32.mrf.mxu0
      %v3139 = vadd.f32 0.0, %v3138
      %3140 = vmatmul.f32.gmra.mxu0 %v3025
      %v3141 = vpop.f32.mrf.mxu0
      %v3142 = vadd.f32 0.0, %v3141
      %3143 = vmatmul.f32.gmra.mxu0 %v3026
      %v3144 = vpop.f32.mrf.mxu0
      %v3145 = vadd.f32 0.0, %v3144
      %3146 = vmatmul.f32.gmra.mxu0 %v3027
      %v3147 = vpop.f32.mrf.mxu0
      %v3148 = vadd.f32 0.0, %v3147
      %3149 = vmatmul.f32.gmra.mxu0 %v3028
      %v3150 = vpop.f32.mrf.mxu0
      %v3151 = vadd.f32 0.0, %v3150
      %3152 = vmatmul.f32.gmra.mxu0 %v3029
      %v3153 = vpop.f32.mrf.mxu0
      %v3154 = vadd.f32 0.0, %v3153
      %3155 = vmatmul.f32.gmra.mxu0 %v3030
      %v3156 = vpop.f32.mrf.mxu0
      %v3157 = vadd.f32 0.0, %v3156
      %3158 = vmatmul.f32.gmra.mxu0 %v3031
      %v3159 = vpop.f32.mrf.mxu0
      %v3160 = vadd.f32 0.0, %v3159
      %3161 = vdwg.mxu0
      %3162 = vmatpush.msra.mxu0 %v3095
      %3163 = vmatpush.msra.mxu0 %v3092
      %3164 = vmatpush.msra.mxu0 %v3089
      %3165 = vmatpush.msra.mxu0 %v3086
      %3166 = vmatpush.msra.mxu0 %v3083
      %3167 = vmatpush.msra.mxu0 %v3080
      %3168 = vmatpush.msra.mxu0 %v3077
      %3169 = vmatpush.msra.mxu0 %v3074
      %3170 = vmatpush.msra.mxu0 %v3071
      %3171 = vmatpush.msra.mxu0 %v3068
      %3172 = vmatpush.msra.mxu0 %v3065
      %3173 = vmatpush.msra.mxu0 %v3062
      %3174 = vmatpush.msra.mxu0 %v3059
      %3175 = vmatpush.msra.mxu0 %v3056
      %3176 = vmatpush.msra.mxu0 %v3053
      %3177 = vmatpush.msra.mxu0 %v3050
      %3178 = vmatmul.f32.gmra.mxu0 %v3115
      %v3179 = vpop.f32.mrf.mxu0
      %v3180 = vadd.f32 0.0, %v3179
      %3181 = vmatmul.f32.gmra.mxu0 %v3118
      %v3182 = vpop.f32.mrf.mxu0
      %v3183 = vadd.f32 0.0, %v3182
      %3184 = vmatmul.f32.gmra.mxu0 %v3121
      %v3185 = vpop.f32.mrf.mxu0
      %v3186 = vadd.f32 0.0, %v3185
      %3187 = vmatmul.f32.gmra.mxu0 %v3124
      %v3188 = vpop.f32.mrf.mxu0
      %v3189 = vadd.f32 0.0, %v3188
      %3190 = vmatmul.f32.gmra.mxu0 %v3127
      %v3191 = vpop.f32.mrf.mxu0
      %v3192 = vadd.f32 0.0, %v3191
      %3193 = vmatmul.f32.gmra.mxu0 %v3130
      %v3194 = vpop.f32.mrf.mxu0
      %v3195 = vadd.f32 0.0, %v3194
      %3196 = vmatmul.f32.gmra.mxu0 %v3133
      %v3197 = vpop.f32.mrf.mxu0
      %v3198 = vadd.f32 0.0, %v3197
      %3199 = vmatmul.f32.gmra.mxu0 %v3136
      %v3200 = vpop.f32.mrf.mxu0
      %v3201 = vadd.f32 0.0, %v3200
      %3202 = vmatmul.f32.gmra.mxu0 %v3139
      %v3203 = vpop.f32.mrf.mxu0
      %v3204 = vadd.f32 0.0, %v3203
      %3205 = vmatmul.f32.gmra.mxu0 %v3142
      %v3206 = vpop.f32.mrf.mxu0
      %v3207 = vadd.f32 0.0, %v3206
      %3208 = vmatmul.f32.gmra.mxu0 %v3145
      %v3209 = vpop.f32.mrf.mxu0
      %v3210 = vadd.f32 0.0, %v3209
      %3211 = vmatmul.f32.gmra.mxu0 %v3148
      %v3212 = vpop.f32.mrf.mxu0
      %v3213 = vadd.f32 0.0, %v3212
      %3214 = vmatmul.f32.gmra.mxu0 %v3151
      %v3215 = vpop.f32.mrf.mxu0
      %v3216 = vadd.f32 0.0, %v3215
      %3217 = vmatmul.f32.gmra.mxu0 %v3154
      %v3218 = vpop.f32.mrf.mxu0
      %v3219 = vadd.f32 0.0, %v3218
      %3220 = vmatmul.f32.gmra.mxu0 %v3157
      %v3221 = vpop.f32.mrf.mxu0
      %v3222 = vadd.f32 0.0, %v3221
      %3223 = vmatmul.f32.gmra.mxu0 %v3160
      %v3224 = vpop.f32.mrf.mxu0
      %v3225 = vadd.f32 0.0, %v3224
      %3226 = vdwg.mxu0
      %v3227 = vsub.f32 %v649, %v3180
      %v3228 = vsub.f32 %v650, %v3183
      %v3229 = vsub.f32 %v651, %v3186
      %v3230 = vsub.f32 %v652, %v3189
      %v3231 = vsub.f32 %v653, %v3192
      %v3232 = vsub.f32 %v654, %v3195
      %v3233 = vsub.f32 %v655, %v3198
      %v3234 = vsub.f32 %v656, %v3201
      %v3235 = vsub.f32 %v657, %v3204
      %v3236 = vsub.f32 %v658, %v3207
      %v3237 = vsub.f32 %v659, %v3210
      %v3238 = vsub.f32 %v660, %v3213
      %v3239 = vsub.f32 %v661, %v3216
      %v3240 = vsub.f32 %v662, %v3219
      %v3241 = vsub.f32 %v663, %v3222
      %v3242 = vsub.f32 %v664, %v3225
      %v3243 = vmul.f32 %v3227, 0.5
      %v3244 = vmul.f32 %v3228, 0.5
      %v3245 = vmul.f32 %v3229, 0.5
      %v3246 = vmul.f32 %v3230, 0.5
      %v3247 = vmul.f32 %v3231, 0.5
      %v3248 = vmul.f32 %v3232, 0.5
      %v3249 = vmul.f32 %v3233, 0.5
      %v3250 = vmul.f32 %v3234, 0.5
      %v3251 = vmul.f32 %v3235, 0.5
      %v3252 = vmul.f32 %v3236, 0.5
      %v3253 = vmul.f32 %v3237, 0.5
      %v3254 = vmul.f32 %v3238, 0.5
      %v3255 = vmul.f32 %v3239, 0.5
      %v3256 = vmul.f32 %v3240, 0.5
      %v3257 = vmul.f32 %v3241, 0.5
      %v3258 = vmul.f32 %v3242, 0.5
      %3259 = vmatpush.msra.mxu0 %v3258
      %3260 = vmatpush.msra.mxu0 %v3257
      %3261 = vmatpush.msra.mxu0 %v3256
      %3262 = vmatpush.msra.mxu0 %v3255
      %3263 = vmatpush.msra.mxu0 %v3254
      %3264 = vmatpush.msra.mxu0 %v3253
      %3265 = vmatpush.msra.mxu0 %v3252
      %3266 = vmatpush.msra.mxu0 %v3251
      %3267 = vmatpush.msra.mxu0 %v3250
      %3268 = vmatpush.msra.mxu0 %v3249
      %3269 = vmatpush.msra.mxu0 %v3248
      %3270 = vmatpush.msra.mxu0 %v3247
      %3271 = vmatpush.msra.mxu0 %v3246
      %3272 = vmatpush.msra.mxu0 %v3245
      %3273 = vmatpush.msra.mxu0 %v3244
      %3274 = vmatpush.msra.mxu0 %v3243
      %3275 = vmatmul.f32.gmra.mxu0 %v3050
      %v3276 = vpop.f32.mrf.mxu0
      %v3277 = vadd.f32 0.0, %v3276
      %3278 = vmatmul.f32.gmra.mxu0 %v3053
      %v3279 = vpop.f32.mrf.mxu0
      %v3280 = vadd.f32 0.0, %v3279
      %3281 = vmatmul.f32.gmra.mxu0 %v3056
      %v3282 = vpop.f32.mrf.mxu0
      %v3283 = vadd.f32 0.0, %v3282
      %3284 = vmatmul.f32.gmra.mxu0 %v3059
      %v3285 = vpop.f32.mrf.mxu0
      %v3286 = vadd.f32 0.0, %v3285
      %3287 = vmatmul.f32.gmra.mxu0 %v3062
      %v3288 = vpop.f32.mrf.mxu0
      %v3289 = vadd.f32 0.0, %v3288
      %3290 = vmatmul.f32.gmra.mxu0 %v3065
      %v3291 = vpop.f32.mrf.mxu0
      %v3292 = vadd.f32 0.0, %v3291
      %3293 = vmatmul.f32.gmra.mxu0 %v3068
      %v3294 = vpop.f32.mrf.mxu0
      %v3295 = vadd.f32 0.0, %v3294
      %3296 = vmatmul.f32.gmra.mxu0 %v3071
      %v3297 = vpop.f32.mrf.mxu0
      %v3298 = vadd.f32 0.0, %v3297
      %3299 = vmatmul.f32.gmra.mxu0 %v3074
      %v3300 = vpop.f32.mrf.mxu0
      %v3301 = vadd.f32 0.0, %v3300
      %3302 = vmatmul.f32.gmra.mxu0 %v3077
      %v3303 = vpop.f32.mrf.mxu0
      %v3304 = vadd.f32 0.0, %v3303
      %3305 = vmatmul.f32.gmra.mxu0 %v3080
      %v3306 = vpop.f32.mrf.mxu0
      %v3307 = vadd.f32 0.0, %v3306
      %3308 = vmatmul.f32.gmra.mxu0 %v3083
      %v3309 = vpop.f32.mrf.mxu0
      %v3310 = vadd.f32 0.0, %v3309
      %3311 = vmatmul.f32.gmra.mxu0 %v3086
      %v3312 = vpop.f32.mrf.mxu0
      %v3313 = vadd.f32 0.0, %v3312
      %3314 = vmatmul.f32.gmra.mxu0 %v3089
      %v3315 = vpop.f32.mrf.mxu0
      %v3316 = vadd.f32 0.0, %v3315
      %3317 = vmatmul.f32.gmra.mxu0 %v3092
      %v3318 = vpop.f32.mrf.mxu0
      %v3319 = vadd.f32 0.0, %v3318
      %3320 = vmatmul.f32.gmra.mxu0 %v3095
      %v3321 = vpop.f32.mrf.mxu0
      %v3322 = vadd.f32 0.0, %v3321
      %3323 = vdwg.mxu0
      %3324 = vmatpush.msra.mxu0 %v3160
      %3325 = vmatpush.msra.mxu0 %v3157
      %3326 = vmatpush.msra.mxu0 %v3154
      %3327 = vmatpush.msra.mxu0 %v3151
      %3328 = vmatpush.msra.mxu0 %v3148
      %3329 = vmatpush.msra.mxu0 %v3145
      %3330 = vmatpush.msra.mxu0 %v3142
      %3331 = vmatpush.msra.mxu0 %v3139
      %3332 = vmatpush.msra.mxu0 %v3136
      %3333 = vmatpush.msra.mxu0 %v3133
      %3334 = vmatpush.msra.mxu0 %v3130
      %3335 = vmatpush.msra.mxu0 %v3127
      %3336 = vmatpush.msra.mxu0 %v3124
      %3337 = vmatpush.msra.mxu0 %v3121
      %3338 = vmatpush.msra.mxu0 %v3118
      %3339 = vmatpush.msra.mxu0 %v3115
      %3340 = vmatmul.f32.gmra.mxu0 %v3243
      %v3341 = vpop.f32.mrf.mxu0
      %v3342 = vadd.f32 0.0, %v3341
      %3343 = vmatmul.f32.gmra.mxu0 %v3244
      %v3344 = vpop.f32.mrf.mxu0
      %v3345 = vadd.f32 0.0, %v3344
      %3346 = vmatmul.f32.gmra.mxu0 %v3245
      %v3347 = vpop.f32.mrf.mxu0
      %v3348 = vadd.f32 0.0, %v3347
      %3349 = vmatmul.f32.gmra.mxu0 %v3246
      %v3350 = vpop.f32.mrf.mxu0
      %v3351 = vadd.f32 0.0, %v3350
      %3352 = vmatmul.f32.gmra.mxu0 %v3247
      %v3353 = vpop.f32.mrf.mxu0
      %v3354 = vadd.f32 0.0, %v3353
      %3355 = vmatmul.f32.gmra.mxu0 %v3248
      %v3356 = vpop.f32.mrf.mxu0
      %v3357 = vadd.f32 0.0, %v3356
      %3358 = vmatmul.f32.gmra.mxu0 %v3249
      %v3359 = vpop.f32.mrf.mxu0
      %v3360 = vadd.f32 0.0, %v3359
      %3361 = vmatmul.f32.gmra.mxu0 %v3250
      %v3362 = vpop.f32.mrf.mxu0
      %v3363 = vadd.f32 0.0, %v3362
      %3364 = vmatmul.f32.gmra.mxu0 %v3251
      %v3365 = vpop.f32.mrf.mxu0
      %v3366 = vadd.f32 0.0, %v3365
      %3367 = vmatmul.f32.gmra.mxu0 %v3252
      %v3368 = vpop.f32.mrf.mxu0
      %v3369 = vadd.f32 0.0, %v3368
      %3370 = vmatmul.f32.gmra.mxu0 %v3253
      %v3371 = vpop.f32.mrf.mxu0
      %v3372 = vadd.f32 0.0, %v3371
      %3373 = vmatmul.f32.gmra.mxu0 %v3254
      %v3374 = vpop.f32.mrf.mxu0
      %v3375 = vadd.f32 0.0, %v3374
      %3376 = vmatmul.f32.gmra.mxu0 %v3255
      %v3377 = vpop.f32.mrf.mxu0
      %v3378 = vadd.f32 0.0, %v3377
      %3379 = vmatmul.f32.gmra.mxu0 %v3256
      %v3380 = vpop.f32.mrf.mxu0
      %v3381 = vadd.f32 0.0, %v3380
      %3382 = vmatmul.f32.gmra.mxu0 %v3257
      %v3383 = vpop.f32.mrf.mxu0
      %v3384 = vadd.f32 0.0, %v3383
      %3385 = vmatmul.f32.gmra.mxu0 %v3258
      %v3386 = vpop.f32.mrf.mxu0
      %v3387 = vadd.f32 0.0, %v3386
      %3388 = vdwg.mxu0
      %3389 = vmatpush.msra.mxu0 %v3322
      %3390 = vmatpush.msra.mxu0 %v3319
      %3391 = vmatpush.msra.mxu0 %v3316
      %3392 = vmatpush.msra.mxu0 %v3313
      %3393 = vmatpush.msra.mxu0 %v3310
      %3394 = vmatpush.msra.mxu0 %v3307
      %3395 = vmatpush.msra.mxu0 %v3304
      %3396 = vmatpush.msra.mxu0 %v3301
      %3397 = vmatpush.msra.mxu0 %v3298
      %3398 = vmatpush.msra.mxu0 %v3295
      %3399 = vmatpush.msra.mxu0 %v3292
      %3400 = vmatpush.msra.mxu0 %v3289
      %3401 = vmatpush.msra.mxu0 %v3286
      %3402 = vmatpush.msra.mxu0 %v3283
      %3403 = vmatpush.msra.mxu0 %v3280
      %3404 = vmatpush.msra.mxu0 %v3277
      %3405 = vmatmul.f32.gmra.mxu0 %v3342
      %v3406 = vpop.f32.mrf.mxu0
      %v3407 = vadd.f32 0.0, %v3406
      %3408 = vmatmul.f32.gmra.mxu0 %v3345
      %v3409 = vpop.f32.mrf.mxu0
      %v3410 = vadd.f32 0.0, %v3409
      %3411 = vmatmul.f32.gmra.mxu0 %v3348
      %v3412 = vpop.f32.mrf.mxu0
      %v3413 = vadd.f32 0.0, %v3412
      %3414 = vmatmul.f32.gmra.mxu0 %v3351
      %v3415 = vpop.f32.mrf.mxu0
      %v3416 = vadd.f32 0.0, %v3415
      %3417 = vmatmul.f32.gmra.mxu0 %v3354
      %v3418 = vpop.f32.mrf.mxu0
      %v3419 = vadd.f32 0.0, %v3418
      %3420 = vmatmul.f32.gmra.mxu0 %v3357
      %v3421 = vpop.f32.mrf.mxu0
      %v3422 = vadd.f32 0.0, %v3421
      %3423 = vmatmul.f32.gmra.mxu0 %v3360
      %v3424 = vpop.f32.mrf.mxu0
      %v3425 = vadd.f32 0.0, %v3424
      %3426 = vmatmul.f32.gmra.mxu0 %v3363
      %v3427 = vpop.f32.mrf.mxu0
      %v3428 = vadd.f32 0.0, %v3427
      %3429 = vmatmul.f32.gmra.mxu0 %v3366
      %v3430 = vpop.f32.mrf.mxu0
      %v3431 = vadd.f32 0.0, %v3430
      %3432 = vmatmul.f32.gmra.mxu0 %v3369
      %v3433 = vpop.f32.mrf.mxu0
      %v3434 = vadd.f32 0.0, %v3433
      %3435 = vmatmul.f32.gmra.mxu0 %v3372
      %v3436 = vpop.f32.mrf.mxu0
      %v3437 = vadd.f32 0.0, %v3436
      %3438 = vmatmul.f32.gmra.mxu0 %v3375
      %v3439 = vpop.f32.mrf.mxu0
      %v3440 = vadd.f32 0.0, %v3439
      %3441 = vmatmul.f32.gmra.mxu0 %v3378
      %v3442 = vpop.f32.mrf.mxu0
      %v3443 = vadd.f32 0.0, %v3442
      %3444 = vmatmul.f32.gmra.mxu0 %v3381
      %v3445 = vpop.f32.mrf.mxu0
      %v3446 = vadd.f32 0.0, %v3445
      %3447 = vmatmul.f32.gmra.mxu0 %v3384
      %v3448 = vpop.f32.mrf.mxu0
      %v3449 = vadd.f32 0.0, %v3448
      %3450 = vmatmul.f32.gmra.mxu0 %v3387
      %v3451 = vpop.f32.mrf.mxu0
      %v3452 = vadd.f32 0.0, %v3451
      %3453 = vdwg.mxu0
      %v3454 = vsub.f32 %v649, %v3407
      %v3455 = vsub.f32 %v650, %v3410
      %v3456 = vsub.f32 %v651, %v3413
      %v3457 = vsub.f32 %v652, %v3416
      %v3458 = vsub.f32 %v653, %v3419
      %v3459 = vsub.f32 %v654, %v3422
      %v3460 = vsub.f32 %v655, %v3425
      %v3461 = vsub.f32 %v656, %v3428
      %v3462 = vsub.f32 %v657, %v3431
      %v3463 = vsub.f32 %v658, %v3434
      %v3464 = vsub.f32 %v659, %v3437
      %v3465 = vsub.f32 %v660, %v3440
      %v3466 = vsub.f32 %v661, %v3443
      %v3467 = vsub.f32 %v662, %v3446
      %v3468 = vsub.f32 %v663, %v3449
      %v3469 = vsub.f32 %v664, %v3452
      %v3470 = vmul.f32 %v3454, 0.5
      %v3471 = vmul.f32 %v3455, 0.5
      %v3472 = vmul.f32 %v3456, 0.5
      %v3473 = vmul.f32 %v3457, 0.5
      %v3474 = vmul.f32 %v3458, 0.5
      %v3475 = vmul.f32 %v3459, 0.5
      %v3476 = vmul.f32 %v3460, 0.5
      %v3477 = vmul.f32 %v3461, 0.5
      %v3478 = vmul.f32 %v3462, 0.5
      %v3479 = vmul.f32 %v3463, 0.5
      %v3480 = vmul.f32 %v3464, 0.5
      %v3481 = vmul.f32 %v3465, 0.5
      %v3482 = vmul.f32 %v3466, 0.5
      %v3483 = vmul.f32 %v3467, 0.5
      %v3484 = vmul.f32 %v3468, 0.5
      %v3485 = vmul.f32 %v3469, 0.5
      %3486 = vmatpush.msra.mxu0 %v3485
      %3487 = vmatpush.msra.mxu0 %v3484
      %3488 = vmatpush.msra.mxu0 %v3483
      %3489 = vmatpush.msra.mxu0 %v3482
      %3490 = vmatpush.msra.mxu0 %v3481
      %3491 = vmatpush.msra.mxu0 %v3480
      %3492 = vmatpush.msra.mxu0 %v3479
      %3493 = vmatpush.msra.mxu0 %v3478
      %3494 = vmatpush.msra.mxu0 %v3477
      %3495 = vmatpush.msra.mxu0 %v3476
      %3496 = vmatpush.msra.mxu0 %v3475
      %3497 = vmatpush.msra.mxu0 %v3474
      %3498 = vmatpush.msra.mxu0 %v3473
      %3499 = vmatpush.msra.mxu0 %v3472
      %3500 = vmatpush.msra.mxu0 %v3471
      %3501 = vmatpush.msra.mxu0 %v3470
      %3502 = vmatmul.f32.gmra.mxu0 %v3277
      %v3503 = vpop.f32.mrf.mxu0
      %v3504 = vadd.f32 0.0, %v3503
      %3505 = vmatmul.f32.gmra.mxu0 %v3280
      %v3506 = vpop.f32.mrf.mxu0
      %v3507 = vadd.f32 0.0, %v3506
      %3508 = vmatmul.f32.gmra.mxu0 %v3283
      %v3509 = vpop.f32.mrf.mxu0
      %v3510 = vadd.f32 0.0, %v3509
      %3511 = vmatmul.f32.gmra.mxu0 %v3286
      %v3512 = vpop.f32.mrf.mxu0
      %v3513 = vadd.f32 0.0, %v3512
      %3514 = vmatmul.f32.gmra.mxu0 %v3289
      %v3515 = vpop.f32.mrf.mxu0
      %v3516 = vadd.f32 0.0, %v3515
      %3517 = vmatmul.f32.gmra.mxu0 %v3292
      %v3518 = vpop.f32.mrf.mxu0
      %v3519 = vadd.f32 0.0, %v3518
      %3520 = vmatmul.f32.gmra.mxu0 %v3295
      %v3521 = vpop.f32.mrf.mxu0
      %v3522 = vadd.f32 0.0, %v3521
      %3523 = vmatmul.f32.gmra.mxu0 %v3298
      %v3524 = vpop.f32.mrf.mxu0
      %v3525 = vadd.f32 0.0, %v3524
      %3526 = vmatmul.f32.gmra.mxu0 %v3301
      %v3527 = vpop.f32.mrf.mxu0
      %v3528 = vadd.f32 0.0, %v3527
      %3529 = vmatmul.f32.gmra.mxu0 %v3304
      %v3530 = vpop.f32.mrf.mxu0
      %v3531 = vadd.f32 0.0, %v3530
      %3532 = vmatmul.f32.gmra.mxu0 %v3307
      %v3533 = vpop.f32.mrf.mxu0
      %v3534 = vadd.f32 0.0, %v3533
      %3535 = vmatmul.f32.gmra.mxu0 %v3310
      %v3536 = vpop.f32.mrf.mxu0
      %v3537 = vadd.f32 0.0, %v3536
      %3538 = vmatmul.f32.gmra.mxu0 %v3313
      %v3539 = vpop.f32.mrf.mxu0
      %v3540 = vadd.f32 0.0, %v3539
      %3541 = vmatmul.f32.gmra.mxu0 %v3316
      %v3542 = vpop.f32.mrf.mxu0
      %v3543 = vadd.f32 0.0, %v3542
      %3544 = vmatmul.f32.gmra.mxu0 %v3319
      %v3545 = vpop.f32.mrf.mxu0
      %v3546 = vadd.f32 0.0, %v3545
      %3547 = vmatmul.f32.gmra.mxu0 %v3322
      %v3548 = vpop.f32.mrf.mxu0
      %v3549 = vadd.f32 0.0, %v3548
      %3550 = vdwg.mxu0
      %3551 = vmatpush.msra.mxu0 %v3387
      %3552 = vmatpush.msra.mxu0 %v3384
      %3553 = vmatpush.msra.mxu0 %v3381
      %3554 = vmatpush.msra.mxu0 %v3378
      %3555 = vmatpush.msra.mxu0 %v3375
      %3556 = vmatpush.msra.mxu0 %v3372
      %3557 = vmatpush.msra.mxu0 %v3369
      %3558 = vmatpush.msra.mxu0 %v3366
      %3559 = vmatpush.msra.mxu0 %v3363
      %3560 = vmatpush.msra.mxu0 %v3360
      %3561 = vmatpush.msra.mxu0 %v3357
      %3562 = vmatpush.msra.mxu0 %v3354
      %3563 = vmatpush.msra.mxu0 %v3351
      %3564 = vmatpush.msra.mxu0 %v3348
      %3565 = vmatpush.msra.mxu0 %v3345
      %3566 = vmatpush.msra.mxu0 %v3342
      %3567 = vmatmul.f32.gmra.mxu0 %v3470
      %v3568 = vpop.f32.mrf.mxu0
      %v3569 = vadd.f32 0.0, %v3568
      %3570 = vmatmul.f32.gmra.mxu0 %v3471
      %v3571 = vpop.f32.mrf.mxu0
      %v3572 = vadd.f32 0.0, %v3571
      %3573 = vmatmul.f32.gmra.mxu0 %v3472
      %v3574 = vpop.f32.mrf.mxu0
      %v3575 = vadd.f32 0.0, %v3574
      %3576 = vmatmul.f32.gmra.mxu0 %v3473
      %v3577 = vpop.f32.mrf.mxu0
      %v3578 = vadd.f32 0.0, %v3577
      %3579 = vmatmul.f32.gmra.mxu0 %v3474
      %v3580 = vpop.f32.mrf.mxu0
      %v3581 = vadd.f32 0.0, %v3580
      %3582 = vmatmul.f32.gmra.mxu0 %v3475
      %v3583 = vpop.f32.mrf.mxu0
      %v3584 = vadd.f32 0.0, %v3583
      %3585 = vmatmul.f32.gmra.mxu0 %v3476
      %v3586 = vpop.f32.mrf.mxu0
      %v3587 = vadd.f32 0.0, %v3586
      %3588 = vmatmul.f32.gmra.mxu0 %v3477
      %v3589 = vpop.f32.mrf.mxu0
      %v3590 = vadd.f32 0.0, %v3589
      %3591 = vmatmul.f32.gmra.mxu0 %v3478
      %v3592 = vpop.f32.mrf.mxu0
      %v3593 = vadd.f32 0.0, %v3592
      %3594 = vmatmul.f32.gmra.mxu0 %v3479
      %v3595 = vpop.f32.mrf.mxu0
      %v3596 = vadd.f32 0.0, %v3595
      %3597 = vmatmul.f32.gmra.mxu0 %v3480
      %v3598 = vpop.f32.mrf.mxu0
      %v3599 = vadd.f32 0.0, %v3598
      %3600 = vmatmul.f32.gmra.mxu0 %v3481
      %v3601 = vpop.f32.mrf.mxu0
      %v3602 = vadd.f32 0.0, %v3601
      %3603 = vmatmul.f32.gmra.mxu0 %v3482
      %v3604 = vpop.f32.mrf.mxu0
      %v3605 = vadd.f32 0.0, %v3604
      %3606 = vmatmul.f32.gmra.mxu0 %v3483
      %v3607 = vpop.f32.mrf.mxu0
      %v3608 = vadd.f32 0.0, %v3607
      %3609 = vmatmul.f32.gmra.mxu0 %v3484
      %v3610 = vpop.f32.mrf.mxu0
      %v3611 = vadd.f32 0.0, %v3610
      %3612 = vmatmul.f32.gmra.mxu0 %v3485
      %v3613 = vpop.f32.mrf.mxu0
      %v3614 = vadd.f32 0.0, %v3613
      %3615 = vdwg.mxu0
      %3616 = vmatpush.msra.mxu0 %v3549
      %3617 = vmatpush.msra.mxu0 %v3546
      %3618 = vmatpush.msra.mxu0 %v3543
      %3619 = vmatpush.msra.mxu0 %v3540
      %3620 = vmatpush.msra.mxu0 %v3537
      %3621 = vmatpush.msra.mxu0 %v3534
      %3622 = vmatpush.msra.mxu0 %v3531
      %3623 = vmatpush.msra.mxu0 %v3528
      %3624 = vmatpush.msra.mxu0 %v3525
      %3625 = vmatpush.msra.mxu0 %v3522
      %3626 = vmatpush.msra.mxu0 %v3519
      %3627 = vmatpush.msra.mxu0 %v3516
      %3628 = vmatpush.msra.mxu0 %v3513
      %3629 = vmatpush.msra.mxu0 %v3510
      %3630 = vmatpush.msra.mxu0 %v3507
      %3631 = vmatpush.msra.mxu0 %v3504
      %3632 = vmatmul.f32.gmra.mxu0 %v3569
      %v3633 = vpop.f32.mrf.mxu0
      %v3634 = vadd.f32 0.0, %v3633
      %3635 = vmatmul.f32.gmra.mxu0 %v3572
      %v3636 = vpop.f32.mrf.mxu0
      %v3637 = vadd.f32 0.0, %v3636
      %3638 = vmatmul.f32.gmra.mxu0 %v3575
      %v3639 = vpop.f32.mrf.mxu0
      %v3640 = vadd.f32 0.0, %v3639
      %3641 = vmatmul.f32.gmra.mxu0 %v3578
      %v3642 = vpop.f32.mrf.mxu0
      %v3643 = vadd.f32 0.0, %v3642
      %3644 = vmatmul.f32.gmra.mxu0 %v3581
      %v3645 = vpop.f32.mrf.mxu0
      %v3646 = vadd.f32 0.0, %v3645
      %3647 = vmatmul.f32.gmra.mxu0 %v3584
      %v3648 = vpop.f32.mrf.mxu0
      %v3649 = vadd.f32 0.0, %v3648
      %3650 = vmatmul.f32.gmra.mxu0 %v3587
      %v3651 = vpop.f32.mrf.mxu0
      %v3652 = vadd.f32 0.0, %v3651
      %3653 = vmatmul.f32.gmra.mxu0 %v3590
      %v3654 = vpop.f32.mrf.mxu0
      %v3655 = vadd.f32 0.0, %v3654
      %3656 = vmatmul.f32.gmra.mxu0 %v3593
      %v3657 = vpop.f32.mrf.mxu0
      %v3658 = vadd.f32 0.0, %v3657
      %3659 = vmatmul.f32.gmra.mxu0 %v3596
      %v3660 = vpop.f32.mrf.mxu0
      %v3661 = vadd.f32 0.0, %v3660
      %3662 = vmatmul.f32.gmra.mxu0 %v3599
      %v3663 = vpop.f32.mrf.mxu0
      %v3664 = vadd.f32 0.0, %v3663
      %3665 = vmatmul.f32.gmra.mxu0 %v3602
      %v3666 = vpop.f32.mrf.mxu0
      %v3667 = vadd.f32 0.0, %v3666
      %3668 = vmatmul.f32.gmra.mxu0 %v3605
      %v3669 = vpop.f32.mrf.mxu0
      %v3670 = vadd.f32 0.0, %v3669
      %3671 = vmatmul.f32.gmra.mxu0 %v3608
      %v3672 = vpop.f32.mrf.mxu0
      %v3673 = vadd.f32 0.0, %v3672
      %3674 = vmatmul.f32.gmra.mxu0 %v3611
      %v3675 = vpop.f32.mrf.mxu0
      %v3676 = vadd.f32 0.0, %v3675
      %3677 = vmatmul.f32.gmra.mxu0 %v3614
      %v3678 = vpop.f32.mrf.mxu0
      %v3679 = vadd.f32 0.0, %v3678
      %3680 = vdwg.mxu0
      %v3681 = vsub.f32 %v649, %v3634
      %v3682 = vsub.f32 %v650, %v3637
      %v3683 = vsub.f32 %v651, %v3640
      %v3684 = vsub.f32 %v652, %v3643
      %v3685 = vsub.f32 %v653, %v3646
      %v3686 = vsub.f32 %v654, %v3649
      %v3687 = vsub.f32 %v655, %v3652
      %v3688 = vsub.f32 %v656, %v3655
      %v3689 = vsub.f32 %v657, %v3658
      %v3690 = vsub.f32 %v658, %v3661
      %v3691 = vsub.f32 %v659, %v3664
      %v3692 = vsub.f32 %v660, %v3667
      %v3693 = vsub.f32 %v661, %v3670
      %v3694 = vsub.f32 %v662, %v3673
      %v3695 = vsub.f32 %v663, %v3676
      %v3696 = vsub.f32 %v664, %v3679
      %v3697 = vmul.f32 %v3681, 0.5
      %v3698 = vmul.f32 %v3682, 0.5
      %v3699 = vmul.f32 %v3683, 0.5
      %v3700 = vmul.f32 %v3684, 0.5
      %v3701 = vmul.f32 %v3685, 0.5
      %v3702 = vmul.f32 %v3686, 0.5
      %v3703 = vmul.f32 %v3687, 0.5
      %v3704 = vmul.f32 %v3688, 0.5
      %v3705 = vmul.f32 %v3689, 0.5
      %v3706 = vmul.f32 %v3690, 0.5
      %v3707 = vmul.f32 %v3691, 0.5
      %v3708 = vmul.f32 %v3692, 0.5
      %v3709 = vmul.f32 %v3693, 0.5
      %v3710 = vmul.f32 %v3694, 0.5
      %v3711 = vmul.f32 %v3695, 0.5
      %v3712 = vmul.f32 %v3696, 0.5
      %3713 = vmatpush.msra.mxu0 %v3712
      %3714 = vmatpush.msra.mxu0 %v3711
      %3715 = vmatpush.msra.mxu0 %v3710
      %3716 = vmatpush.msra.mxu0 %v3709
      %3717 = vmatpush.msra.mxu0 %v3708
      %3718 = vmatpush.msra.mxu0 %v3707
      %3719 = vmatpush.msra.mxu0 %v3706
      %3720 = vmatpush.msra.mxu0 %v3705
      %3721 = vmatpush.msra.mxu0 %v3704
      %3722 = vmatpush.msra.mxu0 %v3703
      %3723 = vmatpush.msra.mxu0 %v3702
      %3724 = vmatpush.msra.mxu0 %v3701
      %3725 = vmatpush.msra.mxu0 %v3700
      %3726 = vmatpush.msra.mxu0 %v3699
      %3727 = vmatpush.msra.mxu0 %v3698
      %3728 = vmatpush.msra.mxu0 %v3697
      %3729 = vmatmul.f32.gmra.mxu0 %v3504
      %v3730 = vpop.f32.mrf.mxu0
      %v3731 = vadd.f32 0.0, %v3730
      %3732 = vmatmul.f32.gmra.mxu0 %v3507
      %v3733 = vpop.f32.mrf.mxu0
      %v3734 = vadd.f32 0.0, %v3733
      %3735 = vmatmul.f32.gmra.mxu0 %v3510
      %v3736 = vpop.f32.mrf.mxu0
      %v3737 = vadd.f32 0.0, %v3736
      %3738 = vmatmul.f32.gmra.mxu0 %v3513
      %v3739 = vpop.f32.mrf.mxu0
      %v3740 = vadd.f32 0.0, %v3739
      %3741 = vmatmul.f32.gmra.mxu0 %v3516
      %v3742 = vpop.f32.mrf.mxu0
      %v3743 = vadd.f32 0.0, %v3742
      %3744 = vmatmul.f32.gmra.mxu0 %v3519
      %v3745 = vpop.f32.mrf.mxu0
      %v3746 = vadd.f32 0.0, %v3745
      %3747 = vmatmul.f32.gmra.mxu0 %v3522
      %v3748 = vpop.f32.mrf.mxu0
      %v3749 = vadd.f32 0.0, %v3748
      %3750 = vmatmul.f32.gmra.mxu0 %v3525
      %v3751 = vpop.f32.mrf.mxu0
      %v3752 = vadd.f32 0.0, %v3751
      %3753 = vmatmul.f32.gmra.mxu0 %v3528
      %v3754 = vpop.f32.mrf.mxu0
      %v3755 = vadd.f32 0.0, %v3754
      %3756 = vmatmul.f32.gmra.mxu0 %v3531
      %v3757 = vpop.f32.mrf.mxu0
      %v3758 = vadd.f32 0.0, %v3757
      %3759 = vmatmul.f32.gmra.mxu0 %v3534
      %v3760 = vpop.f32.mrf.mxu0
      %v3761 = vadd.f32 0.0, %v3760
      %3762 = vmatmul.f32.gmra.mxu0 %v3537
      %v3763 = vpop.f32.mrf.mxu0
      %v3764 = vadd.f32 0.0, %v3763
      %3765 = vmatmul.f32.gmra.mxu0 %v3540
      %v3766 = vpop.f32.mrf.mxu0
      %v3767 = vadd.f32 0.0, %v3766
      %3768 = vmatmul.f32.gmra.mxu0 %v3543
      %v3769 = vpop.f32.mrf.mxu0
      %v3770 = vadd.f32 0.0, %v3769
      %3771 = vmatmul.f32.gmra.mxu0 %v3546
      %v3772 = vpop.f32.mrf.mxu0
      %v3773 = vadd.f32 0.0, %v3772
      %3774 = vmatmul.f32.gmra.mxu0 %v3549
      %v3775 = vpop.f32.mrf.mxu0
      %v3776 = vadd.f32 0.0, %v3775
      %3777 = vdwg.mxu0
      %3778 = vmatpush.msra.mxu0 %v3614
      %3779 = vmatpush.msra.mxu0 %v3611
      %3780 = vmatpush.msra.mxu0 %v3608
      %3781 = vmatpush.msra.mxu0 %v3605
      %3782 = vmatpush.msra.mxu0 %v3602
      %3783 = vmatpush.msra.mxu0 %v3599
      %3784 = vmatpush.msra.mxu0 %v3596
      %3785 = vmatpush.msra.mxu0 %v3593
      %3786 = vmatpush.msra.mxu0 %v3590
      %3787 = vmatpush.msra.mxu0 %v3587
      %3788 = vmatpush.msra.mxu0 %v3584
      %3789 = vmatpush.msra.mxu0 %v3581
      %3790 = vmatpush.msra.mxu0 %v3578
      %3791 = vmatpush.msra.mxu0 %v3575
      %3792 = vmatpush.msra.mxu0 %v3572
      %3793 = vmatpush.msra.mxu0 %v3569
      %3794 = vmatmul.f32.gmra.mxu0 %v3697
      %v3795 = vpop.f32.mrf.mxu0
      %v3796 = vadd.f32 0.0, %v3795
      %3797 = vmatmul.f32.gmra.mxu0 %v3698
      %v3798 = vpop.f32.mrf.mxu0
      %v3799 = vadd.f32 0.0, %v3798
      %3800 = vmatmul.f32.gmra.mxu0 %v3699
      %v3801 = vpop.f32.mrf.mxu0
      %v3802 = vadd.f32 0.0, %v3801
      %3803 = vmatmul.f32.gmra.mxu0 %v3700
      %v3804 = vpop.f32.mrf.mxu0
      %v3805 = vadd.f32 0.0, %v3804
      %3806 = vmatmul.f32.gmra.mxu0 %v3701
      %v3807 = vpop.f32.mrf.mxu0
      %v3808 = vadd.f32 0.0, %v3807
      %3809 = vmatmul.f32.gmra.mxu0 %v3702
      %v3810 = vpop.f32.mrf.mxu0
      %v3811 = vadd.f32 0.0, %v3810
      %3812 = vmatmul.f32.gmra.mxu0 %v3703
      %v3813 = vpop.f32.mrf.mxu0
      %v3814 = vadd.f32 0.0, %v3813
      %3815 = vmatmul.f32.gmra.mxu0 %v3704
      %v3816 = vpop.f32.mrf.mxu0
      %v3817 = vadd.f32 0.0, %v3816
      %3818 = vmatmul.f32.gmra.mxu0 %v3705
      %v3819 = vpop.f32.mrf.mxu0
      %v3820 = vadd.f32 0.0, %v3819
      %3821 = vmatmul.f32.gmra.mxu0 %v3706
      %v3822 = vpop.f32.mrf.mxu0
      %v3823 = vadd.f32 0.0, %v3822
      %3824 = vmatmul.f32.gmra.mxu0 %v3707
      %v3825 = vpop.f32.mrf.mxu0
      %v3826 = vadd.f32 0.0, %v3825
      %3827 = vmatmul.f32.gmra.mxu0 %v3708
      %v3828 = vpop.f32.mrf.mxu0
      %v3829 = vadd.f32 0.0, %v3828
      %3830 = vmatmul.f32.gmra.mxu0 %v3709
      %v3831 = vpop.f32.mrf.mxu0
      %v3832 = vadd.f32 0.0, %v3831
      %3833 = vmatmul.f32.gmra.mxu0 %v3710
      %v3834 = vpop.f32.mrf.mxu0
      %v3835 = vadd.f32 0.0, %v3834
      %3836 = vmatmul.f32.gmra.mxu0 %v3711
      %v3837 = vpop.f32.mrf.mxu0
      %v3838 = vadd.f32 0.0, %v3837
      %3839 = vmatmul.f32.gmra.mxu0 %v3712
      %v3840 = vpop.f32.mrf.mxu0
      %v3841 = vadd.f32 0.0, %v3840
      %3842 = vdwg.mxu0
      %3843 = vmatpush.msra.mxu0 %v3776
      %3844 = vmatpush.msra.mxu0 %v3773
      %3845 = vmatpush.msra.mxu0 %v3770
      %3846 = vmatpush.msra.mxu0 %v3767
      %3847 = vmatpush.msra.mxu0 %v3764
      %3848 = vmatpush.msra.mxu0 %v3761
      %3849 = vmatpush.msra.mxu0 %v3758
      %3850 = vmatpush.msra.mxu0 %v3755
      %3851 = vmatpush.msra.mxu0 %v3752
      %3852 = vmatpush.msra.mxu0 %v3749
      %3853 = vmatpush.msra.mxu0 %v3746
      %3854 = vmatpush.msra.mxu0 %v3743
      %3855 = vmatpush.msra.mxu0 %v3740
      %3856 = vmatpush.msra.mxu0 %v3737
      %3857 = vmatpush.msra.mxu0 %v3734
      %3858 = vmatpush.msra.mxu0 %v3731
      %3859 = vmatmul.f32.gmra.mxu0 %v3796
      %v3860 = vpop.f32.mrf.mxu0
      %v3861 = vadd.f32 0.0, %v3860
      %3862 = vmatmul.f32.gmra.mxu0 %v3799
      %v3863 = vpop.f32.mrf.mxu0
      %v3864 = vadd.f32 0.0, %v3863
      %3865 = vmatmul.f32.gmra.mxu0 %v3802
      %v3866 = vpop.f32.mrf.mxu0
      %v3867 = vadd.f32 0.0, %v3866
      %3868 = vmatmul.f32.gmra.mxu0 %v3805
      %v3869 = vpop.f32.mrf.mxu0
      %v3870 = vadd.f32 0.0, %v3869
      %3871 = vmatmul.f32.gmra.mxu0 %v3808
      %v3872 = vpop.f32.mrf.mxu0
      %v3873 = vadd.f32 0.0, %v3872
      %3874 = vmatmul.f32.gmra.mxu0 %v3811
      %v3875 = vpop.f32.mrf.mxu0
      %v3876 = vadd.f32 0.0, %v3875
      %3877 = vmatmul.f32.gmra.mxu0 %v3814
      %v3878 = vpop.f32.mrf.mxu0
      %v3879 = vadd.f32 0.0, %v3878
      %3880 = vmatmul.f32.gmra.mxu0 %v3817
      %v3881 = vpop.f32.mrf.mxu0
      %v3882 = vadd.f32 0.0, %v3881
      %3883 = vmatmul.f32.gmra.mxu0 %v3820
      %v3884 = vpop.f32.mrf.mxu0
      %v3885 = vadd.f32 0.0, %v3884
      %3886 = vmatmul.f32.gmra.mxu0 %v3823
      %v3887 = vpop.f32.mrf.mxu0
      %v3888 = vadd.f32 0.0, %v3887
      %3889 = vmatmul.f32.gmra.mxu0 %v3826
      %v3890 = vpop.f32.mrf.mxu0
      %v3891 = vadd.f32 0.0, %v3890
      %3892 = vmatmul.f32.gmra.mxu0 %v3829
      %v3893 = vpop.f32.mrf.mxu0
      %v3894 = vadd.f32 0.0, %v3893
      %3895 = vmatmul.f32.gmra.mxu0 %v3832
      %v3896 = vpop.f32.mrf.mxu0
      %v3897 = vadd.f32 0.0, %v3896
      %3898 = vmatmul.f32.gmra.mxu0 %v3835
      %v3899 = vpop.f32.mrf.mxu0
      %v3900 = vadd.f32 0.0, %v3899
      %3901 = vmatmul.f32.gmra.mxu0 %v3838
      %v3902 = vpop.f32.mrf.mxu0
      %v3903 = vadd.f32 0.0, %v3902
      %3904 = vmatmul.f32.gmra.mxu0 %v3841
      %v3905 = vpop.f32.mrf.mxu0
      %v3906 = vadd.f32 0.0, %v3905
      %3907 = vdwg.mxu0
      %v3908 = vsub.f32 %v649, %v3861
      %v3909 = vsub.f32 %v650, %v3864
      %v3910 = vsub.f32 %v651, %v3867
      %v3911 = vsub.f32 %v652, %v3870
      %v3912 = vsub.f32 %v653, %v3873
      %v3913 = vsub.f32 %v654, %v3876
      %v3914 = vsub.f32 %v655, %v3879
      %v3915 = vsub.f32 %v656, %v3882
      %v3916 = vsub.f32 %v657, %v3885
      %v3917 = vsub.f32 %v658, %v3888
      %v3918 = vsub.f32 %v659, %v3891
      %v3919 = vsub.f32 %v660, %v3894
      %v3920 = vsub.f32 %v661, %v3897
      %v3921 = vsub.f32 %v662, %v3900
      %v3922 = vsub.f32 %v663, %v3903
      %v3923 = vsub.f32 %v664, %v3906
      %v3924 = vmul.f32 %v3908, 0.5
      %v3925 = vmul.f32 %v3909, 0.5
      %v3926 = vmul.f32 %v3910, 0.5
      %v3927 = vmul.f32 %v3911, 0.5
      %v3928 = vmul.f32 %v3912, 0.5
      %v3929 = vmul.f32 %v3913, 0.5
      %v3930 = vmul.f32 %v3914, 0.5
      %v3931 = vmul.f32 %v3915, 0.5
      %v3932 = vmul.f32 %v3916, 0.5
      %v3933 = vmul.f32 %v3917, 0.5
      %v3934 = vmul.f32 %v3918, 0.5
      %v3935 = vmul.f32 %v3919, 0.5
      %v3936 = vmul.f32 %v3920, 0.5
      %v3937 = vmul.f32 %v3921, 0.5
      %v3938 = vmul.f32 %v3922, 0.5
      %v3939 = vmul.f32 %v3923, 0.5
      %3940 = vmatpush.msra.mxu0 %v3939
      %3941 = vmatpush.msra.mxu0 %v3938
      %3942 = vmatpush.msra.mxu0 %v3937
      %3943 = vmatpush.msra.mxu0 %v3936
      %3944 = vmatpush.msra.mxu0 %v3935
      %3945 = vmatpush.msra.mxu0 %v3934
      %3946 = vmatpush.msra.mxu0 %v3933
      %3947 = vmatpush.msra.mxu0 %v3932
      %3948 = vmatpush.msra.mxu0 %v3931
      %3949 = vmatpush.msra.mxu0 %v3930
      %3950 = vmatpush.msra.mxu0 %v3929
      %3951 = vmatpush.msra.mxu0 %v3928
      %3952 = vmatpush.msra.mxu0 %v3927
      %3953 = vmatpush.msra.mxu0 %v3926
      %3954 = vmatpush.msra.mxu0 %v3925
      %3955 = vmatpush.msra.mxu0 %v3924
      %3956 = vmatmul.f32.gmra.mxu0 %v3731
      %v3957 = vpop.f32.mrf.mxu0
      %v3958 = vadd.f32 0.0, %v3957
      %3959 = vmatmul.f32.gmra.mxu0 %v3734
      %v3960 = vpop.f32.mrf.mxu0
      %v3961 = vadd.f32 0.0, %v3960
      %3962 = vmatmul.f32.gmra.mxu0 %v3737
      %v3963 = vpop.f32.mrf.mxu0
      %v3964 = vadd.f32 0.0, %v3963
      %3965 = vmatmul.f32.gmra.mxu0 %v3740
      %v3966 = vpop.f32.mrf.mxu0
      %v3967 = vadd.f32 0.0, %v3966
      %3968 = vmatmul.f32.gmra.mxu0 %v3743
      %v3969 = vpop.f32.mrf.mxu0
      %v3970 = vadd.f32 0.0, %v3969
      %3971 = vmatmul.f32.gmra.mxu0 %v3746
      %v3972 = vpop.f32.mrf.mxu0
      %v3973 = vadd.f32 0.0, %v3972
      %3974 = vmatmul.f32.gmra.mxu0 %v3749
      %v3975 = vpop.f32.mrf.mxu0
      %v3976 = vadd.f32 0.0, %v3975
      %3977 = vmatmul.f32.gmra.mxu0 %v3752
      %v3978 = vpop.f32.mrf.mxu0
      %v3979 = vadd.f32 0.0, %v3978
      %3980 = vmatmul.f32.gmra.mxu0 %v3755
      %v3981 = vpop.f32.mrf.mxu0
      %v3982 = vadd.f32 0.0, %v3981
      %3983 = vmatmul.f32.gmra.mxu0 %v3758
      %v3984 = vpop.f32.mrf.mxu0
      %v3985 = vadd.f32 0.0, %v3984
      %3986 = vmatmul.f32.gmra.mxu0 %v3761
      %v3987 = vpop.f32.mrf.mxu0
      %v3988 = vadd.f32 0.0, %v3987
      %3989 = vmatmul.f32.gmra.mxu0 %v3764
      %v3990 = vpop.f32.mrf.mxu0
      %v3991 = vadd.f32 0.0, %v3990
      %3992 = vmatmul.f32.gmra.mxu0 %v3767
      %v3993 = vpop.f32.mrf.mxu0
      %v3994 = vadd.f32 0.0, %v3993
      %3995 = vmatmul.f32.gmra.mxu0 %v3770
      %v3996 = vpop.f32.mrf.mxu0
      %v3997 = vadd.f32 0.0, %v3996
      %3998 = vmatmul.f32.gmra.mxu0 %v3773
      %v3999 = vpop.f32.mrf.mxu0
      %v4000 = vadd.f32 0.0, %v3999
      %4001 = vmatmul.f32.gmra.mxu0 %v3776
      %v4002 = vpop.f32.mrf.mxu0
      %v4003 = vadd.f32 0.0, %v4002
      %4004 = vdwg.mxu0
      %4005 = vmatpush.msra.mxu0 %v3841
      %4006 = vmatpush.msra.mxu0 %v3838
      %4007 = vmatpush.msra.mxu0 %v3835
      %4008 = vmatpush.msra.mxu0 %v3832
      %4009 = vmatpush.msra.mxu0 %v3829
      %4010 = vmatpush.msra.mxu0 %v3826
      %4011 = vmatpush.msra.mxu0 %v3823
      %4012 = vmatpush.msra.mxu0 %v3820
      %4013 = vmatpush.msra.mxu0 %v3817
      %4014 = vmatpush.msra.mxu0 %v3814
      %4015 = vmatpush.msra.mxu0 %v3811
      %4016 = vmatpush.msra.mxu0 %v3808
      %4017 = vmatpush.msra.mxu0 %v3805
      %4018 = vmatpush.msra.mxu0 %v3802
      %4019 = vmatpush.msra.mxu0 %v3799
      %4020 = vmatpush.msra.mxu0 %v3796
      %4021 = vmatmul.f32.gmra.mxu0 %v3924
      %v4022 = vpop.f32.mrf.mxu0
      %v4023 = vadd.f32 0.0, %v4022
      %4024 = vmatmul.f32.gmra.mxu0 %v3925
      %v4025 = vpop.f32.mrf.mxu0
      %v4026 = vadd.f32 0.0, %v4025
      %4027 = vmatmul.f32.gmra.mxu0 %v3926
      %v4028 = vpop.f32.mrf.mxu0
      %v4029 = vadd.f32 0.0, %v4028
      %4030 = vmatmul.f32.gmra.mxu0 %v3927
      %v4031 = vpop.f32.mrf.mxu0
      %v4032 = vadd.f32 0.0, %v4031
      %4033 = vmatmul.f32.gmra.mxu0 %v3928
      %v4034 = vpop.f32.mrf.mxu0
      %v4035 = vadd.f32 0.0, %v4034
      %4036 = vmatmul.f32.gmra.mxu0 %v3929
      %v4037 = vpop.f32.mrf.mxu0
      %v4038 = vadd.f32 0.0, %v4037
      %4039 = vmatmul.f32.gmra.mxu0 %v3930
      %v4040 = vpop.f32.mrf.mxu0
      %v4041 = vadd.f32 0.0, %v4040
      %4042 = vmatmul.f32.gmra.mxu0 %v3931
      %v4043 = vpop.f32.mrf.mxu0
      %v4044 = vadd.f32 0.0, %v4043
      %4045 = vmatmul.f32.gmra.mxu0 %v3932
      %v4046 = vpop.f32.mrf.mxu0
      %v4047 = vadd.f32 0.0, %v4046
      %4048 = vmatmul.f32.gmra.mxu0 %v3933
      %v4049 = vpop.f32.mrf.mxu0
      %v4050 = vadd.f32 0.0, %v4049
      %4051 = vmatmul.f32.gmra.mxu0 %v3934
      %v4052 = vpop.f32.mrf.mxu0
      %v4053 = vadd.f32 0.0, %v4052
      %4054 = vmatmul.f32.gmra.mxu0 %v3935
      %v4055 = vpop.f32.mrf.mxu0
      %v4056 = vadd.f32 0.0, %v4055
      %4057 = vmatmul.f32.gmra.mxu0 %v3936
      %v4058 = vpop.f32.mrf.mxu0
      %v4059 = vadd.f32 0.0, %v4058
      %4060 = vmatmul.f32.gmra.mxu0 %v3937
      %v4061 = vpop.f32.mrf.mxu0
      %v4062 = vadd.f32 0.0, %v4061
      %4063 = vmatmul.f32.gmra.mxu0 %v3938
      %v4064 = vpop.f32.mrf.mxu0
      %v4065 = vadd.f32 0.0, %v4064
      %4066 = vmatmul.f32.gmra.mxu0 %v3939
      %v4067 = vpop.f32.mrf.mxu0
      %v4068 = vadd.f32 0.0, %v4067
      %4069 = vdwg.mxu0
      %4070 = vmatpush.msra.mxu0 %v4003
      %4071 = vmatpush.msra.mxu0 %v4000
      %4072 = vmatpush.msra.mxu0 %v3997
      %4073 = vmatpush.msra.mxu0 %v3994
      %4074 = vmatpush.msra.mxu0 %v3991
      %4075 = vmatpush.msra.mxu0 %v3988
      %4076 = vmatpush.msra.mxu0 %v3985
      %4077 = vmatpush.msra.mxu0 %v3982
      %4078 = vmatpush.msra.mxu0 %v3979
      %4079 = vmatpush.msra.mxu0 %v3976
      %4080 = vmatpush.msra.mxu0 %v3973
      %4081 = vmatpush.msra.mxu0 %v3970
      %4082 = vmatpush.msra.mxu0 %v3967
      %4083 = vmatpush.msra.mxu0 %v3964
      %4084 = vmatpush.msra.mxu0 %v3961
      %4085 = vmatpush.msra.mxu0 %v3958
      %4086 = vmatmul.f32.gmra.mxu0 %v4023
      %v4087 = vpop.f32.mrf.mxu0
      %v4088 = vadd.f32 0.0, %v4087
      %4089 = vmatmul.f32.gmra.mxu0 %v4026
      %v4090 = vpop.f32.mrf.mxu0
      %v4091 = vadd.f32 0.0, %v4090
      %4092 = vmatmul.f32.gmra.mxu0 %v4029
      %v4093 = vpop.f32.mrf.mxu0
      %v4094 = vadd.f32 0.0, %v4093
      %4095 = vmatmul.f32.gmra.mxu0 %v4032
      %v4096 = vpop.f32.mrf.mxu0
      %v4097 = vadd.f32 0.0, %v4096
      %4098 = vmatmul.f32.gmra.mxu0 %v4035
      %v4099 = vpop.f32.mrf.mxu0
      %v4100 = vadd.f32 0.0, %v4099
      %4101 = vmatmul.f32.gmra.mxu0 %v4038
      %v4102 = vpop.f32.mrf.mxu0
      %v4103 = vadd.f32 0.0, %v4102
      %4104 = vmatmul.f32.gmra.mxu0 %v4041
      %v4105 = vpop.f32.mrf.mxu0
      %v4106 = vadd.f32 0.0, %v4105
      %4107 = vmatmul.f32.gmra.mxu0 %v4044
      %v4108 = vpop.f32.mrf.mxu0
      %v4109 = vadd.f32 0.0, %v4108
      %4110 = vmatmul.f32.gmra.mxu0 %v4047
      %v4111 = vpop.f32.mrf.mxu0
      %v4112 = vadd.f32 0.0, %v4111
      %4113 = vmatmul.f32.gmra.mxu0 %v4050
      %v4114 = vpop.f32.mrf.mxu0
      %v4115 = vadd.f32 0.0, %v4114
      %4116 = vmatmul.f32.gmra.mxu0 %v4053
      %v4117 = vpop.f32.mrf.mxu0
      %v4118 = vadd.f32 0.0, %v4117
      %4119 = vmatmul.f32.gmra.mxu0 %v4056
      %v4120 = vpop.f32.mrf.mxu0
      %v4121 = vadd.f32 0.0, %v4120
      %4122 = vmatmul.f32.gmra.mxu0 %v4059
      %v4123 = vpop.f32.mrf.mxu0
      %v4124 = vadd.f32 0.0, %v4123
      %4125 = vmatmul.f32.gmra.mxu0 %v4062
      %v4126 = vpop.f32.mrf.mxu0
      %v4127 = vadd.f32 0.0, %v4126
      %4128 = vmatmul.f32.gmra.mxu0 %v4065
      %v4129 = vpop.f32.mrf.mxu0
      %v4130 = vadd.f32 0.0, %v4129
      %4131 = vmatmul.f32.gmra.mxu0 %v4068
      %v4132 = vpop.f32.mrf.mxu0
      %v4133 = vadd.f32 0.0, %v4132
      %4134 = vdwg.mxu0
      %v4135 = vsub.f32 %v649, %v4088
      %v4136 = vsub.f32 %v650, %v4091
      %v4137 = vsub.f32 %v651, %v4094
      %v4138 = vsub.f32 %v652, %v4097
      %v4139 = vsub.f32 %v653, %v4100
      %v4140 = vsub.f32 %v654, %v4103
      %v4141 = vsub.f32 %v655, %v4106
      %v4142 = vsub.f32 %v656, %v4109
      %v4143 = vsub.f32 %v657, %v4112
      %v4144 = vsub.f32 %v658, %v4115
      %v4145 = vsub.f32 %v659, %v4118
      %v4146 = vsub.f32 %v660, %v4121
      %v4147 = vsub.f32 %v661, %v4124
      %v4148 = vsub.f32 %v662, %v4127
      %v4149 = vsub.f32 %v663, %v4130
      %v4150 = vsub.f32 %v664, %v4133
      %v4151 = vmul.f32 %v4135, 0.5
      %v4152 = vmul.f32 %v4136, 0.5
      %v4153 = vmul.f32 %v4137, 0.5
      %v4154 = vmul.f32 %v4138, 0.5
      %v4155 = vmul.f32 %v4139, 0.5
      %v4156 = vmul.f32 %v4140, 0.5
      %v4157 = vmul.f32 %v4141, 0.5
      %v4158 = vmul.f32 %v4142, 0.5
      %v4159 = vmul.f32 %v4143, 0.5
      %v4160 = vmul.f32 %v4144, 0.5
      %v4161 = vmul.f32 %v4145, 0.5
      %v4162 = vmul.f32 %v4146, 0.5
      %v4163 = vmul.f32 %v4147, 0.5
      %v4164 = vmul.f32 %v4148, 0.5
      %v4165 = vmul.f32 %v4149, 0.5
      %v4166 = vmul.f32 %v4150, 0.5
      %4167 = vmatpush.msra.mxu0 %v4166
      %4168 = vmatpush.msra.mxu0 %v4165
      %4169 = vmatpush.msra.mxu0 %v4164
      %4170 = vmatpush.msra.mxu0 %v4163
      %4171 = vmatpush.msra.mxu0 %v4162
      %4172 = vmatpush.msra.mxu0 %v4161
      %4173 = vmatpush.msra.mxu0 %v4160
      %4174 = vmatpush.msra.mxu0 %v4159
      %4175 = vmatpush.msra.mxu0 %v4158
      %4176 = vmatpush.msra.mxu0 %v4157
      %4177 = vmatpush.msra.mxu0 %v4156
      %4178 = vmatpush.msra.mxu0 %v4155
      %4179 = vmatpush.msra.mxu0 %v4154
      %4180 = vmatpush.msra.mxu0 %v4153
      %4181 = vmatpush.msra.mxu0 %v4152
      %4182 = vmatpush.msra.mxu0 %v4151
      %4183 = vmatmul.f32.gmra.mxu0 %v3958
      %v4184 = vpop.f32.mrf.mxu0
      %v4185 = vadd.f32 0.0, %v4184
      %4186 = vmatmul.f32.gmra.mxu0 %v3961
      %v4187 = vpop.f32.mrf.mxu0
      %v4188 = vadd.f32 0.0, %v4187
      %4189 = vmatmul.f32.gmra.mxu0 %v3964
      %v4190 = vpop.f32.mrf.mxu0
      %v4191 = vadd.f32 0.0, %v4190
      %4192 = vmatmul.f32.gmra.mxu0 %v3967
      %v4193 = vpop.f32.mrf.mxu0
      %v4194 = vadd.f32 0.0, %v4193
      %4195 = vmatmul.f32.gmra.mxu0 %v3970
      %v4196 = vpop.f32.mrf.mxu0
      %v4197 = vadd.f32 0.0, %v4196
      %4198 = vmatmul.f32.gmra.mxu0 %v3973
      %v4199 = vpop.f32.mrf.mxu0
      %v4200 = vadd.f32 0.0, %v4199
      %4201 = vmatmul.f32.gmra.mxu0 %v3976
      %v4202 = vpop.f32.mrf.mxu0
      %v4203 = vadd.f32 0.0, %v4202
      %4204 = vmatmul.f32.gmra.mxu0 %v3979
      %v4205 = vpop.f32.mrf.mxu0
      %v4206 = vadd.f32 0.0, %v4205
      %4207 = vmatmul.f32.gmra.mxu0 %v3982
      %v4208 = vpop.f32.mrf.mxu0
      %v4209 = vadd.f32 0.0, %v4208
      %4210 = vmatmul.f32.gmra.mxu0 %v3985
      %v4211 = vpop.f32.mrf.mxu0
      %v4212 = vadd.f32 0.0, %v4211
      %4213 = vmatmul.f32.gmra.mxu0 %v3988
      %v4214 = vpop.f32.mrf.mxu0
      %v4215 = vadd.f32 0.0, %v4214
      %4216 = vmatmul.f32.gmra.mxu0 %v3991
      %v4217 = vpop.f32.mrf.mxu0
      %v4218 = vadd.f32 0.0, %v4217
      %4219 = vmatmul.f32.gmra.mxu0 %v3994
      %v4220 = vpop.f32.mrf.mxu0
      %v4221 = vadd.f32 0.0, %v4220
      %4222 = vmatmul.f32.gmra.mxu0 %v3997
      %v4223 = vpop.f32.mrf.mxu0
      %v4224 = vadd.f32 0.0, %v4223
      %4225 = vmatmul.f32.gmra.mxu0 %v4000
      %v4226 = vpop.f32.mrf.mxu0
      %v4227 = vadd.f32 0.0, %v4226
      %4228 = vmatmul.f32.gmra.mxu0 %v4003
      %v4229 = vpop.f32.mrf.mxu0
      %v4230 = vadd.f32 0.0, %v4229
      %4231 = vdwg.mxu0
      %v4232 = vstv %s617
      %v4233 = vrsqrt.pop %v4232
      %v4234 = vmul.f32 %v4233, %v4232
      %v4235 = vmul.f32 %v4234, %v4233
      %v4236 = vmul.f32 0.5, %v4235
      %v4237 = vsub.f32 1.5, %v4236
      %v4238 = vmul.f32 %v4233, %v4237
      %v4239 = vmul.f32 %v4232, %v4238
      %vm4240 = vcmp.eq.f32.partialorder %v4232, inf
      %v4241 = vsel %vm4240, %v4232, %v4239
      %vm4242 = vcmp.eq.f32.partialorder %v4232, 0.0
      %v4243 = vand.u32 %v4232, 2147483648
      %v4244 = vsel %vm4242, %v4243, %v4241
      %s4245 = vtos %v4244
      %v4246 = vstv %s4245
      %v4247 = vmul.f32 %v4185, %v4246
      %v4248 = vmul.f32 %v4188, %v4246
      %v4249 = vmul.f32 %v4191, %v4246
      %v4250 = vmul.f32 %v4194, %v4246
      %v4251 = vmul.f32 %v4197, %v4246
      %v4252 = vmul.f32 %v4200, %v4246
      %v4253 = vmul.f32 %v4203, %v4246
      %v4254 = vmul.f32 %v4206, %v4246
      %v4255 = vmul.f32 %v4209, %v4246
      %v4256 = vmul.f32 %v4212, %v4246
      %v4257 = vmul.f32 %v4215, %v4246
      %v4258 = vmul.f32 %v4218, %v4246
      %v4259 = vmul.f32 %v4221, %v4246
      %v4260 = vmul.f32 %v4224, %v4246
      %v4261 = vmul.f32 %v4227, %v4246
      %v4262 = vmul.f32 %v4230, %v4246
      %v4263 = vmul.f32 %v4247, %v321
      %v4264 = vmul.f32 %v4248, %v322
      %v4265 = vmul.f32 %v4249, %v323
      %v4266 = vmul.f32 %v4250, %v324
      %v4267 = vmul.f32 %v4251, %v325
      %v4268 = vmul.f32 %v4252, %v326
      %v4269 = vmul.f32 %v4253, %v327
      %v4270 = vmul.f32 %v4254, %v328
      %v4271 = vmul.f32 %v4255, %v329
      %v4272 = vmul.f32 %v4256, %v330
      %v4273 = vmul.f32 %v4257, %v331
      %v4274 = vmul.f32 %v4258, %v332
      %v4275 = vmul.f32 %v4259, %v333
      %v4276 = vmul.f32 %v4260, %v334
      %v4277 = vmul.f32 %v4261, %v335
      %v4278 = vmul.f32 %v4262, %v336
      %v4279 = vadd.f32 %v4263, %v4264
      %v4280 = vadd.f32 %v4279, %v4265
      %v4281 = vadd.f32 %v4280, %v4266
      %v4282 = vadd.f32 %v4281, %v4267
      %v4283 = vadd.f32 %v4282, %v4268
      %v4284 = vadd.f32 %v4283, %v4269
      %v4285 = vadd.f32 %v4284, %v4270
      %v4286 = vadd.f32 %v4285, %v4271
      %v4287 = vadd.f32 %v4286, %v4272
      %v4288 = vadd.f32 %v4287, %v4273
      %v4289 = vadd.f32 %v4288, %v4274
      %v4290 = vadd.f32 %v4289, %v4275
      %v4291 = vadd.f32 %v4290, %v4276
      %v4292 = vadd.f32 %v4291, %v4277
      %v4293 = vadd.f32 %v4292, %v4278
      %v4294 = vrot.slane %v4293, 4
      %v4295 = vadd.f32 %v4293, %v4294
      %v4296 = vrot.slane %v4295, 2
      %v4297 = vadd.f32 %v4295, %v4296
      %v4298 = vrot.slane %v4297, 1
      %v4299 = vadd.f32 %v4297, %v4298
      %v4300 = vld [vmem:[%s252] sm:$0x1]
      %v4301 = vsub.f32 %v352, %v4300
      %v4302 = vmul.f32 %v4301, %v4301
      %v4303 = vadd.f32 %v4302, %v361
      %v4304 = vld [vmem:[%s257] sm:$0x1]
      %v4305 = vadd.f32 %v4303, %v4304
      %v4306 = vmul.f32 %v4299, 2.0
      %v4307 = vsub.f32 %v4305, %v4306
      %4308 = vst [vmem:[%s268] sm:$0x1] %v4307
      %p4309 = scmp.lt.s32.totalorder %s24, 1
      %s4310 = scalar_select %p4309, %s24, 1
      %s4311 = scalar_lea.vmem %s5, %s4310
      // Predicated region
      $region37: #{custom_clip_forward.7} parent=35 // pred_check
        %p4312 = pneg %p152
      $region38: #{custom_clip_forward.7} parent=35 // pred_check_branch
        %4314 = sbr.rel (%p4312) target = $region40
      $region39: #{custom_clip_forward.7} parent=35 // pred_region
        _
      $region40: #{custom_clip_forward.7} parent=35 // pred_fallthru
        _
    $region36: #{custom_clip_forward.7} parent=5 // pred_fallthru
      _
    %p4315 = scmp.le.s32.totalorder 2, %s19
    // Predicated region
    $region41: #{custom_clip_forward.7} parent=5 // pred_check
      %p4316 = pneg %p4315
    $region42: #{custom_clip_forward.7} parent=5 // pred_check_branch
      %4318 = sbr.rel (%p4316) target = $region44
    $region43: #{custom_clip_forward.7} parent=5 // pred_region
      %s4319 = ssub.s32 %s19, 2
      // Predicated region
      $region45: #{custom_clip_forward.7} parent=43 // pred_check
        %p4320 = pneg %p158
      $region46: #{custom_clip_forward.7} parent=43 // pred_check_branch
        %4322 = sbr.rel (%p4320) target = $region48
      $region47: #{custom_clip_forward.7} parent=43 // pred_region
        %p4323 = scmp.lt.s32.totalorder %s25, 1
        %s4324 = scalar_select %p4323, %s25, 1
        %s4325 = scalar_lea.vmem %s5, %s4324
      $region48: #{custom_clip_forward.7} parent=43 // pred_fallthru
        _
    $region44: #{custom_clip_forward.7} parent=5 // pred_fallthru
      _
  $region6: #{custom_clip_forward.7} parent=0 // loop_footer
    %s23 = sadd.s32 1, %s19
  $region7: #{custom_clip_forward.7} parent=0 // loop_footer_branch
    %18 = sbr.rel target = $region3
  $region8: #{custom_clip_forward.7} parent=0 // loop_exit
    _

// kernel: custom_clip_forward.6
$region0: #{custom_clip_forward.6}
  #allocation0 [shape = 'u32[]', space=smem, size = 0x4, offset = 0x4, fixed_abs, tag = 'smem constant byte address 0x4 - core index']
  #allocation1 [shape = 'u32[72,128]{1,0:T(1,128)}', space=vmem, size = 0x9000, scoped, tag = 'internal scratch']
  %s0 = inlined_call_operand.vmem [shape: f32[4,3,128], index: 0, kind: input, shape index: {}]
  %s1 = inlined_call_operand.vmem [shape: f32[4,1,128], index: 1, kind: output, shape index: {0}]
  %s2 = inlined_call_operand.vmem [shape: f32[4,1,128], index: 2, kind: output, shape index: {1}]
  %s3 = inlined_call_operand.vmem [shape: f32[4,128,128], index: 3, kind: output, shape index: {2}]
  %4 = xla_tuple %s1, %s2, %s3
  %s5 = sld [smem:[#allocation0]]
  $region53: #{custom_clip_forward.6} parent=0
    _
  %s7 = ssub.s32 1, %s5
  %s8 = scalar_select 0, %s7, %s5
  loop: start=0, step=1, limit=6
  $region2: #{custom_clip_forward.6} parent=0 // loop_pre_header
    _
  $region3: #{custom_clip_forward.6} parent=0 // loop_header
    %s10 = sphi 0, %s14
    %p11 = scmp.ge.s32.totalorder %s10, 6
    %s20 = sphi 0, %s22
    %s23 = sphi 0, %s20
    %s24 = sphi 0, %s23
    %s40 = sphi 0, %s24
    %s46 = sphi 0, %s48
    %s49 = sphi 0, %s46
    %s50 = sphi 0, %s49
    %s66 = sphi 0, %s50
    %s72 = sphi 0, %s74
    %s75 = sphi 0, %s72
    %s76 = sphi 0, %s75
    %s92 = sphi 0, %s76
    %s98 = sphi 0, %s100
    %s101 = sphi 0, %s98
    %s102 = sphi 0, %s101
    %s118 = sphi 0, %s102
  $region4: #{custom_clip_forward.6} parent=0 // loop_header_branch
    %13 = sbr.rel (%p11) target = $region8
  $region5: #{custom_clip_forward.6} parent=0 // loop_body
    %s15 = ssub.s32 %s10, 1
    %s16 = ssub.s32 %s10, 2
    %s17 = sadd.s32 %s10, 1
    %s18 = ssub.s32 %s10, %s17
    %p19 = scmp.eq.s32.totalorder %s18, 0
    %s21 = sadd.s32 %s20, 1
    %s22 = scalar_select %p19, %s20, %s21
    %p25 = pneg %p19
    %p26 = scmp.eq.s32.totalorder %s10, 3
    %p27 = por %p25, %p26
    %p28 = scmp.ne.s32.totalorder %s20, %s23
    %p29 = scmp.eq.s32.totalorder %s10, 0
    %p30 = por %p28, %p29
    %p31 = scmp.ne.s32.totalorder %s20, %s23
    %p32 = scmp.eq.s32.totalorder %s15, 3
    %p33 = por %p31, %p32
    %p34 = scmp.ne.s32.totalorder %s23, %s24
    %p35 = scmp.eq.s32.totalorder %s15, 0
    %p36 = por %p34, %p35
    %p37 = scmp.ne.s32.totalorder %s23, %s24
    %p38 = scmp.eq.s32.totalorder %s16, 3
    %p39 = por %p37, %p38
    %p41 = scmp.ne.s32.totalorder %s24, %s40
    %p42 = scmp.eq.s32.totalorder %s16, 0
    %p43 = por %p41, %p42
    %s44 = ssub.s32 %s10, %s17
    %p45 = scmp.eq.s32.totalorder %s44, 0
    %s47 = sadd.s32 %s46, 1
    %s48 = scalar_select %p45, %s46, %s47
    %p51 = pneg %p45
    %p52 = scmp.eq.s32.totalorder %s10, 3
    %p53 = por %p51, %p52
    %p54 = scmp.ne.s32.totalorder %s46, %s49
    %p55 = scmp.eq.s32.totalorder %s10, 0
    %p56 = por %p54, %p55
    %p57 = scmp.ne.s32.totalorder %s46, %s49
    %p58 = scmp.eq.s32.totalorder %s15, 3
    %p59 = por %p57, %p58
    %p60 = scmp.ne.s32.totalorder %s49, %s50
    %p61 = scmp.eq.s32.totalorder %s15, 0
    %p62 = por %p60, %p61
    %p63 = scmp.ne.s32.totalorder %s49, %s50
    %p64 = scmp.eq.s32.totalorder %s16, 3
    %p65 = por %p63, %p64
    %p67 = scmp.ne.s32.totalorder %s50, %s66
    %p68 = scmp.eq.s32.totalorder %s16, 0
    %p69 = por %p67, %p68
    %s70 = ssub.s32 %s10, %s17
    %p71 = scmp.eq.s32.totalorder %s70, 0
    %s73 = sadd.s32 %s72, 1
    %s74 = scalar_select %p71, %s72, %s73
    %p77 = pneg %p71
    %p78 = scmp.eq.s32.totalorder %s10, 3
    %p79 = por %p77, %p78
    %p80 = scmp.ne.s32.totalorder %s72, %s75
    %p81 = scmp.eq.s32.totalorder %s10, 0
    %p82 = por %p80, %p81
    %p83 = scmp.ne.s32.totalorder %s72, %s75
    %p84 = scmp.eq.s32.totalorder %s15, 3
    %p85 = por %p83, %p84
    %p86 = scmp.ne.s32.totalorder %s75, %s76
    %p87 = scmp.eq.s32.totalorder %s15, 0
    %p88 = por %p86, %p87
    %p89 = scmp.ne.s32.totalorder %s75, %s76
    %p90 = scmp.eq.s32.totalorder %s16, 3
    %p91 = por %p89, %p90
    %p93 = scmp.ne.s32.totalorder %s76, %s92
    %p94 = scmp.eq.s32.totalorder %s16, 0
    %p95 = por %p93, %p94
    %s96 = ssub.s32 %s10, %s17
    %p97 = scmp.eq.s32.totalorder %s96, 0
    %s99 = sadd.s32 %s98, 1
    %s100 = scalar_select %p97, %s98, %s99
    %p103 = pneg %p97
    %p104 = scmp.eq.s32.totalorder %s10, 3
    %p105 = por %p103, %p104
    %p106 = scmp.ne.s32.totalorder %s98, %s101
    %p107 = scmp.eq.s32.totalorder %s10, 0
    %p108 = por %p106, %p107
    %p109 = scmp.ne.s32.totalorder %s98, %s101
    %p110 = scmp.eq.s32.totalorder %s15, 3
    %p111 = por %p109, %p110
    %p112 = scmp.ne.s32.totalorder %s101, %s102
    %p113 = scmp.eq.s32.totalorder %s15, 0
    %p114 = por %p112, %p113
    %p115 = scmp.ne.s32.totalorder %s101, %s102
    %p116 = scmp.eq.s32.totalorder %s16, 3
    %p117 = por %p115, %p116
    %p119 = scmp.ne.s32.totalorder %s102, %s118
    %p120 = scmp.eq.s32.totalorder %s16, 0
    %p121 = por %p119, %p120
    %p122 = scmp.le.s32.totalorder 1, %s10
    %p123 = scmp.lt.s32.totalorder %s10, 5
    %p124 = pnand %p122, %p123
    %p125 = pneg %p124
    // Predicated region
    $region9: #{custom_clip_forward.6} parent=5 // pred_check
      _
    $region10: #{custom_clip_forward.6} parent=5 // pred_check_branch
      %127 = sbr.rel (%p124) target = $region12
    $region11: #{custom_clip_forward.6} parent=5 // pred_region
      %s128 = ssub.s32 %s10, 1
    $region12: #{custom_clip_forward.6} parent=5 // pred_fallthru
      _
    %p129 = scmp.lt.s32.totalorder %s10, 4
    // Predicated region
    $region13: #{custom_clip_forward.6} parent=5 // pred_check
      %p130 = pneg %p129
    $region14: #{custom_clip_forward.6} parent=5 // pred_check_branch
      %132 = sbr.rel (%p130) target = $region16
    $region15: #{custom_clip_forward.6} parent=5 // pred_region
      // Predicated region
      $region17: #{custom_clip_forward.6} parent=15 // pred_check
        %p133 = pneg %p30
      $region18: #{custom_clip_forward.6} parent=15 // pred_check_branch
        %135 = sbr.rel (%p133) target = $region20
      $region19: #{custom_clip_forward.6} parent=15 // pred_region
        %p136 = scmp.lt.s32.totalorder %s10, 3
        %s137 = scalar_select %p136, %s10, 3
        %s138 = smul.addr %s137, 4
        %s139 = scalar_lea.vmem %s0, %s138
      $region20: #{custom_clip_forward.6} parent=15 // pred_fallthru
        _
    $region16: #{custom_clip_forward.6} parent=5 // pred_fallthru
      _
    %p140 = scmp.le.s32.totalorder 1, %s10
    %p141 = scmp.lt.s32.totalorder %s10, 5
    %p142 = pnand %p140, %p141
    %p143 = pneg %p142
    // Predicated region
    $region21: #{custom_clip_forward.6} parent=5 // pred_check
      _
    $region22: #{custom_clip_forward.6} parent=5 // pred_check_branch
      %145 = sbr.rel (%p142) target = $region24
    $region23: #{custom_clip_forward.6} parent=5 // pred_region
      %s146 = ssub.s32 %s10, 1
      %p147 = scmp.lt.s32.totalorder %s15, 3
      %s148 = scalar_select %p147, %s15, 3
      %s149 = smul.addr %s148, 4
      %s150 = scalar_lea.vmem %s0, %s149
      %p151 = pneg %p36
      %p152 = pneg %p33
      %p153 = pneg %p62
      %p154 = pneg %p59
      %p155 = scmp.lt.s32.totalorder %s15, 3
      %s156 = scalar_select %p155, %s15, 3
      %s157 = scalar_lea.vmem %s1, %s156
      %p158 = pneg %p88
      %p159 = pneg %p85
      %p160 = scmp.lt.s32.totalorder %s15, 3
      %s161 = scalar_select %p160, %s15, 3
      %s162 = scalar_lea.vmem %s2, %s161
      %p163 = pneg %p114
      %p164 = pneg %p111
      %p165 = scmp.lt.s32.totalorder %s15, 3
      %s166 = scalar_select %p165, %s15, 3
      %s167 = smul.addr %s166, 16
      %s168 = smul.addr %s167, 8
      %s169 = scalar_lea.vmem %s3, %s168
      %p170 = scmp.lt.s32.totalorder %s15, 3
      %s171 = scalar_select %p170, %s15, 3
      %s172 = smul.addr %s171, 4
      %s173 = scalar_lea.vmem %s0, %s172
      %p174 = scmp.lt.s32.totalorder %s15, 3
      %s175 = scalar_select %p174, %s15, 3
      %s176 = scalar_lea.vmem %s1, %s175
      %p177 = scmp.lt.s32.totalorder %s15, 3
      %s178 = scalar_select %p177, %s15, 3
      %s179 = scalar_lea.vmem %s2, %s178
      %p180 = scmp.lt.s32.totalorder %s15, 3
      %s181 = scalar_select %p180, %s15, 3
      %s182 = smul.addr %s181, 16
      %s183 = smul.addr %s182, 8
      %s184 = scalar_lea.vmem %s3, %s183
      %v185 = vld [vmem:[%s173] sm:$0x7]
      %vm186 = vcmask 1042432
      %v187 = vsel %vm186, %v185, 0.0
      %v188 = vrot.slane %v187, 4
      %v189 = vadd.f32 %v187, %v188
      %v190 = vrot.slane %v189, 2
      %v191 = vadd.f32 %v189, %v190
      %v192 = vrot.slane %v191, 1
      %v193 = vadd.f32 %v191, %v192
      %v194 = vrcp.pop 3.0
      %v195 = vmul.f32 3.0, %v194
      %v196 = vsub.f32 1.0, %v195
      %v197 = vmul.f32 %v194, %v196
      %v198 = vadd.f32 %v194, %v197
      %vm199 = vweird.f32 %v194
      %v200 = vsel %vm199, %v194, %v198
      %v201 = vmul.f32 %v193, %v200
      %v202 = vsub.f32 %v185, %v201
      %v203 = vmul.f32 %v202, 0.70710677
      %v204 = vlaneseq
      %v205 = vshrl.u32 %v204, 7
      %v206 = vadd.s32 %v205, 8
      %v207 = vadd.s32 %v205, 16
      %v208 = vadd.s32 %v205, 24
      %v209 = vadd.s32 %v205, 32
      %v210 = vadd.s32 %v205, 40
      %v211 = vadd.s32 %v205, 48
      %v212 = vadd.s32 %v205, 56
      %v213 = vadd.s32 %v205, 64
      %v214 = vadd.s32 %v205, 72
      %v215 = vadd.s32 %v205, 80
      %v216 = vadd.s32 %v205, 88
      %v217 = vadd.s32 %v205, 96
      %v218 = vadd.s32 %v205, 104
      %v219 = vadd.s32 %v205, 112
      %v220 = vadd.s32 %v205, 120
      %v221 = vlaneseq
      %v222 = vand.u32 %v221, 127
      %vm223 = vcmp.eq.s32.totalorder %v205, %v222
      %vm224 = vcmp.eq.s32.totalorder %v206, %v222
      %vm225 = vcmp.eq.s32.totalorder %v207, %v222
      %vm226 = vcmp.eq.s32.totalorder %v208, %v222
      %vm227 = vcmp.eq.s32.totalorder %v209, %v222
      %vm228 = vcmp.eq.s32.totalorder %v210, %v222
      %vm229 = vcmp.eq.s32.totalorder %v211, %v222
      %vm230 = vcmp.eq.s32.totalorder %v212, %v222
      %vm231 = vcmp.eq.s32.totalorder %v213, %v222
      %vm232 = vcmp.eq.s32.totalorder %v214, %v222
      %vm233 = vcmp.eq.s32.totalorder %v215, %v222
      %vm234 = vcmp.eq.s32.totalorder %v216, %v222
      %vm235 = vcmp.eq.s32.totalorder %v217, %v222
      %vm236 = vcmp.eq.s32.totalorder %v218, %v222
      %vm237 = vcmp.eq.s32.totalorder %v219, %v222
      %vm238 = vcmp.eq.s32.totalorder %v220, %v222
      %v239 = vsel %vm223, 1, 0
      %v240 = vsel %vm224, 1, 0
      %v241 = vsel %vm225, 1, 0
      %v242 = vsel %vm226, 1, 0
      %v243 = vsel %vm227, 1, 0
      %v244 = vsel %vm228, 1, 0
      %v245 = vsel %vm229, 1, 0
      %v246 = vsel %vm230, 1, 0
      %v247 = vsel %vm231, 1, 0
      %v248 = vsel %vm232, 1, 0
      %v249 = vsel %vm233, 1, 0
      %v250 = vsel %vm234, 1, 0
      %v251 = vsel %vm235, 1, 0
      %v252 = vsel %vm236, 1, 0
      %v253 = vsel %vm237, 1, 0
      %v254 = vsel %vm238, 1, 0
      %v255 = vcvt.s32.f32 %v239
      %v256 = vcvt.s32.f32 %v240
      %v257 = vcvt.s32.f32 %v241
      %v258 = vcvt.s32.f32 %v242
      %v259 = vcvt.s32.f32 %v243
      %v260 = vcvt.s32.f32 %v244
      %v261 = vcvt.s32.f32 %v245
      %v262 = vcvt.s32.f32 %v246
      %v263 = vcvt.s32.f32 %v247
      %v264 = vcvt.s32.f32 %v248
      %v265 = vcvt.s32.f32 %v249
      %v266 = vcvt.s32.f32 %v250
      %v267 = vcvt.s32.f32 %v251
      %v268 = vcvt.s32.f32 %v252
      %v269 = vcvt.s32.f32 %v253
      %v270 = vcvt.s32.f32 %v254
      %271 = vst [vmem:[%s176] sm:$0x1] %v201
      %v272 = vmul.f32 %v203, %v203
      %v273 = vsel %vm186, %v272, 0.0
      %v274 = vrot.slane %v273, 4
      %v275 = vadd.f32 %v273, %v274
      %v276 = vrot.slane %v275, 2
      %v277 = vadd.f32 %v275, %v276
      %v278 = vrot.slane %v277, 1
      %v279 = vadd.f32 %v277, %v278
      %280 = vst [vmem:[%s179] sm:$0x1] %v279
      %v281 = vmul.f32 %v255, 1e-07
      %v282 = vmul.f32 %v256, 1e-07
      %v283 = vmul.f32 %v257, 1e-07
      %v284 = vmul.f32 %v258, 1e-07
      %v285 = vmul.f32 %v259, 1e-07
      %v286 = vmul.f32 %v260, 1e-07
      %v287 = vmul.f32 %v261, 1e-07
      %v288 = vmul.f32 %v262, 1e-07
      %v289 = vmul.f32 %v263, 1e-07
      %v290 = vmul.f32 %v264, 1e-07
      %v291 = vmul.f32 %v265, 1e-07
      %v292 = vmul.f32 %v266, 1e-07
      %v293 = vmul.f32 %v267, 1e-07
      %v294 = vmul.f32 %v268, 1e-07
      %v295 = vmul.f32 %v269, 1e-07
      %v296 = vmul.f32 %v270, 1e-07
      %297 = vxpose.xlu0.b32.start [1/16] %v203, 128
      %298 = vxpose.xlu0.b32.cont [2/16] 0.0, 128
      %299 = vxpose.xlu0.b32.cont [3/16] 0.0, 128
      %300 = vxpose.xlu0.b32.cont [4/16] 0.0, 128
      %301 = vxpose.xlu0.b32.cont [5/16] 0.0, 128
      %302 = vxpose.xlu0.b32.cont [6/16] 0.0, 128
      %303 = vxpose.xlu0.b32.cont [7/16] 0.0, 128
      %304 = vxpose.xlu0.b32.cont [8/16] 0.0, 128
      %305 = vxpose.xlu0.b32.cont [9/16] 0.0, 128
      %306 = vxpose.xlu0.b32.cont [10/16] 0.0, 128
      %307 = vxpose.xlu0.b32.cont [11/16] 0.0, 128
      %308 = vxpose.xlu0.b32.cont [12/16] 0.0, 128
      %309 = vxpose.xlu0.b32.cont [13/16] 0.0, 128
      %310 = vxpose.xlu0.b32.cont [14/16] 0.0, 128
      %311 = vxpose.xlu0.b32.cont [15/16] 0.0, 128
      %312 = vxpose.xlu0.b32.end [16/16] 0.0, 128
      %v313 = vpop.trf.xlu0
      %v314 = vpop.trf.xlu0
      %v315 = vpop.trf.xlu0
      %v316 = vpop.trf.xlu0
      %v317 = vpop.trf.xlu0
      %v318 = vpop.trf.xlu0
      %v319 = vpop.trf.xlu0
      %v320 = vpop.trf.xlu0
      %v321 = vpop.trf.xlu0
      %v322 = vpop.trf.xlu0
      %v323 = vpop.trf.xlu0
      %v324 = vpop.trf.xlu0
      %v325 = vpop.trf.xlu0
      %v326 = vpop.trf.xlu0
      %v327 = vpop.trf.xlu0
      %v328 = vpop.trf.xlu0
      %vm329 = vcmask 23552
      %v331 = vsel %vm329, %v313, 0
      %v334 = vsel %vm329, %v314, 0
      %v337 = vsel %vm329, %v315, 0
      %v340 = vsel %vm329, %v316, 0
      %v343 = vsel %vm329, %v317, 0
      %v346 = vsel %vm329, %v318, 0
      %v349 = vsel %vm329, %v319, 0
      %v352 = vsel %vm329, %v320, 0
      %v355 = vsel %vm329, %v321, 0
      %v358 = vsel %vm329, %v322, 0
      %v361 = vsel %vm329, %v323, 0
      %v364 = vsel %vm329, %v324, 0
      %v367 = vsel %vm329, %v325, 0
      %v370 = vsel %vm329, %v326, 0
      %v373 = vsel %vm329, %v327, 0
      %v376 = vsel %vm329, %v328, 0
      %v379 = vsel %vm186, %v203, 0
      %381 = vmatpush.msra.mxu0 0.0
      %382 = vmatpush.msra.mxu0 0.0
      %383 = vmatpush.msra.mxu0 0.0
      %384 = vmatpush.msra.mxu0 0.0
      %385 = vmatpush.msra.mxu0 0.0
      %386 = vmatpush.msra.mxu0 0.0
      %387 = vmatpush.msra.mxu0 0.0
      %388 = vmatpush.msra.mxu0 0.0
      %389 = vmatpush.msra.mxu0 0.0
      %390 = vmatpush.msra.mxu0 0.0
      %391 = vmatpush.msra.mxu0 0.0
      %392 = vmatpush.msra.mxu0 0.0
      %393 = vmatpush.msra.mxu0 0.0
      %394 = vmatpush.msra.mxu0 0.0
      %395 = vmatpush.msra.mxu0 0.0
      %396 = vmatpush.msra.mxu0 %v379
      %397 = vmatmul.f32.gmra.mxu0 %v331
      %v398 = vpop.f32.mrf.mxu0
      %v399 = vadd.f32 %v281, %v398
      %400 = vmatmul.f32.gmra.mxu0 %v334
      %v401 = vpop.f32.mrf.mxu0
      %v402 = vadd.f32 %v282, %v401
      %403 = vmatmul.f32.gmra.mxu0 %v337
      %v404 = vpop.f32.mrf.mxu0
      %v405 = vadd.f32 %v283, %v404
      %406 = vmatmul.f32.gmra.mxu0 %v340
      %v407 = vpop.f32.mrf.mxu0
      %v408 = vadd.f32 %v284, %v407
      %409 = vmatmul.f32.gmra.mxu0 %v343
      %v410 = vpop.f32.mrf.mxu0
      %v411 = vadd.f32 %v285, %v410
      %412 = vmatmul.f32.gmra.mxu0 %v346
      %v413 = vpop.f32.mrf.mxu0
      %v414 = vadd.f32 %v286, %v413
      %415 = vmatmul.f32.gmra.mxu0 %v349
      %v416 = vpop.f32.mrf.mxu0
      %v417 = vadd.f32 %v287, %v416
      %418 = vmatmul.f32.gmra.mxu0 %v352
      %v419 = vpop.f32.mrf.mxu0
      %v420 = vadd.f32 %v288, %v419
      %421 = vmatmul.f32.gmra.mxu0 %v355
      %v422 = vpop.f32.mrf.mxu0
      %v423 = vadd.f32 %v289, %v422
      %424 = vmatmul.f32.gmra.mxu0 %v358
      %v425 = vpop.f32.mrf.mxu0
      %v426 = vadd.f32 %v290, %v425
      %427 = vmatmul.f32.gmra.mxu0 %v361
      %v428 = vpop.f32.mrf.mxu0
      %v429 = vadd.f32 %v291, %v428
      %430 = vmatmul.f32.gmra.mxu0 %v364
      %v431 = vpop.f32.mrf.mxu0
      %v432 = vadd.f32 %v292, %v431
      %433 = vmatmul.f32.gmra.mxu0 %v367
      %v434 = vpop.f32.mrf.mxu0
      %v435 = vadd.f32 %v293, %v434
      %436 = vmatmul.f32.gmra.mxu0 %v370
      %v437 = vpop.f32.mrf.mxu0
      %v438 = vadd.f32 %v294, %v437
      %439 = vmatmul.f32.gmra.mxu0 %v373
      %v440 = vpop.f32.mrf.mxu0
      %v441 = vadd.f32 %v295, %v440
      %442 = vmatmul.f32.gmra.mxu0 %v376
      %v443 = vpop.f32.mrf.mxu0
      %v444 = vadd.f32 %v296, %v443
      %445 = vdwg.mxu0
      %v446 = vmul.f32 %v399, %v399
      %v447 = vmul.f32 %v402, %v402
      %v448 = vmul.f32 %v405, %v405
      %v449 = vmul.f32 %v408, %v408
      %v450 = vmul.f32 %v411, %v411
      %v451 = vmul.f32 %v414, %v414
      %v452 = vmul.f32 %v417, %v417
      %v453 = vmul.f32 %v420, %v420
      %v454 = vmul.f32 %v423, %v423
      %v455 = vmul.f32 %v426, %v426
      %v456 = vmul.f32 %v429, %v429
      %v457 = vmul.f32 %v432, %v432
      %v458 = vmul.f32 %v435, %v435
      %v459 = vmul.f32 %v438, %v438
      %v460 = vmul.f32 %v441, %v441
      %v461 = vmul.f32 %v444, %v444
      %v462 = vadd.f32 %v446, %v447
      %v463 = vadd.f32 %v462, %v448
      %v464 = vadd.f32 %v463, %v449
      %v465 = vadd.f32 %v464, %v450
      %v466 = vadd.f32 %v465, %v451
      %v467 = vadd.f32 %v466, %v452
      %v468 = vadd.f32 %v467, %v453
      %v469 = vadd.f32 %v468, %v454
      %v470 = vadd.f32 %v469, %v455
      %v471 = vadd.f32 %v470, %v456
      %v472 = vadd.f32 %v471, %v457
      %v473 = vadd.f32 %v472, %v458
      %v474 = vadd.f32 %v473, %v459
      %v475 = vadd.f32 %v474, %v460
      %v476 = vadd.f32 %v475, %v461
      %477 = vadd.xlane.f32.xlu0 %v476
      %v478 = vpop.xlane.xlu0 %477
      %v479 = vrot.slane %v478, 4
      %v480 = vadd.f32 %v478, %v479
      %v481 = vrot.slane %v480, 2
      %v482 = vadd.f32 %v480, %v481
      %v483 = vrot.slane %v482, 1
      %v484 = vadd.f32 %v482, %v483
      %s485 = vtos %v484
      %v486 = vstv %s485
      %v487 = vrsqrt.pop %v486
      %v488 = vmul.f32 %v487, %v486
      %v489 = vmul.f32 %v488, %v487
      %v490 = vmul.f32 0.5, %v489
      %v491 = vsub.f32 1.5, %v490
      %v492 = vmul.f32 %v487, %v491
      %v493 = vmul.f32 %v486, %v492
      %vm494 = vcmp.eq.f32.partialorder %v486, inf
      %v495 = vsel %vm494, %v486, %v493
      %vm496 = vcmp.eq.f32.partialorder %v486, 0.0
      %v497 = vand.u32 %v486, 2147483648
      %v498 = vsel %vm496, %v497, %v495
      %s499 = vtos %v498
      %s500 = smax.f32 %s499, 1e-12
      %v501 = vstv %s500
      %v502 = vrcp.pop %v501
      %v503 = vmul.f32 %v501, %v502
      %v504 = vsub.f32 1.0, %v503
      %v505 = vmul.f32 %v502, %v504
      %v506 = vadd.f32 %v502, %v505
      %vm507 = vweird.f32 %v501
      %vm508 = vweird.f32 %v502
      %vm509 = vmor %vm507, %vm508
      %v510 = vsel %vm509, %v502, %v506
      %v511 = vand.u32 2147483647, %v501
      %vm512 = vcmp.eq.f32.partialorder %v511, 8.507059e+37
      %v513 = vand.u32 %v501, 2147483648
      %v514 = vor.u32 1.1754944e-38, %v513
      %v515 = vsel %vm512, %v514, %v510
      %v516 = vmul.f32 %v399, %v515
      %v517 = vmul.f32 %v402, %v515
      %v518 = vmul.f32 %v405, %v515
      %v519 = vmul.f32 %v408, %v515
      %v520 = vmul.f32 %v411, %v515
      %v521 = vmul.f32 %v414, %v515
      %v522 = vmul.f32 %v417, %v515
      %v523 = vmul.f32 %v420, %v515
      %v524 = vmul.f32 %v423, %v515
      %v525 = vmul.f32 %v426, %v515
      %v526 = vmul.f32 %v429, %v515
      %v527 = vmul.f32 %v432, %v515
      %v528 = vmul.f32 %v435, %v515
      %v529 = vmul.f32 %v438, %v515
      %v530 = vmul.f32 %v441, %v515
      %v531 = vmul.f32 %v444, %v515
      %v532 = vmul.f32 %v255, 3.0
      %v533 = vmul.f32 %v256, 3.0
      %v534 = vmul.f32 %v257, 3.0
      %v535 = vmul.f32 %v258, 3.0
      %v536 = vmul.f32 %v259, 3.0
      %v537 = vmul.f32 %v260, 3.0
      %v538 = vmul.f32 %v261, 3.0
      %v539 = vmul.f32 %v262, 3.0
      %v540 = vmul.f32 %v263, 3.0
      %v541 = vmul.f32 %v264, 3.0
      %v542 = vmul.f32 %v265, 3.0
      %v543 = vmul.f32 %v266, 3.0
      %v544 = vmul.f32 %v267, 3.0
      %v545 = vmul.f32 %v268, 3.0
      %v546 = vmul.f32 %v269, 3.0
      %v547 = vmul.f32 %v270, 3.0
      %548 = vmatpush.msra.mxu0 %v531
      %549 = vmatpush.msra.mxu0 %v530
      %550 = vmatpush.msra.mxu0 %v529
      %551 = vmatpush.msra.mxu0 %v528
      %552 = vmatpush.msra.mxu0 %v527
      %553 = vmatpush.msra.mxu0 %v526
      %554 = vmatpush.msra.mxu0 %v525
      %555 = vmatpush.msra.mxu0 %v524
      %556 = vmatpush.msra.mxu0 %v523
      %557 = vmatpush.msra.mxu0 %v522
      %558 = vmatpush.msra.mxu0 %v521
      %559 = vmatpush.msra.mxu0 %v520
      %560 = vmatpush.msra.mxu0 %v519
      %561 = vmatpush.msra.mxu0 %v518
      %562 = vmatpush.msra.mxu0 %v517
      %563 = vmatpush.msra.mxu0 %v516
      %564 = vmatmul.f32.gmra.mxu0 %v255
      %v565 = vpop.f32.mrf.mxu0
      %v566 = vadd.f32 0.0, %v565
      %567 = vmatmul.f32.gmra.mxu0 %v256
      %v568 = vpop.f32.mrf.mxu0
      %v569 = vadd.f32 0.0, %v568
      %570 = vmatmul.f32.gmra.mxu0 %v257
      %v571 = vpop.f32.mrf.mxu0
      %v572 = vadd.f32 0.0, %v571
      %573 = vmatmul.f32.gmra.mxu0 %v258
      %v574 = vpop.f32.mrf.mxu0
      %v575 = vadd.f32 0.0, %v574
      %576 = vmatmul.f32.gmra.mxu0 %v259
      %v577 = vpop.f32.mrf.mxu0
      %v578 = vadd.f32 0.0, %v577
      %579 = vmatmul.f32.gmra.mxu0 %v260
      %v580 = vpop.f32.mrf.mxu0
      %v581 = vadd.f32 0.0, %v580
      %582 = vmatmul.f32.gmra.mxu0 %v261
      %v583 = vpop.f32.mrf.mxu0
      %v584 = vadd.f32 0.0, %v583
      %585 = vmatmul.f32.gmra.mxu0 %v262
      %v586 = vpop.f32.mrf.mxu0
      %v587 = vadd.f32 0.0, %v586
      %588 = vmatmul.f32.gmra.mxu0 %v263
      %v589 = vpop.f32.mrf.mxu0
      %v590 = vadd.f32 0.0, %v589
      %591 = vmatmul.f32.gmra.mxu0 %v264
      %v592 = vpop.f32.mrf.mxu0
      %v593 = vadd.f32 0.0, %v592
      %594 = vmatmul.f32.gmra.mxu0 %v265
      %v595 = vpop.f32.mrf.mxu0
      %v596 = vadd.f32 0.0, %v595
      %597 = vmatmul.f32.gmra.mxu0 %v266
      %v598 = vpop.f32.mrf.mxu0
      %v599 = vadd.f32 0.0, %v598
      %600 = vmatmul.f32.gmra.mxu0 %v267
      %v601 = vpop.f32.mrf.mxu0
      %v602 = vadd.f32 0.0, %v601
      %603 = vmatmul.f32.gmra.mxu0 %v268
      %v604 = vpop.f32.mrf.mxu0
      %v605 = vadd.f32 0.0, %v604
      %606 = vmatmul.f32.gmra.mxu0 %v269
      %v607 = vpop.f32.mrf.mxu0
      %v608 = vadd.f32 0.0, %v607
      %609 = vmatmul.f32.gmra.mxu0 %v270
      %v610 = vpop.f32.mrf.mxu0
      %v611 = vadd.f32 0.0, %v610
      %612 = vdwg.mxu0
      %v613 = vsub.f32 %v532, %v566
      %v614 = vsub.f32 %v533, %v569
      %v615 = vsub.f32 %v534, %v572
      %v616 = vsub.f32 %v535, %v575
      %v617 = vsub.f32 %v536, %v578
      %v618 = vsub.f32 %v537, %v581
      %v619 = vsub.f32 %v538, %v584
      %v620 = vsub.f32 %v539, %v587
      %v621 = vsub.f32 %v540, %v590
      %v622 = vsub.f32 %v541, %v593
      %v623 = vsub.f32 %v542, %v596
      %v624 = vsub.f32 %v543, %v599
      %v625 = vsub.f32 %v544, %v602
      %v626 = vsub.f32 %v545, %v605
      %v627 = vsub.f32 %v546, %v608
      %v628 = vsub.f32 %v547, %v611
      %v629 = vmul.f32 %v613, 0.5
      %v630 = vmul.f32 %v614, 0.5
      %v631 = vmul.f32 %v615, 0.5
      %v632 = vmul.f32 %v616, 0.5
      %v633 = vmul.f32 %v617, 0.5
      %v634 = vmul.f32 %v618, 0.5
      %v635 = vmul.f32 %v619, 0.5
      %v636 = vmul.f32 %v620, 0.5
      %v637 = vmul.f32 %v621, 0.5
      %v638 = vmul.f32 %v622, 0.5
      %v639 = vmul.f32 %v623, 0.5
      %v640 = vmul.f32 %v624, 0.5
      %v641 = vmul.f32 %v625, 0.5
      %v642 = vmul.f32 %v626, 0.5
      %v643 = vmul.f32 %v627, 0.5
      %v644 = vmul.f32 %v628, 0.5
      %645 = vmatpush.msra.mxu0 %v644
      %646 = vmatpush.msra.mxu0 %v643
      %647 = vmatpush.msra.mxu0 %v642
      %648 = vmatpush.msra.mxu0 %v641
      %649 = vmatpush.msra.mxu0 %v640
      %650 = vmatpush.msra.mxu0 %v639
      %651 = vmatpush.msra.mxu0 %v638
      %652 = vmatpush.msra.mxu0 %v637
      %653 = vmatpush.msra.mxu0 %v636
      %654 = vmatpush.msra.mxu0 %v635
      %655 = vmatpush.msra.mxu0 %v634
      %656 = vmatpush.msra.mxu0 %v633
      %657 = vmatpush.msra.mxu0 %v632
      %658 = vmatpush.msra.mxu0 %v631
      %659 = vmatpush.msra.mxu0 %v630
      %660 = vmatpush.msra.mxu0 %v629
      %661 = vmatmul.f32.gmra.mxu0 %v516
      %v662 = vpop.f32.mrf.mxu0
      %v663 = vadd.f32 0.0, %v662
      %664 = vmatmul.f32.gmra.mxu0 %v517
      %v665 = vpop.f32.mrf.mxu0
      %v666 = vadd.f32 0.0, %v665
      %667 = vmatmul.f32.gmra.mxu0 %v518
      %v668 = vpop.f32.mrf.mxu0
      %v669 = vadd.f32 0.0, %v668
      %670 = vmatmul.f32.gmra.mxu0 %v519
      %v671 = vpop.f32.mrf.mxu0
      %v672 = vadd.f32 0.0, %v671
      %673 = vmatmul.f32.gmra.mxu0 %v520
      %v674 = vpop.f32.mrf.mxu0
      %v675 = vadd.f32 0.0, %v674
      %676 = vmatmul.f32.gmra.mxu0 %v521
      %v677 = vpop.f32.mrf.mxu0
      %v678 = vadd.f32 0.0, %v677
      %679 = vmatmul.f32.gmra.mxu0 %v522
      %v680 = vpop.f32.mrf.mxu0
      %v681 = vadd.f32 0.0, %v680
      %682 = vmatmul.f32.gmra.mxu0 %v523
      %v683 = vpop.f32.mrf.mxu0
      %v684 = vadd.f32 0.0, %v683
      %685 = vmatmul.f32.gmra.mxu0 %v524
      %v686 = vpop.f32.mrf.mxu0
      %v687 = vadd.f32 0.0, %v686
      %688 = vmatmul.f32.gmra.mxu0 %v525
      %v689 = vpop.f32.mrf.mxu0
      %v690 = vadd.f32 0.0, %v689
      %691 = vmatmul.f32.gmra.mxu0 %v526
      %v692 = vpop.f32.mrf.mxu0
      %v693 = vadd.f32 0.0, %v692
      %694 = vmatmul.f32.gmra.mxu0 %v527
      %v695 = vpop.f32.mrf.mxu0
      %v696 = vadd.f32 0.0, %v695
      %697 = vmatmul.f32.gmra.mxu0 %v528
      %v698 = vpop.f32.mrf.mxu0
      %v699 = vadd.f32 0.0, %v698
      %700 = vmatmul.f32.gmra.mxu0 %v529
      %v701 = vpop.f32.mrf.mxu0
      %v702 = vadd.f32 0.0, %v701
      %703 = vmatmul.f32.gmra.mxu0 %v530
      %v704 = vpop.f32.mrf.mxu0
      %v705 = vadd.f32 0.0, %v704
      %706 = vmatmul.f32.gmra.mxu0 %v531
      %v707 = vpop.f32.mrf.mxu0
      %v708 = vadd.f32 0.0, %v707
      %709 = vdwg.mxu0
      %710 = vmatpush.msra.mxu0 %v270
      %711 = vmatpush.msra.mxu0 %v269
      %712 = vmatpush.msra.mxu0 %v268
      %713 = vmatpush.msra.mxu0 %v267
      %714 = vmatpush.msra.mxu0 %v266
      %715 = vmatpush.msra.mxu0 %v265
      %716 = vmatpush.msra.mxu0 %v264
      %717 = vmatpush.msra.mxu0 %v263
      %718 = vmatpush.msra.mxu0 %v262
      %719 = vmatpush.msra.mxu0 %v261
      %720 = vmatpush.msra.mxu0 %v260
      %721 = vmatpush.msra.mxu0 %v259
      %722 = vmatpush.msra.mxu0 %v258
      %723 = vmatpush.msra.mxu0 %v257
      %724 = vmatpush.msra.mxu0 %v256
      %725 = vmatpush.msra.mxu0 %v255
      %726 = vmatmul.f32.gmra.mxu0 %v629
      %v727 = vpop.f32.mrf.mxu0
      %v728 = vadd.f32 0.0, %v727
      %729 = vmatmul.f32.gmra.mxu0 %v630
      %v730 = vpop.f32.mrf.mxu0
      %v731 = vadd.f32 0.0, %v730
      %732 = vmatmul.f32.gmra.mxu0 %v631
      %v733 = vpop.f32.mrf.mxu0
      %v734 = vadd.f32 0.0, %v733
      %735 = vmatmul.f32.gmra.mxu0 %v632
      %v736 = vpop.f32.mrf.mxu0
      %v737 = vadd.f32 0.0, %v736
      %738 = vmatmul.f32.gmra.mxu0 %v633
      %v739 = vpop.f32.mrf.mxu0
      %v740 = vadd.f32 0.0, %v739
      %741 = vmatmul.f32.gmra.mxu0 %v634
      %v742 = vpop.f32.mrf.mxu0
      %v743 = vadd.f32 0.0, %v742
      %744 = vmatmul.f32.gmra.mxu0 %v635
      %v745 = vpop.f32.mrf.mxu0
      %v746 = vadd.f32 0.0, %v745
      %747 = vmatmul.f32.gmra.mxu0 %v636
      %v748 = vpop.f32.mrf.mxu0
      %v749 = vadd.f32 0.0, %v748
      %750 = vmatmul.f32.gmra.mxu0 %v637
      %v751 = vpop.f32.mrf.mxu0
      %v752 = vadd.f32 0.0, %v751
      %753 = vmatmul.f32.gmra.mxu0 %v638
      %v754 = vpop.f32.mrf.mxu0
      %v755 = vadd.f32 0.0, %v754
      %756 = vmatmul.f32.gmra.mxu0 %v639
      %v757 = vpop.f32.mrf.mxu0
      %v758 = vadd.f32 0.0, %v757
      %759 = vmatmul.f32.gmra.mxu0 %v640
      %v760 = vpop.f32.mrf.mxu0
      %v761 = vadd.f32 0.0, %v760
      %762 = vmatmul.f32.gmra.mxu0 %v641
      %v763 = vpop.f32.mrf.mxu0
      %v764 = vadd.f32 0.0, %v763
      %765 = vmatmul.f32.gmra.mxu0 %v642
      %v766 = vpop.f32.mrf.mxu0
      %v767 = vadd.f32 0.0, %v766
      %768 = vmatmul.f32.gmra.mxu0 %v643
      %v769 = vpop.f32.mrf.mxu0
      %v770 = vadd.f32 0.0, %v769
      %771 = vmatmul.f32.gmra.mxu0 %v644
      %v772 = vpop.f32.mrf.mxu0
      %v773 = vadd.f32 0.0, %v772
      %774 = vdwg.mxu0
      %775 = vmatpush.msra.mxu0 %v708
      %776 = vmatpush.msra.mxu0 %v705
      %777 = vmatpush.msra.mxu0 %v702
      %778 = vmatpush.msra.mxu0 %v699
      %779 = vmatpush.msra.mxu0 %v696
      %780 = vmatpush.msra.mxu0 %v693
      %781 = vmatpush.msra.mxu0 %v690
      %782 = vmatpush.msra.mxu0 %v687
      %783 = vmatpush.msra.mxu0 %v684
      %784 = vmatpush.msra.mxu0 %v681
      %785 = vmatpush.msra.mxu0 %v678
      %786 = vmatpush.msra.mxu0 %v675
      %787 = vmatpush.msra.mxu0 %v672
      %788 = vmatpush.msra.mxu0 %v669
      %789 = vmatpush.msra.mxu0 %v666
      %790 = vmatpush.msra.mxu0 %v663
      %791 = vmatmul.f32.gmra.mxu0 %v728
      %v792 = vpop.f32.mrf.mxu0
      %v793 = vadd.f32 0.0, %v792
      %794 = vmatmul.f32.gmra.mxu0 %v731
      %v795 = vpop.f32.mrf.mxu0
      %v796 = vadd.f32 0.0, %v795
      %797 = vmatmul.f32.gmra.mxu0 %v734
      %v798 = vpop.f32.mrf.mxu0
      %v799 = vadd.f32 0.0, %v798
      %800 = vmatmul.f32.gmra.mxu0 %v737
      %v801 = vpop.f32.mrf.mxu0
      %v802 = vadd.f32 0.0, %v801
      %803 = vmatmul.f32.gmra.mxu0 %v740
      %v804 = vpop.f32.mrf.mxu0
      %v805 = vadd.f32 0.0, %v804
      %806 = vmatmul.f32.gmra.mxu0 %v743
      %v807 = vpop.f32.mrf.mxu0
      %v808 = vadd.f32 0.0, %v807
      %809 = vmatmul.f32.gmra.mxu0 %v746
      %v810 = vpop.f32.mrf.mxu0
      %v811 = vadd.f32 0.0, %v810
      %812 = vmatmul.f32.gmra.mxu0 %v749
      %v813 = vpop.f32.mrf.mxu0
      %v814 = vadd.f32 0.0, %v813
      %815 = vmatmul.f32.gmra.mxu0 %v752
      %v816 = vpop.f32.mrf.mxu0
      %v817 = vadd.f32 0.0, %v816
      %818 = vmatmul.f32.gmra.mxu0 %v755
      %v819 = vpop.f32.mrf.mxu0
      %v820 = vadd.f32 0.0, %v819
      %821 = vmatmul.f32.gmra.mxu0 %v758
      %v822 = vpop.f32.mrf.mxu0
      %v823 = vadd.f32 0.0, %v822
      %824 = vmatmul.f32.gmra.mxu0 %v761
      %v825 = vpop.f32.mrf.mxu0
      %v826 = vadd.f32 0.0, %v825
      %827 = vmatmul.f32.gmra.mxu0 %v764
      %v828 = vpop.f32.mrf.mxu0
      %v829 = vadd.f32 0.0, %v828
      %830 = vmatmul.f32.gmra.mxu0 %v767
      %v831 = vpop.f32.mrf.mxu0
      %v832 = vadd.f32 0.0, %v831
      %833 = vmatmul.f32.gmra.mxu0 %v770
      %v834 = vpop.f32.mrf.mxu0
      %v835 = vadd.f32 0.0, %v834
      %836 = vmatmul.f32.gmra.mxu0 %v773
      %v837 = vpop.f32.mrf.mxu0
      %v838 = vadd.f32 0.0, %v837
      %839 = vdwg.mxu0
      %v840 = vsub.f32 %v532, %v793
      %v841 = vsub.f32 %v533, %v796
      %v842 = vsub.f32 %v534, %v799
      %v843 = vsub.f32 %v535, %v802
      %v844 = vsub.f32 %v536, %v805
      %v845 = vsub.f32 %v537, %v808
      %v846 = vsub.f32 %v538, %v811
      %v847 = vsub.f32 %v539, %v814
      %v848 = vsub.f32 %v540, %v817
      %v849 = vsub.f32 %v541, %v820
      %v850 = vsub.f32 %v542, %v823
      %v851 = vsub.f32 %v543, %v826
      %v852 = vsub.f32 %v544, %v829
      %v853 = vsub.f32 %v545, %v832
      %v854 = vsub.f32 %v546, %v835
      %v855 = vsub.f32 %v547, %v838
      %v856 = vmul.f32 %v840, 0.5
      %v857 = vmul.f32 %v841, 0.5
      %v858 = vmul.f32 %v842, 0.5
      %v859 = vmul.f32 %v843, 0.5
      %v860 = vmul.f32 %v844, 0.5
      %v861 = vmul.f32 %v845, 0.5
      %v862 = vmul.f32 %v846, 0.5
      %v863 = vmul.f32 %v847, 0.5
      %v864 = vmul.f32 %v848, 0.5
      %v865 = vmul.f32 %v849, 0.5
      %v866 = vmul.f32 %v850, 0.5
      %v867 = vmul.f32 %v851, 0.5
      %v868 = vmul.f32 %v852, 0.5
      %v869 = vmul.f32 %v853, 0.5
      %v870 = vmul.f32 %v854, 0.5
      %v871 = vmul.f32 %v855, 0.5
      %872 = vmatpush.msra.mxu0 %v871
      %873 = vmatpush.msra.mxu0 %v870
      %874 = vmatpush.msra.mxu0 %v869
      %875 = vmatpush.msra.mxu0 %v868
      %876 = vmatpush.msra.mxu0 %v867
      %877 = vmatpush.msra.mxu0 %v866
      %878 = vmatpush.msra.mxu0 %v865
      %879 = vmatpush.msra.mxu0 %v864
      %880 = vmatpush.msra.mxu0 %v863
      %881 = vmatpush.msra.mxu0 %v862
      %882 = vmatpush.msra.mxu0 %v861
      %883 = vmatpush.msra.mxu0 %v860
      %884 = vmatpush.msra.mxu0 %v859
      %885 = vmatpush.msra.mxu0 %v858
      %886 = vmatpush.msra.mxu0 %v857
      %887 = vmatpush.msra.mxu0 %v856
      %888 = vmatmul.f32.gmra.mxu0 %v663
      %v889 = vpop.f32.mrf.mxu0
      %v890 = vadd.f32 0.0, %v889
      %891 = vmatmul.f32.gmra.mxu0 %v666
      %v892 = vpop.f32.mrf.mxu0
      %v893 = vadd.f32 0.0, %v892
      %894 = vmatmul.f32.gmra.mxu0 %v669
      %v895 = vpop.f32.mrf.mxu0
      %v896 = vadd.f32 0.0, %v895
      %897 = vmatmul.f32.gmra.mxu0 %v672
      %v898 = vpop.f32.mrf.mxu0
      %v899 = vadd.f32 0.0, %v898
      %900 = vmatmul.f32.gmra.mxu0 %v675
      %v901 = vpop.f32.mrf.mxu0
      %v902 = vadd.f32 0.0, %v901
      %903 = vmatmul.f32.gmra.mxu0 %v678
      %v904 = vpop.f32.mrf.mxu0
      %v905 = vadd.f32 0.0, %v904
      %906 = vmatmul.f32.gmra.mxu0 %v681
      %v907 = vpop.f32.mrf.mxu0
      %v908 = vadd.f32 0.0, %v907
      %909 = vmatmul.f32.gmra.mxu0 %v684
      %v910 = vpop.f32.mrf.mxu0
      %v911 = vadd.f32 0.0, %v910
      %912 = vmatmul.f32.gmra.mxu0 %v687
      %v913 = vpop.f32.mrf.mxu0
      %v914 = vadd.f32 0.0, %v913
      %915 = vmatmul.f32.gmra.mxu0 %v690
      %v916 = vpop.f32.mrf.mxu0
      %v917 = vadd.f32 0.0, %v916
      %918 = vmatmul.f32.gmra.mxu0 %v693
      %v919 = vpop.f32.mrf.mxu0
      %v920 = vadd.f32 0.0, %v919
      %921 = vmatmul.f32.gmra.mxu0 %v696
      %v922 = vpop.f32.mrf.mxu0
      %v923 = vadd.f32 0.0, %v922
      %924 = vmatmul.f32.gmra.mxu0 %v699
      %v925 = vpop.f32.mrf.mxu0
      %v926 = vadd.f32 0.0, %v925
      %927 = vmatmul.f32.gmra.mxu0 %v702
      %v928 = vpop.f32.mrf.mxu0
      %v929 = vadd.f32 0.0, %v928
      %930 = vmatmul.f32.gmra.mxu0 %v705
      %v931 = vpop.f32.mrf.mxu0
      %v932 = vadd.f32 0.0, %v931
      %933 = vmatmul.f32.gmra.mxu0 %v708
      %v934 = vpop.f32.mrf.mxu0
      %v935 = vadd.f32 0.0, %v934
      %936 = vdwg.mxu0
      %937 = vmatpush.msra.mxu0 %v773
      %938 = vmatpush.msra.mxu0 %v770
      %939 = vmatpush.msra.mxu0 %v767
      %940 = vmatpush.msra.mxu0 %v764
      %941 = vmatpush.msra.mxu0 %v761
      %942 = vmatpush.msra.mxu0 %v758
      %943 = vmatpush.msra.mxu0 %v755
      %944 = vmatpush.msra.mxu0 %v752
      %945 = vmatpush.msra.mxu0 %v749
      %946 = vmatpush.msra.mxu0 %v746
      %947 = vmatpush.msra.mxu0 %v743
      %948 = vmatpush.msra.mxu0 %v740
      %949 = vmatpush.msra.mxu0 %v737
      %950 = vmatpush.msra.mxu0 %v734
      %951 = vmatpush.msra.mxu0 %v731
      %952 = vmatpush.msra.mxu0 %v728
      %953 = vmatmul.f32.gmra.mxu0 %v856
      %v954 = vpop.f32.mrf.mxu0
      %v955 = vadd.f32 0.0, %v954
      %956 = vmatmul.f32.gmra.mxu0 %v857
      %v957 = vpop.f32.mrf.mxu0
      %v958 = vadd.f32 0.0, %v957
      %959 = vmatmul.f32.gmra.mxu0 %v858
      %v960 = vpop.f32.mrf.mxu0
      %v961 = vadd.f32 0.0, %v960
      %962 = vmatmul.f32.gmra.mxu0 %v859
      %v963 = vpop.f32.mrf.mxu0
      %v964 = vadd.f32 0.0, %v963
      %965 = vmatmul.f32.gmra.mxu0 %v860
      %v966 = vpop.f32.mrf.mxu0
      %v967 = vadd.f32 0.0, %v966
      %968 = vmatmul.f32.gmra.mxu0 %v861
      %v969 = vpop.f32.mrf.mxu0
      %v970 = vadd.f32 0.0, %v969
      %971 = vmatmul.f32.gmra.mxu0 %v862
      %v972 = vpop.f32.mrf.mxu0
      %v973 = vadd.f32 0.0, %v972
      %974 = vmatmul.f32.gmra.mxu0 %v863
      %v975 = vpop.f32.mrf.mxu0
      %v976 = vadd.f32 0.0, %v975
      %977 = vmatmul.f32.gmra.mxu0 %v864
      %v978 = vpop.f32.mrf.mxu0
      %v979 = vadd.f32 0.0, %v978
      %980 = vmatmul.f32.gmra.mxu0 %v865
      %v981 = vpop.f32.mrf.mxu0
      %v982 = vadd.f32 0.0, %v981
      %983 = vmatmul.f32.gmra.mxu0 %v866
      %v984 = vpop.f32.mrf.mxu0
      %v985 = vadd.f32 0.0, %v984
      %986 = vmatmul.f32.gmra.mxu0 %v867
      %v987 = vpop.f32.mrf.mxu0
      %v988 = vadd.f32 0.0, %v987
      %989 = vmatmul.f32.gmra.mxu0 %v868
      %v990 = vpop.f32.mrf.mxu0
      %v991 = vadd.f32 0.0, %v990
      %992 = vmatmul.f32.gmra.mxu0 %v869
      %v993 = vpop.f32.mrf.mxu0
      %v994 = vadd.f32 0.0, %v993
      %995 = vmatmul.f32.gmra.mxu0 %v870
      %v996 = vpop.f32.mrf.mxu0
      %v997 = vadd.f32 0.0, %v996
      %998 = vmatmul.f32.gmra.mxu0 %v871
      %v999 = vpop.f32.mrf.mxu0
      %v1000 = vadd.f32 0.0, %v999
      %1001 = vdwg.mxu0
      %1002 = vmatpush.msra.mxu0 %v935
      %1003 = vmatpush.msra.mxu0 %v932
      %1004 = vmatpush.msra.mxu0 %v929
      %1005 = vmatpush.msra.mxu0 %v926
      %1006 = vmatpush.msra.mxu0 %v923
      %1007 = vmatpush.msra.mxu0 %v920
      %1008 = vmatpush.msra.mxu0 %v917
      %1009 = vmatpush.msra.mxu0 %v914
      %1010 = vmatpush.msra.mxu0 %v911
      %1011 = vmatpush.msra.mxu0 %v908
      %1012 = vmatpush.msra.mxu0 %v905
      %1013 = vmatpush.msra.mxu0 %v902
      %1014 = vmatpush.msra.mxu0 %v899
      %1015 = vmatpush.msra.mxu0 %v896
      %1016 = vmatpush.msra.mxu0 %v893
      %1017 = vmatpush.msra.mxu0 %v890
      %1018 = vmatmul.f32.gmra.mxu0 %v955
      %v1019 = vpop.f32.mrf.mxu0
      %v1020 = vadd.f32 0.0, %v1019
      %1021 = vmatmul.f32.gmra.mxu0 %v958
      %v1022 = vpop.f32.mrf.mxu0
      %v1023 = vadd.f32 0.0, %v1022
      %1024 = vmatmul.f32.gmra.mxu0 %v961
      %v1025 = vpop.f32.mrf.mxu0
      %v1026 = vadd.f32 0.0, %v1025
      %1027 = vmatmul.f32.gmra.mxu0 %v964
      %v1028 = vpop.f32.mrf.mxu0
      %v1029 = vadd.f32 0.0, %v1028
      %1030 = vmatmul.f32.gmra.mxu0 %v967
      %v1031 = vpop.f32.mrf.mxu0
      %v1032 = vadd.f32 0.0, %v1031
      %1033 = vmatmul.f32.gmra.mxu0 %v970
      %v1034 = vpop.f32.mrf.mxu0
      %v1035 = vadd.f32 0.0, %v1034
      %1036 = vmatmul.f32.gmra.mxu0 %v973
      %v1037 = vpop.f32.mrf.mxu0
      %v1038 = vadd.f32 0.0, %v1037
      %1039 = vmatmul.f32.gmra.mxu0 %v976
      %v1040 = vpop.f32.mrf.mxu0
      %v1041 = vadd.f32 0.0, %v1040
      %1042 = vmatmul.f32.gmra.mxu0 %v979
      %v1043 = vpop.f32.mrf.mxu0
      %v1044 = vadd.f32 0.0, %v1043
      %1045 = vmatmul.f32.gmra.mxu0 %v982
      %v1046 = vpop.f32.mrf.mxu0
      %v1047 = vadd.f32 0.0, %v1046
      %1048 = vmatmul.f32.gmra.mxu0 %v985
      %v1049 = vpop.f32.mrf.mxu0
      %v1050 = vadd.f32 0.0, %v1049
      %1051 = vmatmul.f32.gmra.mxu0 %v988
      %v1052 = vpop.f32.mrf.mxu0
      %v1053 = vadd.f32 0.0, %v1052
      %1054 = vmatmul.f32.gmra.mxu0 %v991
      %v1055 = vpop.f32.mrf.mxu0
      %v1056 = vadd.f32 0.0, %v1055
      %1057 = vmatmul.f32.gmra.mxu0 %v994
      %v1058 = vpop.f32.mrf.mxu0
      %v1059 = vadd.f32 0.0, %v1058
      %1060 = vmatmul.f32.gmra.mxu0 %v997
      %v1061 = vpop.f32.mrf.mxu0
      %v1062 = vadd.f32 0.0, %v1061
      %1063 = vmatmul.f32.gmra.mxu0 %v1000
      %v1064 = vpop.f32.mrf.mxu0
      %v1065 = vadd.f32 0.0, %v1064
      %1066 = vdwg.mxu0
      %v1067 = vsub.f32 %v532, %v1020
      %v1068 = vsub.f32 %v533, %v1023
      %v1069 = vsub.f32 %v534, %v1026
      %v1070 = vsub.f32 %v535, %v1029
      %v1071 = vsub.f32 %v536, %v1032
      %v1072 = vsub.f32 %v537, %v1035
      %v1073 = vsub.f32 %v538, %v1038
      %v1074 = vsub.f32 %v539, %v1041
      %v1075 = vsub.f32 %v540, %v1044
      %v1076 = vsub.f32 %v541, %v1047
      %v1077 = vsub.f32 %v542, %v1050
      %v1078 = vsub.f32 %v543, %v1053
      %v1079 = vsub.f32 %v544, %v1056
      %v1080 = vsub.f32 %v545, %v1059
      %v1081 = vsub.f32 %v546, %v1062
      %v1082 = vsub.f32 %v547, %v1065
      %v1083 = vmul.f32 %v1067, 0.5
      %v1084 = vmul.f32 %v1068, 0.5
      %v1085 = vmul.f32 %v1069, 0.5
      %v1086 = vmul.f32 %v1070, 0.5
      %v1087 = vmul.f32 %v1071, 0.5
      %v1088 = vmul.f32 %v1072, 0.5
      %v1089 = vmul.f32 %v1073, 0.5
      %v1090 = vmul.f32 %v1074, 0.5
      %v1091 = vmul.f32 %v1075, 0.5
      %v1092 = vmul.f32 %v1076, 0.5
      %v1093 = vmul.f32 %v1077, 0.5
      %v1094 = vmul.f32 %v1078, 0.5
      %v1095 = vmul.f32 %v1079, 0.5
      %v1096 = vmul.f32 %v1080, 0.5
      %v1097 = vmul.f32 %v1081, 0.5
      %v1098 = vmul.f32 %v1082, 0.5
      %1099 = vmatpush.msra.mxu0 %v1098
      %1100 = vmatpush.msra.mxu0 %v1097
      %1101 = vmatpush.msra.mxu0 %v1096
      %1102 = vmatpush.msra.mxu0 %v1095
      %1103 = vmatpush.msra.mxu0 %v1094
      %1104 = vmatpush.msra.mxu0 %v1093
      %1105 = vmatpush.msra.mxu0 %v1092
      %1106 = vmatpush.msra.mxu0 %v1091
      %1107 = vmatpush.msra.mxu0 %v1090
      %1108 = vmatpush.msra.mxu0 %v1089
      %1109 = vmatpush.msra.mxu0 %v1088
      %1110 = vmatpush.msra.mxu0 %v1087
      %1111 = vmatpush.msra.mxu0 %v1086
      %1112 = vmatpush.msra.mxu0 %v1085
      %1113 = vmatpush.msra.mxu0 %v1084
      %1114 = vmatpush.msra.mxu0 %v1083
      %1115 = vmatmul.f32.gmra.mxu0 %v890
      %v1116 = vpop.f32.mrf.mxu0
      %v1117 = vadd.f32 0.0, %v1116
      %1118 = vmatmul.f32.gmra.mxu0 %v893
      %v1119 = vpop.f32.mrf.mxu0
      %v1120 = vadd.f32 0.0, %v1119
      %1121 = vmatmul.f32.gmra.mxu0 %v896
      %v1122 = vpop.f32.mrf.mxu0
      %v1123 = vadd.f32 0.0, %v1122
      %1124 = vmatmul.f32.gmra.mxu0 %v899
      %v1125 = vpop.f32.mrf.mxu0
      %v1126 = vadd.f32 0.0, %v1125
      %1127 = vmatmul.f32.gmra.mxu0 %v902
      %v1128 = vpop.f32.mrf.mxu0
      %v1129 = vadd.f32 0.0, %v1128
      %1130 = vmatmul.f32.gmra.mxu0 %v905
      %v1131 = vpop.f32.mrf.mxu0
      %v1132 = vadd.f32 0.0, %v1131
      %1133 = vmatmul.f32.gmra.mxu0 %v908
      %v1134 = vpop.f32.mrf.mxu0
      %v1135 = vadd.f32 0.0, %v1134
      %1136 = vmatmul.f32.gmra.mxu0 %v911
      %v1137 = vpop.f32.mrf.mxu0
      %v1138 = vadd.f32 0.0, %v1137
      %1139 = vmatmul.f32.gmra.mxu0 %v914
      %v1140 = vpop.f32.mrf.mxu0
      %v1141 = vadd.f32 0.0, %v1140
      %1142 = vmatmul.f32.gmra.mxu0 %v917
      %v1143 = vpop.f32.mrf.mxu0
      %v1144 = vadd.f32 0.0, %v1143
      %1145 = vmatmul.f32.gmra.mxu0 %v920
      %v1146 = vpop.f32.mrf.mxu0
      %v1147 = vadd.f32 0.0, %v1146
      %1148 = vmatmul.f32.gmra.mxu0 %v923
      %v1149 = vpop.f32.mrf.mxu0
      %v1150 = vadd.f32 0.0, %v1149
      %1151 = vmatmul.f32.gmra.mxu0 %v926
      %v1152 = vpop.f32.mrf.mxu0
      %v1153 = vadd.f32 0.0, %v1152
      %1154 = vmatmul.f32.gmra.mxu0 %v929
      %v1155 = vpop.f32.mrf.mxu0
      %v1156 = vadd.f32 0.0, %v1155
      %1157 = vmatmul.f32.gmra.mxu0 %v932
      %v1158 = vpop.f32.mrf.mxu0
      %v1159 = vadd.f32 0.0, %v1158
      %1160 = vmatmul.f32.gmra.mxu0 %v935
      %v1161 = vpop.f32.mrf.mxu0
      %v1162 = vadd.f32 0.0, %v1161
      %1163 = vdwg.mxu0
      %1164 = vmatpush.msra.mxu0 %v1000
      %1165 = vmatpush.msra.mxu0 %v997
      %1166 = vmatpush.msra.mxu0 %v994
      %1167 = vmatpush.msra.mxu0 %v991
      %1168 = vmatpush.msra.mxu0 %v988
      %1169 = vmatpush.msra.mxu0 %v985
      %1170 = vmatpush.msra.mxu0 %v982
      %1171 = vmatpush.msra.mxu0 %v979
      %1172 = vmatpush.msra.mxu0 %v976
      %1173 = vmatpush.msra.mxu0 %v973
      %1174 = vmatpush.msra.mxu0 %v970
      %1175 = vmatpush.msra.mxu0 %v967
      %1176 = vmatpush.msra.mxu0 %v964
      %1177 = vmatpush.msra.mxu0 %v961
      %1178 = vmatpush.msra.mxu0 %v958
      %1179 = vmatpush.msra.mxu0 %v955
      %1180 = vmatmul.f32.gmra.mxu0 %v1083
      %v1181 = vpop.f32.mrf.mxu0
      %v1182 = vadd.f32 0.0, %v1181
      %1183 = vmatmul.f32.gmra.mxu0 %v1084
      %v1184 = vpop.f32.mrf.mxu0
      %v1185 = vadd.f32 0.0, %v1184
      %1186 = vmatmul.f32.gmra.mxu0 %v1085
      %v1187 = vpop.f32.mrf.mxu0
      %v1188 = vadd.f32 0.0, %v1187
      %1189 = vmatmul.f32.gmra.mxu0 %v1086
      %v1190 = vpop.f32.mrf.mxu0
      %v1191 = vadd.f32 0.0, %v1190
      %1192 = vmatmul.f32.gmra.mxu0 %v1087
      %v1193 = vpop.f32.mrf.mxu0
      %v1194 = vadd.f32 0.0, %v1193
      %1195 = vmatmul.f32.gmra.mxu0 %v1088
      %v1196 = vpop.f32.mrf.mxu0
      %v1197 = vadd.f32 0.0, %v1196
      %1198 = vmatmul.f32.gmra.mxu0 %v1089
      %v1199 = vpop.f32.mrf.mxu0
      %v1200 = vadd.f32 0.0, %v1199
      %1201 = vmatmul.f32.gmra.mxu0 %v1090
      %v1202 = vpop.f32.mrf.mxu0
      %v1203 = vadd.f32 0.0, %v1202
      %1204 = vmatmul.f32.gmra.mxu0 %v1091
      %v1205 = vpop.f32.mrf.mxu0
      %v1206 = vadd.f32 0.0, %v1205
      %1207 = vmatmul.f32.gmra.mxu0 %v1092
      %v1208 = vpop.f32.mrf.mxu0
      %v1209 = vadd.f32 0.0, %v1208
      %1210 = vmatmul.f32.gmra.mxu0 %v1093
      %v1211 = vpop.f32.mrf.mxu0
      %v1212 = vadd.f32 0.0, %v1211
      %1213 = vmatmul.f32.gmra.mxu0 %v1094
      %v1214 = vpop.f32.mrf.mxu0
      %v1215 = vadd.f32 0.0, %v1214
      %1216 = vmatmul.f32.gmra.mxu0 %v1095
      %v1217 = vpop.f32.mrf.mxu0
      %v1218 = vadd.f32 0.0, %v1217
      %1219 = vmatmul.f32.gmra.mxu0 %v1096
      %v1220 = vpop.f32.mrf.mxu0
      %v1221 = vadd.f32 0.0, %v1220
      %1222 = vmatmul.f32.gmra.mxu0 %v1097
      %v1223 = vpop.f32.mrf.mxu0
      %v1224 = vadd.f32 0.0, %v1223
      %1225 = vmatmul.f32.gmra.mxu0 %v1098
      %v1226 = vpop.f32.mrf.mxu0
      %v1227 = vadd.f32 0.0, %v1226
      %1228 = vdwg.mxu0
      %1229 = vmatpush.msra.mxu0 %v1162
      %1230 = vmatpush.msra.mxu0 %v1159
      %1231 = vmatpush.msra.mxu0 %v1156
      %1232 = vmatpush.msra.mxu0 %v1153
      %1233 = vmatpush.msra.mxu0 %v1150
      %1234 = vmatpush.msra.mxu0 %v1147
      %1235 = vmatpush.msra.mxu0 %v1144
      %1236 = vmatpush.msra.mxu0 %v1141
      %1237 = vmatpush.msra.mxu0 %v1138
      %1238 = vmatpush.msra.mxu0 %v1135
      %1239 = vmatpush.msra.mxu0 %v1132
      %1240 = vmatpush.msra.mxu0 %v1129
      %1241 = vmatpush.msra.mxu0 %v1126
      %1242 = vmatpush.msra.mxu0 %v1123
      %1243 = vmatpush.msra.mxu0 %v1120
      %1244 = vmatpush.msra.mxu0 %v1117
      %1245 = vmatmul.f32.gmra.mxu0 %v1182
      %v1246 = vpop.f32.mrf.mxu0
      %v1247 = vadd.f32 0.0, %v1246
      %1248 = vmatmul.f32.gmra.mxu0 %v1185
      %v1249 = vpop.f32.mrf.mxu0
      %v1250 = vadd.f32 0.0, %v1249
      %1251 = vmatmul.f32.gmra.mxu0 %v1188
      %v1252 = vpop.f32.mrf.mxu0
      %v1253 = vadd.f32 0.0, %v1252
      %1254 = vmatmul.f32.gmra.mxu0 %v1191
      %v1255 = vpop.f32.mrf.mxu0
      %v1256 = vadd.f32 0.0, %v1255
      %1257 = vmatmul.f32.gmra.mxu0 %v1194
      %v1258 = vpop.f32.mrf.mxu0
      %v1259 = vadd.f32 0.0, %v1258
      %1260 = vmatmul.f32.gmra.mxu0 %v1197
      %v1261 = vpop.f32.mrf.mxu0
      %v1262 = vadd.f32 0.0, %v1261
      %1263 = vmatmul.f32.gmra.mxu0 %v1200
      %v1264 = vpop.f32.mrf.mxu0
      %v1265 = vadd.f32 0.0, %v1264
      %1266 = vmatmul.f32.gmra.mxu0 %v1203
      %v1267 = vpop.f32.mrf.mxu0
      %v1268 = vadd.f32 0.0, %v1267
      %1269 = vmatmul.f32.gmra.mxu0 %v1206
      %v1270 = vpop.f32.mrf.mxu0
      %v1271 = vadd.f32 0.0, %v1270
      %1272 = vmatmul.f32.gmra.mxu0 %v1209
      %v1273 = vpop.f32.mrf.mxu0
      %v1274 = vadd.f32 0.0, %v1273
      %1275 = vmatmul.f32.gmra.mxu0 %v1212
      %v1276 = vpop.f32.mrf.mxu0
      %v1277 = vadd.f32 0.0, %v1276
      %1278 = vmatmul.f32.gmra.mxu0 %v1215
      %v1279 = vpop.f32.mrf.mxu0
      %v1280 = vadd.f32 0.0, %v1279
      %1281 = vmatmul.f32.gmra.mxu0 %v1218
      %v1282 = vpop.f32.mrf.mxu0
      %v1283 = vadd.f32 0.0, %v1282
      %1284 = vmatmul.f32.gmra.mxu0 %v1221
      %v1285 = vpop.f32.mrf.mxu0
      %v1286 = vadd.f32 0.0, %v1285
      %1287 = vmatmul.f32.gmra.mxu0 %v1224
      %v1288 = vpop.f32.mrf.mxu0
      %v1289 = vadd.f32 0.0, %v1288
      %1290 = vmatmul.f32.gmra.mxu0 %v1227
      %v1291 = vpop.f32.mrf.mxu0
      %v1292 = vadd.f32 0.0, %v1291
      %1293 = vdwg.mxu0
      %v1294 = vsub.f32 %v532, %v1247
      %v1295 = vsub.f32 %v533, %v1250
      %v1296 = vsub.f32 %v534, %v1253
      %v1297 = vsub.f32 %v535, %v1256
      %v1298 = vsub.f32 %v536, %v1259
      %v1299 = vsub.f32 %v537, %v1262
      %v1300 = vsub.f32 %v538, %v1265
      %v1301 = vsub.f32 %v539, %v1268
      %v1302 = vsub.f32 %v540, %v1271
      %v1303 = vsub.f32 %v541, %v1274
      %v1304 = vsub.f32 %v542, %v1277
      %v1305 = vsub.f32 %v543, %v1280
      %v1306 = vsub.f32 %v544, %v1283
      %v1307 = vsub.f32 %v545, %v1286
      %v1308 = vsub.f32 %v546, %v1289
      %v1309 = vsub.f32 %v547, %v1292
      %v1310 = vmul.f32 %v1294, 0.5
      %v1311 = vmul.f32 %v1295, 0.5
      %v1312 = vmul.f32 %v1296, 0.5
      %v1313 = vmul.f32 %v1297, 0.5
      %v1314 = vmul.f32 %v1298, 0.5
      %v1315 = vmul.f32 %v1299, 0.5
      %v1316 = vmul.f32 %v1300, 0.5
      %v1317 = vmul.f32 %v1301, 0.5
      %v1318 = vmul.f32 %v1302, 0.5
      %v1319 = vmul.f32 %v1303, 0.5
      %v1320 = vmul.f32 %v1304, 0.5
      %v1321 = vmul.f32 %v1305, 0.5
      %v1322 = vmul.f32 %v1306, 0.5
      %v1323 = vmul.f32 %v1307, 0.5
      %v1324 = vmul.f32 %v1308, 0.5
      %v1325 = vmul.f32 %v1309, 0.5
      %1326 = vmatpush.msra.mxu0 %v1325
      %1327 = vmatpush.msra.mxu0 %v1324
      %1328 = vmatpush.msra.mxu0 %v1323
      %1329 = vmatpush.msra.mxu0 %v1322
      %1330 = vmatpush.msra.mxu0 %v1321
      %1331 = vmatpush.msra.mxu0 %v1320
      %1332 = vmatpush.msra.mxu0 %v1319
      %1333 = vmatpush.msra.mxu0 %v1318
      %1334 = vmatpush.msra.mxu0 %v1317
      %1335 = vmatpush.msra.mxu0 %v1316
      %1336 = vmatpush.msra.mxu0 %v1315
      %1337 = vmatpush.msra.mxu0 %v1314
      %1338 = vmatpush.msra.mxu0 %v1313
      %1339 = vmatpush.msra.mxu0 %v1312
      %1340 = vmatpush.msra.mxu0 %v1311
      %1341 = vmatpush.msra.mxu0 %v1310
      %1342 = vmatmul.f32.gmra.mxu0 %v1117
      %v1343 = vpop.f32.mrf.mxu0
      %v1344 = vadd.f32 0.0, %v1343
      %1345 = vmatmul.f32.gmra.mxu0 %v1120
      %v1346 = vpop.f32.mrf.mxu0
      %v1347 = vadd.f32 0.0, %v1346
      %1348 = vmatmul.f32.gmra.mxu0 %v1123
      %v1349 = vpop.f32.mrf.mxu0
      %v1350 = vadd.f32 0.0, %v1349
      %1351 = vmatmul.f32.gmra.mxu0 %v1126
      %v1352 = vpop.f32.mrf.mxu0
      %v1353 = vadd.f32 0.0, %v1352
      %1354 = vmatmul.f32.gmra.mxu0 %v1129
      %v1355 = vpop.f32.mrf.mxu0
      %v1356 = vadd.f32 0.0, %v1355
      %1357 = vmatmul.f32.gmra.mxu0 %v1132
      %v1358 = vpop.f32.mrf.mxu0
      %v1359 = vadd.f32 0.0, %v1358
      %1360 = vmatmul.f32.gmra.mxu0 %v1135
      %v1361 = vpop.f32.mrf.mxu0
      %v1362 = vadd.f32 0.0, %v1361
      %1363 = vmatmul.f32.gmra.mxu0 %v1138
      %v1364 = vpop.f32.mrf.mxu0
      %v1365 = vadd.f32 0.0, %v1364
      %1366 = vmatmul.f32.gmra.mxu0 %v1141
      %v1367 = vpop.f32.mrf.mxu0
      %v1368 = vadd.f32 0.0, %v1367
      %1369 = vmatmul.f32.gmra.mxu0 %v1144
      %v1370 = vpop.f32.mrf.mxu0
      %v1371 = vadd.f32 0.0, %v1370
      %1372 = vmatmul.f32.gmra.mxu0 %v1147
      %v1373 = vpop.f32.mrf.mxu0
      %v1374 = vadd.f32 0.0, %v1373
      %1375 = vmatmul.f32.gmra.mxu0 %v1150
      %v1376 = vpop.f32.mrf.mxu0
      %v1377 = vadd.f32 0.0, %v1376
      %1378 = vmatmul.f32.gmra.mxu0 %v1153
      %v1379 = vpop.f32.mrf.mxu0
      %v1380 = vadd.f32 0.0, %v1379
      %1381 = vmatmul.f32.gmra.mxu0 %v1156
      %v1382 = vpop.f32.mrf.mxu0
      %v1383 = vadd.f32 0.0, %v1382
      %1384 = vmatmul.f32.gmra.mxu0 %v1159
      %v1385 = vpop.f32.mrf.mxu0
      %v1386 = vadd.f32 0.0, %v1385
      %1387 = vmatmul.f32.gmra.mxu0 %v1162
      %v1388 = vpop.f32.mrf.mxu0
      %v1389 = vadd.f32 0.0, %v1388
      %1390 = vdwg.mxu0
      %1391 = vmatpush.msra.mxu0 %v1227
      %1392 = vmatpush.msra.mxu0 %v1224
      %1393 = vmatpush.msra.mxu0 %v1221
      %1394 = vmatpush.msra.mxu0 %v1218
      %1395 = vmatpush.msra.mxu0 %v1215
      %1396 = vmatpush.msra.mxu0 %v1212
      %1397 = vmatpush.msra.mxu0 %v1209
      %1398 = vmatpush.msra.mxu0 %v1206
      %1399 = vmatpush.msra.mxu0 %v1203
      %1400 = vmatpush.msra.mxu0 %v1200
      %1401 = vmatpush.msra.mxu0 %v1197
      %1402 = vmatpush.msra.mxu0 %v1194
      %1403 = vmatpush.msra.mxu0 %v1191
      %1404 = vmatpush.msra.mxu0 %v1188
      %1405 = vmatpush.msra.mxu0 %v1185
      %1406 = vmatpush.msra.mxu0 %v1182
      %1407 = vmatmul.f32.gmra.mxu0 %v1310
      %v1408 = vpop.f32.mrf.mxu0
      %v1409 = vadd.f32 0.0, %v1408
      %1410 = vmatmul.f32.gmra.mxu0 %v1311
      %v1411 = vpop.f32.mrf.mxu0
      %v1412 = vadd.f32 0.0, %v1411
      %1413 = vmatmul.f32.gmra.mxu0 %v1312
      %v1414 = vpop.f32.mrf.mxu0
      %v1415 = vadd.f32 0.0, %v1414
      %1416 = vmatmul.f32.gmra.mxu0 %v1313
      %v1417 = vpop.f32.mrf.mxu0
      %v1418 = vadd.f32 0.0, %v1417
      %1419 = vmatmul.f32.gmra.mxu0 %v1314
      %v1420 = vpop.f32.mrf.mxu0
      %v1421 = vadd.f32 0.0, %v1420
      %1422 = vmatmul.f32.gmra.mxu0 %v1315
      %v1423 = vpop.f32.mrf.mxu0
      %v1424 = vadd.f32 0.0, %v1423
      %1425 = vmatmul.f32.gmra.mxu0 %v1316
      %v1426 = vpop.f32.mrf.mxu0
      %v1427 = vadd.f32 0.0, %v1426
      %1428 = vmatmul.f32.gmra.mxu0 %v1317
      %v1429 = vpop.f32.mrf.mxu0
      %v1430 = vadd.f32 0.0, %v1429
      %1431 = vmatmul.f32.gmra.mxu0 %v1318
      %v1432 = vpop.f32.mrf.mxu0
      %v1433 = vadd.f32 0.0, %v1432
      %1434 = vmatmul.f32.gmra.mxu0 %v1319
      %v1435 = vpop.f32.mrf.mxu0
      %v1436 = vadd.f32 0.0, %v1435
      %1437 = vmatmul.f32.gmra.mxu0 %v1320
      %v1438 = vpop.f32.mrf.mxu0
      %v1439 = vadd.f32 0.0, %v1438
      %1440 = vmatmul.f32.gmra.mxu0 %v1321
      %v1441 = vpop.f32.mrf.mxu0
      %v1442 = vadd.f32 0.0, %v1441
      %1443 = vmatmul.f32.gmra.mxu0 %v1322
      %v1444 = vpop.f32.mrf.mxu0
      %v1445 = vadd.f32 0.0, %v1444
      %1446 = vmatmul.f32.gmra.mxu0 %v1323
      %v1447 = vpop.f32.mrf.mxu0
      %v1448 = vadd.f32 0.0, %v1447
      %1449 = vmatmul.f32.gmra.mxu0 %v1324
      %v1450 = vpop.f32.mrf.mxu0
      %v1451 = vadd.f32 0.0, %v1450
      %1452 = vmatmul.f32.gmra.mxu0 %v1325
      %v1453 = vpop.f32.mrf.mxu0
      %v1454 = vadd.f32 0.0, %v1453
      %1455 = vdwg.mxu0
      %1456 = vmatpush.msra.mxu0 %v1389
      %1457 = vmatpush.msra.mxu0 %v1386
      %1458 = vmatpush.msra.mxu0 %v1383
      %1459 = vmatpush.msra.mxu0 %v1380
      %1460 = vmatpush.msra.mxu0 %v1377
      %1461 = vmatpush.msra.mxu0 %v1374
      %1462 = vmatpush.msra.mxu0 %v1371
      %1463 = vmatpush.msra.mxu0 %v1368
      %1464 = vmatpush.msra.mxu0 %v1365
      %1465 = vmatpush.msra.mxu0 %v1362
      %1466 = vmatpush.msra.mxu0 %v1359
      %1467 = vmatpush.msra.mxu0 %v1356
      %1468 = vmatpush.msra.mxu0 %v1353
      %1469 = vmatpush.msra.mxu0 %v1350
      %1470 = vmatpush.msra.mxu0 %v1347
      %1471 = vmatpush.msra.mxu0 %v1344
      %1472 = vmatmul.f32.gmra.mxu0 %v1409
      %v1473 = vpop.f32.mrf.mxu0
      %v1474 = vadd.f32 0.0, %v1473
      %1475 = vmatmul.f32.gmra.mxu0 %v1412
      %v1476 = vpop.f32.mrf.mxu0
      %v1477 = vadd.f32 0.0, %v1476
      %1478 = vmatmul.f32.gmra.mxu0 %v1415
      %v1479 = vpop.f32.mrf.mxu0
      %v1480 = vadd.f32 0.0, %v1479
      %1481 = vmatmul.f32.gmra.mxu0 %v1418
      %v1482 = vpop.f32.mrf.mxu0
      %v1483 = vadd.f32 0.0, %v1482
      %1484 = vmatmul.f32.gmra.mxu0 %v1421
      %v1485 = vpop.f32.mrf.mxu0
      %v1486 = vadd.f32 0.0, %v1485
      %1487 = vmatmul.f32.gmra.mxu0 %v1424
      %v1488 = vpop.f32.mrf.mxu0
      %v1489 = vadd.f32 0.0, %v1488
      %1490 = vmatmul.f32.gmra.mxu0 %v1427
      %v1491 = vpop.f32.mrf.mxu0
      %v1492 = vadd.f32 0.0, %v1491
      %1493 = vmatmul.f32.gmra.mxu0 %v1430
      %v1494 = vpop.f32.mrf.mxu0
      %v1495 = vadd.f32 0.0, %v1494
      %1496 = vmatmul.f32.gmra.mxu0 %v1433
      %v1497 = vpop.f32.mrf.mxu0
      %v1498 = vadd.f32 0.0, %v1497
      %1499 = vmatmul.f32.gmra.mxu0 %v1436
      %v1500 = vpop.f32.mrf.mxu0
      %v1501 = vadd.f32 0.0, %v1500
      %1502 = vmatmul.f32.gmra.mxu0 %v1439
      %v1503 = vpop.f32.mrf.mxu0
      %v1504 = vadd.f32 0.0, %v1503
      %1505 = vmatmul.f32.gmra.mxu0 %v1442
      %v1506 = vpop.f32.mrf.mxu0
      %v1507 = vadd.f32 0.0, %v1506
      %1508 = vmatmul.f32.gmra.mxu0 %v1445
      %v1509 = vpop.f32.mrf.mxu0
      %v1510 = vadd.f32 0.0, %v1509
      %1511 = vmatmul.f32.gmra.mxu0 %v1448
      %v1512 = vpop.f32.mrf.mxu0
      %v1513 = vadd.f32 0.0, %v1512
      %1514 = vmatmul.f32.gmra.mxu0 %v1451
      %v1515 = vpop.f32.mrf.mxu0
      %v1516 = vadd.f32 0.0, %v1515
      %1517 = vmatmul.f32.gmra.mxu0 %v1454
      %v1518 = vpop.f32.mrf.mxu0
      %v1519 = vadd.f32 0.0, %v1518
      %1520 = vdwg.mxu0
      %v1521 = vsub.f32 %v532, %v1474
      %v1522 = vsub.f32 %v533, %v1477
      %v1523 = vsub.f32 %v534, %v1480
      %v1524 = vsub.f32 %v535, %v1483
      %v1525 = vsub.f32 %v536, %v1486
      %v1526 = vsub.f32 %v537, %v1489
      %v1527 = vsub.f32 %v538, %v1492
      %v1528 = vsub.f32 %v539, %v1495
      %v1529 = vsub.f32 %v540, %v1498
      %v1530 = vsub.f32 %v541, %v1501
      %v1531 = vsub.f32 %v542, %v1504
      %v1532 = vsub.f32 %v543, %v1507
      %v1533 = vsub.f32 %v544, %v1510
      %v1534 = vsub.f32 %v545, %v1513
      %v1535 = vsub.f32 %v546, %v1516
      %v1536 = vsub.f32 %v547, %v1519
      %v1537 = vmul.f32 %v1521, 0.5
      %v1538 = vmul.f32 %v1522, 0.5
      %v1539 = vmul.f32 %v1523, 0.5
      %v1540 = vmul.f32 %v1524, 0.5
      %v1541 = vmul.f32 %v1525, 0.5
      %v1542 = vmul.f32 %v1526, 0.5
      %v1543 = vmul.f32 %v1527, 0.5
      %v1544 = vmul.f32 %v1528, 0.5
      %v1545 = vmul.f32 %v1529, 0.5
      %v1546 = vmul.f32 %v1530, 0.5
      %v1547 = vmul.f32 %v1531, 0.5
      %v1548 = vmul.f32 %v1532, 0.5
      %v1549 = vmul.f32 %v1533, 0.5
      %v1550 = vmul.f32 %v1534, 0.5
      %v1551 = vmul.f32 %v1535, 0.5
      %v1552 = vmul.f32 %v1536, 0.5
      %1553 = vmatpush.msra.mxu0 %v1552
      %1554 = vmatpush.msra.mxu0 %v1551
      %1555 = vmatpush.msra.mxu0 %v1550
      %1556 = vmatpush.msra.mxu0 %v1549
      %1557 = vmatpush.msra.mxu0 %v1548
      %1558 = vmatpush.msra.mxu0 %v1547
      %1559 = vmatpush.msra.mxu0 %v1546
      %1560 = vmatpush.msra.mxu0 %v1545
      %1561 = vmatpush.msra.mxu0 %v1544
      %1562 = vmatpush.msra.mxu0 %v1543
      %1563 = vmatpush.msra.mxu0 %v1542
      %1564 = vmatpush.msra.mxu0 %v1541
      %1565 = vmatpush.msra.mxu0 %v1540
      %1566 = vmatpush.msra.mxu0 %v1539
      %1567 = vmatpush.msra.mxu0 %v1538
      %1568 = vmatpush.msra.mxu0 %v1537
      %1569 = vmatmul.f32.gmra.mxu0 %v1344
      %v1570 = vpop.f32.mrf.mxu0
      %v1571 = vadd.f32 0.0, %v1570
      %1572 = vmatmul.f32.gmra.mxu0 %v1347
      %v1573 = vpop.f32.mrf.mxu0
      %v1574 = vadd.f32 0.0, %v1573
      %1575 = vmatmul.f32.gmra.mxu0 %v1350
      %v1576 = vpop.f32.mrf.mxu0
      %v1577 = vadd.f32 0.0, %v1576
      %1578 = vmatmul.f32.gmra.mxu0 %v1353
      %v1579 = vpop.f32.mrf.mxu0
      %v1580 = vadd.f32 0.0, %v1579
      %1581 = vmatmul.f32.gmra.mxu0 %v1356
      %v1582 = vpop.f32.mrf.mxu0
      %v1583 = vadd.f32 0.0, %v1582
      %1584 = vmatmul.f32.gmra.mxu0 %v1359
      %v1585 = vpop.f32.mrf.mxu0
      %v1586 = vadd.f32 0.0, %v1585
      %1587 = vmatmul.f32.gmra.mxu0 %v1362
      %v1588 = vpop.f32.mrf.mxu0
      %v1589 = vadd.f32 0.0, %v1588
      %1590 = vmatmul.f32.gmra.mxu0 %v1365
      %v1591 = vpop.f32.mrf.mxu0
      %v1592 = vadd.f32 0.0, %v1591
      %1593 = vmatmul.f32.gmra.mxu0 %v1368
      %v1594 = vpop.f32.mrf.mxu0
      %v1595 = vadd.f32 0.0, %v1594
      %1596 = vmatmul.f32.gmra.mxu0 %v1371
      %v1597 = vpop.f32.mrf.mxu0
      %v1598 = vadd.f32 0.0, %v1597
      %1599 = vmatmul.f32.gmra.mxu0 %v1374
      %v1600 = vpop.f32.mrf.mxu0
      %v1601 = vadd.f32 0.0, %v1600
      %1602 = vmatmul.f32.gmra.mxu0 %v1377
      %v1603 = vpop.f32.mrf.mxu0
      %v1604 = vadd.f32 0.0, %v1603
      %1605 = vmatmul.f32.gmra.mxu0 %v1380
      %v1606 = vpop.f32.mrf.mxu0
      %v1607 = vadd.f32 0.0, %v1606
      %1608 = vmatmul.f32.gmra.mxu0 %v1383
      %v1609 = vpop.f32.mrf.mxu0
      %v1610 = vadd.f32 0.0, %v1609
      %1611 = vmatmul.f32.gmra.mxu0 %v1386
      %v1612 = vpop.f32.mrf.mxu0
      %v1613 = vadd.f32 0.0, %v1612
      %1614 = vmatmul.f32.gmra.mxu0 %v1389
      %v1615 = vpop.f32.mrf.mxu0
      %v1616 = vadd.f32 0.0, %v1615
      %1617 = vdwg.mxu0
      %1618 = vmatpush.msra.mxu0 %v1454
      %1619 = vmatpush.msra.mxu0 %v1451
      %1620 = vmatpush.msra.mxu0 %v1448
      %1621 = vmatpush.msra.mxu0 %v1445
      %1622 = vmatpush.msra.mxu0 %v1442
      %1623 = vmatpush.msra.mxu0 %v1439
      %1624 = vmatpush.msra.mxu0 %v1436
      %1625 = vmatpush.msra.mxu0 %v1433
      %1626 = vmatpush.msra.mxu0 %v1430
      %1627 = vmatpush.msra.mxu0 %v1427
      %1628 = vmatpush.msra.mxu0 %v1424
      %1629 = vmatpush.msra.mxu0 %v1421
      %1630 = vmatpush.msra.mxu0 %v1418
      %1631 = vmatpush.msra.mxu0 %v1415
      %1632 = vmatpush.msra.mxu0 %v1412
      %1633 = vmatpush.msra.mxu0 %v1409
      %1634 = vmatmul.f32.gmra.mxu0 %v1537
      %v1635 = vpop.f32.mrf.mxu0
      %v1636 = vadd.f32 0.0, %v1635
      %1637 = vmatmul.f32.gmra.mxu0 %v1538
      %v1638 = vpop.f32.mrf.mxu0
      %v1639 = vadd.f32 0.0, %v1638
      %1640 = vmatmul.f32.gmra.mxu0 %v1539
      %v1641 = vpop.f32.mrf.mxu0
      %v1642 = vadd.f32 0.0, %v1641
      %1643 = vmatmul.f32.gmra.mxu0 %v1540
      %v1644 = vpop.f32.mrf.mxu0
      %v1645 = vadd.f32 0.0, %v1644
      %1646 = vmatmul.f32.gmra.mxu0 %v1541
      %v1647 = vpop.f32.mrf.mxu0
      %v1648 = vadd.f32 0.0, %v1647
      %1649 = vmatmul.f32.gmra.mxu0 %v1542
      %v1650 = vpop.f32.mrf.mxu0
      %v1651 = vadd.f32 0.0, %v1650
      %1652 = vmatmul.f32.gmra.mxu0 %v1543
      %v1653 = vpop.f32.mrf.mxu0
      %v1654 = vadd.f32 0.0, %v1653
      %1655 = vmatmul.f32.gmra.mxu0 %v1544
      %v1656 = vpop.f32.mrf.mxu0
      %v1657 = vadd.f32 0.0, %v1656
      %1658 = vmatmul.f32.gmra.mxu0 %v1545
      %v1659 = vpop.f32.mrf.mxu0
      %v1660 = vadd.f32 0.0, %v1659
      %1661 = vmatmul.f32.gmra.mxu0 %v1546
      %v1662 = vpop.f32.mrf.mxu0
      %v1663 = vadd.f32 0.0, %v1662
      %1664 = vmatmul.f32.gmra.mxu0 %v1547
      %v1665 = vpop.f32.mrf.mxu0
      %v1666 = vadd.f32 0.0, %v1665
      %1667 = vmatmul.f32.gmra.mxu0 %v1548
      %v1668 = vpop.f32.mrf.mxu0
      %v1669 = vadd.f32 0.0, %v1668
      %1670 = vmatmul.f32.gmra.mxu0 %v1549
      %v1671 = vpop.f32.mrf.mxu0
      %v1672 = vadd.f32 0.0, %v1671
      %1673 = vmatmul.f32.gmra.mxu0 %v1550
      %v1674 = vpop.f32.mrf.mxu0
      %v1675 = vadd.f32 0.0, %v1674
      %1676 = vmatmul.f32.gmra.mxu0 %v1551
      %v1677 = vpop.f32.mrf.mxu0
      %v1678 = vadd.f32 0.0, %v1677
      %1679 = vmatmul.f32.gmra.mxu0 %v1552
      %v1680 = vpop.f32.mrf.mxu0
      %v1681 = vadd.f32 0.0, %v1680
      %1682 = vdwg.mxu0
      %1683 = vmatpush.msra.mxu0 %v1616
      %1684 = vmatpush.msra.mxu0 %v1613
      %1685 = vmatpush.msra.mxu0 %v1610
      %1686 = vmatpush.msra.mxu0 %v1607
      %1687 = vmatpush.msra.mxu0 %v1604
      %1688 = vmatpush.msra.mxu0 %v1601
      %1689 = vmatpush.msra.mxu0 %v1598
      %1690 = vmatpush.msra.mxu0 %v1595
      %1691 = vmatpush.msra.mxu0 %v1592
      %1692 = vmatpush.msra.mxu0 %v1589
      %1693 = vmatpush.msra.mxu0 %v1586
      %1694 = vmatpush.msra.mxu0 %v1583
      %1695 = vmatpush.msra.mxu0 %v1580
      %1696 = vmatpush.msra.mxu0 %v1577
      %1697 = vmatpush.msra.mxu0 %v1574
      %1698 = vmatpush.msra.mxu0 %v1571
      %1699 = vmatmul.f32.gmra.mxu0 %v1636
      %v1700 = vpop.f32.mrf.mxu0
      %v1701 = vadd.f32 0.0, %v1700
      %1702 = vmatmul.f32.gmra.mxu0 %v1639
      %v1703 = vpop.f32.mrf.mxu0
      %v1704 = vadd.f32 0.0, %v1703
      %1705 = vmatmul.f32.gmra.mxu0 %v1642
      %v1706 = vpop.f32.mrf.mxu0
      %v1707 = vadd.f32 0.0, %v1706
      %1708 = vmatmul.f32.gmra.mxu0 %v1645
      %v1709 = vpop.f32.mrf.mxu0
      %v1710 = vadd.f32 0.0, %v1709
      %1711 = vmatmul.f32.gmra.mxu0 %v1648
      %v1712 = vpop.f32.mrf.mxu0
      %v1713 = vadd.f32 0.0, %v1712
      %1714 = vmatmul.f32.gmra.mxu0 %v1651
      %v1715 = vpop.f32.mrf.mxu0
      %v1716 = vadd.f32 0.0, %v1715
      %1717 = vmatmul.f32.gmra.mxu0 %v1654
      %v1718 = vpop.f32.mrf.mxu0
      %v1719 = vadd.f32 0.0, %v1718
      %1720 = vmatmul.f32.gmra.mxu0 %v1657
      %v1721 = vpop.f32.mrf.mxu0
      %v1722 = vadd.f32 0.0, %v1721
      %1723 = vmatmul.f32.gmra.mxu0 %v1660
      %v1724 = vpop.f32.mrf.mxu0
      %v1725 = vadd.f32 0.0, %v1724
      %1726 = vmatmul.f32.gmra.mxu0 %v1663
      %v1727 = vpop.f32.mrf.mxu0
      %v1728 = vadd.f32 0.0, %v1727
      %1729 = vmatmul.f32.gmra.mxu0 %v1666
      %v1730 = vpop.f32.mrf.mxu0
      %v1731 = vadd.f32 0.0, %v1730
      %1732 = vmatmul.f32.gmra.mxu0 %v1669
      %v1733 = vpop.f32.mrf.mxu0
      %v1734 = vadd.f32 0.0, %v1733
      %1735 = vmatmul.f32.gmra.mxu0 %v1672
      %v1736 = vpop.f32.mrf.mxu0
      %v1737 = vadd.f32 0.0, %v1736
      %1738 = vmatmul.f32.gmra.mxu0 %v1675
      %v1739 = vpop.f32.mrf.mxu0
      %v1740 = vadd.f32 0.0, %v1739
      %1741 = vmatmul.f32.gmra.mxu0 %v1678
      %v1742 = vpop.f32.mrf.mxu0
      %v1743 = vadd.f32 0.0, %v1742
      %1744 = vmatmul.f32.gmra.mxu0 %v1681
      %v1745 = vpop.f32.mrf.mxu0
      %v1746 = vadd.f32 0.0, %v1745
      %1747 = vdwg.mxu0
      %v1748 = vsub.f32 %v532, %v1701
      %v1749 = vsub.f32 %v533, %v1704
      %v1750 = vsub.f32 %v534, %v1707
      %v1751 = vsub.f32 %v535, %v1710
      %v1752 = vsub.f32 %v536, %v1713
      %v1753 = vsub.f32 %v537, %v1716
      %v1754 = vsub.f32 %v538, %v1719
      %v1755 = vsub.f32 %v539, %v1722
      %v1756 = vsub.f32 %v540, %v1725
      %v1757 = vsub.f32 %v541, %v1728
      %v1758 = vsub.f32 %v542, %v1731
      %v1759 = vsub.f32 %v543, %v1734
      %v1760 = vsub.f32 %v544, %v1737
      %v1761 = vsub.f32 %v545, %v1740
      %v1762 = vsub.f32 %v546, %v1743
      %v1763 = vsub.f32 %v547, %v1746
      %v1764 = vmul.f32 %v1748, 0.5
      %v1765 = vmul.f32 %v1749, 0.5
      %v1766 = vmul.f32 %v1750, 0.5
      %v1767 = vmul.f32 %v1751, 0.5
      %v1768 = vmul.f32 %v1752, 0.5
      %v1769 = vmul.f32 %v1753, 0.5
      %v1770 = vmul.f32 %v1754, 0.5
      %v1771 = vmul.f32 %v1755, 0.5
      %v1772 = vmul.f32 %v1756, 0.5
      %v1773 = vmul.f32 %v1757, 0.5
      %v1774 = vmul.f32 %v1758, 0.5
      %v1775 = vmul.f32 %v1759, 0.5
      %v1776 = vmul.f32 %v1760, 0.5
      %v1777 = vmul.f32 %v1761, 0.5
      %v1778 = vmul.f32 %v1762, 0.5
      %v1779 = vmul.f32 %v1763, 0.5
      %1780 = vmatpush.msra.mxu0 %v1779
      %1781 = vmatpush.msra.mxu0 %v1778
      %1782 = vmatpush.msra.mxu0 %v1777
      %1783 = vmatpush.msra.mxu0 %v1776
      %1784 = vmatpush.msra.mxu0 %v1775
      %1785 = vmatpush.msra.mxu0 %v1774
      %1786 = vmatpush.msra.mxu0 %v1773
      %1787 = vmatpush.msra.mxu0 %v1772
      %1788 = vmatpush.msra.mxu0 %v1771
      %1789 = vmatpush.msra.mxu0 %v1770
      %1790 = vmatpush.msra.mxu0 %v1769
      %1791 = vmatpush.msra.mxu0 %v1768
      %1792 = vmatpush.msra.mxu0 %v1767
      %1793 = vmatpush.msra.mxu0 %v1766
      %1794 = vmatpush.msra.mxu0 %v1765
      %1795 = vmatpush.msra.mxu0 %v1764
      %1796 = vmatmul.f32.gmra.mxu0 %v1571
      %v1797 = vpop.f32.mrf.mxu0
      %v1798 = vadd.f32 0.0, %v1797
      %1799 = vmatmul.f32.gmra.mxu0 %v1574
      %v1800 = vpop.f32.mrf.mxu0
      %v1801 = vadd.f32 0.0, %v1800
      %1802 = vmatmul.f32.gmra.mxu0 %v1577
      %v1803 = vpop.f32.mrf.mxu0
      %v1804 = vadd.f32 0.0, %v1803
      %1805 = vmatmul.f32.gmra.mxu0 %v1580
      %v1806 = vpop.f32.mrf.mxu0
      %v1807 = vadd.f32 0.0, %v1806
      %1808 = vmatmul.f32.gmra.mxu0 %v1583
      %v1809 = vpop.f32.mrf.mxu0
      %v1810 = vadd.f32 0.0, %v1809
      %1811 = vmatmul.f32.gmra.mxu0 %v1586
      %v1812 = vpop.f32.mrf.mxu0
      %v1813 = vadd.f32 0.0, %v1812
      %1814 = vmatmul.f32.gmra.mxu0 %v1589
      %v1815 = vpop.f32.mrf.mxu0
      %v1816 = vadd.f32 0.0, %v1815
      %1817 = vmatmul.f32.gmra.mxu0 %v1592
      %v1818 = vpop.f32.mrf.mxu0
      %v1819 = vadd.f32 0.0, %v1818
      %1820 = vmatmul.f32.gmra.mxu0 %v1595
      %v1821 = vpop.f32.mrf.mxu0
      %v1822 = vadd.f32 0.0, %v1821
      %1823 = vmatmul.f32.gmra.mxu0 %v1598
      %v1824 = vpop.f32.mrf.mxu0
      %v1825 = vadd.f32 0.0, %v1824
      %1826 = vmatmul.f32.gmra.mxu0 %v1601
      %v1827 = vpop.f32.mrf.mxu0
      %v1828 = vadd.f32 0.0, %v1827
      %1829 = vmatmul.f32.gmra.mxu0 %v1604
      %v1830 = vpop.f32.mrf.mxu0
      %v1831 = vadd.f32 0.0, %v1830
      %1832 = vmatmul.f32.gmra.mxu0 %v1607
      %v1833 = vpop.f32.mrf.mxu0
      %v1834 = vadd.f32 0.0, %v1833
      %1835 = vmatmul.f32.gmra.mxu0 %v1610
      %v1836 = vpop.f32.mrf.mxu0
      %v1837 = vadd.f32 0.0, %v1836
      %1838 = vmatmul.f32.gmra.mxu0 %v1613
      %v1839 = vpop.f32.mrf.mxu0
      %v1840 = vadd.f32 0.0, %v1839
      %1841 = vmatmul.f32.gmra.mxu0 %v1616
      %v1842 = vpop.f32.mrf.mxu0
      %v1843 = vadd.f32 0.0, %v1842
      %1844 = vdwg.mxu0
      %1845 = vmatpush.msra.mxu0 %v1681
      %1846 = vmatpush.msra.mxu0 %v1678
      %1847 = vmatpush.msra.mxu0 %v1675
      %1848 = vmatpush.msra.mxu0 %v1672
      %1849 = vmatpush.msra.mxu0 %v1669
      %1850 = vmatpush.msra.mxu0 %v1666
      %1851 = vmatpush.msra.mxu0 %v1663
      %1852 = vmatpush.msra.mxu0 %v1660
      %1853 = vmatpush.msra.mxu0 %v1657
      %1854 = vmatpush.msra.mxu0 %v1654
      %1855 = vmatpush.msra.mxu0 %v1651
      %1856 = vmatpush.msra.mxu0 %v1648
      %1857 = vmatpush.msra.mxu0 %v1645
      %1858 = vmatpush.msra.mxu0 %v1642
      %1859 = vmatpush.msra.mxu0 %v1639
      %1860 = vmatpush.msra.mxu0 %v1636
      %1861 = vmatmul.f32.gmra.mxu0 %v1764
      %v1862 = vpop.f32.mrf.mxu0
      %v1863 = vadd.f32 0.0, %v1862
      %1864 = vmatmul.f32.gmra.mxu0 %v1765
      %v1865 = vpop.f32.mrf.mxu0
      %v1866 = vadd.f32 0.0, %v1865
      %1867 = vmatmul.f32.gmra.mxu0 %v1766
      %v1868 = vpop.f32.mrf.mxu0
      %v1869 = vadd.f32 0.0, %v1868
      %1870 = vmatmul.f32.gmra.mxu0 %v1767
      %v1871 = vpop.f32.mrf.mxu0
      %v1872 = vadd.f32 0.0, %v1871
      %1873 = vmatmul.f32.gmra.mxu0 %v1768
      %v1874 = vpop.f32.mrf.mxu0
      %v1875 = vadd.f32 0.0, %v1874
      %1876 = vmatmul.f32.gmra.mxu0 %v1769
      %v1877 = vpop.f32.mrf.mxu0
      %v1878 = vadd.f32 0.0, %v1877
      %1879 = vmatmul.f32.gmra.mxu0 %v1770
      %v1880 = vpop.f32.mrf.mxu0
      %v1881 = vadd.f32 0.0, %v1880
      %1882 = vmatmul.f32.gmra.mxu0 %v1771
      %v1883 = vpop.f32.mrf.mxu0
      %v1884 = vadd.f32 0.0, %v1883
      %1885 = vmatmul.f32.gmra.mxu0 %v1772
      %v1886 = vpop.f32.mrf.mxu0
      %v1887 = vadd.f32 0.0, %v1886
      %1888 = vmatmul.f32.gmra.mxu0 %v1773
      %v1889 = vpop.f32.mrf.mxu0
      %v1890 = vadd.f32 0.0, %v1889
      %1891 = vmatmul.f32.gmra.mxu0 %v1774
      %v1892 = vpop.f32.mrf.mxu0
      %v1893 = vadd.f32 0.0, %v1892
      %1894 = vmatmul.f32.gmra.mxu0 %v1775
      %v1895 = vpop.f32.mrf.mxu0
      %v1896 = vadd.f32 0.0, %v1895
      %1897 = vmatmul.f32.gmra.mxu0 %v1776
      %v1898 = vpop.f32.mrf.mxu0
      %v1899 = vadd.f32 0.0, %v1898
      %1900 = vmatmul.f32.gmra.mxu0 %v1777
      %v1901 = vpop.f32.mrf.mxu0
      %v1902 = vadd.f32 0.0, %v1901
      %1903 = vmatmul.f32.gmra.mxu0 %v1778
      %v1904 = vpop.f32.mrf.mxu0
      %v1905 = vadd.f32 0.0, %v1904
      %1906 = vmatmul.f32.gmra.mxu0 %v1779
      %v1907 = vpop.f32.mrf.mxu0
      %v1908 = vadd.f32 0.0, %v1907
      %1909 = vdwg.mxu0
      %1910 = vmatpush.msra.mxu0 %v1843
      %1911 = vmatpush.msra.mxu0 %v1840
      %1912 = vmatpush.msra.mxu0 %v1837
      %1913 = vmatpush.msra.mxu0 %v1834
      %1914 = vmatpush.msra.mxu0 %v1831
      %1915 = vmatpush.msra.mxu0 %v1828
      %1916 = vmatpush.msra.mxu0 %v1825
      %1917 = vmatpush.msra.mxu0 %v1822
      %1918 = vmatpush.msra.mxu0 %v1819
      %1919 = vmatpush.msra.mxu0 %v1816
      %1920 = vmatpush.msra.mxu0 %v1813
      %1921 = vmatpush.msra.mxu0 %v1810
      %1922 = vmatpush.msra.mxu0 %v1807
      %1923 = vmatpush.msra.mxu0 %v1804
      %1924 = vmatpush.msra.mxu0 %v1801
      %1925 = vmatpush.msra.mxu0 %v1798
      %1926 = vmatmul.f32.gmra.mxu0 %v1863
      %v1927 = vpop.f32.mrf.mxu0
      %v1928 = vadd.f32 0.0, %v1927
      %1929 = vmatmul.f32.gmra.mxu0 %v1866
      %v1930 = vpop.f32.mrf.mxu0
      %v1931 = vadd.f32 0.0, %v1930
      %1932 = vmatmul.f32.gmra.mxu0 %v1869
      %v1933 = vpop.f32.mrf.mxu0
      %v1934 = vadd.f32 0.0, %v1933
      %1935 = vmatmul.f32.gmra.mxu0 %v1872
      %v1936 = vpop.f32.mrf.mxu0
      %v1937 = vadd.f32 0.0, %v1936
      %1938 = vmatmul.f32.gmra.mxu0 %v1875
      %v1939 = vpop.f32.mrf.mxu0
      %v1940 = vadd.f32 0.0, %v1939
      %1941 = vmatmul.f32.gmra.mxu0 %v1878
      %v1942 = vpop.f32.mrf.mxu0
      %v1943 = vadd.f32 0.0, %v1942
      %1944 = vmatmul.f32.gmra.mxu0 %v1881
      %v1945 = vpop.f32.mrf.mxu0
      %v1946 = vadd.f32 0.0, %v1945
      %1947 = vmatmul.f32.gmra.mxu0 %v1884
      %v1948 = vpop.f32.mrf.mxu0
      %v1949 = vadd.f32 0.0, %v1948
      %1950 = vmatmul.f32.gmra.mxu0 %v1887
      %v1951 = vpop.f32.mrf.mxu0
      %v1952 = vadd.f32 0.0, %v1951
      %1953 = vmatmul.f32.gmra.mxu0 %v1890
      %v1954 = vpop.f32.mrf.mxu0
      %v1955 = vadd.f32 0.0, %v1954
      %1956 = vmatmul.f32.gmra.mxu0 %v1893
      %v1957 = vpop.f32.mrf.mxu0
      %v1958 = vadd.f32 0.0, %v1957
      %1959 = vmatmul.f32.gmra.mxu0 %v1896
      %v1960 = vpop.f32.mrf.mxu0
      %v1961 = vadd.f32 0.0, %v1960
      %1962 = vmatmul.f32.gmra.mxu0 %v1899
      %v1963 = vpop.f32.mrf.mxu0
      %v1964 = vadd.f32 0.0, %v1963
      %1965 = vmatmul.f32.gmra.mxu0 %v1902
      %v1966 = vpop.f32.mrf.mxu0
      %v1967 = vadd.f32 0.0, %v1966
      %1968 = vmatmul.f32.gmra.mxu0 %v1905
      %v1969 = vpop.f32.mrf.mxu0
      %v1970 = vadd.f32 0.0, %v1969
      %1971 = vmatmul.f32.gmra.mxu0 %v1908
      %v1972 = vpop.f32.mrf.mxu0
      %v1973 = vadd.f32 0.0, %v1972
      %1974 = vdwg.mxu0
      %v1975 = vsub.f32 %v532, %v1928
      %v1976 = vsub.f32 %v533, %v1931
      %v1977 = vsub.f32 %v534, %v1934
      %v1978 = vsub.f32 %v535, %v1937
      %v1979 = vsub.f32 %v536, %v1940
      %v1980 = vsub.f32 %v537, %v1943
      %v1981 = vsub.f32 %v538, %v1946
      %v1982 = vsub.f32 %v539, %v1949
      %v1983 = vsub.f32 %v540, %v1952
      %v1984 = vsub.f32 %v541, %v1955
      %v1985 = vsub.f32 %v542, %v1958
      %v1986 = vsub.f32 %v543, %v1961
      %v1987 = vsub.f32 %v544, %v1964
      %v1988 = vsub.f32 %v545, %v1967
      %v1989 = vsub.f32 %v546, %v1970
      %v1990 = vsub.f32 %v547, %v1973
      %v1991 = vmul.f32 %v1975, 0.5
      %v1992 = vmul.f32 %v1976, 0.5
      %v1993 = vmul.f32 %v1977, 0.5
      %v1994 = vmul.f32 %v1978, 0.5
      %v1995 = vmul.f32 %v1979, 0.5
      %v1996 = vmul.f32 %v1980, 0.5
      %v1997 = vmul.f32 %v1981, 0.5
      %v1998 = vmul.f32 %v1982, 0.5
      %v1999 = vmul.f32 %v1983, 0.5
      %v2000 = vmul.f32 %v1984, 0.5
      %v2001 = vmul.f32 %v1985, 0.5
      %v2002 = vmul.f32 %v1986, 0.5
      %v2003 = vmul.f32 %v1987, 0.5
      %v2004 = vmul.f32 %v1988, 0.5
      %v2005 = vmul.f32 %v1989, 0.5
      %v2006 = vmul.f32 %v1990, 0.5
      %2007 = vmatpush.msra.mxu0 %v2006
      %2008 = vmatpush.msra.mxu0 %v2005
      %2009 = vmatpush.msra.mxu0 %v2004
      %2010 = vmatpush.msra.mxu0 %v2003
      %2011 = vmatpush.msra.mxu0 %v2002
      %2012 = vmatpush.msra.mxu0 %v2001
      %2013 = vmatpush.msra.mxu0 %v2000
      %2014 = vmatpush.msra.mxu0 %v1999
      %2015 = vmatpush.msra.mxu0 %v1998
      %2016 = vmatpush.msra.mxu0 %v1997
      %2017 = vmatpush.msra.mxu0 %v1996
      %2018 = vmatpush.msra.mxu0 %v1995
      %2019 = vmatpush.msra.mxu0 %v1994
      %2020 = vmatpush.msra.mxu0 %v1993
      %2021 = vmatpush.msra.mxu0 %v1992
      %2022 = vmatpush.msra.mxu0 %v1991
      %2023 = vmatmul.f32.gmra.mxu0 %v1798
      %v2024 = vpop.f32.mrf.mxu0
      %v2025 = vadd.f32 0.0, %v2024
      %2026 = vmatmul.f32.gmra.mxu0 %v1801
      %v2027 = vpop.f32.mrf.mxu0
      %v2028 = vadd.f32 0.0, %v2027
      %2029 = vmatmul.f32.gmra.mxu0 %v1804
      %v2030 = vpop.f32.mrf.mxu0
      %v2031 = vadd.f32 0.0, %v2030
      %2032 = vmatmul.f32.gmra.mxu0 %v1807
      %v2033 = vpop.f32.mrf.mxu0
      %v2034 = vadd.f32 0.0, %v2033
      %2035 = vmatmul.f32.gmra.mxu0 %v1810
      %v2036 = vpop.f32.mrf.mxu0
      %v2037 = vadd.f32 0.0, %v2036
      %2038 = vmatmul.f32.gmra.mxu0 %v1813
      %v2039 = vpop.f32.mrf.mxu0
      %v2040 = vadd.f32 0.0, %v2039
      %2041 = vmatmul.f32.gmra.mxu0 %v1816
      %v2042 = vpop.f32.mrf.mxu0
      %v2043 = vadd.f32 0.0, %v2042
      %2044 = vmatmul.f32.gmra.mxu0 %v1819
      %v2045 = vpop.f32.mrf.mxu0
      %v2046 = vadd.f32 0.0, %v2045
      %2047 = vmatmul.f32.gmra.mxu0 %v1822
      %v2048 = vpop.f32.mrf.mxu0
      %v2049 = vadd.f32 0.0, %v2048
      %2050 = vmatmul.f32.gmra.mxu0 %v1825
      %v2051 = vpop.f32.mrf.mxu0
      %v2052 = vadd.f32 0.0, %v2051
      %2053 = vmatmul.f32.gmra.mxu0 %v1828
      %v2054 = vpop.f32.mrf.mxu0
      %v2055 = vadd.f32 0.0, %v2054
      %2056 = vmatmul.f32.gmra.mxu0 %v1831
      %v2057 = vpop.f32.mrf.mxu0
      %v2058 = vadd.f32 0.0, %v2057
      %2059 = vmatmul.f32.gmra.mxu0 %v1834
      %v2060 = vpop.f32.mrf.mxu0
      %v2061 = vadd.f32 0.0, %v2060
      %2062 = vmatmul.f32.gmra.mxu0 %v1837
      %v2063 = vpop.f32.mrf.mxu0
      %v2064 = vadd.f32 0.0, %v2063
      %2065 = vmatmul.f32.gmra.mxu0 %v1840
      %v2066 = vpop.f32.mrf.mxu0
      %v2067 = vadd.f32 0.0, %v2066
      %2068 = vmatmul.f32.gmra.mxu0 %v1843
      %v2069 = vpop.f32.mrf.mxu0
      %v2070 = vadd.f32 0.0, %v2069
      %2071 = vdwg.mxu0
      %2072 = vmatpush.msra.mxu0 %v1908
      %2073 = vmatpush.msra.mxu0 %v1905
      %2074 = vmatpush.msra.mxu0 %v1902
      %2075 = vmatpush.msra.mxu0 %v1899
      %2076 = vmatpush.msra.mxu0 %v1896
      %2077 = vmatpush.msra.mxu0 %v1893
      %2078 = vmatpush.msra.mxu0 %v1890
      %2079 = vmatpush.msra.mxu0 %v1887
      %2080 = vmatpush.msra.mxu0 %v1884
      %2081 = vmatpush.msra.mxu0 %v1881
      %2082 = vmatpush.msra.mxu0 %v1878
      %2083 = vmatpush.msra.mxu0 %v1875
      %2084 = vmatpush.msra.mxu0 %v1872
      %2085 = vmatpush.msra.mxu0 %v1869
      %2086 = vmatpush.msra.mxu0 %v1866
      %2087 = vmatpush.msra.mxu0 %v1863
      %2088 = vmatmul.f32.gmra.mxu0 %v1991
      %v2089 = vpop.f32.mrf.mxu0
      %v2090 = vadd.f32 0.0, %v2089
      %2091 = vmatmul.f32.gmra.mxu0 %v1992
      %v2092 = vpop.f32.mrf.mxu0
      %v2093 = vadd.f32 0.0, %v2092
      %2094 = vmatmul.f32.gmra.mxu0 %v1993
      %v2095 = vpop.f32.mrf.mxu0
      %v2096 = vadd.f32 0.0, %v2095
      %2097 = vmatmul.f32.gmra.mxu0 %v1994
      %v2098 = vpop.f32.mrf.mxu0
      %v2099 = vadd.f32 0.0, %v2098
      %2100 = vmatmul.f32.gmra.mxu0 %v1995
      %v2101 = vpop.f32.mrf.mxu0
      %v2102 = vadd.f32 0.0, %v2101
      %2103 = vmatmul.f32.gmra.mxu0 %v1996
      %v2104 = vpop.f32.mrf.mxu0
      %v2105 = vadd.f32 0.0, %v2104
      %2106 = vmatmul.f32.gmra.mxu0 %v1997
      %v2107 = vpop.f32.mrf.mxu0
      %v2108 = vadd.f32 0.0, %v2107
      %2109 = vmatmul.f32.gmra.mxu0 %v1998
      %v2110 = vpop.f32.mrf.mxu0
      %v2111 = vadd.f32 0.0, %v2110
      %2112 = vmatmul.f32.gmra.mxu0 %v1999
      %v2113 = vpop.f32.mrf.mxu0
      %v2114 = vadd.f32 0.0, %v2113
      %2115 = vmatmul.f32.gmra.mxu0 %v2000
      %v2116 = vpop.f32.mrf.mxu0
      %v2117 = vadd.f32 0.0, %v2116
      %2118 = vmatmul.f32.gmra.mxu0 %v2001
      %v2119 = vpop.f32.mrf.mxu0
      %v2120 = vadd.f32 0.0, %v2119
      %2121 = vmatmul.f32.gmra.mxu0 %v2002
      %v2122 = vpop.f32.mrf.mxu0
      %v2123 = vadd.f32 0.0, %v2122
      %2124 = vmatmul.f32.gmra.mxu0 %v2003
      %v2125 = vpop.f32.mrf.mxu0
      %v2126 = vadd.f32 0.0, %v2125
      %2127 = vmatmul.f32.gmra.mxu0 %v2004
      %v2128 = vpop.f32.mrf.mxu0
      %v2129 = vadd.f32 0.0, %v2128
      %2130 = vmatmul.f32.gmra.mxu0 %v2005
      %v2131 = vpop.f32.mrf.mxu0
      %v2132 = vadd.f32 0.0, %v2131
      %2133 = vmatmul.f32.gmra.mxu0 %v2006
      %v2134 = vpop.f32.mrf.mxu0
      %v2135 = vadd.f32 0.0, %v2134
      %2136 = vdwg.mxu0
      %2137 = vmatpush.msra.mxu0 %v2070
      %2138 = vmatpush.msra.mxu0 %v2067
      %2139 = vmatpush.msra.mxu0 %v2064
      %2140 = vmatpush.msra.mxu0 %v2061
      %2141 = vmatpush.msra.mxu0 %v2058
      %2142 = vmatpush.msra.mxu0 %v2055
      %2143 = vmatpush.msra.mxu0 %v2052
      %2144 = vmatpush.msra.mxu0 %v2049
      %2145 = vmatpush.msra.mxu0 %v2046
      %2146 = vmatpush.msra.mxu0 %v2043
      %2147 = vmatpush.msra.mxu0 %v2040
      %2148 = vmatpush.msra.mxu0 %v2037
      %2149 = vmatpush.msra.mxu0 %v2034
      %2150 = vmatpush.msra.mxu0 %v2031
      %2151 = vmatpush.msra.mxu0 %v2028
      %2152 = vmatpush.msra.mxu0 %v2025
      %2153 = vmatmul.f32.gmra.mxu0 %v2090
      %v2154 = vpop.f32.mrf.mxu0
      %v2155 = vadd.f32 0.0, %v2154
      %2156 = vmatmul.f32.gmra.mxu0 %v2093
      %v2157 = vpop.f32.mrf.mxu0
      %v2158 = vadd.f32 0.0, %v2157
      %2159 = vmatmul.f32.gmra.mxu0 %v2096
      %v2160 = vpop.f32.mrf.mxu0
      %v2161 = vadd.f32 0.0, %v2160
      %2162 = vmatmul.f32.gmra.mxu0 %v2099
      %v2163 = vpop.f32.mrf.mxu0
      %v2164 = vadd.f32 0.0, %v2163
      %2165 = vmatmul.f32.gmra.mxu0 %v2102
      %v2166 = vpop.f32.mrf.mxu0
      %v2167 = vadd.f32 0.0, %v2166
      %2168 = vmatmul.f32.gmra.mxu0 %v2105
      %v2169 = vpop.f32.mrf.mxu0
      %v2170 = vadd.f32 0.0, %v2169
      %2171 = vmatmul.f32.gmra.mxu0 %v2108
      %v2172 = vpop.f32.mrf.mxu0
      %v2173 = vadd.f32 0.0, %v2172
      %2174 = vmatmul.f32.gmra.mxu0 %v2111
      %v2175 = vpop.f32.mrf.mxu0
      %v2176 = vadd.f32 0.0, %v2175
      %2177 = vmatmul.f32.gmra.mxu0 %v2114
      %v2178 = vpop.f32.mrf.mxu0
      %v2179 = vadd.f32 0.0, %v2178
      %2180 = vmatmul.f32.gmra.mxu0 %v2117
      %v2181 = vpop.f32.mrf.mxu0
      %v2182 = vadd.f32 0.0, %v2181
      %2183 = vmatmul.f32.gmra.mxu0 %v2120
      %v2184 = vpop.f32.mrf.mxu0
      %v2185 = vadd.f32 0.0, %v2184
      %2186 = vmatmul.f32.gmra.mxu0 %v2123
      %v2187 = vpop.f32.mrf.mxu0
      %v2188 = vadd.f32 0.0, %v2187
      %2189 = vmatmul.f32.gmra.mxu0 %v2126
      %v2190 = vpop.f32.mrf.mxu0
      %v2191 = vadd.f32 0.0, %v2190
      %2192 = vmatmul.f32.gmra.mxu0 %v2129
      %v2193 = vpop.f32.mrf.mxu0
      %v2194 = vadd.f32 0.0, %v2193
      %2195 = vmatmul.f32.gmra.mxu0 %v2132
      %v2196 = vpop.f32.mrf.mxu0
      %v2197 = vadd.f32 0.0, %v2196
      %2198 = vmatmul.f32.gmra.mxu0 %v2135
      %v2199 = vpop.f32.mrf.mxu0
      %v2200 = vadd.f32 0.0, %v2199
      %2201 = vdwg.mxu0
      %v2202 = vsub.f32 %v532, %v2155
      %v2203 = vsub.f32 %v533, %v2158
      %v2204 = vsub.f32 %v534, %v2161
      %v2205 = vsub.f32 %v535, %v2164
      %v2206 = vsub.f32 %v536, %v2167
      %v2207 = vsub.f32 %v537, %v2170
      %v2208 = vsub.f32 %v538, %v2173
      %v2209 = vsub.f32 %v539, %v2176
      %v2210 = vsub.f32 %v540, %v2179
      %v2211 = vsub.f32 %v541, %v2182
      %v2212 = vsub.f32 %v542, %v2185
      %v2213 = vsub.f32 %v543, %v2188
      %v2214 = vsub.f32 %v544, %v2191
      %v2215 = vsub.f32 %v545, %v2194
      %v2216 = vsub.f32 %v546, %v2197
      %v2217 = vsub.f32 %v547, %v2200
      %v2218 = vmul.f32 %v2202, 0.5
      %v2219 = vmul.f32 %v2203, 0.5
      %v2220 = vmul.f32 %v2204, 0.5
      %v2221 = vmul.f32 %v2205, 0.5
      %v2222 = vmul.f32 %v2206, 0.5
      %v2223 = vmul.f32 %v2207, 0.5
      %v2224 = vmul.f32 %v2208, 0.5
      %v2225 = vmul.f32 %v2209, 0.5
      %v2226 = vmul.f32 %v2210, 0.5
      %v2227 = vmul.f32 %v2211, 0.5
      %v2228 = vmul.f32 %v2212, 0.5
      %v2229 = vmul.f32 %v2213, 0.5
      %v2230 = vmul.f32 %v2214, 0.5
      %v2231 = vmul.f32 %v2215, 0.5
      %v2232 = vmul.f32 %v2216, 0.5
      %v2233 = vmul.f32 %v2217, 0.5
      %2234 = vmatpush.msra.mxu0 %v2233
      %2235 = vmatpush.msra.mxu0 %v2232
      %2236 = vmatpush.msra.mxu0 %v2231
      %2237 = vmatpush.msra.mxu0 %v2230
      %2238 = vmatpush.msra.mxu0 %v2229
      %2239 = vmatpush.msra.mxu0 %v2228
      %2240 = vmatpush.msra.mxu0 %v2227
      %2241 = vmatpush.msra.mxu0 %v2226
      %2242 = vmatpush.msra.mxu0 %v2225
      %2243 = vmatpush.msra.mxu0 %v2224
      %2244 = vmatpush.msra.mxu0 %v2223
      %2245 = vmatpush.msra.mxu0 %v2222
      %2246 = vmatpush.msra.mxu0 %v2221
      %2247 = vmatpush.msra.mxu0 %v2220
      %2248 = vmatpush.msra.mxu0 %v2219
      %2249 = vmatpush.msra.mxu0 %v2218
      %2250 = vmatmul.f32.gmra.mxu0 %v2025
      %v2251 = vpop.f32.mrf.mxu0
      %v2252 = vadd.f32 0.0, %v2251
      %2253 = vmatmul.f32.gmra.mxu0 %v2028
      %v2254 = vpop.f32.mrf.mxu0
      %v2255 = vadd.f32 0.0, %v2254
      %2256 = vmatmul.f32.gmra.mxu0 %v2031
      %v2257 = vpop.f32.mrf.mxu0
      %v2258 = vadd.f32 0.0, %v2257
      %2259 = vmatmul.f32.gmra.mxu0 %v2034
      %v2260 = vpop.f32.mrf.mxu0
      %v2261 = vadd.f32 0.0, %v2260
      %2262 = vmatmul.f32.gmra.mxu0 %v2037
      %v2263 = vpop.f32.mrf.mxu0
      %v2264 = vadd.f32 0.0, %v2263
      %2265 = vmatmul.f32.gmra.mxu0 %v2040
      %v2266 = vpop.f32.mrf.mxu0
      %v2267 = vadd.f32 0.0, %v2266
      %2268 = vmatmul.f32.gmra.mxu0 %v2043
      %v2269 = vpop.f32.mrf.mxu0
      %v2270 = vadd.f32 0.0, %v2269
      %2271 = vmatmul.f32.gmra.mxu0 %v2046
      %v2272 = vpop.f32.mrf.mxu0
      %v2273 = vadd.f32 0.0, %v2272
      %2274 = vmatmul.f32.gmra.mxu0 %v2049
      %v2275 = vpop.f32.mrf.mxu0
      %v2276 = vadd.f32 0.0, %v2275
      %2277 = vmatmul.f32.gmra.mxu0 %v2052
      %v2278 = vpop.f32.mrf.mxu0
      %v2279 = vadd.f32 0.0, %v2278
      %2280 = vmatmul.f32.gmra.mxu0 %v2055
      %v2281 = vpop.f32.mrf.mxu0
      %v2282 = vadd.f32 0.0, %v2281
      %2283 = vmatmul.f32.gmra.mxu0 %v2058
      %v2284 = vpop.f32.mrf.mxu0
      %v2285 = vadd.f32 0.0, %v2284
      %2286 = vmatmul.f32.gmra.mxu0 %v2061
      %v2287 = vpop.f32.mrf.mxu0
      %v2288 = vadd.f32 0.0, %v2287
      %2289 = vmatmul.f32.gmra.mxu0 %v2064
      %v2290 = vpop.f32.mrf.mxu0
      %v2291 = vadd.f32 0.0, %v2290
      %2292 = vmatmul.f32.gmra.mxu0 %v2067
      %v2293 = vpop.f32.mrf.mxu0
      %v2294 = vadd.f32 0.0, %v2293
      %2295 = vmatmul.f32.gmra.mxu0 %v2070
      %v2296 = vpop.f32.mrf.mxu0
      %v2297 = vadd.f32 0.0, %v2296
      %2298 = vdwg.mxu0
      %2299 = vmatpush.msra.mxu0 %v2135
      %2300 = vmatpush.msra.mxu0 %v2132
      %2301 = vmatpush.msra.mxu0 %v2129
      %2302 = vmatpush.msra.mxu0 %v2126
      %2303 = vmatpush.msra.mxu0 %v2123
      %2304 = vmatpush.msra.mxu0 %v2120
      %2305 = vmatpush.msra.mxu0 %v2117
      %2306 = vmatpush.msra.mxu0 %v2114
      %2307 = vmatpush.msra.mxu0 %v2111
      %2308 = vmatpush.msra.mxu0 %v2108
      %2309 = vmatpush.msra.mxu0 %v2105
      %2310 = vmatpush.msra.mxu0 %v2102
      %2311 = vmatpush.msra.mxu0 %v2099
      %2312 = vmatpush.msra.mxu0 %v2096
      %2313 = vmatpush.msra.mxu0 %v2093
      %2314 = vmatpush.msra.mxu0 %v2090
      %2315 = vmatmul.f32.gmra.mxu0 %v2218
      %v2316 = vpop.f32.mrf.mxu0
      %v2317 = vadd.f32 0.0, %v2316
      %2318 = vmatmul.f32.gmra.mxu0 %v2219
      %v2319 = vpop.f32.mrf.mxu0
      %v2320 = vadd.f32 0.0, %v2319
      %2321 = vmatmul.f32.gmra.mxu0 %v2220
      %v2322 = vpop.f32.mrf.mxu0
      %v2323 = vadd.f32 0.0, %v2322
      %2324 = vmatmul.f32.gmra.mxu0 %v2221
      %v2325 = vpop.f32.mrf.mxu0
      %v2326 = vadd.f32 0.0, %v2325
      %2327 = vmatmul.f32.gmra.mxu0 %v2222
      %v2328 = vpop.f32.mrf.mxu0
      %v2329 = vadd.f32 0.0, %v2328
      %2330 = vmatmul.f32.gmra.mxu0 %v2223
      %v2331 = vpop.f32.mrf.mxu0
      %v2332 = vadd.f32 0.0, %v2331
      %2333 = vmatmul.f32.gmra.mxu0 %v2224
      %v2334 = vpop.f32.mrf.mxu0
      %v2335 = vadd.f32 0.0, %v2334
      %2336 = vmatmul.f32.gmra.mxu0 %v2225
      %v2337 = vpop.f32.mrf.mxu0
      %v2338 = vadd.f32 0.0, %v2337
      %2339 = vmatmul.f32.gmra.mxu0 %v2226
      %v2340 = vpop.f32.mrf.mxu0
      %v2341 = vadd.f32 0.0, %v2340
      %2342 = vmatmul.f32.gmra.mxu0 %v2227
      %v2343 = vpop.f32.mrf.mxu0
      %v2344 = vadd.f32 0.0, %v2343
      %2345 = vmatmul.f32.gmra.mxu0 %v2228
      %v2346 = vpop.f32.mrf.mxu0
      %v2347 = vadd.f32 0.0, %v2346
      %2348 = vmatmul.f32.gmra.mxu0 %v2229
      %v2349 = vpop.f32.mrf.mxu0
      %v2350 = vadd.f32 0.0, %v2349
      %2351 = vmatmul.f32.gmra.mxu0 %v2230
      %v2352 = vpop.f32.mrf.mxu0
      %v2353 = vadd.f32 0.0, %v2352
      %2354 = vmatmul.f32.gmra.mxu0 %v2231
      %v2355 = vpop.f32.mrf.mxu0
      %v2356 = vadd.f32 0.0, %v2355
      %2357 = vmatmul.f32.gmra.mxu0 %v2232
      %v2358 = vpop.f32.mrf.mxu0
      %v2359 = vadd.f32 0.0, %v2358
      %2360 = vmatmul.f32.gmra.mxu0 %v2233
      %v2361 = vpop.f32.mrf.mxu0
      %v2362 = vadd.f32 0.0, %v2361
      %2363 = vdwg.mxu0
      %2364 = vmatpush.msra.mxu0 %v2297
      %2365 = vmatpush.msra.mxu0 %v2294
      %2366 = vmatpush.msra.mxu0 %v2291
      %2367 = vmatpush.msra.mxu0 %v2288
      %2368 = vmatpush.msra.mxu0 %v2285
      %2369 = vmatpush.msra.mxu0 %v2282
      %2370 = vmatpush.msra.mxu0 %v2279
      %2371 = vmatpush.msra.mxu0 %v2276
      %2372 = vmatpush.msra.mxu0 %v2273
      %2373 = vmatpush.msra.mxu0 %v2270
      %2374 = vmatpush.msra.mxu0 %v2267
      %2375 = vmatpush.msra.mxu0 %v2264
      %2376 = vmatpush.msra.mxu0 %v2261
      %2377 = vmatpush.msra.mxu0 %v2258
      %2378 = vmatpush.msra.mxu0 %v2255
      %2379 = vmatpush.msra.mxu0 %v2252
      %2380 = vmatmul.f32.gmra.mxu0 %v2317
      %v2381 = vpop.f32.mrf.mxu0
      %v2382 = vadd.f32 0.0, %v2381
      %2383 = vmatmul.f32.gmra.mxu0 %v2320
      %v2384 = vpop.f32.mrf.mxu0
      %v2385 = vadd.f32 0.0, %v2384
      %2386 = vmatmul.f32.gmra.mxu0 %v2323
      %v2387 = vpop.f32.mrf.mxu0
      %v2388 = vadd.f32 0.0, %v2387
      %2389 = vmatmul.f32.gmra.mxu0 %v2326
      %v2390 = vpop.f32.mrf.mxu0
      %v2391 = vadd.f32 0.0, %v2390
      %2392 = vmatmul.f32.gmra.mxu0 %v2329
      %v2393 = vpop.f32.mrf.mxu0
      %v2394 = vadd.f32 0.0, %v2393
      %2395 = vmatmul.f32.gmra.mxu0 %v2332
      %v2396 = vpop.f32.mrf.mxu0
      %v2397 = vadd.f32 0.0, %v2396
      %2398 = vmatmul.f32.gmra.mxu0 %v2335
      %v2399 = vpop.f32.mrf.mxu0
      %v2400 = vadd.f32 0.0, %v2399
      %2401 = vmatmul.f32.gmra.mxu0 %v2338
      %v2402 = vpop.f32.mrf.mxu0
      %v2403 = vadd.f32 0.0, %v2402
      %2404 = vmatmul.f32.gmra.mxu0 %v2341
      %v2405 = vpop.f32.mrf.mxu0
      %v2406 = vadd.f32 0.0, %v2405
      %2407 = vmatmul.f32.gmra.mxu0 %v2344
      %v2408 = vpop.f32.mrf.mxu0
      %v2409 = vadd.f32 0.0, %v2408
      %2410 = vmatmul.f32.gmra.mxu0 %v2347
      %v2411 = vpop.f32.mrf.mxu0
      %v2412 = vadd.f32 0.0, %v2411
      %2413 = vmatmul.f32.gmra.mxu0 %v2350
      %v2414 = vpop.f32.mrf.mxu0
      %v2415 = vadd.f32 0.0, %v2414
      %2416 = vmatmul.f32.gmra.mxu0 %v2353
      %v2417 = vpop.f32.mrf.mxu0
      %v2418 = vadd.f32 0.0, %v2417
      %2419 = vmatmul.f32.gmra.mxu0 %v2356
      %v2420 = vpop.f32.mrf.mxu0
      %v2421 = vadd.f32 0.0, %v2420
      %2422 = vmatmul.f32.gmra.mxu0 %v2359
      %v2423 = vpop.f32.mrf.mxu0
      %v2424 = vadd.f32 0.0, %v2423
      %2425 = vmatmul.f32.gmra.mxu0 %v2362
      %v2426 = vpop.f32.mrf.mxu0
      %v2427 = vadd.f32 0.0, %v2426
      %2428 = vdwg.mxu0
      %v2429 = vsub.f32 %v532, %v2382
      %v2430 = vsub.f32 %v533, %v2385
      %v2431 = vsub.f32 %v534, %v2388
      %v2432 = vsub.f32 %v535, %v2391
      %v2433 = vsub.f32 %v536, %v2394
      %v2434 = vsub.f32 %v537, %v2397
      %v2435 = vsub.f32 %v538, %v2400
      %v2436 = vsub.f32 %v539, %v2403
      %v2437 = vsub.f32 %v540, %v2406
      %v2438 = vsub.f32 %v541, %v2409
      %v2439 = vsub.f32 %v542, %v2412
      %v2440 = vsub.f32 %v543, %v2415
      %v2441 = vsub.f32 %v544, %v2418
      %v2442 = vsub.f32 %v545, %v2421
      %v2443 = vsub.f32 %v546, %v2424
      %v2444 = vsub.f32 %v547, %v2427
      %v2445 = vmul.f32 %v2429, 0.5
      %v2446 = vmul.f32 %v2430, 0.5
      %v2447 = vmul.f32 %v2431, 0.5
      %v2448 = vmul.f32 %v2432, 0.5
      %v2449 = vmul.f32 %v2433, 0.5
      %v2450 = vmul.f32 %v2434, 0.5
      %v2451 = vmul.f32 %v2435, 0.5
      %v2452 = vmul.f32 %v2436, 0.5
      %v2453 = vmul.f32 %v2437, 0.5
      %v2454 = vmul.f32 %v2438, 0.5
      %v2455 = vmul.f32 %v2439, 0.5
      %v2456 = vmul.f32 %v2440, 0.5
      %v2457 = vmul.f32 %v2441, 0.5
      %v2458 = vmul.f32 %v2442, 0.5
      %v2459 = vmul.f32 %v2443, 0.5
      %v2460 = vmul.f32 %v2444, 0.5
      %2461 = vmatpush.msra.mxu0 %v2460
      %2462 = vmatpush.msra.mxu0 %v2459
      %2463 = vmatpush.msra.mxu0 %v2458
      %2464 = vmatpush.msra.mxu0 %v2457
      %2465 = vmatpush.msra.mxu0 %v2456
      %2466 = vmatpush.msra.mxu0 %v2455
      %2467 = vmatpush.msra.mxu0 %v2454
      %2468 = vmatpush.msra.mxu0 %v2453
      %2469 = vmatpush.msra.mxu0 %v2452
      %2470 = vmatpush.msra.mxu0 %v2451
      %2471 = vmatpush.msra.mxu0 %v2450
      %2472 = vmatpush.msra.mxu0 %v2449
      %2473 = vmatpush.msra.mxu0 %v2448
      %2474 = vmatpush.msra.mxu0 %v2447
      %2475 = vmatpush.msra.mxu0 %v2446
      %2476 = vmatpush.msra.mxu0 %v2445
      %2477 = vmatmul.f32.gmra.mxu0 %v2252
      %v2478 = vpop.f32.mrf.mxu0
      %v2479 = vadd.f32 0.0, %v2478
      %2480 = vmatmul.f32.gmra.mxu0 %v2255
      %v2481 = vpop.f32.mrf.mxu0
      %v2482 = vadd.f32 0.0, %v2481
      %2483 = vmatmul.f32.gmra.mxu0 %v2258
      %v2484 = vpop.f32.mrf.mxu0
      %v2485 = vadd.f32 0.0, %v2484
      %2486 = vmatmul.f32.gmra.mxu0 %v2261
      %v2487 = vpop.f32.mrf.mxu0
      %v2488 = vadd.f32 0.0, %v2487
      %2489 = vmatmul.f32.gmra.mxu0 %v2264
      %v2490 = vpop.f32.mrf.mxu0
      %v2491 = vadd.f32 0.0, %v2490
      %2492 = vmatmul.f32.gmra.mxu0 %v2267
      %v2493 = vpop.f32.mrf.mxu0
      %v2494 = vadd.f32 0.0, %v2493
      %2495 = vmatmul.f32.gmra.mxu0 %v2270
      %v2496 = vpop.f32.mrf.mxu0
      %v2497 = vadd.f32 0.0, %v2496
      %2498 = vmatmul.f32.gmra.mxu0 %v2273
      %v2499 = vpop.f32.mrf.mxu0
      %v2500 = vadd.f32 0.0, %v2499
      %2501 = vmatmul.f32.gmra.mxu0 %v2276
      %v2502 = vpop.f32.mrf.mxu0
      %v2503 = vadd.f32 0.0, %v2502
      %2504 = vmatmul.f32.gmra.mxu0 %v2279
      %v2505 = vpop.f32.mrf.mxu0
      %v2506 = vadd.f32 0.0, %v2505
      %2507 = vmatmul.f32.gmra.mxu0 %v2282
      %v2508 = vpop.f32.mrf.mxu0
      %v2509 = vadd.f32 0.0, %v2508
      %2510 = vmatmul.f32.gmra.mxu0 %v2285
      %v2511 = vpop.f32.mrf.mxu0
      %v2512 = vadd.f32 0.0, %v2511
      %2513 = vmatmul.f32.gmra.mxu0 %v2288
      %v2514 = vpop.f32.mrf.mxu0
      %v2515 = vadd.f32 0.0, %v2514
      %2516 = vmatmul.f32.gmra.mxu0 %v2291
      %v2517 = vpop.f32.mrf.mxu0
      %v2518 = vadd.f32 0.0, %v2517
      %2519 = vmatmul.f32.gmra.mxu0 %v2294
      %v2520 = vpop.f32.mrf.mxu0
      %v2521 = vadd.f32 0.0, %v2520
      %2522 = vmatmul.f32.gmra.mxu0 %v2297
      %v2523 = vpop.f32.mrf.mxu0
      %v2524 = vadd.f32 0.0, %v2523
      %2525 = vdwg.mxu0
      %2526 = vmatpush.msra.mxu0 %v2362
      %2527 = vmatpush.msra.mxu0 %v2359
      %2528 = vmatpush.msra.mxu0 %v2356
      %2529 = vmatpush.msra.mxu0 %v2353
      %2530 = vmatpush.msra.mxu0 %v2350
      %2531 = vmatpush.msra.mxu0 %v2347
      %2532 = vmatpush.msra.mxu0 %v2344
      %2533 = vmatpush.msra.mxu0 %v2341
      %2534 = vmatpush.msra.mxu0 %v2338
      %2535 = vmatpush.msra.mxu0 %v2335
      %2536 = vmatpush.msra.mxu0 %v2332
      %2537 = vmatpush.msra.mxu0 %v2329
      %2538 = vmatpush.msra.mxu0 %v2326
      %2539 = vmatpush.msra.mxu0 %v2323
      %2540 = vmatpush.msra.mxu0 %v2320
      %2541 = vmatpush.msra.mxu0 %v2317
      %2542 = vmatmul.f32.gmra.mxu0 %v2445
      %v2543 = vpop.f32.mrf.mxu0
      %v2544 = vadd.f32 0.0, %v2543
      %2545 = vmatmul.f32.gmra.mxu0 %v2446
      %v2546 = vpop.f32.mrf.mxu0
      %v2547 = vadd.f32 0.0, %v2546
      %2548 = vmatmul.f32.gmra.mxu0 %v2447
      %v2549 = vpop.f32.mrf.mxu0
      %v2550 = vadd.f32 0.0, %v2549
      %2551 = vmatmul.f32.gmra.mxu0 %v2448
      %v2552 = vpop.f32.mrf.mxu0
      %v2553 = vadd.f32 0.0, %v2552
      %2554 = vmatmul.f32.gmra.mxu0 %v2449
      %v2555 = vpop.f32.mrf.mxu0
      %v2556 = vadd.f32 0.0, %v2555
      %2557 = vmatmul.f32.gmra.mxu0 %v2450
      %v2558 = vpop.f32.mrf.mxu0
      %v2559 = vadd.f32 0.0, %v2558
      %2560 = vmatmul.f32.gmra.mxu0 %v2451
      %v2561 = vpop.f32.mrf.mxu0
      %v2562 = vadd.f32 0.0, %v2561
      %2563 = vmatmul.f32.gmra.mxu0 %v2452
      %v2564 = vpop.f32.mrf.mxu0
      %v2565 = vadd.f32 0.0, %v2564
      %2566 = vmatmul.f32.gmra.mxu0 %v2453
      %v2567 = vpop.f32.mrf.mxu0
      %v2568 = vadd.f32 0.0, %v2567
      %2569 = vmatmul.f32.gmra.mxu0 %v2454
      %v2570 = vpop.f32.mrf.mxu0
      %v2571 = vadd.f32 0.0, %v2570
      %2572 = vmatmul.f32.gmra.mxu0 %v2455
      %v2573 = vpop.f32.mrf.mxu0
      %v2574 = vadd.f32 0.0, %v2573
      %2575 = vmatmul.f32.gmra.mxu0 %v2456
      %v2576 = vpop.f32.mrf.mxu0
      %v2577 = vadd.f32 0.0, %v2576
      %2578 = vmatmul.f32.gmra.mxu0 %v2457
      %v2579 = vpop.f32.mrf.mxu0
      %v2580 = vadd.f32 0.0, %v2579
      %2581 = vmatmul.f32.gmra.mxu0 %v2458
      %v2582 = vpop.f32.mrf.mxu0
      %v2583 = vadd.f32 0.0, %v2582
      %2584 = vmatmul.f32.gmra.mxu0 %v2459
      %v2585 = vpop.f32.mrf.mxu0
      %v2586 = vadd.f32 0.0, %v2585
      %2587 = vmatmul.f32.gmra.mxu0 %v2460
      %v2588 = vpop.f32.mrf.mxu0
      %v2589 = vadd.f32 0.0, %v2588
      %2590 = vdwg.mxu0
      %2591 = vmatpush.msra.mxu0 %v2524
      %2592 = vmatpush.msra.mxu0 %v2521
      %2593 = vmatpush.msra.mxu0 %v2518
      %2594 = vmatpush.msra.mxu0 %v2515
      %2595 = vmatpush.msra.mxu0 %v2512
      %2596 = vmatpush.msra.mxu0 %v2509
      %2597 = vmatpush.msra.mxu0 %v2506
      %2598 = vmatpush.msra.mxu0 %v2503
      %2599 = vmatpush.msra.mxu0 %v2500
      %2600 = vmatpush.msra.mxu0 %v2497
      %2601 = vmatpush.msra.mxu0 %v2494
      %2602 = vmatpush.msra.mxu0 %v2491
      %2603 = vmatpush.msra.mxu0 %v2488
      %2604 = vmatpush.msra.mxu0 %v2485
      %2605 = vmatpush.msra.mxu0 %v2482
      %2606 = vmatpush.msra.mxu0 %v2479
      %2607 = vmatmul.f32.gmra.mxu0 %v2544
      %v2608 = vpop.f32.mrf.mxu0
      %v2609 = vadd.f32 0.0, %v2608
      %2610 = vmatmul.f32.gmra.mxu0 %v2547
      %v2611 = vpop.f32.mrf.mxu0
      %v2612 = vadd.f32 0.0, %v2611
      %2613 = vmatmul.f32.gmra.mxu0 %v2550
      %v2614 = vpop.f32.mrf.mxu0
      %v2615 = vadd.f32 0.0, %v2614
      %2616 = vmatmul.f32.gmra.mxu0 %v2553
      %v2617 = vpop.f32.mrf.mxu0
      %v2618 = vadd.f32 0.0, %v2617
      %2619 = vmatmul.f32.gmra.mxu0 %v2556
      %v2620 = vpop.f32.mrf.mxu0
      %v2621 = vadd.f32 0.0, %v2620
      %2622 = vmatmul.f32.gmra.mxu0 %v2559
      %v2623 = vpop.f32.mrf.mxu0
      %v2624 = vadd.f32 0.0, %v2623
      %2625 = vmatmul.f32.gmra.mxu0 %v2562
      %v2626 = vpop.f32.mrf.mxu0
      %v2627 = vadd.f32 0.0, %v2626
      %2628 = vmatmul.f32.gmra.mxu0 %v2565
      %v2629 = vpop.f32.mrf.mxu0
      %v2630 = vadd.f32 0.0, %v2629
      %2631 = vmatmul.f32.gmra.mxu0 %v2568
      %v2632 = vpop.f32.mrf.mxu0
      %v2633 = vadd.f32 0.0, %v2632
      %2634 = vmatmul.f32.gmra.mxu0 %v2571
      %v2635 = vpop.f32.mrf.mxu0
      %v2636 = vadd.f32 0.0, %v2635
      %2637 = vmatmul.f32.gmra.mxu0 %v2574
      %v2638 = vpop.f32.mrf.mxu0
      %v2639 = vadd.f32 0.0, %v2638
      %2640 = vmatmul.f32.gmra.mxu0 %v2577
      %v2641 = vpop.f32.mrf.mxu0
      %v2642 = vadd.f32 0.0, %v2641
      %2643 = vmatmul.f32.gmra.mxu0 %v2580
      %v2644 = vpop.f32.mrf.mxu0
      %v2645 = vadd.f32 0.0, %v2644
      %2646 = vmatmul.f32.gmra.mxu0 %v2583
      %v2647 = vpop.f32.mrf.mxu0
      %v2648 = vadd.f32 0.0, %v2647
      %2649 = vmatmul.f32.gmra.mxu0 %v2586
      %v2650 = vpop.f32.mrf.mxu0
      %v2651 = vadd.f32 0.0, %v2650
      %2652 = vmatmul.f32.gmra.mxu0 %v2589
      %v2653 = vpop.f32.mrf.mxu0
      %v2654 = vadd.f32 0.0, %v2653
      %2655 = vdwg.mxu0
      %v2656 = vsub.f32 %v532, %v2609
      %v2657 = vsub.f32 %v533, %v2612
      %v2658 = vsub.f32 %v534, %v2615
      %v2659 = vsub.f32 %v535, %v2618
      %v2660 = vsub.f32 %v536, %v2621
      %v2661 = vsub.f32 %v537, %v2624
      %v2662 = vsub.f32 %v538, %v2627
      %v2663 = vsub.f32 %v539, %v2630
      %v2664 = vsub.f32 %v540, %v2633
      %v2665 = vsub.f32 %v541, %v2636
      %v2666 = vsub.f32 %v542, %v2639
      %v2667 = vsub.f32 %v543, %v2642
      %v2668 = vsub.f32 %v544, %v2645
      %v2669 = vsub.f32 %v545, %v2648
      %v2670 = vsub.f32 %v546, %v2651
      %v2671 = vsub.f32 %v547, %v2654
      %v2672 = vmul.f32 %v2656, 0.5
      %v2673 = vmul.f32 %v2657, 0.5
      %v2674 = vmul.f32 %v2658, 0.5
      %v2675 = vmul.f32 %v2659, 0.5
      %v2676 = vmul.f32 %v2660, 0.5
      %v2677 = vmul.f32 %v2661, 0.5
      %v2678 = vmul.f32 %v2662, 0.5
      %v2679 = vmul.f32 %v2663, 0.5
      %v2680 = vmul.f32 %v2664, 0.5
      %v2681 = vmul.f32 %v2665, 0.5
      %v2682 = vmul.f32 %v2666, 0.5
      %v2683 = vmul.f32 %v2667, 0.5
      %v2684 = vmul.f32 %v2668, 0.5
      %v2685 = vmul.f32 %v2669, 0.5
      %v2686 = vmul.f32 %v2670, 0.5
      %v2687 = vmul.f32 %v2671, 0.5
      %2688 = vmatpush.msra.mxu0 %v2687
      %2689 = vmatpush.msra.mxu0 %v2686
      %2690 = vmatpush.msra.mxu0 %v2685
      %2691 = vmatpush.msra.mxu0 %v2684
      %2692 = vmatpush.msra.mxu0 %v2683
      %2693 = vmatpush.msra.mxu0 %v2682
      %2694 = vmatpush.msra.mxu0 %v2681
      %2695 = vmatpush.msra.mxu0 %v2680
      %2696 = vmatpush.msra.mxu0 %v2679
      %2697 = vmatpush.msra.mxu0 %v2678
      %2698 = vmatpush.msra.mxu0 %v2677
      %2699 = vmatpush.msra.mxu0 %v2676
      %2700 = vmatpush.msra.mxu0 %v2675
      %2701 = vmatpush.msra.mxu0 %v2674
      %2702 = vmatpush.msra.mxu0 %v2673
      %2703 = vmatpush.msra.mxu0 %v2672
      %2704 = vmatmul.f32.gmra.mxu0 %v2479
      %v2705 = vpop.f32.mrf.mxu0
      %v2706 = vadd.f32 0.0, %v2705
      %2707 = vmatmul.f32.gmra.mxu0 %v2482
      %v2708 = vpop.f32.mrf.mxu0
      %v2709 = vadd.f32 0.0, %v2708
      %2710 = vmatmul.f32.gmra.mxu0 %v2485
      %v2711 = vpop.f32.mrf.mxu0
      %v2712 = vadd.f32 0.0, %v2711
      %2713 = vmatmul.f32.gmra.mxu0 %v2488
      %v2714 = vpop.f32.mrf.mxu0
      %v2715 = vadd.f32 0.0, %v2714
      %2716 = vmatmul.f32.gmra.mxu0 %v2491
      %v2717 = vpop.f32.mrf.mxu0
      %v2718 = vadd.f32 0.0, %v2717
      %2719 = vmatmul.f32.gmra.mxu0 %v2494
      %v2720 = vpop.f32.mrf.mxu0
      %v2721 = vadd.f32 0.0, %v2720
      %2722 = vmatmul.f32.gmra.mxu0 %v2497
      %v2723 = vpop.f32.mrf.mxu0
      %v2724 = vadd.f32 0.0, %v2723
      %2725 = vmatmul.f32.gmra.mxu0 %v2500
      %v2726 = vpop.f32.mrf.mxu0
      %v2727 = vadd.f32 0.0, %v2726
      %2728 = vmatmul.f32.gmra.mxu0 %v2503
      %v2729 = vpop.f32.mrf.mxu0
      %v2730 = vadd.f32 0.0, %v2729
      %2731 = vmatmul.f32.gmra.mxu0 %v2506
      %v2732 = vpop.f32.mrf.mxu0
      %v2733 = vadd.f32 0.0, %v2732
      %2734 = vmatmul.f32.gmra.mxu0 %v2509
      %v2735 = vpop.f32.mrf.mxu0
      %v2736 = vadd.f32 0.0, %v2735
      %2737 = vmatmul.f32.gmra.mxu0 %v2512
      %v2738 = vpop.f32.mrf.mxu0
      %v2739 = vadd.f32 0.0, %v2738
      %2740 = vmatmul.f32.gmra.mxu0 %v2515
      %v2741 = vpop.f32.mrf.mxu0
      %v2742 = vadd.f32 0.0, %v2741
      %2743 = vmatmul.f32.gmra.mxu0 %v2518
      %v2744 = vpop.f32.mrf.mxu0
      %v2745 = vadd.f32 0.0, %v2744
      %2746 = vmatmul.f32.gmra.mxu0 %v2521
      %v2747 = vpop.f32.mrf.mxu0
      %v2748 = vadd.f32 0.0, %v2747
      %2749 = vmatmul.f32.gmra.mxu0 %v2524
      %v2750 = vpop.f32.mrf.mxu0
      %v2751 = vadd.f32 0.0, %v2750
      %2752 = vdwg.mxu0
      %2753 = vmatpush.msra.mxu0 %v2589
      %2754 = vmatpush.msra.mxu0 %v2586
      %2755 = vmatpush.msra.mxu0 %v2583
      %2756 = vmatpush.msra.mxu0 %v2580
      %2757 = vmatpush.msra.mxu0 %v2577
      %2758 = vmatpush.msra.mxu0 %v2574
      %2759 = vmatpush.msra.mxu0 %v2571
      %2760 = vmatpush.msra.mxu0 %v2568
      %2761 = vmatpush.msra.mxu0 %v2565
      %2762 = vmatpush.msra.mxu0 %v2562
      %2763 = vmatpush.msra.mxu0 %v2559
      %2764 = vmatpush.msra.mxu0 %v2556
      %2765 = vmatpush.msra.mxu0 %v2553
      %2766 = vmatpush.msra.mxu0 %v2550
      %2767 = vmatpush.msra.mxu0 %v2547
      %2768 = vmatpush.msra.mxu0 %v2544
      %2769 = vmatmul.f32.gmra.mxu0 %v2672
      %v2770 = vpop.f32.mrf.mxu0
      %v2771 = vadd.f32 0.0, %v2770
      %2772 = vmatmul.f32.gmra.mxu0 %v2673
      %v2773 = vpop.f32.mrf.mxu0
      %v2774 = vadd.f32 0.0, %v2773
      %2775 = vmatmul.f32.gmra.mxu0 %v2674
      %v2776 = vpop.f32.mrf.mxu0
      %v2777 = vadd.f32 0.0, %v2776
      %2778 = vmatmul.f32.gmra.mxu0 %v2675
      %v2779 = vpop.f32.mrf.mxu0
      %v2780 = vadd.f32 0.0, %v2779
      %2781 = vmatmul.f32.gmra.mxu0 %v2676
      %v2782 = vpop.f32.mrf.mxu0
      %v2783 = vadd.f32 0.0, %v2782
      %2784 = vmatmul.f32.gmra.mxu0 %v2677
      %v2785 = vpop.f32.mrf.mxu0
      %v2786 = vadd.f32 0.0, %v2785
      %2787 = vmatmul.f32.gmra.mxu0 %v2678
      %v2788 = vpop.f32.mrf.mxu0
      %v2789 = vadd.f32 0.0, %v2788
      %2790 = vmatmul.f32.gmra.mxu0 %v2679
      %v2791 = vpop.f32.mrf.mxu0
      %v2792 = vadd.f32 0.0, %v2791
      %2793 = vmatmul.f32.gmra.mxu0 %v2680
      %v2794 = vpop.f32.mrf.mxu0
      %v2795 = vadd.f32 0.0, %v2794
      %2796 = vmatmul.f32.gmra.mxu0 %v2681
      %v2797 = vpop.f32.mrf.mxu0
      %v2798 = vadd.f32 0.0, %v2797
      %2799 = vmatmul.f32.gmra.mxu0 %v2682
      %v2800 = vpop.f32.mrf.mxu0
      %v2801 = vadd.f32 0.0, %v2800
      %2802 = vmatmul.f32.gmra.mxu0 %v2683
      %v2803 = vpop.f32.mrf.mxu0
      %v2804 = vadd.f32 0.0, %v2803
      %2805 = vmatmul.f32.gmra.mxu0 %v2684
      %v2806 = vpop.f32.mrf.mxu0
      %v2807 = vadd.f32 0.0, %v2806
      %2808 = vmatmul.f32.gmra.mxu0 %v2685
      %v2809 = vpop.f32.mrf.mxu0
      %v2810 = vadd.f32 0.0, %v2809
      %2811 = vmatmul.f32.gmra.mxu0 %v2686
      %v2812 = vpop.f32.mrf.mxu0
      %v2813 = vadd.f32 0.0, %v2812
      %2814 = vmatmul.f32.gmra.mxu0 %v2687
      %v2815 = vpop.f32.mrf.mxu0
      %v2816 = vadd.f32 0.0, %v2815
      %2817 = vdwg.mxu0
      %2818 = vmatpush.msra.mxu0 %v2751
      %2819 = vmatpush.msra.mxu0 %v2748
      %2820 = vmatpush.msra.mxu0 %v2745
      %2821 = vmatpush.msra.mxu0 %v2742
      %2822 = vmatpush.msra.mxu0 %v2739
      %2823 = vmatpush.msra.mxu0 %v2736
      %2824 = vmatpush.msra.mxu0 %v2733
      %2825 = vmatpush.msra.mxu0 %v2730
      %2826 = vmatpush.msra.mxu0 %v2727
      %2827 = vmatpush.msra.mxu0 %v2724
      %2828 = vmatpush.msra.mxu0 %v2721
      %2829 = vmatpush.msra.mxu0 %v2718
      %2830 = vmatpush.msra.mxu0 %v2715
      %2831 = vmatpush.msra.mxu0 %v2712
      %2832 = vmatpush.msra.mxu0 %v2709
      %2833 = vmatpush.msra.mxu0 %v2706
      %2834 = vmatmul.f32.gmra.mxu0 %v2771
      %v2835 = vpop.f32.mrf.mxu0
      %v2836 = vadd.f32 0.0, %v2835
      %2837 = vmatmul.f32.gmra.mxu0 %v2774
      %v2838 = vpop.f32.mrf.mxu0
      %v2839 = vadd.f32 0.0, %v2838
      %2840 = vmatmul.f32.gmra.mxu0 %v2777
      %v2841 = vpop.f32.mrf.mxu0
      %v2842 = vadd.f32 0.0, %v2841
      %2843 = vmatmul.f32.gmra.mxu0 %v2780
      %v2844 = vpop.f32.mrf.mxu0
      %v2845 = vadd.f32 0.0, %v2844
      %2846 = vmatmul.f32.gmra.mxu0 %v2783
      %v2847 = vpop.f32.mrf.mxu0
      %v2848 = vadd.f32 0.0, %v2847
      %2849 = vmatmul.f32.gmra.mxu0 %v2786
      %v2850 = vpop.f32.mrf.mxu0
      %v2851 = vadd.f32 0.0, %v2850
      %2852 = vmatmul.f32.gmra.mxu0 %v2789
      %v2853 = vpop.f32.mrf.mxu0
      %v2854 = vadd.f32 0.0, %v2853
      %2855 = vmatmul.f32.gmra.mxu0 %v2792
      %v2856 = vpop.f32.mrf.mxu0
      %v2857 = vadd.f32 0.0, %v2856
      %2858 = vmatmul.f32.gmra.mxu0 %v2795
      %v2859 = vpop.f32.mrf.mxu0
      %v2860 = vadd.f32 0.0, %v2859
      %2861 = vmatmul.f32.gmra.mxu0 %v2798
      %v2862 = vpop.f32.mrf.mxu0
      %v2863 = vadd.f32 0.0, %v2862
      %2864 = vmatmul.f32.gmra.mxu0 %v2801
      %v2865 = vpop.f32.mrf.mxu0
      %v2866 = vadd.f32 0.0, %v2865
      %2867 = vmatmul.f32.gmra.mxu0 %v2804
      %v2868 = vpop.f32.mrf.mxu0
      %v2869 = vadd.f32 0.0, %v2868
      %2870 = vmatmul.f32.gmra.mxu0 %v2807
      %v2871 = vpop.f32.mrf.mxu0
      %v2872 = vadd.f32 0.0, %v2871
      %2873 = vmatmul.f32.gmra.mxu0 %v2810
      %v2874 = vpop.f32.mrf.mxu0
      %v2875 = vadd.f32 0.0, %v2874
      %2876 = vmatmul.f32.gmra.mxu0 %v2813
      %v2877 = vpop.f32.mrf.mxu0
      %v2878 = vadd.f32 0.0, %v2877
      %2879 = vmatmul.f32.gmra.mxu0 %v2816
      %v2880 = vpop.f32.mrf.mxu0
      %v2881 = vadd.f32 0.0, %v2880
      %2882 = vdwg.mxu0
      %v2883 = vsub.f32 %v532, %v2836
      %v2884 = vsub.f32 %v533, %v2839
      %v2885 = vsub.f32 %v534, %v2842
      %v2886 = vsub.f32 %v535, %v2845
      %v2887 = vsub.f32 %v536, %v2848
      %v2888 = vsub.f32 %v537, %v2851
      %v2889 = vsub.f32 %v538, %v2854
      %v2890 = vsub.f32 %v539, %v2857
      %v2891 = vsub.f32 %v540, %v2860
      %v2892 = vsub.f32 %v541, %v2863
      %v2893 = vsub.f32 %v542, %v2866
      %v2894 = vsub.f32 %v543, %v2869
      %v2895 = vsub.f32 %v544, %v2872
      %v2896 = vsub.f32 %v545, %v2875
      %v2897 = vsub.f32 %v546, %v2878
      %v2898 = vsub.f32 %v547, %v2881
      %v2899 = vmul.f32 %v2883, 0.5
      %v2900 = vmul.f32 %v2884, 0.5
      %v2901 = vmul.f32 %v2885, 0.5
      %v2902 = vmul.f32 %v2886, 0.5
      %v2903 = vmul.f32 %v2887, 0.5
      %v2904 = vmul.f32 %v2888, 0.5
      %v2905 = vmul.f32 %v2889, 0.5
      %v2906 = vmul.f32 %v2890, 0.5
      %v2907 = vmul.f32 %v2891, 0.5
      %v2908 = vmul.f32 %v2892, 0.5
      %v2909 = vmul.f32 %v2893, 0.5
      %v2910 = vmul.f32 %v2894, 0.5
      %v2911 = vmul.f32 %v2895, 0.5
      %v2912 = vmul.f32 %v2896, 0.5
      %v2913 = vmul.f32 %v2897, 0.5
      %v2914 = vmul.f32 %v2898, 0.5
      %2915 = vmatpush.msra.mxu0 %v2914
      %2916 = vmatpush.msra.mxu0 %v2913
      %2917 = vmatpush.msra.mxu0 %v2912
      %2918 = vmatpush.msra.mxu0 %v2911
      %2919 = vmatpush.msra.mxu0 %v2910
      %2920 = vmatpush.msra.mxu0 %v2909
      %2921 = vmatpush.msra.mxu0 %v2908
      %2922 = vmatpush.msra.mxu0 %v2907
      %2923 = vmatpush.msra.mxu0 %v2906
      %2924 = vmatpush.msra.mxu0 %v2905
      %2925 = vmatpush.msra.mxu0 %v2904
      %2926 = vmatpush.msra.mxu0 %v2903
      %2927 = vmatpush.msra.mxu0 %v2902
      %2928 = vmatpush.msra.mxu0 %v2901
      %2929 = vmatpush.msra.mxu0 %v2900
      %2930 = vmatpush.msra.mxu0 %v2899
      %2931 = vmatmul.f32.gmra.mxu0 %v2706
      %v2932 = vpop.f32.mrf.mxu0
      %v2933 = vadd.f32 0.0, %v2932
      %2934 = vmatmul.f32.gmra.mxu0 %v2709
      %v2935 = vpop.f32.mrf.mxu0
      %v2936 = vadd.f32 0.0, %v2935
      %2937 = vmatmul.f32.gmra.mxu0 %v2712
      %v2938 = vpop.f32.mrf.mxu0
      %v2939 = vadd.f32 0.0, %v2938
      %2940 = vmatmul.f32.gmra.mxu0 %v2715
      %v2941 = vpop.f32.mrf.mxu0
      %v2942 = vadd.f32 0.0, %v2941
      %2943 = vmatmul.f32.gmra.mxu0 %v2718
      %v2944 = vpop.f32.mrf.mxu0
      %v2945 = vadd.f32 0.0, %v2944
      %2946 = vmatmul.f32.gmra.mxu0 %v2721
      %v2947 = vpop.f32.mrf.mxu0
      %v2948 = vadd.f32 0.0, %v2947
      %2949 = vmatmul.f32.gmra.mxu0 %v2724
      %v2950 = vpop.f32.mrf.mxu0
      %v2951 = vadd.f32 0.0, %v2950
      %2952 = vmatmul.f32.gmra.mxu0 %v2727
      %v2953 = vpop.f32.mrf.mxu0
      %v2954 = vadd.f32 0.0, %v2953
      %2955 = vmatmul.f32.gmra.mxu0 %v2730
      %v2956 = vpop.f32.mrf.mxu0
      %v2957 = vadd.f32 0.0, %v2956
      %2958 = vmatmul.f32.gmra.mxu0 %v2733
      %v2959 = vpop.f32.mrf.mxu0
      %v2960 = vadd.f32 0.0, %v2959
      %2961 = vmatmul.f32.gmra.mxu0 %v2736
      %v2962 = vpop.f32.mrf.mxu0
      %v2963 = vadd.f32 0.0, %v2962
      %2964 = vmatmul.f32.gmra.mxu0 %v2739
      %v2965 = vpop.f32.mrf.mxu0
      %v2966 = vadd.f32 0.0, %v2965
      %2967 = vmatmul.f32.gmra.mxu0 %v2742
      %v2968 = vpop.f32.mrf.mxu0
      %v2969 = vadd.f32 0.0, %v2968
      %2970 = vmatmul.f32.gmra.mxu0 %v2745
      %v2971 = vpop.f32.mrf.mxu0
      %v2972 = vadd.f32 0.0, %v2971
      %2973 = vmatmul.f32.gmra.mxu0 %v2748
      %v2974 = vpop.f32.mrf.mxu0
      %v2975 = vadd.f32 0.0, %v2974
      %2976 = vmatmul.f32.gmra.mxu0 %v2751
      %v2977 = vpop.f32.mrf.mxu0
      %v2978 = vadd.f32 0.0, %v2977
      %2979 = vdwg.mxu0
      %2980 = vmatpush.msra.mxu0 %v2816
      %2981 = vmatpush.msra.mxu0 %v2813
      %2982 = vmatpush.msra.mxu0 %v2810
      %2983 = vmatpush.msra.mxu0 %v2807
      %2984 = vmatpush.msra.mxu0 %v2804
      %2985 = vmatpush.msra.mxu0 %v2801
      %2986 = vmatpush.msra.mxu0 %v2798
      %2987 = vmatpush.msra.mxu0 %v2795
      %2988 = vmatpush.msra.mxu0 %v2792
      %2989 = vmatpush.msra.mxu0 %v2789
      %2990 = vmatpush.msra.mxu0 %v2786
      %2991 = vmatpush.msra.mxu0 %v2783
      %2992 = vmatpush.msra.mxu0 %v2780
      %2993 = vmatpush.msra.mxu0 %v2777
      %2994 = vmatpush.msra.mxu0 %v2774
      %2995 = vmatpush.msra.mxu0 %v2771
      %2996 = vmatmul.f32.gmra.mxu0 %v2899
      %v2997 = vpop.f32.mrf.mxu0
      %v2998 = vadd.f32 0.0, %v2997
      %2999 = vmatmul.f32.gmra.mxu0 %v2900
      %v3000 = vpop.f32.mrf.mxu0
      %v3001 = vadd.f32 0.0, %v3000
      %3002 = vmatmul.f32.gmra.mxu0 %v2901
      %v3003 = vpop.f32.mrf.mxu0
      %v3004 = vadd.f32 0.0, %v3003
      %3005 = vmatmul.f32.gmra.mxu0 %v2902
      %v3006 = vpop.f32.mrf.mxu0
      %v3007 = vadd.f32 0.0, %v3006
      %3008 = vmatmul.f32.gmra.mxu0 %v2903
      %v3009 = vpop.f32.mrf.mxu0
      %v3010 = vadd.f32 0.0, %v3009
      %3011 = vmatmul.f32.gmra.mxu0 %v2904
      %v3012 = vpop.f32.mrf.mxu0
      %v3013 = vadd.f32 0.0, %v3012
      %3014 = vmatmul.f32.gmra.mxu0 %v2905
      %v3015 = vpop.f32.mrf.mxu0
      %v3016 = vadd.f32 0.0, %v3015
      %3017 = vmatmul.f32.gmra.mxu0 %v2906
      %v3018 = vpop.f32.mrf.mxu0
      %v3019 = vadd.f32 0.0, %v3018
      %3020 = vmatmul.f32.gmra.mxu0 %v2907
      %v3021 = vpop.f32.mrf.mxu0
      %v3022 = vadd.f32 0.0, %v3021
      %3023 = vmatmul.f32.gmra.mxu0 %v2908
      %v3024 = vpop.f32.mrf.mxu0
      %v3025 = vadd.f32 0.0, %v3024
      %3026 = vmatmul.f32.gmra.mxu0 %v2909
      %v3027 = vpop.f32.mrf.mxu0
      %v3028 = vadd.f32 0.0, %v3027
      %3029 = vmatmul.f32.gmra.mxu0 %v2910
      %v3030 = vpop.f32.mrf.mxu0
      %v3031 = vadd.f32 0.0, %v3030
      %3032 = vmatmul.f32.gmra.mxu0 %v2911
      %v3033 = vpop.f32.mrf.mxu0
      %v3034 = vadd.f32 0.0, %v3033
      %3035 = vmatmul.f32.gmra.mxu0 %v2912
      %v3036 = vpop.f32.mrf.mxu0
      %v3037 = vadd.f32 0.0, %v3036
      %3038 = vmatmul.f32.gmra.mxu0 %v2913
      %v3039 = vpop.f32.mrf.mxu0
      %v3040 = vadd.f32 0.0, %v3039
      %3041 = vmatmul.f32.gmra.mxu0 %v2914
      %v3042 = vpop.f32.mrf.mxu0
      %v3043 = vadd.f32 0.0, %v3042
      %3044 = vdwg.mxu0
      %3045 = vmatpush.msra.mxu0 %v2978
      %3046 = vmatpush.msra.mxu0 %v2975
      %3047 = vmatpush.msra.mxu0 %v2972
      %3048 = vmatpush.msra.mxu0 %v2969
      %3049 = vmatpush.msra.mxu0 %v2966
      %3050 = vmatpush.msra.mxu0 %v2963
      %3051 = vmatpush.msra.mxu0 %v2960
      %3052 = vmatpush.msra.mxu0 %v2957
      %3053 = vmatpush.msra.mxu0 %v2954
      %3054 = vmatpush.msra.mxu0 %v2951
      %3055 = vmatpush.msra.mxu0 %v2948
      %3056 = vmatpush.msra.mxu0 %v2945
      %3057 = vmatpush.msra.mxu0 %v2942
      %3058 = vmatpush.msra.mxu0 %v2939
      %3059 = vmatpush.msra.mxu0 %v2936
      %3060 = vmatpush.msra.mxu0 %v2933
      %3061 = vmatmul.f32.gmra.mxu0 %v2998
      %v3062 = vpop.f32.mrf.mxu0
      %v3063 = vadd.f32 0.0, %v3062
      %3064 = vmatmul.f32.gmra.mxu0 %v3001
      %v3065 = vpop.f32.mrf.mxu0
      %v3066 = vadd.f32 0.0, %v3065
      %3067 = vmatmul.f32.gmra.mxu0 %v3004
      %v3068 = vpop.f32.mrf.mxu0
      %v3069 = vadd.f32 0.0, %v3068
      %3070 = vmatmul.f32.gmra.mxu0 %v3007
      %v3071 = vpop.f32.mrf.mxu0
      %v3072 = vadd.f32 0.0, %v3071
      %3073 = vmatmul.f32.gmra.mxu0 %v3010
      %v3074 = vpop.f32.mrf.mxu0
      %v3075 = vadd.f32 0.0, %v3074
      %3076 = vmatmul.f32.gmra.mxu0 %v3013
      %v3077 = vpop.f32.mrf.mxu0
      %v3078 = vadd.f32 0.0, %v3077
      %3079 = vmatmul.f32.gmra.mxu0 %v3016
      %v3080 = vpop.f32.mrf.mxu0
      %v3081 = vadd.f32 0.0, %v3080
      %3082 = vmatmul.f32.gmra.mxu0 %v3019
      %v3083 = vpop.f32.mrf.mxu0
      %v3084 = vadd.f32 0.0, %v3083
      %3085 = vmatmul.f32.gmra.mxu0 %v3022
      %v3086 = vpop.f32.mrf.mxu0
      %v3087 = vadd.f32 0.0, %v3086
      %3088 = vmatmul.f32.gmra.mxu0 %v3025
      %v3089 = vpop.f32.mrf.mxu0
      %v3090 = vadd.f32 0.0, %v3089
      %3091 = vmatmul.f32.gmra.mxu0 %v3028
      %v3092 = vpop.f32.mrf.mxu0
      %v3093 = vadd.f32 0.0, %v3092
      %3094 = vmatmul.f32.gmra.mxu0 %v3031
      %v3095 = vpop.f32.mrf.mxu0
      %v3096 = vadd.f32 0.0, %v3095
      %3097 = vmatmul.f32.gmra.mxu0 %v3034
      %v3098 = vpop.f32.mrf.mxu0
      %v3099 = vadd.f32 0.0, %v3098
      %3100 = vmatmul.f32.gmra.mxu0 %v3037
      %v3101 = vpop.f32.mrf.mxu0
      %v3102 = vadd.f32 0.0, %v3101
      %3103 = vmatmul.f32.gmra.mxu0 %v3040
      %v3104 = vpop.f32.mrf.mxu0
      %v3105 = vadd.f32 0.0, %v3104
      %3106 = vmatmul.f32.gmra.mxu0 %v3043
      %v3107 = vpop.f32.mrf.mxu0
      %v3108 = vadd.f32 0.0, %v3107
      %3109 = vdwg.mxu0
      %v3110 = vsub.f32 %v532, %v3063
      %v3111 = vsub.f32 %v533, %v3066
      %v3112 = vsub.f32 %v534, %v3069
      %v3113 = vsub.f32 %v535, %v3072
      %v3114 = vsub.f32 %v536, %v3075
      %v3115 = vsub.f32 %v537, %v3078
      %v3116 = vsub.f32 %v538, %v3081
      %v3117 = vsub.f32 %v539, %v3084
      %v3118 = vsub.f32 %v540, %v3087
      %v3119 = vsub.f32 %v541, %v3090
      %v3120 = vsub.f32 %v542, %v3093
      %v3121 = vsub.f32 %v543, %v3096
      %v3122 = vsub.f32 %v544, %v3099
      %v3123 = vsub.f32 %v545, %v3102
      %v3124 = vsub.f32 %v546, %v3105
      %v3125 = vsub.f32 %v547, %v3108
      %v3126 = vmul.f32 %v3110, 0.5
      %v3127 = vmul.f32 %v3111, 0.5
      %v3128 = vmul.f32 %v3112, 0.5
      %v3129 = vmul.f32 %v3113, 0.5
      %v3130 = vmul.f32 %v3114, 0.5
      %v3131 = vmul.f32 %v3115, 0.5
      %v3132 = vmul.f32 %v3116, 0.5
      %v3133 = vmul.f32 %v3117, 0.5
      %v3134 = vmul.f32 %v3118, 0.5
      %v3135 = vmul.f32 %v3119, 0.5
      %v3136 = vmul.f32 %v3120, 0.5
      %v3137 = vmul.f32 %v3121, 0.5
      %v3138 = vmul.f32 %v3122, 0.5
      %v3139 = vmul.f32 %v3123, 0.5
      %v3140 = vmul.f32 %v3124, 0.5
      %v3141 = vmul.f32 %v3125, 0.5
      %3142 = vmatpush.msra.mxu0 %v3141
      %3143 = vmatpush.msra.mxu0 %v3140
      %3144 = vmatpush.msra.mxu0 %v3139
      %3145 = vmatpush.msra.mxu0 %v3138
      %3146 = vmatpush.msra.mxu0 %v3137
      %3147 = vmatpush.msra.mxu0 %v3136
      %3148 = vmatpush.msra.mxu0 %v3135
      %3149 = vmatpush.msra.mxu0 %v3134
      %3150 = vmatpush.msra.mxu0 %v3133
      %3151 = vmatpush.msra.mxu0 %v3132
      %3152 = vmatpush.msra.mxu0 %v3131
      %3153 = vmatpush.msra.mxu0 %v3130
      %3154 = vmatpush.msra.mxu0 %v3129
      %3155 = vmatpush.msra.mxu0 %v3128
      %3156 = vmatpush.msra.mxu0 %v3127
      %3157 = vmatpush.msra.mxu0 %v3126
      %3158 = vmatmul.f32.gmra.mxu0 %v2933
      %v3159 = vpop.f32.mrf.mxu0
      %v3160 = vadd.f32 0.0, %v3159
      %3161 = vmatmul.f32.gmra.mxu0 %v2936
      %v3162 = vpop.f32.mrf.mxu0
      %v3163 = vadd.f32 0.0, %v3162
      %3164 = vmatmul.f32.gmra.mxu0 %v2939
      %v3165 = vpop.f32.mrf.mxu0
      %v3166 = vadd.f32 0.0, %v3165
      %3167 = vmatmul.f32.gmra.mxu0 %v2942
      %v3168 = vpop.f32.mrf.mxu0
      %v3169 = vadd.f32 0.0, %v3168
      %3170 = vmatmul.f32.gmra.mxu0 %v2945
      %v3171 = vpop.f32.mrf.mxu0
      %v3172 = vadd.f32 0.0, %v3171
      %3173 = vmatmul.f32.gmra.mxu0 %v2948
      %v3174 = vpop.f32.mrf.mxu0
      %v3175 = vadd.f32 0.0, %v3174
      %3176 = vmatmul.f32.gmra.mxu0 %v2951
      %v3177 = vpop.f32.mrf.mxu0
      %v3178 = vadd.f32 0.0, %v3177
      %3179 = vmatmul.f32.gmra.mxu0 %v2954
      %v3180 = vpop.f32.mrf.mxu0
      %v3181 = vadd.f32 0.0, %v3180
      %3182 = vmatmul.f32.gmra.mxu0 %v2957
      %v3183 = vpop.f32.mrf.mxu0
      %v3184 = vadd.f32 0.0, %v3183
      %3185 = vmatmul.f32.gmra.mxu0 %v2960
      %v3186 = vpop.f32.mrf.mxu0
      %v3187 = vadd.f32 0.0, %v3186
      %3188 = vmatmul.f32.gmra.mxu0 %v2963
      %v3189 = vpop.f32.mrf.mxu0
      %v3190 = vadd.f32 0.0, %v3189
      %3191 = vmatmul.f32.gmra.mxu0 %v2966
      %v3192 = vpop.f32.mrf.mxu0
      %v3193 = vadd.f32 0.0, %v3192
      %3194 = vmatmul.f32.gmra.mxu0 %v2969
      %v3195 = vpop.f32.mrf.mxu0
      %v3196 = vadd.f32 0.0, %v3195
      %3197 = vmatmul.f32.gmra.mxu0 %v2972
      %v3198 = vpop.f32.mrf.mxu0
      %v3199 = vadd.f32 0.0, %v3198
      %3200 = vmatmul.f32.gmra.mxu0 %v2975
      %v3201 = vpop.f32.mrf.mxu0
      %v3202 = vadd.f32 0.0, %v3201
      %3203 = vmatmul.f32.gmra.mxu0 %v2978
      %v3204 = vpop.f32.mrf.mxu0
      %v3205 = vadd.f32 0.0, %v3204
      %3206 = vdwg.mxu0
      %3207 = vmatpush.msra.mxu0 %v3043
      %3208 = vmatpush.msra.mxu0 %v3040
      %3209 = vmatpush.msra.mxu0 %v3037
      %3210 = vmatpush.msra.mxu0 %v3034
      %3211 = vmatpush.msra.mxu0 %v3031
      %3212 = vmatpush.msra.mxu0 %v3028
      %3213 = vmatpush.msra.mxu0 %v3025
      %3214 = vmatpush.msra.mxu0 %v3022
      %3215 = vmatpush.msra.mxu0 %v3019
      %3216 = vmatpush.msra.mxu0 %v3016
      %3217 = vmatpush.msra.mxu0 %v3013
      %3218 = vmatpush.msra.mxu0 %v3010
      %3219 = vmatpush.msra.mxu0 %v3007
      %3220 = vmatpush.msra.mxu0 %v3004
      %3221 = vmatpush.msra.mxu0 %v3001
      %3222 = vmatpush.msra.mxu0 %v2998
      %3223 = vmatmul.f32.gmra.mxu0 %v3126
      %v3224 = vpop.f32.mrf.mxu0
      %v3225 = vadd.f32 0.0, %v3224
      %3226 = vmatmul.f32.gmra.mxu0 %v3127
      %v3227 = vpop.f32.mrf.mxu0
      %v3228 = vadd.f32 0.0, %v3227
      %3229 = vmatmul.f32.gmra.mxu0 %v3128
      %v3230 = vpop.f32.mrf.mxu0
      %v3231 = vadd.f32 0.0, %v3230
      %3232 = vmatmul.f32.gmra.mxu0 %v3129
      %v3233 = vpop.f32.mrf.mxu0
      %v3234 = vadd.f32 0.0, %v3233
      %3235 = vmatmul.f32.gmra.mxu0 %v3130
      %v3236 = vpop.f32.mrf.mxu0
      %v3237 = vadd.f32 0.0, %v3236
      %3238 = vmatmul.f32.gmra.mxu0 %v3131
      %v3239 = vpop.f32.mrf.mxu0
      %v3240 = vadd.f32 0.0, %v3239
      %3241 = vmatmul.f32.gmra.mxu0 %v3132
      %v3242 = vpop.f32.mrf.mxu0
      %v3243 = vadd.f32 0.0, %v3242
      %3244 = vmatmul.f32.gmra.mxu0 %v3133
      %v3245 = vpop.f32.mrf.mxu0
      %v3246 = vadd.f32 0.0, %v3245
      %3247 = vmatmul.f32.gmra.mxu0 %v3134
      %v3248 = vpop.f32.mrf.mxu0
      %v3249 = vadd.f32 0.0, %v3248
      %3250 = vmatmul.f32.gmra.mxu0 %v3135
      %v3251 = vpop.f32.mrf.mxu0
      %v3252 = vadd.f32 0.0, %v3251
      %3253 = vmatmul.f32.gmra.mxu0 %v3136
      %v3254 = vpop.f32.mrf.mxu0
      %v3255 = vadd.f32 0.0, %v3254
      %3256 = vmatmul.f32.gmra.mxu0 %v3137
      %v3257 = vpop.f32.mrf.mxu0
      %v3258 = vadd.f32 0.0, %v3257
      %3259 = vmatmul.f32.gmra.mxu0 %v3138
      %v3260 = vpop.f32.mrf.mxu0
      %v3261 = vadd.f32 0.0, %v3260
      %3262 = vmatmul.f32.gmra.mxu0 %v3139
      %v3263 = vpop.f32.mrf.mxu0
      %v3264 = vadd.f32 0.0, %v3263
      %3265 = vmatmul.f32.gmra.mxu0 %v3140
      %v3266 = vpop.f32.mrf.mxu0
      %v3267 = vadd.f32 0.0, %v3266
      %3268 = vmatmul.f32.gmra.mxu0 %v3141
      %v3269 = vpop.f32.mrf.mxu0
      %v3270 = vadd.f32 0.0, %v3269
      %3271 = vdwg.mxu0
      %3272 = vmatpush.msra.mxu0 %v3205
      %3273 = vmatpush.msra.mxu0 %v3202
      %3274 = vmatpush.msra.mxu0 %v3199
      %3275 = vmatpush.msra.mxu0 %v3196
      %3276 = vmatpush.msra.mxu0 %v3193
      %3277 = vmatpush.msra.mxu0 %v3190
      %3278 = vmatpush.msra.mxu0 %v3187
      %3279 = vmatpush.msra.mxu0 %v3184
      %3280 = vmatpush.msra.mxu0 %v3181
      %3281 = vmatpush.msra.mxu0 %v3178
      %3282 = vmatpush.msra.mxu0 %v3175
      %3283 = vmatpush.msra.mxu0 %v3172
      %3284 = vmatpush.msra.mxu0 %v3169
      %3285 = vmatpush.msra.mxu0 %v3166
      %3286 = vmatpush.msra.mxu0 %v3163
      %3287 = vmatpush.msra.mxu0 %v3160
      %3288 = vmatmul.f32.gmra.mxu0 %v3225
      %v3289 = vpop.f32.mrf.mxu0
      %v3290 = vadd.f32 0.0, %v3289
      %3291 = vmatmul.f32.gmra.mxu0 %v3228
      %v3292 = vpop.f32.mrf.mxu0
      %v3293 = vadd.f32 0.0, %v3292
      %3294 = vmatmul.f32.gmra.mxu0 %v3231
      %v3295 = vpop.f32.mrf.mxu0
      %v3296 = vadd.f32 0.0, %v3295
      %3297 = vmatmul.f32.gmra.mxu0 %v3234
      %v3298 = vpop.f32.mrf.mxu0
      %v3299 = vadd.f32 0.0, %v3298
      %3300 = vmatmul.f32.gmra.mxu0 %v3237
      %v3301 = vpop.f32.mrf.mxu0
      %v3302 = vadd.f32 0.0, %v3301
      %3303 = vmatmul.f32.gmra.mxu0 %v3240
      %v3304 = vpop.f32.mrf.mxu0
      %v3305 = vadd.f32 0.0, %v3304
      %3306 = vmatmul.f32.gmra.mxu0 %v3243
      %v3307 = vpop.f32.mrf.mxu0
      %v3308 = vadd.f32 0.0, %v3307
      %3309 = vmatmul.f32.gmra.mxu0 %v3246
      %v3310 = vpop.f32.mrf.mxu0
      %v3311 = vadd.f32 0.0, %v3310
      %3312 = vmatmul.f32.gmra.mxu0 %v3249
      %v3313 = vpop.f32.mrf.mxu0
      %v3314 = vadd.f32 0.0, %v3313
      %3315 = vmatmul.f32.gmra.mxu0 %v3252
      %v3316 = vpop.f32.mrf.mxu0
      %v3317 = vadd.f32 0.0, %v3316
      %3318 = vmatmul.f32.gmra.mxu0 %v3255
      %v3319 = vpop.f32.mrf.mxu0
      %v3320 = vadd.f32 0.0, %v3319
      %3321 = vmatmul.f32.gmra.mxu0 %v3258
      %v3322 = vpop.f32.mrf.mxu0
      %v3323 = vadd.f32 0.0, %v3322
      %3324 = vmatmul.f32.gmra.mxu0 %v3261
      %v3325 = vpop.f32.mrf.mxu0
      %v3326 = vadd.f32 0.0, %v3325
      %3327 = vmatmul.f32.gmra.mxu0 %v3264
      %v3328 = vpop.f32.mrf.mxu0
      %v3329 = vadd.f32 0.0, %v3328
      %3330 = vmatmul.f32.gmra.mxu0 %v3267
      %v3331 = vpop.f32.mrf.mxu0
      %v3332 = vadd.f32 0.0, %v3331
      %3333 = vmatmul.f32.gmra.mxu0 %v3270
      %v3334 = vpop.f32.mrf.mxu0
      %v3335 = vadd.f32 0.0, %v3334
      %3336 = vdwg.mxu0
      %v3337 = vsub.f32 %v532, %v3290
      %v3338 = vsub.f32 %v533, %v3293
      %v3339 = vsub.f32 %v534, %v3296
      %v3340 = vsub.f32 %v535, %v3299
      %v3341 = vsub.f32 %v536, %v3302
      %v3342 = vsub.f32 %v537, %v3305
      %v3343 = vsub.f32 %v538, %v3308
      %v3344 = vsub.f32 %v539, %v3311
      %v3345 = vsub.f32 %v540, %v3314
      %v3346 = vsub.f32 %v541, %v3317
      %v3347 = vsub.f32 %v542, %v3320
      %v3348 = vsub.f32 %v543, %v3323
      %v3349 = vsub.f32 %v544, %v3326
      %v3350 = vsub.f32 %v545, %v3329
      %v3351 = vsub.f32 %v546, %v3332
      %v3352 = vsub.f32 %v547, %v3335
      %v3353 = vmul.f32 %v3337, 0.5
      %v3354 = vmul.f32 %v3338, 0.5
      %v3355 = vmul.f32 %v3339, 0.5
      %v3356 = vmul.f32 %v3340, 0.5
      %v3357 = vmul.f32 %v3341, 0.5
      %v3358 = vmul.f32 %v3342, 0.5
      %v3359 = vmul.f32 %v3343, 0.5
      %v3360 = vmul.f32 %v3344, 0.5
      %v3361 = vmul.f32 %v3345, 0.5
      %v3362 = vmul.f32 %v3346, 0.5
      %v3363 = vmul.f32 %v3347, 0.5
      %v3364 = vmul.f32 %v3348, 0.5
      %v3365 = vmul.f32 %v3349, 0.5
      %v3366 = vmul.f32 %v3350, 0.5
      %v3367 = vmul.f32 %v3351, 0.5
      %v3368 = vmul.f32 %v3352, 0.5
      %3369 = vmatpush.msra.mxu0 %v3368
      %3370 = vmatpush.msra.mxu0 %v3367
      %3371 = vmatpush.msra.mxu0 %v3366
      %3372 = vmatpush.msra.mxu0 %v3365
      %3373 = vmatpush.msra.mxu0 %v3364
      %3374 = vmatpush.msra.mxu0 %v3363
      %3375 = vmatpush.msra.mxu0 %v3362
      %3376 = vmatpush.msra.mxu0 %v3361
      %3377 = vmatpush.msra.mxu0 %v3360
      %3378 = vmatpush.msra.mxu0 %v3359
      %3379 = vmatpush.msra.mxu0 %v3358
      %3380 = vmatpush.msra.mxu0 %v3357
      %3381 = vmatpush.msra.mxu0 %v3356
      %3382 = vmatpush.msra.mxu0 %v3355
      %3383 = vmatpush.msra.mxu0 %v3354
      %3384 = vmatpush.msra.mxu0 %v3353
      %3385 = vmatmul.f32.gmra.mxu0 %v3160
      %v3386 = vpop.f32.mrf.mxu0
      %v3387 = vadd.f32 0.0, %v3386
      %3388 = vmatmul.f32.gmra.mxu0 %v3163
      %v3389 = vpop.f32.mrf.mxu0
      %v3390 = vadd.f32 0.0, %v3389
      %3391 = vmatmul.f32.gmra.mxu0 %v3166
      %v3392 = vpop.f32.mrf.mxu0
      %v3393 = vadd.f32 0.0, %v3392
      %3394 = vmatmul.f32.gmra.mxu0 %v3169
      %v3395 = vpop.f32.mrf.mxu0
      %v3396 = vadd.f32 0.0, %v3395
      %3397 = vmatmul.f32.gmra.mxu0 %v3172
      %v3398 = vpop.f32.mrf.mxu0
      %v3399 = vadd.f32 0.0, %v3398
      %3400 = vmatmul.f32.gmra.mxu0 %v3175
      %v3401 = vpop.f32.mrf.mxu0
      %v3402 = vadd.f32 0.0, %v3401
      %3403 = vmatmul.f32.gmra.mxu0 %v3178
      %v3404 = vpop.f32.mrf.mxu0
      %v3405 = vadd.f32 0.0, %v3404
      %3406 = vmatmul.f32.gmra.mxu0 %v3181
      %v3407 = vpop.f32.mrf.mxu0
      %v3408 = vadd.f32 0.0, %v3407
      %3409 = vmatmul.f32.gmra.mxu0 %v3184
      %v3410 = vpop.f32.mrf.mxu0
      %v3411 = vadd.f32 0.0, %v3410
      %3412 = vmatmul.f32.gmra.mxu0 %v3187
      %v3413 = vpop.f32.mrf.mxu0
      %v3414 = vadd.f32 0.0, %v3413
      %3415 = vmatmul.f32.gmra.mxu0 %v3190
      %v3416 = vpop.f32.mrf.mxu0
      %v3417 = vadd.f32 0.0, %v3416
      %3418 = vmatmul.f32.gmra.mxu0 %v3193
      %v3419 = vpop.f32.mrf.mxu0
      %v3420 = vadd.f32 0.0, %v3419
      %3421 = vmatmul.f32.gmra.mxu0 %v3196
      %v3422 = vpop.f32.mrf.mxu0
      %v3423 = vadd.f32 0.0, %v3422
      %3424 = vmatmul.f32.gmra.mxu0 %v3199
      %v3425 = vpop.f32.mrf.mxu0
      %v3426 = vadd.f32 0.0, %v3425
      %3427 = vmatmul.f32.gmra.mxu0 %v3202
      %v3428 = vpop.f32.mrf.mxu0
      %v3429 = vadd.f32 0.0, %v3428
      %3430 = vmatmul.f32.gmra.mxu0 %v3205
      %v3431 = vpop.f32.mrf.mxu0
      %v3432 = vadd.f32 0.0, %v3431
      %3433 = vdwg.mxu0
      %3434 = vmatpush.msra.mxu0 %v3270
      %3435 = vmatpush.msra.mxu0 %v3267
      %3436 = vmatpush.msra.mxu0 %v3264
      %3437 = vmatpush.msra.mxu0 %v3261
      %3438 = vmatpush.msra.mxu0 %v3258
      %3439 = vmatpush.msra.mxu0 %v3255
      %3440 = vmatpush.msra.mxu0 %v3252
      %3441 = vmatpush.msra.mxu0 %v3249
      %3442 = vmatpush.msra.mxu0 %v3246
      %3443 = vmatpush.msra.mxu0 %v3243
      %3444 = vmatpush.msra.mxu0 %v3240
      %3445 = vmatpush.msra.mxu0 %v3237
      %3446 = vmatpush.msra.mxu0 %v3234
      %3447 = vmatpush.msra.mxu0 %v3231
      %3448 = vmatpush.msra.mxu0 %v3228
      %3449 = vmatpush.msra.mxu0 %v3225
      %3450 = vmatmul.f32.gmra.mxu0 %v3353
      %v3451 = vpop.f32.mrf.mxu0
      %v3452 = vadd.f32 0.0, %v3451
      %3453 = vmatmul.f32.gmra.mxu0 %v3354
      %v3454 = vpop.f32.mrf.mxu0
      %v3455 = vadd.f32 0.0, %v3454
      %3456 = vmatmul.f32.gmra.mxu0 %v3355
      %v3457 = vpop.f32.mrf.mxu0
      %v3458 = vadd.f32 0.0, %v3457
      %3459 = vmatmul.f32.gmra.mxu0 %v3356
      %v3460 = vpop.f32.mrf.mxu0
      %v3461 = vadd.f32 0.0, %v3460
      %3462 = vmatmul.f32.gmra.mxu0 %v3357
      %v3463 = vpop.f32.mrf.mxu0
      %v3464 = vadd.f32 0.0, %v3463
      %3465 = vmatmul.f32.gmra.mxu0 %v3358
      %v3466 = vpop.f32.mrf.mxu0
      %v3467 = vadd.f32 0.0, %v3466
      %3468 = vmatmul.f32.gmra.mxu0 %v3359
      %v3469 = vpop.f32.mrf.mxu0
      %v3470 = vadd.f32 0.0, %v3469
      %3471 = vmatmul.f32.gmra.mxu0 %v3360
      %v3472 = vpop.f32.mrf.mxu0
      %v3473 = vadd.f32 0.0, %v3472
      %3474 = vmatmul.f32.gmra.mxu0 %v3361
      %v3475 = vpop.f32.mrf.mxu0
      %v3476 = vadd.f32 0.0, %v3475
      %3477 = vmatmul.f32.gmra.mxu0 %v3362
      %v3478 = vpop.f32.mrf.mxu0
      %v3479 = vadd.f32 0.0, %v3478
      %3480 = vmatmul.f32.gmra.mxu0 %v3363
      %v3481 = vpop.f32.mrf.mxu0
      %v3482 = vadd.f32 0.0, %v3481
      %3483 = vmatmul.f32.gmra.mxu0 %v3364
      %v3484 = vpop.f32.mrf.mxu0
      %v3485 = vadd.f32 0.0, %v3484
      %3486 = vmatmul.f32.gmra.mxu0 %v3365
      %v3487 = vpop.f32.mrf.mxu0
      %v3488 = vadd.f32 0.0, %v3487
      %3489 = vmatmul.f32.gmra.mxu0 %v3366
      %v3490 = vpop.f32.mrf.mxu0
      %v3491 = vadd.f32 0.0, %v3490
      %3492 = vmatmul.f32.gmra.mxu0 %v3367
      %v3493 = vpop.f32.mrf.mxu0
      %v3494 = vadd.f32 0.0, %v3493
      %3495 = vmatmul.f32.gmra.mxu0 %v3368
      %v3496 = vpop.f32.mrf.mxu0
      %v3497 = vadd.f32 0.0, %v3496
      %3498 = vdwg.mxu0
      %3499 = vmatpush.msra.mxu0 %v3432
      %3500 = vmatpush.msra.mxu0 %v3429
      %3501 = vmatpush.msra.mxu0 %v3426
      %3502 = vmatpush.msra.mxu0 %v3423
      %3503 = vmatpush.msra.mxu0 %v3420
      %3504 = vmatpush.msra.mxu0 %v3417
      %3505 = vmatpush.msra.mxu0 %v3414
      %3506 = vmatpush.msra.mxu0 %v3411
      %3507 = vmatpush.msra.mxu0 %v3408
      %3508 = vmatpush.msra.mxu0 %v3405
      %3509 = vmatpush.msra.mxu0 %v3402
      %3510 = vmatpush.msra.mxu0 %v3399
      %3511 = vmatpush.msra.mxu0 %v3396
      %3512 = vmatpush.msra.mxu0 %v3393
      %3513 = vmatpush.msra.mxu0 %v3390
      %3514 = vmatpush.msra.mxu0 %v3387
      %3515 = vmatmul.f32.gmra.mxu0 %v3452
      %v3516 = vpop.f32.mrf.mxu0
      %v3517 = vadd.f32 0.0, %v3516
      %3518 = vmatmul.f32.gmra.mxu0 %v3455
      %v3519 = vpop.f32.mrf.mxu0
      %v3520 = vadd.f32 0.0, %v3519
      %3521 = vmatmul.f32.gmra.mxu0 %v3458
      %v3522 = vpop.f32.mrf.mxu0
      %v3523 = vadd.f32 0.0, %v3522
      %3524 = vmatmul.f32.gmra.mxu0 %v3461
      %v3525 = vpop.f32.mrf.mxu0
      %v3526 = vadd.f32 0.0, %v3525
      %3527 = vmatmul.f32.gmra.mxu0 %v3464
      %v3528 = vpop.f32.mrf.mxu0
      %v3529 = vadd.f32 0.0, %v3528
      %3530 = vmatmul.f32.gmra.mxu0 %v3467
      %v3531 = vpop.f32.mrf.mxu0
      %v3532 = vadd.f32 0.0, %v3531
      %3533 = vmatmul.f32.gmra.mxu0 %v3470
      %v3534 = vpop.f32.mrf.mxu0
      %v3535 = vadd.f32 0.0, %v3534
      %3536 = vmatmul.f32.gmra.mxu0 %v3473
      %v3537 = vpop.f32.mrf.mxu0
      %v3538 = vadd.f32 0.0, %v3537
      %3539 = vmatmul.f32.gmra.mxu0 %v3476
      %v3540 = vpop.f32.mrf.mxu0
      %v3541 = vadd.f32 0.0, %v3540
      %3542 = vmatmul.f32.gmra.mxu0 %v3479
      %v3543 = vpop.f32.mrf.mxu0
      %v3544 = vadd.f32 0.0, %v3543
      %3545 = vmatmul.f32.gmra.mxu0 %v3482
      %v3546 = vpop.f32.mrf.mxu0
      %v3547 = vadd.f32 0.0, %v3546
      %3548 = vmatmul.f32.gmra.mxu0 %v3485
      %v3549 = vpop.f32.mrf.mxu0
      %v3550 = vadd.f32 0.0, %v3549
      %3551 = vmatmul.f32.gmra.mxu0 %v3488
      %v3552 = vpop.f32.mrf.mxu0
      %v3553 = vadd.f32 0.0, %v3552
      %3554 = vmatmul.f32.gmra.mxu0 %v3491
      %v3555 = vpop.f32.mrf.mxu0
      %v3556 = vadd.f32 0.0, %v3555
      %3557 = vmatmul.f32.gmra.mxu0 %v3494
      %v3558 = vpop.f32.mrf.mxu0
      %v3559 = vadd.f32 0.0, %v3558
      %3560 = vmatmul.f32.gmra.mxu0 %v3497
      %v3561 = vpop.f32.mrf.mxu0
      %v3562 = vadd.f32 0.0, %v3561
      %3563 = vdwg.mxu0
      %v3564 = vsub.f32 %v532, %v3517
      %v3565 = vsub.f32 %v533, %v3520
      %v3566 = vsub.f32 %v534, %v3523
      %v3567 = vsub.f32 %v535, %v3526
      %v3568 = vsub.f32 %v536, %v3529
      %v3569 = vsub.f32 %v537, %v3532
      %v3570 = vsub.f32 %v538, %v3535
      %v3571 = vsub.f32 %v539, %v3538
      %v3572 = vsub.f32 %v540, %v3541
      %v3573 = vsub.f32 %v541, %v3544
      %v3574 = vsub.f32 %v542, %v3547
      %v3575 = vsub.f32 %v543, %v3550
      %v3576 = vsub.f32 %v544, %v3553
      %v3577 = vsub.f32 %v545, %v3556
      %v3578 = vsub.f32 %v546, %v3559
      %v3579 = vsub.f32 %v547, %v3562
      %v3580 = vmul.f32 %v3564, 0.5
      %v3581 = vmul.f32 %v3565, 0.5
      %v3582 = vmul.f32 %v3566, 0.5
      %v3583 = vmul.f32 %v3567, 0.5
      %v3584 = vmul.f32 %v3568, 0.5
      %v3585 = vmul.f32 %v3569, 0.5
      %v3586 = vmul.f32 %v3570, 0.5
      %v3587 = vmul.f32 %v3571, 0.5
      %v3588 = vmul.f32 %v3572, 0.5
      %v3589 = vmul.f32 %v3573, 0.5
      %v3590 = vmul.f32 %v3574, 0.5
      %v3591 = vmul.f32 %v3575, 0.5
      %v3592 = vmul.f32 %v3576, 0.5
      %v3593 = vmul.f32 %v3577, 0.5
      %v3594 = vmul.f32 %v3578, 0.5
      %v3595 = vmul.f32 %v3579, 0.5
      %3596 = vmatpush.msra.mxu0 %v3595
      %3597 = vmatpush.msra.mxu0 %v3594
      %3598 = vmatpush.msra.mxu0 %v3593
      %3599 = vmatpush.msra.mxu0 %v3592
      %3600 = vmatpush.msra.mxu0 %v3591
      %3601 = vmatpush.msra.mxu0 %v3590
      %3602 = vmatpush.msra.mxu0 %v3589
      %3603 = vmatpush.msra.mxu0 %v3588
      %3604 = vmatpush.msra.mxu0 %v3587
      %3605 = vmatpush.msra.mxu0 %v3586
      %3606 = vmatpush.msra.mxu0 %v3585
      %3607 = vmatpush.msra.mxu0 %v3584
      %3608 = vmatpush.msra.mxu0 %v3583
      %3609 = vmatpush.msra.mxu0 %v3582
      %3610 = vmatpush.msra.mxu0 %v3581
      %3611 = vmatpush.msra.mxu0 %v3580
      %3612 = vmatmul.f32.gmra.mxu0 %v3387
      %v3613 = vpop.f32.mrf.mxu0
      %v3614 = vadd.f32 0.0, %v3613
      %3615 = vmatmul.f32.gmra.mxu0 %v3390
      %v3616 = vpop.f32.mrf.mxu0
      %v3617 = vadd.f32 0.0, %v3616
      %3618 = vmatmul.f32.gmra.mxu0 %v3393
      %v3619 = vpop.f32.mrf.mxu0
      %v3620 = vadd.f32 0.0, %v3619
      %3621 = vmatmul.f32.gmra.mxu0 %v3396
      %v3622 = vpop.f32.mrf.mxu0
      %v3623 = vadd.f32 0.0, %v3622
      %3624 = vmatmul.f32.gmra.mxu0 %v3399
      %v3625 = vpop.f32.mrf.mxu0
      %v3626 = vadd.f32 0.0, %v3625
      %3627 = vmatmul.f32.gmra.mxu0 %v3402
      %v3628 = vpop.f32.mrf.mxu0
      %v3629 = vadd.f32 0.0, %v3628
      %3630 = vmatmul.f32.gmra.mxu0 %v3405
      %v3631 = vpop.f32.mrf.mxu0
      %v3632 = vadd.f32 0.0, %v3631
      %3633 = vmatmul.f32.gmra.mxu0 %v3408
      %v3634 = vpop.f32.mrf.mxu0
      %v3635 = vadd.f32 0.0, %v3634
      %3636 = vmatmul.f32.gmra.mxu0 %v3411
      %v3637 = vpop.f32.mrf.mxu0
      %v3638 = vadd.f32 0.0, %v3637
      %3639 = vmatmul.f32.gmra.mxu0 %v3414
      %v3640 = vpop.f32.mrf.mxu0
      %v3641 = vadd.f32 0.0, %v3640
      %3642 = vmatmul.f32.gmra.mxu0 %v3417
      %v3643 = vpop.f32.mrf.mxu0
      %v3644 = vadd.f32 0.0, %v3643
      %3645 = vmatmul.f32.gmra.mxu0 %v3420
      %v3646 = vpop.f32.mrf.mxu0
      %v3647 = vadd.f32 0.0, %v3646
      %3648 = vmatmul.f32.gmra.mxu0 %v3423
      %v3649 = vpop.f32.mrf.mxu0
      %v3650 = vadd.f32 0.0, %v3649
      %3651 = vmatmul.f32.gmra.mxu0 %v3426
      %v3652 = vpop.f32.mrf.mxu0
      %v3653 = vadd.f32 0.0, %v3652
      %3654 = vmatmul.f32.gmra.mxu0 %v3429
      %v3655 = vpop.f32.mrf.mxu0
      %v3656 = vadd.f32 0.0, %v3655
      %3657 = vmatmul.f32.gmra.mxu0 %v3432
      %v3658 = vpop.f32.mrf.mxu0
      %v3659 = vadd.f32 0.0, %v3658
      %3660 = vdwg.mxu0
      %3661 = vmatpush.msra.mxu0 %v3497
      %3662 = vmatpush.msra.mxu0 %v3494
      %3663 = vmatpush.msra.mxu0 %v3491
      %3664 = vmatpush.msra.mxu0 %v3488
      %3665 = vmatpush.msra.mxu0 %v3485
      %3666 = vmatpush.msra.mxu0 %v3482
      %3667 = vmatpush.msra.mxu0 %v3479
      %3668 = vmatpush.msra.mxu0 %v3476
      %3669 = vmatpush.msra.mxu0 %v3473
      %3670 = vmatpush.msra.mxu0 %v3470
      %3671 = vmatpush.msra.mxu0 %v3467
      %3672 = vmatpush.msra.mxu0 %v3464
      %3673 = vmatpush.msra.mxu0 %v3461
      %3674 = vmatpush.msra.mxu0 %v3458
      %3675 = vmatpush.msra.mxu0 %v3455
      %3676 = vmatpush.msra.mxu0 %v3452
      %3677 = vmatmul.f32.gmra.mxu0 %v3580
      %v3678 = vpop.f32.mrf.mxu0
      %v3679 = vadd.f32 0.0, %v3678
      %3680 = vmatmul.f32.gmra.mxu0 %v3581
      %v3681 = vpop.f32.mrf.mxu0
      %v3682 = vadd.f32 0.0, %v3681
      %3683 = vmatmul.f32.gmra.mxu0 %v3582
      %v3684 = vpop.f32.mrf.mxu0
      %v3685 = vadd.f32 0.0, %v3684
      %3686 = vmatmul.f32.gmra.mxu0 %v3583
      %v3687 = vpop.f32.mrf.mxu0
      %v3688 = vadd.f32 0.0, %v3687
      %3689 = vmatmul.f32.gmra.mxu0 %v3584
      %v3690 = vpop.f32.mrf.mxu0
      %v3691 = vadd.f32 0.0, %v3690
      %3692 = vmatmul.f32.gmra.mxu0 %v3585
      %v3693 = vpop.f32.mrf.mxu0
      %v3694 = vadd.f32 0.0, %v3693
      %3695 = vmatmul.f32.gmra.mxu0 %v3586
      %v3696 = vpop.f32.mrf.mxu0
      %v3697 = vadd.f32 0.0, %v3696
      %3698 = vmatmul.f32.gmra.mxu0 %v3587
      %v3699 = vpop.f32.mrf.mxu0
      %v3700 = vadd.f32 0.0, %v3699
      %3701 = vmatmul.f32.gmra.mxu0 %v3588
      %v3702 = vpop.f32.mrf.mxu0
      %v3703 = vadd.f32 0.0, %v3702
      %3704 = vmatmul.f32.gmra.mxu0 %v3589
      %v3705 = vpop.f32.mrf.mxu0
      %v3706 = vadd.f32 0.0, %v3705
      %3707 = vmatmul.f32.gmra.mxu0 %v3590
      %v3708 = vpop.f32.mrf.mxu0
      %v3709 = vadd.f32 0.0, %v3708
      %3710 = vmatmul.f32.gmra.mxu0 %v3591
      %v3711 = vpop.f32.mrf.mxu0
      %v3712 = vadd.f32 0.0, %v3711
      %3713 = vmatmul.f32.gmra.mxu0 %v3592
      %v3714 = vpop.f32.mrf.mxu0
      %v3715 = vadd.f32 0.0, %v3714
      %3716 = vmatmul.f32.gmra.mxu0 %v3593
      %v3717 = vpop.f32.mrf.mxu0
      %v3718 = vadd.f32 0.0, %v3717
      %3719 = vmatmul.f32.gmra.mxu0 %v3594
      %v3720 = vpop.f32.mrf.mxu0
      %v3721 = vadd.f32 0.0, %v3720
      %3722 = vmatmul.f32.gmra.mxu0 %v3595
      %v3723 = vpop.f32.mrf.mxu0
      %v3724 = vadd.f32 0.0, %v3723
      %3725 = vdwg.mxu0
      %3726 = vmatpush.msra.mxu0 %v3659
      %3727 = vmatpush.msra.mxu0 %v3656
      %3728 = vmatpush.msra.mxu0 %v3653
      %3729 = vmatpush.msra.mxu0 %v3650
      %3730 = vmatpush.msra.mxu0 %v3647
      %3731 = vmatpush.msra.mxu0 %v3644
      %3732 = vmatpush.msra.mxu0 %v3641
      %3733 = vmatpush.msra.mxu0 %v3638
      %3734 = vmatpush.msra.mxu0 %v3635
      %3735 = vmatpush.msra.mxu0 %v3632
      %3736 = vmatpush.msra.mxu0 %v3629
      %3737 = vmatpush.msra.mxu0 %v3626
      %3738 = vmatpush.msra.mxu0 %v3623
      %3739 = vmatpush.msra.mxu0 %v3620
      %3740 = vmatpush.msra.mxu0 %v3617
      %3741 = vmatpush.msra.mxu0 %v3614
      %3742 = vmatmul.f32.gmra.mxu0 %v3679
      %v3743 = vpop.f32.mrf.mxu0
      %v3744 = vadd.f32 0.0, %v3743
      %3745 = vmatmul.f32.gmra.mxu0 %v3682
      %v3746 = vpop.f32.mrf.mxu0
      %v3747 = vadd.f32 0.0, %v3746
      %3748 = vmatmul.f32.gmra.mxu0 %v3685
      %v3749 = vpop.f32.mrf.mxu0
      %v3750 = vadd.f32 0.0, %v3749
      %3751 = vmatmul.f32.gmra.mxu0 %v3688
      %v3752 = vpop.f32.mrf.mxu0
      %v3753 = vadd.f32 0.0, %v3752
      %3754 = vmatmul.f32.gmra.mxu0 %v3691
      %v3755 = vpop.f32.mrf.mxu0
      %v3756 = vadd.f32 0.0, %v3755
      %3757 = vmatmul.f32.gmra.mxu0 %v3694
      %v3758 = vpop.f32.mrf.mxu0
      %v3759 = vadd.f32 0.0, %v3758
      %3760 = vmatmul.f32.gmra.mxu0 %v3697
      %v3761 = vpop.f32.mrf.mxu0
      %v3762 = vadd.f32 0.0, %v3761
      %3763 = vmatmul.f32.gmra.mxu0 %v3700
      %v3764 = vpop.f32.mrf.mxu0
      %v3765 = vadd.f32 0.0, %v3764
      %3766 = vmatmul.f32.gmra.mxu0 %v3703
      %v3767 = vpop.f32.mrf.mxu0
      %v3768 = vadd.f32 0.0, %v3767
      %3769 = vmatmul.f32.gmra.mxu0 %v3706
      %v3770 = vpop.f32.mrf.mxu0
      %v3771 = vadd.f32 0.0, %v3770
      %3772 = vmatmul.f32.gmra.mxu0 %v3709
      %v3773 = vpop.f32.mrf.mxu0
      %v3774 = vadd.f32 0.0, %v3773
      %3775 = vmatmul.f32.gmra.mxu0 %v3712
      %v3776 = vpop.f32.mrf.mxu0
      %v3777 = vadd.f32 0.0, %v3776
      %3778 = vmatmul.f32.gmra.mxu0 %v3715
      %v3779 = vpop.f32.mrf.mxu0
      %v3780 = vadd.f32 0.0, %v3779
      %3781 = vmatmul.f32.gmra.mxu0 %v3718
      %v3782 = vpop.f32.mrf.mxu0
      %v3783 = vadd.f32 0.0, %v3782
      %3784 = vmatmul.f32.gmra.mxu0 %v3721
      %v3785 = vpop.f32.mrf.mxu0
      %v3786 = vadd.f32 0.0, %v3785
      %3787 = vmatmul.f32.gmra.mxu0 %v3724
      %v3788 = vpop.f32.mrf.mxu0
      %v3789 = vadd.f32 0.0, %v3788
      %3790 = vdwg.mxu0
      %v3791 = vsub.f32 %v532, %v3744
      %v3792 = vsub.f32 %v533, %v3747
      %v3793 = vsub.f32 %v534, %v3750
      %v3794 = vsub.f32 %v535, %v3753
      %v3795 = vsub.f32 %v536, %v3756
      %v3796 = vsub.f32 %v537, %v3759
      %v3797 = vsub.f32 %v538, %v3762
      %v3798 = vsub.f32 %v539, %v3765
      %v3799 = vsub.f32 %v540, %v3768
      %v3800 = vsub.f32 %v541, %v3771
      %v3801 = vsub.f32 %v542, %v3774
      %v3802 = vsub.f32 %v543, %v3777
      %v3803 = vsub.f32 %v544, %v3780
      %v3804 = vsub.f32 %v545, %v3783
      %v3805 = vsub.f32 %v546, %v3786
      %v3806 = vsub.f32 %v547, %v3789
      %v3807 = vmul.f32 %v3791, 0.5
      %v3808 = vmul.f32 %v3792, 0.5
      %v3809 = vmul.f32 %v3793, 0.5
      %v3810 = vmul.f32 %v3794, 0.5
      %v3811 = vmul.f32 %v3795, 0.5
      %v3812 = vmul.f32 %v3796, 0.5
      %v3813 = vmul.f32 %v3797, 0.5
      %v3814 = vmul.f32 %v3798, 0.5
      %v3815 = vmul.f32 %v3799, 0.5
      %v3816 = vmul.f32 %v3800, 0.5
      %v3817 = vmul.f32 %v3801, 0.5
      %v3818 = vmul.f32 %v3802, 0.5
      %v3819 = vmul.f32 %v3803, 0.5
      %v3820 = vmul.f32 %v3804, 0.5
      %v3821 = vmul.f32 %v3805, 0.5
      %v3822 = vmul.f32 %v3806, 0.5
      %3823 = vmatpush.msra.mxu0 %v3822
      %3824 = vmatpush.msra.mxu0 %v3821
      %3825 = vmatpush.msra.mxu0 %v3820
      %3826 = vmatpush.msra.mxu0 %v3819
      %3827 = vmatpush.msra.mxu0 %v3818
      %3828 = vmatpush.msra.mxu0 %v3817
      %3829 = vmatpush.msra.mxu0 %v3816
      %3830 = vmatpush.msra.mxu0 %v3815
      %3831 = vmatpush.msra.mxu0 %v3814
      %3832 = vmatpush.msra.mxu0 %v3813
      %3833 = vmatpush.msra.mxu0 %v3812
      %3834 = vmatpush.msra.mxu0 %v3811
      %3835 = vmatpush.msra.mxu0 %v3810
      %3836 = vmatpush.msra.mxu0 %v3809
      %3837 = vmatpush.msra.mxu0 %v3808
      %3838 = vmatpush.msra.mxu0 %v3807
      %3839 = vmatmul.f32.gmra.mxu0 %v3614
      %v3840 = vpop.f32.mrf.mxu0
      %v3841 = vadd.f32 0.0, %v3840
      %3842 = vmatmul.f32.gmra.mxu0 %v3617
      %v3843 = vpop.f32.mrf.mxu0
      %v3844 = vadd.f32 0.0, %v3843
      %3845 = vmatmul.f32.gmra.mxu0 %v3620
      %v3846 = vpop.f32.mrf.mxu0
      %v3847 = vadd.f32 0.0, %v3846
      %3848 = vmatmul.f32.gmra.mxu0 %v3623
      %v3849 = vpop.f32.mrf.mxu0
      %v3850 = vadd.f32 0.0, %v3849
      %3851 = vmatmul.f32.gmra.mxu0 %v3626
      %v3852 = vpop.f32.mrf.mxu0
      %v3853 = vadd.f32 0.0, %v3852
      %3854 = vmatmul.f32.gmra.mxu0 %v3629
      %v3855 = vpop.f32.mrf.mxu0
      %v3856 = vadd.f32 0.0, %v3855
      %3857 = vmatmul.f32.gmra.mxu0 %v3632
      %v3858 = vpop.f32.mrf.mxu0
      %v3859 = vadd.f32 0.0, %v3858
      %3860 = vmatmul.f32.gmra.mxu0 %v3635
      %v3861 = vpop.f32.mrf.mxu0
      %v3862 = vadd.f32 0.0, %v3861
      %3863 = vmatmul.f32.gmra.mxu0 %v3638
      %v3864 = vpop.f32.mrf.mxu0
      %v3865 = vadd.f32 0.0, %v3864
      %3866 = vmatmul.f32.gmra.mxu0 %v3641
      %v3867 = vpop.f32.mrf.mxu0
      %v3868 = vadd.f32 0.0, %v3867
      %3869 = vmatmul.f32.gmra.mxu0 %v3644
      %v3870 = vpop.f32.mrf.mxu0
      %v3871 = vadd.f32 0.0, %v3870
      %3872 = vmatmul.f32.gmra.mxu0 %v3647
      %v3873 = vpop.f32.mrf.mxu0
      %v3874 = vadd.f32 0.0, %v3873
      %3875 = vmatmul.f32.gmra.mxu0 %v3650
      %v3876 = vpop.f32.mrf.mxu0
      %v3877 = vadd.f32 0.0, %v3876
      %3878 = vmatmul.f32.gmra.mxu0 %v3653
      %v3879 = vpop.f32.mrf.mxu0
      %v3880 = vadd.f32 0.0, %v3879
      %3881 = vmatmul.f32.gmra.mxu0 %v3656
      %v3882 = vpop.f32.mrf.mxu0
      %v3883 = vadd.f32 0.0, %v3882
      %3884 = vmatmul.f32.gmra.mxu0 %v3659
      %v3885 = vpop.f32.mrf.mxu0
      %v3886 = vadd.f32 0.0, %v3885
      %3887 = vdwg.mxu0
      %3888 = vmatpush.msra.mxu0 %v3724
      %3889 = vmatpush.msra.mxu0 %v3721
      %3890 = vmatpush.msra.mxu0 %v3718
      %3891 = vmatpush.msra.mxu0 %v3715
      %3892 = vmatpush.msra.mxu0 %v3712
      %3893 = vmatpush.msra.mxu0 %v3709
      %3894 = vmatpush.msra.mxu0 %v3706
      %3895 = vmatpush.msra.mxu0 %v3703
      %3896 = vmatpush.msra.mxu0 %v3700
      %3897 = vmatpush.msra.mxu0 %v3697
      %3898 = vmatpush.msra.mxu0 %v3694
      %3899 = vmatpush.msra.mxu0 %v3691
      %3900 = vmatpush.msra.mxu0 %v3688
      %3901 = vmatpush.msra.mxu0 %v3685
      %3902 = vmatpush.msra.mxu0 %v3682
      %3903 = vmatpush.msra.mxu0 %v3679
      %3904 = vmatmul.f32.gmra.mxu0 %v3807
      %v3905 = vpop.f32.mrf.mxu0
      %v3906 = vadd.f32 0.0, %v3905
      %3907 = vmatmul.f32.gmra.mxu0 %v3808
      %v3908 = vpop.f32.mrf.mxu0
      %v3909 = vadd.f32 0.0, %v3908
      %3910 = vmatmul.f32.gmra.mxu0 %v3809
      %v3911 = vpop.f32.mrf.mxu0
      %v3912 = vadd.f32 0.0, %v3911
      %3913 = vmatmul.f32.gmra.mxu0 %v3810
      %v3914 = vpop.f32.mrf.mxu0
      %v3915 = vadd.f32 0.0, %v3914
      %3916 = vmatmul.f32.gmra.mxu0 %v3811
      %v3917 = vpop.f32.mrf.mxu0
      %v3918 = vadd.f32 0.0, %v3917
      %3919 = vmatmul.f32.gmra.mxu0 %v3812
      %v3920 = vpop.f32.mrf.mxu0
      %v3921 = vadd.f32 0.0, %v3920
      %3922 = vmatmul.f32.gmra.mxu0 %v3813
      %v3923 = vpop.f32.mrf.mxu0
      %v3924 = vadd.f32 0.0, %v3923
      %3925 = vmatmul.f32.gmra.mxu0 %v3814
      %v3926 = vpop.f32.mrf.mxu0
      %v3927 = vadd.f32 0.0, %v3926
      %3928 = vmatmul.f32.gmra.mxu0 %v3815
      %v3929 = vpop.f32.mrf.mxu0
      %v3930 = vadd.f32 0.0, %v3929
      %3931 = vmatmul.f32.gmra.mxu0 %v3816
      %v3932 = vpop.f32.mrf.mxu0
      %v3933 = vadd.f32 0.0, %v3932
      %3934 = vmatmul.f32.gmra.mxu0 %v3817
      %v3935 = vpop.f32.mrf.mxu0
      %v3936 = vadd.f32 0.0, %v3935
      %3937 = vmatmul.f32.gmra.mxu0 %v3818
      %v3938 = vpop.f32.mrf.mxu0
      %v3939 = vadd.f32 0.0, %v3938
      %3940 = vmatmul.f32.gmra.mxu0 %v3819
      %v3941 = vpop.f32.mrf.mxu0
      %v3942 = vadd.f32 0.0, %v3941
      %3943 = vmatmul.f32.gmra.mxu0 %v3820
      %v3944 = vpop.f32.mrf.mxu0
      %v3945 = vadd.f32 0.0, %v3944
      %3946 = vmatmul.f32.gmra.mxu0 %v3821
      %v3947 = vpop.f32.mrf.mxu0
      %v3948 = vadd.f32 0.0, %v3947
      %3949 = vmatmul.f32.gmra.mxu0 %v3822
      %v3950 = vpop.f32.mrf.mxu0
      %v3951 = vadd.f32 0.0, %v3950
      %3952 = vdwg.mxu0
      %3953 = vmatpush.msra.mxu0 %v3886
      %3954 = vmatpush.msra.mxu0 %v3883
      %3955 = vmatpush.msra.mxu0 %v3880
      %3956 = vmatpush.msra.mxu0 %v3877
      %3957 = vmatpush.msra.mxu0 %v3874
      %3958 = vmatpush.msra.mxu0 %v3871
      %3959 = vmatpush.msra.mxu0 %v3868
      %3960 = vmatpush.msra.mxu0 %v3865
      %3961 = vmatpush.msra.mxu0 %v3862
      %3962 = vmatpush.msra.mxu0 %v3859
      %3963 = vmatpush.msra.mxu0 %v3856
      %3964 = vmatpush.msra.mxu0 %v3853
      %3965 = vmatpush.msra.mxu0 %v3850
      %3966 = vmatpush.msra.mxu0 %v3847
      %3967 = vmatpush.msra.mxu0 %v3844
      %3968 = vmatpush.msra.mxu0 %v3841
      %3969 = vmatmul.f32.gmra.mxu0 %v3906
      %v3970 = vpop.f32.mrf.mxu0
      %v3971 = vadd.f32 0.0, %v3970
      %3972 = vmatmul.f32.gmra.mxu0 %v3909
      %v3973 = vpop.f32.mrf.mxu0
      %v3974 = vadd.f32 0.0, %v3973
      %3975 = vmatmul.f32.gmra.mxu0 %v3912
      %v3976 = vpop.f32.mrf.mxu0
      %v3977 = vadd.f32 0.0, %v3976
      %3978 = vmatmul.f32.gmra.mxu0 %v3915
      %v3979 = vpop.f32.mrf.mxu0
      %v3980 = vadd.f32 0.0, %v3979
      %3981 = vmatmul.f32.gmra.mxu0 %v3918
      %v3982 = vpop.f32.mrf.mxu0
      %v3983 = vadd.f32 0.0, %v3982
      %3984 = vmatmul.f32.gmra.mxu0 %v3921
      %v3985 = vpop.f32.mrf.mxu0
      %v3986 = vadd.f32 0.0, %v3985
      %3987 = vmatmul.f32.gmra.mxu0 %v3924
      %v3988 = vpop.f32.mrf.mxu0
      %v3989 = vadd.f32 0.0, %v3988
      %3990 = vmatmul.f32.gmra.mxu0 %v3927
      %v3991 = vpop.f32.mrf.mxu0
      %v3992 = vadd.f32 0.0, %v3991
      %3993 = vmatmul.f32.gmra.mxu0 %v3930
      %v3994 = vpop.f32.mrf.mxu0
      %v3995 = vadd.f32 0.0, %v3994
      %3996 = vmatmul.f32.gmra.mxu0 %v3933
      %v3997 = vpop.f32.mrf.mxu0
      %v3998 = vadd.f32 0.0, %v3997
      %3999 = vmatmul.f32.gmra.mxu0 %v3936
      %v4000 = vpop.f32.mrf.mxu0
      %v4001 = vadd.f32 0.0, %v4000
      %4002 = vmatmul.f32.gmra.mxu0 %v3939
      %v4003 = vpop.f32.mrf.mxu0
      %v4004 = vadd.f32 0.0, %v4003
      %4005 = vmatmul.f32.gmra.mxu0 %v3942
      %v4006 = vpop.f32.mrf.mxu0
      %v4007 = vadd.f32 0.0, %v4006
      %4008 = vmatmul.f32.gmra.mxu0 %v3945
      %v4009 = vpop.f32.mrf.mxu0
      %v4010 = vadd.f32 0.0, %v4009
      %4011 = vmatmul.f32.gmra.mxu0 %v3948
      %v4012 = vpop.f32.mrf.mxu0
      %v4013 = vadd.f32 0.0, %v4012
      %4014 = vmatmul.f32.gmra.mxu0 %v3951
      %v4015 = vpop.f32.mrf.mxu0
      %v4016 = vadd.f32 0.0, %v4015
      %4017 = vdwg.mxu0
      %v4018 = vsub.f32 %v532, %v3971
      %v4019 = vsub.f32 %v533, %v3974
      %v4020 = vsub.f32 %v534, %v3977
      %v4021 = vsub.f32 %v535, %v3980
      %v4022 = vsub.f32 %v536, %v3983
      %v4023 = vsub.f32 %v537, %v3986
      %v4024 = vsub.f32 %v538, %v3989
      %v4025 = vsub.f32 %v539, %v3992
      %v4026 = vsub.f32 %v540, %v3995
      %v4027 = vsub.f32 %v541, %v3998
      %v4028 = vsub.f32 %v542, %v4001
      %v4029 = vsub.f32 %v543, %v4004
      %v4030 = vsub.f32 %v544, %v4007
      %v4031 = vsub.f32 %v545, %v4010
      %v4032 = vsub.f32 %v546, %v4013
      %v4033 = vsub.f32 %v547, %v4016
      %v4034 = vmul.f32 %v4018, 0.5
      %v4035 = vmul.f32 %v4019, 0.5
      %v4036 = vmul.f32 %v4020, 0.5
      %v4037 = vmul.f32 %v4021, 0.5
      %v4038 = vmul.f32 %v4022, 0.5
      %v4039 = vmul.f32 %v4023, 0.5
      %v4040 = vmul.f32 %v4024, 0.5
      %v4041 = vmul.f32 %v4025, 0.5
      %v4042 = vmul.f32 %v4026, 0.5
      %v4043 = vmul.f32 %v4027, 0.5
      %v4044 = vmul.f32 %v4028, 0.5
      %v4045 = vmul.f32 %v4029, 0.5
      %v4046 = vmul.f32 %v4030, 0.5
      %v4047 = vmul.f32 %v4031, 0.5
      %v4048 = vmul.f32 %v4032, 0.5
      %v4049 = vmul.f32 %v4033, 0.5
      %4050 = vmatpush.msra.mxu0 %v4049
      %4051 = vmatpush.msra.mxu0 %v4048
      %4052 = vmatpush.msra.mxu0 %v4047
      %4053 = vmatpush.msra.mxu0 %v4046
      %4054 = vmatpush.msra.mxu0 %v4045
      %4055 = vmatpush.msra.mxu0 %v4044
      %4056 = vmatpush.msra.mxu0 %v4043
      %4057 = vmatpush.msra.mxu0 %v4042
      %4058 = vmatpush.msra.mxu0 %v4041
      %4059 = vmatpush.msra.mxu0 %v4040
      %4060 = vmatpush.msra.mxu0 %v4039
      %4061 = vmatpush.msra.mxu0 %v4038
      %4062 = vmatpush.msra.mxu0 %v4037
      %4063 = vmatpush.msra.mxu0 %v4036
      %4064 = vmatpush.msra.mxu0 %v4035
      %4065 = vmatpush.msra.mxu0 %v4034
      %4066 = vmatmul.f32.gmra.mxu0 %v3841
      %v4067 = vpop.f32.mrf.mxu0
      %v4068 = vadd.f32 0.0, %v4067
      %4069 = vmatmul.f32.gmra.mxu0 %v3844
      %v4070 = vpop.f32.mrf.mxu0
      %v4071 = vadd.f32 0.0, %v4070
      %4072 = vmatmul.f32.gmra.mxu0 %v3847
      %v4073 = vpop.f32.mrf.mxu0
      %v4074 = vadd.f32 0.0, %v4073
      %4075 = vmatmul.f32.gmra.mxu0 %v3850
      %v4076 = vpop.f32.mrf.mxu0
      %v4077 = vadd.f32 0.0, %v4076
      %4078 = vmatmul.f32.gmra.mxu0 %v3853
      %v4079 = vpop.f32.mrf.mxu0
      %v4080 = vadd.f32 0.0, %v4079
      %4081 = vmatmul.f32.gmra.mxu0 %v3856
      %v4082 = vpop.f32.mrf.mxu0
      %v4083 = vadd.f32 0.0, %v4082
      %4084 = vmatmul.f32.gmra.mxu0 %v3859
      %v4085 = vpop.f32.mrf.mxu0
      %v4086 = vadd.f32 0.0, %v4085
      %4087 = vmatmul.f32.gmra.mxu0 %v3862
      %v4088 = vpop.f32.mrf.mxu0
      %v4089 = vadd.f32 0.0, %v4088
      %4090 = vmatmul.f32.gmra.mxu0 %v3865
      %v4091 = vpop.f32.mrf.mxu0
      %v4092 = vadd.f32 0.0, %v4091
      %4093 = vmatmul.f32.gmra.mxu0 %v3868
      %v4094 = vpop.f32.mrf.mxu0
      %v4095 = vadd.f32 0.0, %v4094
      %4096 = vmatmul.f32.gmra.mxu0 %v3871
      %v4097 = vpop.f32.mrf.mxu0
      %v4098 = vadd.f32 0.0, %v4097
      %4099 = vmatmul.f32.gmra.mxu0 %v3874
      %v4100 = vpop.f32.mrf.mxu0
      %v4101 = vadd.f32 0.0, %v4100
      %4102 = vmatmul.f32.gmra.mxu0 %v3877
      %v4103 = vpop.f32.mrf.mxu0
      %v4104 = vadd.f32 0.0, %v4103
      %4105 = vmatmul.f32.gmra.mxu0 %v3880
      %v4106 = vpop.f32.mrf.mxu0
      %v4107 = vadd.f32 0.0, %v4106
      %4108 = vmatmul.f32.gmra.mxu0 %v3883
      %v4109 = vpop.f32.mrf.mxu0
      %v4110 = vadd.f32 0.0, %v4109
      %4111 = vmatmul.f32.gmra.mxu0 %v3886
      %v4112 = vpop.f32.mrf.mxu0
      %v4113 = vadd.f32 0.0, %v4112
      %4114 = vdwg.mxu0
      %v4115 = vstv %s500
      %v4116 = vrsqrt.pop %v4115
      %v4117 = vmul.f32 %v4116, %v4115
      %v4118 = vmul.f32 %v4117, %v4116
      %v4119 = vmul.f32 0.5, %v4118
      %v4120 = vsub.f32 1.5, %v4119
      %v4121 = vmul.f32 %v4116, %v4120
      %v4122 = vmul.f32 %v4115, %v4121
      %vm4123 = vcmp.eq.f32.partialorder %v4115, inf
      %v4124 = vsel %vm4123, %v4115, %v4122
      %vm4125 = vcmp.eq.f32.partialorder %v4115, 0.0
      %v4126 = vand.u32 %v4115, 2147483648
      %v4127 = vsel %vm4125, %v4126, %v4124
      %s4128 = vtos %v4127
      %v4129 = vstv %s4128
      %v4130 = vmul.f32 %v4068, %v4129
      %v4131 = vmul.f32 %v4071, %v4129
      %v4132 = vmul.f32 %v4074, %v4129
      %v4133 = vmul.f32 %v4077, %v4129
      %v4134 = vmul.f32 %v4080, %v4129
      %v4135 = vmul.f32 %v4083, %v4129
      %v4136 = vmul.f32 %v4086, %v4129
      %v4137 = vmul.f32 %v4089, %v4129
      %v4138 = vmul.f32 %v4092, %v4129
      %v4139 = vmul.f32 %v4095, %v4129
      %v4140 = vmul.f32 %v4098, %v4129
      %v4141 = vmul.f32 %v4101, %v4129
      %v4142 = vmul.f32 %v4104, %v4129
      %v4143 = vmul.f32 %v4107, %v4129
      %v4144 = vmul.f32 %v4110, %v4129
      %v4145 = vmul.f32 %v4113, %v4129
      %4146 = vst [vmem:[%s184] sm:$0xff] %v4130
      %4147 = vst [vmem:[%s184 + $0x8] sm:$0xff] %v4131
      %4148 = vst [vmem:[%s184 + $0x10] sm:$0xff] %v4132
      %4149 = vst [vmem:[%s184 + $0x18] sm:$0xff] %v4133
      %4150 = vst [vmem:[%s184 + $0x20] sm:$0xff] %v4134
      %4151 = vst [vmem:[%s184 + $0x28] sm:$0xff] %v4135
      %4152 = vst [vmem:[%s184 + $0x30] sm:$0xff] %v4136
      %4153 = vst [vmem:[%s184 + $0x38] sm:$0xff] %v4137
      %4154 = vst [vmem:[%s184 + $0x40] sm:$0xff] %v4138
      %4155 = vst [vmem:[%s184 + $0x48] sm:$0xff] %v4139
      %4156 = vst [vmem:[%s184 + $0x50] sm:$0xff] %v4140
      %4157 = vst [vmem:[%s184 + $0x58] sm:$0xff] %v4141
      %4158 = vst [vmem:[%s184 + $0x60] sm:$0xff] %v4142
      %4159 = vst [vmem:[%s184 + $0x68] sm:$0xff] %v4143
      %4160 = vst [vmem:[%s184 + $0x70] sm:$0xff] %v4144
      %4161 = vst [vmem:[%s184 + $0x78] sm:$0xff] %v4145
      %p4162 = scmp.lt.s32.totalorder %s15, 3
      %s4163 = scalar_select %p4162, %s15, 3
      %s4164 = scalar_lea.vmem %s1, %s4163
      %p4165 = scmp.lt.s32.totalorder %s15, 3
      %s4166 = scalar_select %p4165, %s15, 3
      %s4167 = scalar_lea.vmem %s2, %s4166
      %p4168 = scmp.lt.s32.totalorder %s15, 3
      %s4169 = scalar_select %p4168, %s15, 3
      %s4170 = smul.addr %s4169, 16
      %s4171 = smul.addr %s4170, 8
      %s4172 = scalar_lea.vmem %s3, %s4171
      // Predicated region
      $region25: #{custom_clip_forward.6} parent=23 // pred_check
        %p4173 = pneg %p59
      $region26: #{custom_clip_forward.6} parent=23 // pred_check_branch
        %4175 = sbr.rel (%p4173) target = $region28
      $region27: #{custom_clip_forward.6} parent=23 // pred_region
        _
      $region28: #{custom_clip_forward.6} parent=23 // pred_fallthru
        _
      // Predicated region
      $region29: #{custom_clip_forward.6} parent=23 // pred_check
        %p4176 = pneg %p85
      $region30: #{custom_clip_forward.6} parent=23 // pred_check_branch
        %4178 = sbr.rel (%p4176) target = $region32
      $region31: #{custom_clip_forward.6} parent=23 // pred_region
        _
      $region32: #{custom_clip_forward.6} parent=23 // pred_fallthru
        _
      // Predicated region
      $region33: #{custom_clip_forward.6} parent=23 // pred_check
        %p4179 = pneg %p111
      $region34: #{custom_clip_forward.6} parent=23 // pred_check_branch
        %4181 = sbr.rel (%p4179) target = $region36
      $region35: #{custom_clip_forward.6} parent=23 // pred_region
        _
      $region36: #{custom_clip_forward.6} parent=23 // pred_fallthru
        _
    $region24: #{custom_clip_forward.6} parent=5 // pred_fallthru
      _
    %p4182 = scmp.le.s32.totalorder 2, %s10
    // Predicated region
    $region37: #{custom_clip_forward.6} parent=5 // pred_check
      %p4183 = pneg %p4182
    $region38: #{custom_clip_forward.6} parent=5 // pred_check_branch
      %4185 = sbr.rel (%p4183) target = $region40
    $region39: #{custom_clip_forward.6} parent=5 // pred_region
      %s4186 = ssub.s32 %s10, 2
      // Predicated region
      $region41: #{custom_clip_forward.6} parent=39 // pred_check
        %p4187 = pneg %p65
      $region42: #{custom_clip_forward.6} parent=39 // pred_check_branch
        %4189 = sbr.rel (%p4187) target = $region44
      $region43: #{custom_clip_forward.6} parent=39 // pred_region
        %p4190 = scmp.lt.s32.totalorder %s16, 3
        %s4191 = scalar_select %p4190, %s16, 3
        %s4192 = scalar_lea.vmem %s1, %s4191
      $region44: #{custom_clip_forward.6} parent=39 // pred_fallthru
        _
      // Predicated region
      $region45: #{custom_clip_forward.6} parent=39 // pred_check
        %p4193 = pneg %p91
      $region46: #{custom_clip_forward.6} parent=39 // pred_check_branch
        %4195 = sbr.rel (%p4193) target = $region48
      $region47: #{custom_clip_forward.6} parent=39 // pred_region
        %p4196 = scmp.lt.s32.totalorder %s16, 3
        %s4197 = scalar_select %p4196, %s16, 3
        %s4198 = scalar_lea.vmem %s2, %s4197
      $region48: #{custom_clip_forward.6} parent=39 // pred_fallthru
        _
      // Predicated region
      $region49: #{custom_clip_forward.6} parent=39 // pred_check
        %p4199 = pneg %p117
      $region50: #{custom_clip_forward.6} parent=39 // pred_check_branch
        %4201 = sbr.rel (%p4199) target = $region52
      $region51: #{custom_clip_forward.6} parent=39 // pred_region
        %p4202 = scmp.lt.s32.totalorder %s16, 3
        %s4203 = scalar_select %p4202, %s16, 3
        %s4204 = smul.addr %s4203, 16
        %s4205 = smul.addr %s4204, 8
        %s4206 = scalar_lea.vmem %s3, %s4205
      $region52: #{custom_clip_forward.6} parent=39 // pred_fallthru
        _
    $region40: #{custom_clip_forward.6} parent=5 // pred_fallthru
      _
  $region6: #{custom_clip_forward.6} parent=0 // loop_footer
    %s14 = sadd.s32 1, %s10
  $region7: #{custom_clip_forward.6} parent=0 // loop_footer_branch
    %9 = sbr.rel target = $region3
  $region8: #{custom_clip_forward.6} parent=0 // loop_exit
    _

</llo_original>
